<compile_context>
chip_gen: v7x
topology: tpu7x:2x2x1
jax: 0.10.0
libtpu: 0.0.40
codegen_flags: <defaults>
</compile_context>

<pallas_src>
import functools

import jax
import jax.numpy as jnp
from jax.experimental import pallas as pl
from jax.experimental.pallas import tpu as pltpu


def _round_up(x, m):
    return (x + m - 1) // m * m


def _tpu_vmem_capacity():
    try:
        return int(pltpu.get_tpu_info().vmem_capacity_bytes)
    except Exception:
        return 64 * 1024 * 1024  # conservative (v7x-sized) default


_VMEM_CAP = _tpu_vmem_capacity()
_BIG_VMEM = _VMEM_CAP >= (96 << 20)     # v5e/v6e: 128 MiB, v7x: 64 MiB
_BM_CAP = 1024 if _BIG_VMEM else 512
_VMEM_LIMIT = (64 << 20) if _BIG_VMEM else (32 << 20)


def _pick_bm(m):
    return min(_BM_CAP, _round_up(m, 8))


# ---------------------------------------------------------------------------
# Pallas kernels
# ---------------------------------------------------------------------------
def _make_matmul_kernel(pre_act: bool, post_act: bool):
    """Matmul with optionally fused (BN-affine + ReLU) on input and/or output.
    Affine math stays in f32; MXU operands are bf16; accumulation is f32."""

    def kernel(x_ref, ps_ref, pb_ref, w_ref, qs_ref, qb_ref, o_ref):
        x = x_ref[...]
        if pre_act:
            xf = x.astype(jnp.float32)
            xf = jnp.maximum(xf * ps_ref[...] + pb_ref[...], 0.0)
            x = xf.astype(x_ref.dtype)
        y = jnp.dot(x, w_ref[...], preferred_element_type=jnp.float32)
        if post_act:
            y = jnp.maximum(y * qs_ref[...] + qb_ref[...], 0.0)
        o_ref[...] = y.astype(o_ref.dtype)

    return kernel


def fused_matmul(x, w, pre=None, post=None, out_dtype=jnp.bfloat16):
    """y = [relu(x*ps+pb)] @ w, then optionally relu(y*qs+qb).  x:[M,K], w:[K,N]."""
    M, K = x.shape
    Kw, N = w.shape
    assert K == Kw
    pre_act = pre is not None
    post_act = post is not None
    ps, pb = pre if pre_act else (jnp.ones((K,), jnp.float32), jnp.zeros((K,), jnp.float32))
    qs, qb = post if post_act else (jnp.ones((N,), jnp.float32), jnp.zeros((N,), jnp.float32))
    ps = ps.reshape(1, K).astype(jnp.float32)
    pb = pb.reshape(1, K).astype(jnp.float32)
    qs = qs.reshape(1, N).astype(jnp.float32)
    qb = qb.reshape(1, N).astype(jnp.float32)

    x = x.astype(jnp.bfloat16)
    w = w.astype(jnp.bfloat16)

    bm = _pick_bm(M)
    out = pl.pallas_call(
        _make_matmul_kernel(pre_act, post_act),
        out_shape=jax.ShapeDtypeStruct((M, N), out_dtype),
        grid=(pl.cdiv(M, bm),),
        in_specs=[
            pl.BlockSpec((bm, K), lambda i: (i, 0)),
            pl.BlockSpec((1, K), lambda i: (0, 0)),
            pl.BlockSpec((1, K), lambda i: (0, 0)),
            pl.BlockSpec((K, N), lambda i: (0, 0)),
            pl.BlockSpec((1, N), lambda i: (0, 0)),
            pl.BlockSpec((1, N), lambda i: (0, 0)),
        ],
        out_specs=pl.BlockSpec((bm, N), lambda i: (i, 0)),
        compiler_params=pltpu.CompilerParams(
            dimension_semantics=("parallel",), vmem_limit_bytes=_VMEM_LIMIT),
    )(x, ps, pb, w, qs, qb)
    return out


def _make_conv3_kernel(Wp: int, Lacc: int):
    """Direct 3x3x3 conv (stride 1, zero pad 1) over one padded depth slab.

    Grid = (B, Do, kd).  x_ref is the flattened padded HW slab [Hp*Wp, Cin] at
    padded depth d+kd; w_ref is the 9 (kh,kw) taps for this kd, [9, Cin, Cout].
    Output rows live at h*Wp + w inside the f32 accumulator ("pitched" layout);
    the seam columns are sliced off in the JAX wrapper."""

    def kernel(x_ref, w_ref, o_ref, acc_ref):
        kd = pl.program_id(2)

        @pl.when(kd == 0)
        def _():
            acc_ref[...] = jnp.zeros_like(acc_ref)

        acc = acc_ref[...]
        for kh in range(3):
            for kw in range(3):
                off = kh * Wp + kw
                xs = x_ref[pl.ds(off, Lacc), :]                      # [Lacc, Cin] bf16
                acc = acc + jnp.dot(xs, w_ref[kh * 3 + kw],
                                    preferred_element_type=jnp.float32)
        acc_ref[...] = acc

        @pl.when(kd == pl.num_programs(2) - 1)
        def _():
            o_ref[...] = acc.astype(o_ref.dtype)

    return kernel


def conv3d_3x3x3(x, w):
    """3x3x3 conv, stride 1, zero padding 1.  x: [B,D,H,W,Cin] bf16,
    w: [3, 9, Cin, Cout] bf16 (kd, kh*3+kw, Cin, Cout).  Returns [B,D,H,W,Cout]."""
    B, D, H, W, C = x.shape
    Cout = w.shape[-1]
    Wp = W + 2
    Hp = H + 3              # pad H by (1, 2): extra bottom row keeps overhang slices in-bounds
    Dp = D + 2
    xp = jnp.pad(x.astype(jnp.bfloat16),
                 ((0, 0), (1, 1), (1, 2), (1, 1), (0, 0))).reshape(B, Dp, Hp * Wp, C)
    Lacc = H * Wp

    out = pl.pallas_call(
        _make_conv3_kernel(Wp, Lacc),
        out_shape=jax.ShapeDtypeStruct((B, D, Lacc, Cout), jnp.bfloat16),
        grid=(B, D, 3),
        in_specs=[
            pl.BlockSpec((None, None, Hp * Wp, C), lambda b, d, kd: (b, d + kd, 0, 0)),
            pl.BlockSpec((None, 9, C, Cout), lambda b, d, kd: (kd, 0, 0, 0)),
        ],
        out_specs=pl.BlockSpec((None, None, Lacc, Cout), lambda b, d, kd: (b, d, 0, 0)),
        scratch_shapes=[pltpu.VMEM((Lacc, Cout), jnp.float32)],
        compiler_params=pltpu.CompilerParams(
            dimension_semantics=("parallel", "parallel", "arbitrary"),
            vmem_limit_bytes=_VMEM_LIMIT),
    )(xp, w.astype(jnp.bfloat16))

    # drop the 2 seam columns per output row (pitched -> dense layout)
    return out.reshape(B, D, H, Wp, Cout)[:, :, :, :W, :]


def _make_pool_kernel(op: str):
    def kernel(x_ref, o_ref):
        x = x_ref[...].astype(jnp.float32)
        if op == "max":
            r = jnp.max(x, axis=0)
        else:
            r = jnp.mean(x, axis=0)
        o_ref[...] = r.astype(o_ref.dtype)

    return kernel


def fused_pool(windows, op, out_dtype=jnp.bfloat16):
    """windows: [KW, M, C]; reduce (max/mean) over the leading window axis."""
    KW, M, C = windows.shape
    bm = _pick_bm(M)
    out = pl.pallas_call(
        _make_pool_kernel(op),
        out_shape=jax.ShapeDtypeStruct((M, C), out_dtype),
        grid=(pl.cdiv(M, bm),),
        in_specs=[pl.BlockSpec((KW, bm, C), lambda i: (0, i, 0))],
        out_specs=pl.BlockSpec((bm, C), lambda i: (i, 0)),
        compiler_params=pltpu.CompilerParams(
            dimension_semantics=("parallel",), vmem_limit_bytes=_VMEM_LIMIT),
    )(windows)
    return out


def _gap_affine_kernel(x_ref, s_ref, b_ref, o_ref):
    # adaptive_avg_pool3d(1) with the (linear) norm5 affine fused after the mean.
    x = x_ref[...].astype(jnp.float32)          # [B, V, C]
    m = jnp.mean(x, axis=1)                     # [B, C]
    o_ref[...] = m * s_ref[...] + b_ref[...]


def global_avgpool_bn(x, affine):
    """x: [B,D,H,W,C] bf16 -> [B, C] f32 (norm5 then global average pool)."""
    B, D, H, W, C = x.shape
    V = D * H * W
    s, b = affine
    s = s.reshape(1, C).astype(jnp.float32)
    b = b.reshape(1, C).astype(jnp.float32)
    return pl.pallas_call(
        _gap_affine_kernel,
        out_shape=jax.ShapeDtypeStruct((B, C), jnp.float32),
        grid=(1,),
        in_specs=[
            pl.BlockSpec((B, V, C), lambda i: (0, 0, 0)),
            pl.BlockSpec((1, C), lambda i: (0, 0)),
            pl.BlockSpec((1, C), lambda i: (0, 0)),
        ],
        out_specs=pl.BlockSpec((B, C), lambda i: (0, 0)),
        compiler_params=pltpu.CompilerParams(vmem_limit_bytes=_VMEM_LIMIT),
    )(x.reshape(B, V, C), s, b)


def _head_kernel(x_ref, w_ref, b_ref, o_ref):
    # ReLU -> L2 normalize -> Linear (proj head) -> L2 normalize (pretraining).
    x = jnp.maximum(x_ref[...], 0.0)
    inv = jax.lax.rsqrt(jnp.maximum(jnp.sum(x * x, axis=1, keepdims=True), 1e-24))
    x = x * inv
    y = jnp.dot(x, w_ref[...], preferred_element_type=jnp.float32) + b_ref[...]
    inv2 = jax.lax.rsqrt(jnp.maximum(jnp.sum(y * y, axis=1, keepdims=True), 1e-24))
    o_ref[...] = y * inv2


def head_call(x, w, b):
    """x: [B, C] pooled features (f32), w: [C, P], b: [P]."""
    B, C = x.shape
    P = w.shape[1]
    return pl.pallas_call(
        _head_kernel,
        out_shape=jax.ShapeDtypeStruct((B, P), jnp.float32),
        grid=(1,),
        in_specs=[
            pl.BlockSpec((B, C), lambda i: (0, 0)),
            pl.BlockSpec((C, P), lambda i: (0, 0)),
            pl.BlockSpec((1, P), lambda i: (0, 0)),
        ],
        out_specs=pl.BlockSpec((B, P), lambda i: (0, 0)),
        compiler_params=pltpu.CompilerParams(vmem_limit_bytes=_VMEM_LIMIT),
    )(x.astype(jnp.float32), w.astype(jnp.float32), b.reshape(1, P).astype(jnp.float32))


# ---------------------------------------------------------------------------
# JAX glue: im2col for conv0 and separable pooling window extraction
# ---------------------------------------------------------------------------
def im2col_3d(x, ksize, stride, pad):
    """x: [B,D,H,W,C] -> ([B,Do,Ho,Wo, kd*kh*kw*C] offset-major/channel-minor, out-spatial)."""
    B, D, H, W, C = x.shape
    kd, kh, kw = ksize
    sd, sh, sw = stride
    pd, ph, pw = pad
    xp = jnp.pad(x, ((0, 0), (pd, pd), (ph, ph), (pw, pw), (0, 0)))
    Do = (D + 2 * pd - kd) // sd + 1
    Ho = (H + 2 * ph - kh) // sh + 1
    Wo = (W + 2 * pw - kw) // sw + 1
    cols = []
    for ki in range(kd):
        for kj in range(kh):
            for kk in range(kw):
                cols.append(
                    xp[:, ki:ki + sd * (Do - 1) + 1:sd,
                          kj:kj + sh * (Ho - 1) + 1:sh,
                          kk:kk + sw * (Wo - 1) + 1:sw, :])
    return jnp.concatenate(cols, axis=-1), (Do, Ho, Wo)


def pool3d_separable(x, op, ksize, stride, pad):
    """Separable window pooling over [B,D,H,W,C] (W, then H, then D passes).
    Exact for max; exact for mean with the equal per-axis kernel sizes used here.
    NOTE: max passes zero-pad — correct here because inputs are post-ReLU (>= 0)."""

    def pool_axis(t, axis, k, s, p):
        if p:
            padw = [(0, 0)] * 5
            padw[axis] = (p, p)
            t = jnp.pad(t, padw)
        n = t.shape[axis]
        L = (n - k) // s + 1
        slices = []
        for ki in range(k):
            idx = [slice(None)] * 5
            idx[axis] = slice(ki, ki + s * (L - 1) + 1, s)
            slices.append(t[tuple(idx)])
        win = jnp.stack(slices, axis=0)                       # [k, B, ..., L, ..., C]
        shp = win.shape
        M = 1
        for d_ in shp[1:-1]:
            M *= d_
        red = fused_pool(win.reshape(k, M, shp[-1]), op)
        return red.reshape(shp[1:-1] + (shp[-1],))

    kd, kh, kw = ksize
    sd, sh, sw = stride
    pd, ph, pw = pad
    x = pool_axis(x, 3, kw, sw, pw)
    x = pool_axis(x, 2, kh, sh, ph)
    x = pool_axis(x, 1, kd, sd, pd)
    return x


# ---------------------------------------------------------------------------
# Parameter initialization (deterministic, mirrors the module's __init__)
# ---------------------------------------------------------------------------
def _kaiming_conv(key, cout, cin, ksize):
    # nn.init.kaiming_normal_(mode='fan_out', nonlinearity='relu')
    fan_out = cout * ksize[0] * ksize[1] * ksize[2]
    std = (2.0 / fan_out) ** 0.5
    return jax.random.normal(key, (cout, cin) + tuple(ksize), jnp.float32) * std


def _bn_params(c, eps=1e-5):
    # BatchNorm3d eval: weight=1, bias=0, running_mean=0, running_var=1.
    gamma = jnp.ones((c,), jnp.float32)
    beta = jnp.zeros((c,), jnp.float32)
    mean = jnp.zeros((c,), jnp.float32)
    var = jnp.ones((c,), jnp.float32)
    s = gamma / jnp.sqrt(var + eps)
    return s, beta - mean * s


def _conv_to_mat(w):
    # [Cout, Cin, kd, kh, kw] -> im2col matrix [kd*kh*kw*Cin, Cout]
    cout = w.shape[0]
    return jnp.transpose(w, (2, 3, 4, 1, 0)).reshape(-1, cout)


def _conv2_to_tensor(w):
    # [Cout, Cin, 3,3,3] -> [3 (kd), 9 (kh*3+kw), Cin, Cout] for the direct-conv kernel
    cout, cin = w.shape[0], w.shape[1]
    return jnp.transpose(w, (2, 3, 4, 1, 0)).reshape(3, 9, cin, cout)


def init_params(key, cfg):
    gr, bn_size, f0, kt = (cfg["growth_rate"], cfg["bn_size"],
                           cfg["num_init_features"], cfg["conv1_t_size"])
    keys = iter(jax.random.split(key, 4096))
    nk = lambda: next(keys)

    extractors = []
    num_features = f0
    for _ in range(cfg["n_modalities"]):
        ext = {}
        ext["conv0_w"] = _conv_to_mat(
            _kaiming_conv(nk(), f0, cfg["n_input_channels"], (kt, 7, 7))).astype(jnp.bfloat16)
        ext["norm0"] = _bn_params(f0)
        nf = f0
        stages = []
        nblocks = len(cfg["block_config"])
        for bi, nlayers in enumerate(cfg["block_config"]):
            layers = []
            for li in range(nlayers):
                cin = nf + li * gr
                c1 = bn_size * gr
                layers.append({
                    "n1": _bn_params(cin),
                    "conv1_w": _kaiming_conv(nk(), c1, cin, (1, 1, 1))
                               .reshape(c1, cin).T.astype(jnp.bfloat16),
                    "n2": _bn_params(c1),
                    "conv2_w": _conv2_to_tensor(
                        _kaiming_conv(nk(), gr, c1, (3, 3, 3))).astype(jnp.bfloat16),
                })
            nf = nf + nlayers * gr
            stage = {"layers": layers, "transition": None}
            if bi != nblocks - 1:
                stage["transition"] = {
                    "n": _bn_params(nf),
                    "conv_w": _kaiming_conv(nk(), nf // 2, nf, (1, 1, 1))
                              .reshape(nf // 2, nf).T.astype(jnp.bfloat16),
                }
                nf = nf // 2
            stages.append(stage)
        ext["stages"] = stages
        ext["norm5"] = _bn_params(nf)
        extractors.append(ext)
        num_features = nf

    heads = []
    for _ in range(cfg["n_modalities"]):
        wh = jax.random.normal(nk(), (cfg["dim_proj"], num_features), jnp.float32) \
             * (1.0 / num_features ** 0.5)
        heads.append({"w": wh.T, "b": jnp.zeros((cfg["dim_proj"],), jnp.float32)})  # bias=0
    return {"extractors": extractors, "heads": heads}, num_features


# ---------------------------------------------------------------------------
# Forward pass (DenseNetMM, pretraining mode)
# ---------------------------------------------------------------------------
def feature_extractor_forward(x_ncdhw, ext, cfg):
    x = jnp.transpose(x_ncdhw, (0, 2, 3, 4, 1)).astype(jnp.bfloat16)  # NCDHW -> NDHWC
    B = x.shape[0]
    kt, st = cfg["conv1_t_size"], cfg["conv1_t_stride"]

    # conv0 (kt x 7 x 7, stride 2) as im2col matmul with norm0+relu0 fused on output
    cols, (D, H, W) = im2col_3d(x, (kt, 7, 7), (st, 2, 2), (kt // 2, 3, 3))
    f0 = ext["conv0_w"].shape[1]
    y = fused_matmul(cols.reshape(B * D * H * W, -1), ext["conv0_w"], post=ext["norm0"])
    x = y.reshape(B, D, H, W, f0)

    # pool0: MaxPool3d(kernel=3, stride=2, padding=1) — separable, zero-pad OK (post-ReLU)
    x = pool3d_separable(x, "max", (3, 3, 3), (2, 2, 2), (1, 1, 1))

    for stage in ext["stages"]:
        feats = x
        for lp in stage["layers"]:
            Bc, D, H, W, C = feats.shape
            # norm1+relu1+conv1(1x1) with norm2+relu2 fused on the output
            bott = fused_matmul(feats.reshape(-1, C), lp["conv1_w"],
                                pre=lp["n1"], post=lp["n2"])
            c1 = lp["conv1_w"].shape[1]
            bott = bott.reshape(Bc, D, H, W, c1)
            # conv2: direct 3x3x3, stride 1, zero padding 1 (padding after relu2, as in PyTorch)
            new = conv3d_3x3x3(bott, lp["conv2_w"])
            feats = jnp.concatenate([feats, new], axis=-1)  # dense connectivity
        x = feats
        if stage["transition"] is not None:
            tp = stage["transition"]
            Bc, D, H, W, C = x.shape
            co = tp["conv_w"].shape[1]
            y = fused_matmul(x.reshape(-1, C), tp["conv_w"], pre=tp["n"])
            y = y.reshape(Bc, D, H, W, co)
            # AvgPool3d(kernel=2, stride=2) — separable (exact: equal window sizes)
            x = pool3d_separable(y, "mean", (2, 2, 2), (2, 2, 2), (0, 0, 0))

    # norm5 fused into adaptive_avg_pool3d(output_size=(1,1,1))
    return global_avgpool_bn(x, ext["norm5"])   # [B, C] f32


def densenet_mm_forward(images, params, cfg):
    """images: [B, n_modalities, C_in, D, H, W].  Returns (pretraining mode) a list
    of L2-normalized projections [B, dim_proj], one per modality."""
    results = []
    for i in range(images.shape[1]):
        pooled = feature_extractor_forward(images[:, i], params["extractors"][i], cfg)
        h = params["heads"][i]
        results.append(head_call(pooled, h["w"], h["b"]))
    return results


if __name__ == "__main__":
    cfg = dict(
        n_modalities=2,        # len(args.data_type) > 1 -> one feature extractor per modality
        n_input_channels=1,
        conv1_t_size=7,
        conv1_t_stride=2,
        growth_rate=8,         # scaled down from the module default 32 (small runnable demo)
        block_config=(2, 2),   # scaled down from the module default (6, 12, 24, 16)
        num_init_features=16,  # scaled down from 64
        bn_size=2,             # scaled down from 4
        dim_proj=3,
        mode="pretraining",
    )
    key = jax.random.PRNGKey(0)
    kp, kx = jax.random.split(key)
    params, num_features = init_params(kp, cfg)

    B, S = 2, 16
    images = jax.random.normal(
        kx, (B, cfg["n_modalities"], cfg["n_input_channels"], S, S, S), jnp.float32)

    fwd = jax.jit(functools.partial(densenet_mm_forward, cfg=cfg))
    outs = fwd(images, params)
    outs = jax.block_until_ready(outs)

    assert len(outs) == cfg["n_modalities"]
    for o in outs:
        assert o.shape == (B, cfg["dim_proj"])
        assert bool(jnp.all(jnp.isfinite(o)))
        # each projection is L2-normalized along dim=1
        assert bool(jnp.all(jnp.abs(jnp.sum(o * o, axis=1) - 1.0) < 1e-3))
    print("KERNEL_OK")
</pallas_src>

<mosaic_0001>
module attributes {stable_mosaic.version = 11 : i64} {
  func.func @kernel(%arg0: i32, %arg1: memref<512x343xbf16, #tpu.memory_space<vmem>>, %arg2: memref<1x343xf32, #tpu.memory_space<vmem>>, %arg3: memref<1x343xf32, #tpu.memory_space<vmem>>, %arg4: memref<343x16xbf16, #tpu.memory_space<vmem>>, %arg5: memref<1x16xf32, #tpu.memory_space<vmem>>, %arg6: memref<1x16xf32, #tpu.memory_space<vmem>>, %arg7: memref<512x16xbf16, #tpu.memory_space<vmem>>) attributes {dimension_semantics = [#tpu.dimension_semantics<parallel>], iteration_bounds = array<i64: 2>, scalar_prefetch = 0 : i64, scratch_operands = 0 : i64, tpu.core_type = #tpu.core_type<tc>, window_params = [{transform_indices = @transform_0, window_bounds = array<i64: 512, 343>}, {pipeline_mode = #tpu.pipeline_mode<synchronous>, transform_indices = @transform_1, window_bounds = array<i64: 1, 343>}, {pipeline_mode = #tpu.pipeline_mode<synchronous>, transform_indices = @transform_2, window_bounds = array<i64: 1, 343>}, {pipeline_mode = #tpu.pipeline_mode<synchronous>, transform_indices = @transform_3, window_bounds = array<i64: 343, 16>}, {pipeline_mode = #tpu.pipeline_mode<synchronous>, transform_indices = @transform_4, window_bounds = array<i64: 1, 16>}, {pipeline_mode = #tpu.pipeline_mode<synchronous>, transform_indices = @transform_5, window_bounds = array<i64: 1, 16>}, {transform_indices = @transform_6, window_bounds = array<i64: 512, 16>}]} {
    %c0 = arith.constant 0 : index
    %c0_0 = arith.constant 0 : index
    %0 = vector.load %arg1[%c0, %c0_0] : memref<512x343xbf16, #tpu.memory_space<vmem>>, vector<512x343xbf16>
    %c0_1 = arith.constant 0 : index
    %c0_2 = arith.constant 0 : index
    %1 = vector.load %arg4[%c0_1, %c0_2] : memref<343x16xbf16, #tpu.memory_space<vmem>>, vector<343x16xbf16>
    %cst = arith.constant dense<0.000000e+00> : vector<512x16xf32>
    %2 = tpu.matmul %0, %1, %cst {dimension_numbers = #tpu.dot_dimension_numbers<[1], [0], [0], [1], [0, 0, 1, 1], [], []>} : vector<512x343xbf16>, vector<343x16xbf16>, vector<512x16xf32> -> vector<512x16xf32>
    %c0_3 = arith.constant 0 : index
    %c0_4 = arith.constant 0 : index
    %3 = vector.load %arg5[%c0_3, %c0_4] : memref<1x16xf32, #tpu.memory_space<vmem>>, vector<1x16xf32>
    %4 = vector.broadcast %3 : vector<1x16xf32> to vector<512x16xf32>
    %5 = arith.mulf %2, %4 : vector<512x16xf32>
    %c0_5 = arith.constant 0 : index
    %c0_6 = arith.constant 0 : index
    %6 = vector.load %arg6[%c0_5, %c0_6] : memref<1x16xf32, #tpu.memory_space<vmem>>, vector<1x16xf32>
    %7 = vector.broadcast %6 : vector<1x16xf32> to vector<512x16xf32>
    %8 = arith.addf %5, %7 : vector<512x16xf32>
    %cst_7 = arith.constant 0.000000e+00 : f32
    %9 = vector.broadcast %cst_7 : f32 to vector<512x16xf32>
    %10 = arith.maximumf %8, %9 : vector<512x16xf32>
    %11 = arith.truncf %10 : vector<512x16xf32> to vector<512x16xbf16>
    %c0_8 = arith.constant 0 : index
    %c0_9 = arith.constant 0 : index
    %12 = vector.load %arg7[%c0_8, %c0_9] : memref<512x16xbf16, #tpu.memory_space<vmem>>, vector<512x16xbf16>
    tpu.vector_store %arg7[%c0_8, %c0_9], %11 {strides = array<i32>} : memref<512x16xbf16, #tpu.memory_space<vmem>>, vector<512x16xbf16>,
    return
  }
  func.func @transform_0(%arg0: i32) -> (i32, i32) {
    %c0_i32 = arith.constant 0 : i32
    %c0_i32_0 = arith.constant 0 : i32
    return %arg0, %c0_i32 : i32, i32
  }
  func.func @transform_1(%arg0: i32) -> (i32, i32) {
    %c0_i32 = arith.constant 0 : i32
    %c0_i32_0 = arith.constant 0 : i32
    %c0_i32_1 = arith.constant 0 : i32
    return %c0_i32, %c0_i32_0 : i32, i32
  }
  func.func @transform_2(%arg0: i32) -> (i32, i32) {
    %c0_i32 = arith.constant 0 : i32
    %c0_i32_0 = arith.constant 0 : i32
    %c0_i32_1 = arith.constant 0 : i32
    return %c0_i32, %c0_i32_0 : i32, i32
  }
  func.func @transform_3(%arg0: i32) -> (i32, i32) {
    %c0_i32 = arith.constant 0 : i32
    %c0_i32_0 = arith.constant 0 : i32
    %c0_i32_1 = arith.constant 0 : i32
    return %c0_i32, %c0_i32_0 : i32, i32
  }
  func.func @transform_4(%arg0: i32) -> (i32, i32) {
    %c0_i32 = arith.constant 0 : i32
    %c0_i32_0 = arith.constant 0 : i32
    %c0_i32_1 = arith.constant 0 : i32
    return %c0_i32, %c0_i32_0 : i32, i32
  }
  func.func @transform_5(%arg0: i32) -> (i32, i32) {
    %c0_i32 = arith.constant 0 : i32
    %c0_i32_0 = arith.constant 0 : i32
    %c0_i32_1 = arith.constant 0 : i32
    return %c0_i32, %c0_i32_0 : i32, i32
  }
  func.func @transform_6(%arg0: i32) -> (i32, i32) {
    %c0_i32 = arith.constant 0 : i32
    %c0_i32_0 = arith.constant 0 : i32
    return %arg0, %c0_i32 : i32, i32
  }
}

module attributes {stable_mosaic.version = 11 : i64} {
  func.func @kernel(%arg0: i32, %arg1: memref<3x512x16xbf16, #tpu.memory_space<vmem>>, %arg2: memref<512x16xbf16, #tpu.memory_space<vmem>>) attributes {dimension_semantics = [#tpu.dimension_semantics<parallel>], iteration_bounds = array<i64: 1>, scalar_prefetch = 0 : i64, scratch_operands = 0 : i64, tpu.core_type = #tpu.core_type<tc>, window_params = [{transform_indices = @transform_0, window_bounds = array<i64: 3, 512, 16>}, {transform_indices = @transform_1, window_bounds = array<i64: 512, 16>}]} {
    %c0 = arith.constant 0 : index
    %c0_0 = arith.constant 0 : index
    %c0_1 = arith.constant 0 : index
    %0 = vector.load %arg1[%c0, %c0_0, %c0_1] : memref<3x512x16xbf16, #tpu.memory_space<vmem>>, vector<3x512x16xbf16>
    %1 = arith.extf %0 : vector<3x512x16xbf16> to vector<3x512x16xf32>
    %cst = arith.constant dense<0xFF800000> : vector<512x16xf32>
    %2 = vector.multi_reduction <maximumf>, %1, %cst [0] : vector<3x512x16xf32> to vector<512x16xf32>
    %3 = arith.truncf %2 : vector<512x16xf32> to vector<512x16xbf16>
    %c0_2 = arith.constant 0 : index
    %c0_3 = arith.constant 0 : index
    %4 = vector.load %arg2[%c0_2, %c0_3] : memref<512x16xbf16, #tpu.memory_space<vmem>>, vector<512x16xbf16>
    tpu.vector_store %arg2[%c0_2, %c0_3], %3 {strides = array<i32>} : memref<512x16xbf16, #tpu.memory_space<vmem>>, vector<512x16xbf16>,
    return
  }
  func.func @transform_0(%arg0: i32) -> (i32, i32, i32) {
    %c0_i32 = arith.constant 0 : i32
    %c0_i32_0 = arith.constant 0 : i32
    %c0_i32_1 = arith.constant 0 : i32
    return %c0_i32, %arg0, %c0_i32_0 : i32, i32, i32
  }
  func.func @transform_1(%arg0: i32) -> (i32, i32) {
    %c0_i32 = arith.constant 0 : i32
    %c0_i32_0 = arith.constant 0 : i32
    return %arg0, %c0_i32 : i32, i32
  }
}

module attributes {stable_mosaic.version = 11 : i64} {
  func.func @kernel(%arg0: i32, %arg1: memref<3x256x16xbf16, #tpu.memory_space<vmem>>, %arg2: memref<256x16xbf16, #tpu.memory_space<vmem>>) attributes {dimension_semantics = [#tpu.dimension_semantics<parallel>], iteration_bounds = array<i64: 1>, scalar_prefetch = 0 : i64, scratch_operands = 0 : i64, tpu.core_type = #tpu.core_type<tc>, window_params = [{transform_indices = @transform_0, window_bounds = array<i64: 3, 256, 16>}, {transform_indices = @transform_1, window_bounds = array<i64: 256, 16>}]} {
    %c0 = arith.constant 0 : index
    %c0_0 = arith.constant 0 : index
    %c0_1 = arith.constant 0 : index
    %0 = vector.load %arg1[%c0, %c0_0, %c0_1] : memref<3x256x16xbf16, #tpu.memory_space<vmem>>, vector<3x256x16xbf16>
    %1 = arith.extf %0 : vector<3x256x16xbf16> to vector<3x256x16xf32>
    %cst = arith.constant dense<0xFF800000> : vector<256x16xf32>
    %2 = vector.multi_reduction <maximumf>, %1, %cst [0] : vector<3x256x16xf32> to vector<256x16xf32>
    %3 = arith.truncf %2 : vector<256x16xf32> to vector<256x16xbf16>
    %c0_2 = arith.constant 0 : index
    %c0_3 = arith.constant 0 : index
    %4 = vector.load %arg2[%c0_2, %c0_3] : memref<256x16xbf16, #tpu.memory_space<vmem>>, vector<256x16xbf16>
    tpu.vector_store %arg2[%c0_2, %c0_3], %3 {strides = array<i32>} : memref<256x16xbf16, #tpu.memory_space<vmem>>, vector<256x16xbf16>,
    return
  }
  func.func @transform_0(%arg0: i32) -> (i32, i32, i32) {
    %c0_i32 = arith.constant 0 : i32
    %c0_i32_0 = arith.constant 0 : i32
    %c0_i32_1 = arith.constant 0 : i32
    return %c0_i32, %arg0, %c0_i32_0 : i32, i32, i32
  }
  func.func @transform_1(%arg0: i32) -> (i32, i32) {
    %c0_i32 = arith.constant 0 : i32
    %c0_i32_0 = arith.constant 0 : i32
    return %arg0, %c0_i32 : i32, i32
  }
}

module attributes {stable_mosaic.version = 11 : i64} {
  func.func @kernel(%arg0: i32, %arg1: memref<3x128x16xbf16, #tpu.memory_space<vmem>>, %arg2: memref<128x16xbf16, #tpu.memory_space<vmem>>) attributes {dimension_semantics = [#tpu.dimension_semantics<parallel>], iteration_bounds = array<i64: 1>, scalar_prefetch = 0 : i64, scratch_operands = 0 : i64, tpu.core_type = #tpu.core_type<tc>, window_params = [{transform_indices = @transform_0, window_bounds = array<i64: 3, 128, 16>}, {transform_indices = @transform_1, window_bounds = array<i64: 128, 16>}]} {
    %c0 = arith.constant 0 : index
    %c0_0 = arith.constant 0 : index
    %c0_1 = arith.constant 0 : index
    %0 = vector.load %arg1[%c0, %c0_0, %c0_1] : memref<3x128x16xbf16, #tpu.memory_space<vmem>>, vector<3x128x16xbf16>
    %1 = arith.extf %0 : vector<3x128x16xbf16> to vector<3x128x16xf32>
    %cst = arith.constant dense<0xFF800000> : vector<128x16xf32>
    %2 = vector.multi_reduction <maximumf>, %1, %cst [0] : vector<3x128x16xf32> to vector<128x16xf32>
    %3 = arith.truncf %2 : vector<128x16xf32> to vector<128x16xbf16>
    %c0_2 = arith.constant 0 : index
    %c0_3 = arith.constant 0 : index
    %4 = vector.load %arg2[%c0_2, %c0_3] : memref<128x16xbf16, #tpu.memory_space<vmem>>, vector<128x16xbf16>
    tpu.vector_store %arg2[%c0_2, %c0_3], %3 {strides = array<i32>} : memref<128x16xbf16, #tpu.memory_space<vmem>>, vector<128x16xbf16>,
    return
  }
  func.func @transform_0(%arg0: i32) -> (i32, i32, i32) {
    %c0_i32 = arith.constant 0 : i32
    %c0_i32_0 = arith.constant 0 : i32
    %c0_i32_1 = arith.constant 0 : i32
    return %c0_i32, %arg0, %c0_i32_0 : i32, i32, i32
  }
  func.func @transform_1(%arg0: i32) -> (i32, i32) {
    %c0_i32 = arith.constant 0 : i32
    %c0_i32_0 = arith.constant 0 : i32
    return %arg0, %c0_i32 : i32, i32
  }
}

module attributes {stable_mosaic.version = 11 : i64} {
  func.func @kernel(%arg0: i32, %arg1: memref<128x16xbf16, #tpu.memory_space<vmem>>, %arg2: memref<1x16xf32, #tpu.memory_space<vmem>>, %arg3: memref<1x16xf32, #tpu.memory_space<vmem>>, %arg4: memref<16x16xbf16, #tpu.memory_space<vmem>>, %arg5: memref<1x16xf32, #tpu.memory_space<vmem>>, %arg6: memref<1x16xf32, #tpu.memory_space<vmem>>, %arg7: memref<128x16xbf16, #tpu.memory_space<vmem>>) attributes {dimension_semantics = [#tpu.dimension_semantics<parallel>], iteration_bounds = array<i64: 1>, scalar_prefetch = 0 : i64, scratch_operands = 0 : i64, tpu.core_type = #tpu.core_type<tc>, window_params = [{transform_indices = @transform_0, window_bounds = array<i64: 128, 16>}, {pipeline_mode = #tpu.pipeline_mode<synchronous>, transform_indices = @transform_1, window_bounds = array<i64: 1, 16>}, {pipeline_mode = #tpu.pipeline_mode<synchronous>, transform_indices = @transform_2, window_bounds = array<i64: 1, 16>}, {pipeline_mode = #tpu.pipeline_mode<synchronous>, transform_indices = @transform_3, window_bounds = array<i64: 16, 16>}, {pipeline_mode = #tpu.pipeline_mode<synchronous>, transform_indices = @transform_4, window_bounds = array<i64: 1, 16>}, {pipeline_mode = #tpu.pipeline_mode<synchronous>, transform_indices = @transform_5, window_bounds = array<i64: 1, 16>}, {transform_indices = @transform_6, window_bounds = array<i64: 128, 16>}]} {
    %c0 = arith.constant 0 : index
    %c0_0 = arith.constant 0 : index
    %0 = vector.load %arg1[%c0, %c0_0] : memref<128x16xbf16, #tpu.memory_space<vmem>>, vector<128x16xbf16>
    %1 = arith.extf %0 : vector<128x16xbf16> to vector<128x16xf32>
    %c0_1 = arith.constant 0 : index
    %c0_2 = arith.constant 0 : index
    %2 = vector.load %arg2[%c0_1, %c0_2] : memref<1x16xf32, #tpu.memory_space<vmem>>, vector<1x16xf32>
    %3 = vector.broadcast %2 : vector<1x16xf32> to vector<128x16xf32>
    %4 = arith.mulf %1, %3 : vector<128x16xf32>
    %c0_3 = arith.constant 0 : index
    %c0_4 = arith.constant 0 : index
    %5 = vector.load %arg3[%c0_3, %c0_4] : memref<1x16xf32, #tpu.memory_space<vmem>>, vector<1x16xf32>
    %6 = vector.broadcast %5 : vector<1x16xf32> to vector<128x16xf32>
    %7 = arith.addf %4, %6 : vector<128x16xf32>
    %cst = arith.constant 0.000000e+00 : f32
    %8 = vector.broadcast %cst : f32 to vector<128x16xf32>
    %9 = arith.maximumf %7, %8 : vector<128x16xf32>
    %10 = arith.truncf %9 : vector<128x16xf32> to vector<128x16xbf16>
    %c0_5 = arith.constant 0 : index
    %c0_6 = arith.constant 0 : index
    %11 = vector.load %arg4[%c0_5, %c0_6] : memref<16x16xbf16, #tpu.memory_space<vmem>>, vector<16x16xbf16>
    %cst_7 = arith.constant dense<0.000000e+00> : vector<128x16xf32>
    %12 = tpu.matmul %10, %11, %cst_7 {dimension_numbers = #tpu.dot_dimension_numbers<[1], [0], [0], [1], [0, 0, 1, 1], [], []>} : vector<128x16xbf16>, vector<16x16xbf16>, vector<128x16xf32> -> vector<128x16xf32>
    %c0_8 = arith.constant 0 : index
    %c0_9 = arith.constant 0 : index
    %13 = vector.load %arg5[%c0_8, %c0_9] : memref<1x16xf32, #tpu.memory_space<vmem>>, vector<1x16xf32>
    %14 = vector.broadcast %13 : vector<1x16xf32> to vector<128x16xf32>
    %15 = arith.mulf %12, %14 : vector<128x16xf32>
    %c0_10 = arith.constant 0 : index
    %c0_11 = arith.constant 0 : index
    %16 = vector.load %arg6[%c0_10, %c0_11] : memref<1x16xf32, #tpu.memory_space<vmem>>, vector<1x16xf32>
    %17 = vector.broadcast %16 : vector<1x16xf32> to vector<128x16xf32>
    %18 = arith.addf %15, %17 : vector<128x16xf32>
    %cst_12 = arith.constant 0.000000e+00 : f32
    %19 = vector.broadcast %cst_12 : f32 to vector<128x16xf32>
    %20 = arith.maximumf %18, %19 : vector<128x16xf32>
    %21 = arith.truncf %20 : vector<128x16xf32> to vector<128x16xbf16>
    %c0_13 = arith.constant 0 : index
    %c0_14 = arith.constant 0 : index
    %22 = vector.load %arg7[%c0_13, %c0_14] : memref<128x16xbf16, #tpu.memory_space<vmem>>, vector<128x16xbf16>
    tpu.vector_store %arg7[%c0_13, %c0_14], %21 {strides = array<i32>} : memref<128x16xbf16, #tpu.memory_space<vmem>>, vector<128x16xbf16>,
    return
  }
  func.func @transform_0(%arg0: i32) -> (i32, i32) {
    %c0_i32 = arith.constant 0 : i32
    %c0_i32_0 = arith.constant 0 : i32
    return %arg0, %c0_i32 : i32, i32
  }
  func.func @transform_1(%arg0: i32) -> (i32, i32) {
    %c0_i32 = arith.constant 0 : i32
    %c0_i32_0 = arith.constant 0 : i32
    %c0_i32_1 = arith.constant 0 : i32
    return %c0_i32, %c0_i32_0 : i32, i32
  }
  func.func @transform_2(%arg0: i32) -> (i32, i32) {
    %c0_i32 = arith.constant 0 : i32
    %c0_i32_0 = arith.constant 0 : i32
    %c0_i32_1 = arith.constant 0 : i32
    return %c0_i32, %c0_i32_0 : i32, i32
  }
  func.func @transform_3(%arg0: i32) -> (i32, i32) {
    %c0_i32 = arith.constant 0 : i32
    %c0_i32_0 = arith.constant 0 : i32
    %c0_i32_1 = arith.constant 0 : i32
    return %c0_i32, %c0_i32_0 : i32, i32
  }
  func.func @transform_4(%arg0: i32) -> (i32, i32) {
    %c0_i32 = arith.constant 0 : i32
    %c0_i32_0 = arith.constant 0 : i32
    %c0_i32_1 = arith.constant 0 : i32
    return %c0_i32, %c0_i32_0 : i32, i32
  }
  func.func @transform_5(%arg0: i32) -> (i32, i32) {
    %c0_i32 = arith.constant 0 : i32
    %c0_i32_0 = arith.constant 0 : i32
    %c0_i32_1 = arith.constant 0 : i32
    return %c0_i32, %c0_i32_0 : i32, i32
  }
  func.func @transform_6(%arg0: i32) -> (i32, i32) {
    %c0_i32 = arith.constant 0 : i32
    %c0_i32_0 = arith.constant 0 : i32
    return %arg0, %c0_i32 : i32, i32
  }
}

module attributes {stable_mosaic.version = 11 : i64} {
  func.func @kernel(%arg0: i32, %arg1: i32, %arg2: i32, %arg3: memref<1x1x42x16xbf16, #tpu.memory_space<vmem>>, %arg4: memref<1x9x16x8xbf16, #tpu.memory_space<vmem>>, %arg5: memref<1x1x24x8xbf16, #tpu.memory_space<vmem>>, %arg6: memref<24x8xf32, #tpu.memory_space<vmem>>) attributes {dimension_semantics = [#tpu.dimension_semantics<parallel>, #tpu.dimension_semantics<parallel>, #tpu.dimension_semantics<arbitrary>], iteration_bounds = array<i64: 2, 4, 3>, scalar_prefetch = 0 : i64, scratch_operands = 1 : i64, tpu.core_type = #tpu.core_type<tc>, window_params = [{transform_indices = @transform_0, window_bounds = array<i64: 1, 1, 42, 16>}, {transform_indices = @transform_1, window_bounds = array<i64: 1, 9, 16, 8>}, {transform_indices = @transform_2, window_bounds = array<i64: 1, 1, 24, 8>}]} {
    %c0_i32 = arith.constant 0 : i32
    %0 = arith.cmpi eq, %arg2, %c0_i32 : i32
    %1 = arith.extui %0 : i1 to i32
    %c0_i32_0 = arith.constant 0 : i32
    %2 = arith.cmpi ne, %1, %c0_i32_0 : i32
    scf.if %2 {
      %cst_74 = arith.constant 0.000000e+00 : f32
      %62 = vector.broadcast %cst_74 : f32 to vector<24x8xf32>
      %c0_75 = arith.constant 0 : index
      %c0_76 = arith.constant 0 : index
      %63 = vector.load %arg6[%c0_75, %c0_76] : memref<24x8xf32, #tpu.memory_space<vmem>>, vector<24x8xf32>
      tpu.vector_store %arg6[%c0_75, %c0_76], %62 {strides = array<i32>} : memref<24x8xf32, #tpu.memory_space<vmem>>, vector<24x8xf32>,
    } else {
    }
    %c0 = arith.constant 0 : index
    %c0_1 = arith.constant 0 : index
    %3 = vector.load %arg6[%c0, %c0_1] : memref<24x8xf32, #tpu.memory_space<vmem>>, vector<24x8xf32>
    %c0_2 = arith.constant 0 : index
    %c0_3 = arith.constant 0 : index
    %c0_4 = arith.constant 0 : index
    %c0_5 = arith.constant 0 : index
    %4 = vector.load %arg3[%c0_2, %c0_3, %c0_4, %c0_5] : memref<1x1x42x16xbf16, #tpu.memory_space<vmem>>, vector<1x1x24x16xbf16>
    %5 = vector.shape_cast %4 : vector<1x1x24x16xbf16> to vector<24x16xbf16>
    %c0_6 = arith.constant 0 : index
    %c0_7 = arith.constant 0 : index
    %c0_8 = arith.constant 0 : index
    %c0_9 = arith.constant 0 : index
    %6 = vector.load %arg4[%c0_6, %c0_7, %c0_8, %c0_9] : memref<1x9x16x8xbf16, #tpu.memory_space<vmem>>, vector<1x1x16x8xbf16>
    %7 = vector.shape_cast %6 : vector<1x1x16x8xbf16> to vector<16x8xbf16>
    %cst = arith.constant dense<0.000000e+00> : vector<24x8xf32>
    %8 = tpu.matmul %5, %7, %cst {dimension_numbers = #tpu.dot_dimension_numbers<[1], [0], [0], [1], [0, 0, 1, 1], [], []>} : vector<24x16xbf16>, vector<16x8xbf16>, vector<24x8xf32> -> vector<24x8xf32>
    %9 = arith.addf %3, %8 : vector<24x8xf32>
    %c0_10 = arith.constant 0 : index
    %c0_11 = arith.constant 0 : index
    %c1 = arith.constant 1 : index
    %c0_12 = arith.constant 0 : index
    %10 = vector.load %arg3[%c0_10, %c0_11, %c1, %c0_12] : memref<1x1x42x16xbf16, #tpu.memory_space<vmem>>, vector<1x1x24x16xbf16>
    %11 = vector.shape_cast %10 : vector<1x1x24x16xbf16> to vector<24x16xbf16>
    %c0_13 = arith.constant 0 : index
    %c1_14 = arith.constant 1 : index
    %c0_15 = arith.constant 0 : index
    %c0_16 = arith.constant 0 : index
    %12 = vector.load %arg4[%c0_13, %c1_14, %c0_15, %c0_16] : memref<1x9x16x8xbf16, #tpu.memory_space<vmem>>, vector<1x1x16x8xbf16>
    %13 = vector.shape_cast %12 : vector<1x1x16x8xbf16> to vector<16x8xbf16>
    %cst_17 = arith.constant dense<0.000000e+00> : vector<24x8xf32>
    %14 = tpu.matmul %11, %13, %cst_17 {dimension_numbers = #tpu.dot_dimension_numbers<[1], [0], [0], [1], [0, 0, 1, 1], [], []>} : vector<24x16xbf16>, vector<16x8xbf16>, vector<24x8xf32> -> vector<24x8xf32>
    %15 = arith.addf %9, %14 : vector<24x8xf32>
    %c0_18 = arith.constant 0 : index
    %c0_19 = arith.constant 0 : index
    %c2 = arith.constant 2 : index
    %c0_20 = arith.constant 0 : index
    %16 = vector.load %arg3[%c0_18, %c0_19, %c2, %c0_20] : memref<1x1x42x16xbf16, #tpu.memory_space<vmem>>, vector<1x1x24x16xbf16>
    %17 = vector.shape_cast %16 : vector<1x1x24x16xbf16> to vector<24x16xbf16>
    %c0_21 = arith.constant 0 : index
    %c2_22 = arith.constant 2 : index
    %c0_23 = arith.constant 0 : index
    %c0_24 = arith.constant 0 : index
    %18 = vector.load %arg4[%c0_21, %c2_22, %c0_23, %c0_24] : memref<1x9x16x8xbf16, #tpu.memory_space<vmem>>, vector<1x1x16x8xbf16>
    %19 = vector.shape_cast %18 : vector<1x1x16x8xbf16> to vector<16x8xbf16>
    %cst_25 = arith.constant dense<0.000000e+00> : vector<24x8xf32>
    %20 = tpu.matmul %17, %19, %cst_25 {dimension_numbers = #tpu.dot_dimension_numbers<[1], [0], [0], [1], [0, 0, 1, 1], [], []>} : vector<24x16xbf16>, vector<16x8xbf16>, vector<24x8xf32> -> vector<24x8xf32>
    %21 = arith.addf %15, %20 : vector<24x8xf32>
    %c0_26 = arith.constant 0 : index
    %c0_27 = arith.constant 0 : index
    %c6 = arith.constant 6 : index
    %c0_28 = arith.constant 0 : index
    %22 = vector.load %arg3[%c0_26, %c0_27, %c6, %c0_28] : memref<1x1x42x16xbf16, #tpu.memory_space<vmem>>, vector<1x1x24x16xbf16>
    %23 = vector.shape_cast %22 : vector<1x1x24x16xbf16> to vector<24x16xbf16>
    %c0_29 = arith.constant 0 : index
    %c3 = arith.constant 3 : index
    %c0_30 = arith.constant 0 : index
    %c0_31 = arith.constant 0 : index
    %24 = vector.load %arg4[%c0_29, %c3, %c0_30, %c0_31] : memref<1x9x16x8xbf16, #tpu.memory_space<vmem>>, vector<1x1x16x8xbf16>
    %25 = vector.shape_cast %24 : vector<1x1x16x8xbf16> to vector<16x8xbf16>
    %cst_32 = arith.constant dense<0.000000e+00> : vector<24x8xf32>
    %26 = tpu.matmul %23, %25, %cst_32 {dimension_numbers = #tpu.dot_dimension_numbers<[1], [0], [0], [1], [0, 0, 1, 1], [], []>} : vector<24x16xbf16>, vector<16x8xbf16>, vector<24x8xf32> -> vector<24x8xf32>
    %27 = arith.addf %21, %26 : vector<24x8xf32>
    %c0_33 = arith.constant 0 : index
    %c0_34 = arith.constant 0 : index
    %c7 = arith.constant 7 : index
    %c0_35 = arith.constant 0 : index
    %28 = vector.load %arg3[%c0_33, %c0_34, %c7, %c0_35] : memref<1x1x42x16xbf16, #tpu.memory_space<vmem>>, vector<1x1x24x16xbf16>
    %29 = vector.shape_cast %28 : vector<1x1x24x16xbf16> to vector<24x16xbf16>
    %c0_36 = arith.constant 0 : index
    %c4 = arith.constant 4 : index
    %c0_37 = arith.constant 0 : index
    %c0_38 = arith.constant 0 : index
    %30 = vector.load %arg4[%c0_36, %c4, %c0_37, %c0_38] : memref<1x9x16x8xbf16, #tpu.memory_space<vmem>>, vector<1x1x16x8xbf16>
    %31 = vector.shape_cast %30 : vector<1x1x16x8xbf16> to vector<16x8xbf16>
    %cst_39 = arith.constant dense<0.000000e+00> : vector<24x8xf32>
    %32 = tpu.matmul %29, %31, %cst_39 {dimension_numbers = #tpu.dot_dimension_numbers<[1], [0], [0], [1], [0, 0, 1, 1], [], []>} : vector<24x16xbf16>, vector<16x8xbf16>, vector<24x8xf32> -> vector<24x8xf32>
    %33 = arith.addf %27, %32 : vector<24x8xf32>
    %c0_40 = arith.constant 0 : index
    %c0_41 = arith.constant 0 : index
    %c8 = arith.constant 8 : index
    %c0_42 = arith.constant 0 : index
    %34 = vector.load %arg3[%c0_40, %c0_41, %c8, %c0_42] : memref<1x1x42x16xbf16, #tpu.memory_space<vmem>>, vector<1x1x24x16xbf16>
    %35 = vector.shape_cast %34 : vector<1x1x24x16xbf16> to vector<24x16xbf16>
    %c0_43 = arith.constant 0 : index
    %c5 = arith.constant 5 : index
    %c0_44 = arith.constant 0 : index
    %c0_45 = arith.constant 0 : index
    %36 = vector.load %arg4[%c0_43, %c5, %c0_44, %c0_45] : memref<1x9x16x8xbf16, #tpu.memory_space<vmem>>, vector<1x1x16x8xbf16>
    %37 = vector.shape_cast %36 : vector<1x1x16x8xbf16> to vector<16x8xbf16>
    %cst_46 = arith.constant dense<0.000000e+00> : vector<24x8xf32>
    %38 = tpu.matmul %35, %37, %cst_46 {dimension_numbers = #tpu.dot_dimension_numbers<[1], [0], [0], [1], [0, 0, 1, 1], [], []>} : vector<24x16xbf16>, vector<16x8xbf16>, vector<24x8xf32> -> vector<24x8xf32>
    %39 = arith.addf %33, %38 : vector<24x8xf32>
    %c0_47 = arith.constant 0 : index
    %c0_48 = arith.constant 0 : index
    %c12 = arith.constant 12 : index
    %c0_49 = arith.constant 0 : index
    %40 = vector.load %arg3[%c0_47, %c0_48, %c12, %c0_49] : memref<1x1x42x16xbf16, #tpu.memory_space<vmem>>, vector<1x1x24x16xbf16>
    %41 = vector.shape_cast %40 : vector<1x1x24x16xbf16> to vector<24x16xbf16>
    %c0_50 = arith.constant 0 : index
    %c6_51 = arith.constant 6 : index
    %c0_52 = arith.constant 0 : index
    %c0_53 = arith.constant 0 : index
    %42 = vector.load %arg4[%c0_50, %c6_51, %c0_52, %c0_53] : memref<1x9x16x8xbf16, #tpu.memory_space<vmem>>, vector<1x1x16x8xbf16>
    %43 = vector.shape_cast %42 : vector<1x1x16x8xbf16> to vector<16x8xbf16>
    %cst_54 = arith.constant dense<0.000000e+00> : vector<24x8xf32>
    %44 = tpu.matmul %41, %43, %cst_54 {dimension_numbers = #tpu.dot_dimension_numbers<[1], [0], [0], [1], [0, 0, 1, 1], [], []>} : vector<24x16xbf16>, vector<16x8xbf16>, vector<24x8xf32> -> vector<24x8xf32>
    %45 = arith.addf %39, %44 : vector<24x8xf32>
    %c0_55 = arith.constant 0 : index
    %c0_56 = arith.constant 0 : index
    %c13 = arith.constant 13 : index
    %c0_57 = arith.constant 0 : index
    %46 = vector.load %arg3[%c0_55, %c0_56, %c13, %c0_57] : memref<1x1x42x16xbf16, #tpu.memory_space<vmem>>, vector<1x1x24x16xbf16>
    %47 = vector.shape_cast %46 : vector<1x1x24x16xbf16> to vector<24x16xbf16>
    %c0_58 = arith.constant 0 : index
    %c7_59 = arith.constant 7 : index
    %c0_60 = arith.constant 0 : index
    %c0_61 = arith.constant 0 : index
    %48 = vector.load %arg4[%c0_58, %c7_59, %c0_60, %c0_61] : memref<1x9x16x8xbf16, #tpu.memory_space<vmem>>, vector<1x1x16x8xbf16>
    %49 = vector.shape_cast %48 : vector<1x1x16x8xbf16> to vector<16x8xbf16>
    %cst_62 = arith.constant dense<0.000000e+00> : vector<24x8xf32>
    %50 = tpu.matmul %47, %49, %cst_62 {dimension_numbers = #tpu.dot_dimension_numbers<[1], [0], [0], [1], [0, 0, 1, 1], [], []>} : vector<24x16xbf16>, vector<16x8xbf16>, vector<24x8xf32> -> vector<24x8xf32>
    %51 = arith.addf %45, %50 : vector<24x8xf32>
    %c0_63 = arith.constant 0 : index
    %c0_64 = arith.constant 0 : index
    %c14 = arith.constant 14 : index
    %c0_65 = arith.constant 0 : index
    %52 = vector.load %arg3[%c0_63, %c0_64, %c14, %c0_65] : memref<1x1x42x16xbf16, #tpu.memory_space<vmem>>, vector<1x1x24x16xbf16>
    %53 = vector.shape_cast %52 : vector<1x1x24x16xbf16> to vector<24x16xbf16>
    %c0_66 = arith.constant 0 : index
    %c8_67 = arith.constant 8 : index
    %c0_68 = arith.constant 0 : index
    %c0_69 = arith.constant 0 : index
    %54 = vector.load %arg4[%c0_66, %c8_67, %c0_68, %c0_69] : memref<1x9x16x8xbf16, #tpu.memory_space<vmem>>, vector<1x1x16x8xbf16>
    %55 = vector.shape_cast %54 : vector<1x1x16x8xbf16> to vector<16x8xbf16>
    %cst_70 = arith.constant dense<0.000000e+00> : vector<24x8xf32>
    %56 = tpu.matmul %53, %55, %cst_70 {dimension_numbers = #tpu.dot_dimension_numbers<[1], [0], [0], [1], [0, 0, 1, 1], [], []>} : vector<24x16xbf16>, vector<16x8xbf16>, vector<24x8xf32> -> vector<24x8xf32>
    %57 = arith.addf %51, %56 : vector<24x8xf32>
    %c0_71 = arith.constant 0 : index
    %c0_72 = arith.constant 0 : index
    %58 = vector.load %arg6[%c0_71, %c0_72] : memref<24x8xf32, #tpu.memory_space<vmem>>, vector<24x8xf32>
    tpu.vector_store %arg6[%c0_71, %c0_72], %57 {strides = array<i32>} : memref<24x8xf32, #tpu.memory_space<vmem>>, vector<24x8xf32>,
    %c2_i32 = arith.constant 2 : i32
    %59 = arith.cmpi eq, %arg2, %c2_i32 : i32
    %60 = arith.extui %59 : i1 to i32
    %c0_i32_73 = arith.constant 0 : i32
    %61 = arith.cmpi ne, %60, %c0_i32_73 : i32
    scf.if %61 {
      %62 = arith.truncf %57 : vector<24x8xf32> to vector<24x8xbf16>
      %c0_74 = arith.constant 0 : index
      %c0_75 = arith.constant 0 : index
      %c0_76 = arith.constant 0 : index
      %c0_77 = arith.constant 0 : index
      %63 = vector.load %arg5[%c0_74, %c0_75, %c0_76, %c0_77] : memref<1x1x24x8xbf16, #tpu.memory_space<vmem>>, vector<1x1x24x8xbf16>
      %64 = vector.shape_cast %63 : vector<1x1x24x8xbf16> to vector<24x8xbf16>
      %65 = vector.shape_cast %62 : vector<24x8xbf16> to vector<1x1x24x8xbf16>
      tpu.vector_store %arg5[%c0_74, %c0_75, %c0_76, %c0_77], %65 {strides = array<i32>} : memref<1x1x24x8xbf16, #tpu.memory_space<vmem>>, vector<1x1x24x8xbf16>,
    } else {
    }
    return
  }
  func.func @transform_0(%arg0: i32, %arg1: i32, %arg2: i32) -> (i32, i32, i32, i32) {
    %0 = arith.addi %arg1, %arg2 : i32
    %c0_i32 = arith.constant 0 : i32
    %c0_i32_0 = arith.constant 0 : i32
    %c0_i32_1 = arith.constant 0 : i32
    return %arg0, %0, %c0_i32, %c0_i32_0 : i32, i32, i32, i32
  }
  func.func @transform_1(%arg0: i32, %arg1: i32, %arg2: i32) -> (i32, i32, i32, i32) {
    %c0_i32 = arith.constant 0 : i32
    %c0_i32_0 = arith.constant 0 : i32
    %c0_i32_1 = arith.constant 0 : i32
    %c0_i32_2 = arith.constant 0 : i32
    return %arg2, %c0_i32, %c0_i32_0, %c0_i32_1 : i32, i32, i32, i32
  }
  func.func @transform_2(%arg0: i32, %arg1: i32, %arg2: i32) -> (i32, i32, i32, i32) {
    %c0_i32 = arith.constant 0 : i32
    %c0_i32_0 = arith.constant 0 : i32
    %c0_i32_1 = arith.constant 0 : i32
    return %arg0, %arg1, %c0_i32, %c0_i32_0 : i32, i32, i32, i32
  }
}

module attributes {stable_mosaic.version = 11 : i64} {
  func.func @kernel(%arg0: i32, %arg1: memref<128x24xbf16, #tpu.memory_space<vmem>>, %arg2: memref<1x24xf32, #tpu.memory_space<vmem>>, %arg3: memref<1x24xf32, #tpu.memory_space<vmem>>, %arg4: memref<24x16xbf16, #tpu.memory_space<vmem>>, %arg5: memref<1x16xf32, #tpu.memory_space<vmem>>, %arg6: memref<1x16xf32, #tpu.memory_space<vmem>>, %arg7: memref<128x16xbf16, #tpu.memory_space<vmem>>) attributes {dimension_semantics = [#tpu.dimension_semantics<parallel>], iteration_bounds = array<i64: 1>, scalar_prefetch = 0 : i64, scratch_operands = 0 : i64, tpu.core_type = #tpu.core_type<tc>, window_params = [{transform_indices = @transform_0, window_bounds = array<i64: 128, 24>}, {pipeline_mode = #tpu.pipeline_mode<synchronous>, transform_indices = @transform_1, window_bounds = array<i64: 1, 24>}, {pipeline_mode = #tpu.pipeline_mode<synchronous>, transform_indices = @transform_2, window_bounds = array<i64: 1, 24>}, {pipeline_mode = #tpu.pipeline_mode<synchronous>, transform_indices = @transform_3, window_bounds = array<i64: 24, 16>}, {pipeline_mode = #tpu.pipeline_mode<synchronous>, transform_indices = @transform_4, window_bounds = array<i64: 1, 16>}, {pipeline_mode = #tpu.pipeline_mode<synchronous>, transform_indices = @transform_5, window_bounds = array<i64: 1, 16>}, {transform_indices = @transform_6, window_bounds = array<i64: 128, 16>}]} {
    %c0 = arith.constant 0 : index
    %c0_0 = arith.constant 0 : index
    %0 = vector.load %arg1[%c0, %c0_0] : memref<128x24xbf16, #tpu.memory_space<vmem>>, vector<128x24xbf16>
    %1 = arith.extf %0 : vector<128x24xbf16> to vector<128x24xf32>
    %c0_1 = arith.constant 0 : index
    %c0_2 = arith.constant 0 : index
    %2 = vector.load %arg2[%c0_1, %c0_2] : memref<1x24xf32, #tpu.memory_space<vmem>>, vector<1x24xf32>
    %3 = vector.broadcast %2 : vector<1x24xf32> to vector<128x24xf32>
    %4 = arith.mulf %1, %3 : vector<128x24xf32>
    %c0_3 = arith.constant 0 : index
    %c0_4 = arith.constant 0 : index
    %5 = vector.load %arg3[%c0_3, %c0_4] : memref<1x24xf32, #tpu.memory_space<vmem>>, vector<1x24xf32>
    %6 = vector.broadcast %5 : vector<1x24xf32> to vector<128x24xf32>
    %7 = arith.addf %4, %6 : vector<128x24xf32>
    %cst = arith.constant 0.000000e+00 : f32
    %8 = vector.broadcast %cst : f32 to vector<128x24xf32>
    %9 = arith.maximumf %7, %8 : vector<128x24xf32>
    %10 = arith.truncf %9 : vector<128x24xf32> to vector<128x24xbf16>
    %c0_5 = arith.constant 0 : index
    %c0_6 = arith.constant 0 : index
    %11 = vector.load %arg4[%c0_5, %c0_6] : memref<24x16xbf16, #tpu.memory_space<vmem>>, vector<24x16xbf16>
    %cst_7 = arith.constant dense<0.000000e+00> : vector<128x16xf32>
    %12 = tpu.matmul %10, %11, %cst_7 {dimension_numbers = #tpu.dot_dimension_numbers<[1], [0], [0], [1], [0, 0, 1, 1], [], []>} : vector<128x24xbf16>, vector<24x16xbf16>, vector<128x16xf32> -> vector<128x16xf32>
    %c0_8 = arith.constant 0 : index
    %c0_9 = arith.constant 0 : index
    %13 = vector.load %arg5[%c0_8, %c0_9] : memref<1x16xf32, #tpu.memory_space<vmem>>, vector<1x16xf32>
    %14 = vector.broadcast %13 : vector<1x16xf32> to vector<128x16xf32>
    %15 = arith.mulf %12, %14 : vector<128x16xf32>
    %c0_10 = arith.constant 0 : index
    %c0_11 = arith.constant 0 : index
    %16 = vector.load %arg6[%c0_10, %c0_11] : memref<1x16xf32, #tpu.memory_space<vmem>>, vector<1x16xf32>
    %17 = vector.broadcast %16 : vector<1x16xf32> to vector<128x16xf32>
    %18 = arith.addf %15, %17 : vector<128x16xf32>
    %cst_12 = arith.constant 0.000000e+00 : f32
    %19 = vector.broadcast %cst_12 : f32 to vector<128x16xf32>
    %20 = arith.maximumf %18, %19 : vector<128x16xf32>
    %21 = arith.truncf %20 : vector<128x16xf32> to vector<128x16xbf16>
    %c0_13 = arith.constant 0 : index
    %c0_14 = arith.constant 0 : index
    %22 = vector.load %arg7[%c0_13, %c0_14] : memref<128x16xbf16, #tpu.memory_space<vmem>>, vector<128x16xbf16>
    tpu.vector_store %arg7[%c0_13, %c0_14], %21 {strides = array<i32>} : memref<128x16xbf16, #tpu.memory_space<vmem>>, vector<128x16xbf16>,
    return
  }
  func.func @transform_0(%arg0: i32) -> (i32, i32) {
    %c0_i32 = arith.constant 0 : i32
    %c0_i32_0 = arith.constant 0 : i32
    return %arg0, %c0_i32 : i32, i32
  }
  func.func @transform_1(%arg0: i32) -> (i32, i32) {
    %c0_i32 = arith.constant 0 : i32
    %c0_i32_0 = arith.constant 0 : i32
    %c0_i32_1 = arith.constant 0 : i32
    return %c0_i32, %c0_i32_0 : i32, i32
  }
  func.func @transform_2(%arg0: i32) -> (i32, i32) {
    %c0_i32 = arith.constant 0 : i32
    %c0_i32_0 = arith.constant 0 : i32
    %c0_i32_1 = arith.constant 0 : i32
    return %c0_i32, %c0_i32_0 : i32, i32
  }
  func.func @transform_3(%arg0: i32) -> (i32, i32) {
    %c0_i32 = arith.constant 0 : i32
    %c0_i32_0 = arith.constant 0 : i32
    %c0_i32_1 = arith.constant 0 : i32
    return %c0_i32, %c0_i32_0 : i32, i32
  }
  func.func @transform_4(%arg0: i32) -> (i32, i32) {
    %c0_i32 = arith.constant 0 : i32
    %c0_i32_0 = arith.constant 0 : i32
    %c0_i32_1 = arith.constant 0 : i32
    return %c0_i32, %c0_i32_0 : i32, i32
  }
  func.func @transform_5(%arg0: i32) -> (i32, i32) {
    %c0_i32 = arith.constant 0 : i32
    %c0_i32_0 = arith.constant 0 : i32
    %c0_i32_1 = arith.constant 0 : i32
    return %c0_i32, %c0_i32_0 : i32, i32
  }
  func.func @transform_6(%arg0: i32) -> (i32, i32) {
    %c0_i32 = arith.constant 0 : i32
    %c0_i32_0 = arith.constant 0 : i32
    return %arg0, %c0_i32 : i32, i32
  }
}

module attributes {stable_mosaic.version = 11 : i64} {
  func.func @kernel(%arg0: i32, %arg1: memref<128x32xbf16, #tpu.memory_space<vmem>>, %arg2: memref<1x32xf32, #tpu.memory_space<vmem>>, %arg3: memref<1x32xf32, #tpu.memory_space<vmem>>, %arg4: memref<32x16xbf16, #tpu.memory_space<vmem>>, %arg5: memref<1x16xf32, #tpu.memory_space<vmem>>, %arg6: memref<1x16xf32, #tpu.memory_space<vmem>>, %arg7: memref<128x16xbf16, #tpu.memory_space<vmem>>) attributes {dimension_semantics = [#tpu.dimension_semantics<parallel>], iteration_bounds = array<i64: 1>, scalar_prefetch = 0 : i64, scratch_operands = 0 : i64, tpu.core_type = #tpu.core_type<tc>, window_params = [{transform_indices = @transform_0, window_bounds = array<i64: 128, 32>}, {pipeline_mode = #tpu.pipeline_mode<synchronous>, transform_indices = @transform_1, window_bounds = array<i64: 1, 32>}, {pipeline_mode = #tpu.pipeline_mode<synchronous>, transform_indices = @transform_2, window_bounds = array<i64: 1, 32>}, {pipeline_mode = #tpu.pipeline_mode<synchronous>, transform_indices = @transform_3, window_bounds = array<i64: 32, 16>}, {pipeline_mode = #tpu.pipeline_mode<synchronous>, transform_indices = @transform_4, window_bounds = array<i64: 1, 16>}, {pipeline_mode = #tpu.pipeline_mode<synchronous>, transform_indices = @transform_5, window_bounds = array<i64: 1, 16>}, {transform_indices = @transform_6, window_bounds = array<i64: 128, 16>}]} {
    %c0 = arith.constant 0 : index
    %c0_0 = arith.constant 0 : index
    %0 = vector.load %arg1[%c0, %c0_0] : memref<128x32xbf16, #tpu.memory_space<vmem>>, vector<128x32xbf16>
    %1 = arith.extf %0 : vector<128x32xbf16> to vector<128x32xf32>
    %c0_1 = arith.constant 0 : index
    %c0_2 = arith.constant 0 : index
    %2 = vector.load %arg2[%c0_1, %c0_2] : memref<1x32xf32, #tpu.memory_space<vmem>>, vector<1x32xf32>
    %3 = vector.broadcast %2 : vector<1x32xf32> to vector<128x32xf32>
    %4 = arith.mulf %1, %3 : vector<128x32xf32>
    %c0_3 = arith.constant 0 : index
    %c0_4 = arith.constant 0 : index
    %5 = vector.load %arg3[%c0_3, %c0_4] : memref<1x32xf32, #tpu.memory_space<vmem>>, vector<1x32xf32>
    %6 = vector.broadcast %5 : vector<1x32xf32> to vector<128x32xf32>
    %7 = arith.addf %4, %6 : vector<128x32xf32>
    %cst = arith.constant 0.000000e+00 : f32
    %8 = vector.broadcast %cst : f32 to vector<128x32xf32>
    %9 = arith.maximumf %7, %8 : vector<128x32xf32>
    %10 = arith.truncf %9 : vector<128x32xf32> to vector<128x32xbf16>
    %c0_5 = arith.constant 0 : index
    %c0_6 = arith.constant 0 : index
    %11 = vector.load %arg4[%c0_5, %c0_6] : memref<32x16xbf16, #tpu.memory_space<vmem>>, vector<32x16xbf16>
    %cst_7 = arith.constant dense<0.000000e+00> : vector<128x16xf32>
    %12 = tpu.matmul %10, %11, %cst_7 {dimension_numbers = #tpu.dot_dimension_numbers<[1], [0], [0], [1], [0, 0, 1, 1], [], []>} : vector<128x32xbf16>, vector<32x16xbf16>, vector<128x16xf32> -> vector<128x16xf32>
    %13 = arith.truncf %12 : vector<128x16xf32> to vector<128x16xbf16>
    %c0_8 = arith.constant 0 : index
    %c0_9 = arith.constant 0 : index
    %14 = vector.load %arg7[%c0_8, %c0_9] : memref<128x16xbf16, #tpu.memory_space<vmem>>, vector<128x16xbf16>
    tpu.vector_store %arg7[%c0_8, %c0_9], %13 {strides = array<i32>} : memref<128x16xbf16, #tpu.memory_space<vmem>>, vector<128x16xbf16>,
    return
  }
  func.func @transform_0(%arg0: i32) -> (i32, i32) {
    %c0_i32 = arith.constant 0 : i32
    %c0_i32_0 = arith.constant 0 : i32
    return %arg0, %c0_i32 : i32, i32
  }
  func.func @transform_1(%arg0: i32) -> (i32, i32) {
    %c0_i32 = arith.constant 0 : i32
    %c0_i32_0 = arith.constant 0 : i32
    %c0_i32_1 = arith.constant 0 : i32
    return %c0_i32, %c0_i32_0 : i32, i32
  }
  func.func @transform_2(%arg0: i32) -> (i32, i32) {
    %c0_i32 = arith.constant 0 : i32
    %c0_i32_0 = arith.constant 0 : i32
    %c0_i32_1 = arith.constant 0 : i32
    return %c0_i32, %c0_i32_0 : i32, i32
  }
  func.func @transform_3(%arg0: i32) -> (i32, i32) {
    %c0_i32 = arith.constant 0 : i32
    %c0_i32_0 = arith.constant 0 : i32
    %c0_i32_1 = arith.constant 0 : i32
    return %c0_i32, %c0_i32_0 : i32, i32
  }
  func.func @transform_4(%arg0: i32) -> (i32, i32) {
    %c0_i32 = arith.constant 0 : i32
    %c0_i32_0 = arith.constant 0 : i32
    %c0_i32_1 = arith.constant 0 : i32
    return %c0_i32, %c0_i32_0 : i32, i32
  }
  func.func @transform_5(%arg0: i32) -> (i32, i32) {
    %c0_i32 = arith.constant 0 : i32
    %c0_i32_0 = arith.constant 0 : i32
    %c0_i32_1 = arith.constant 0 : i32
    return %c0_i32, %c0_i32_0 : i32, i32
  }
  func.func @transform_6(%arg0: i32) -> (i32, i32) {
    %c0_i32 = arith.constant 0 : i32
    %c0_i32_0 = arith.constant 0 : i32
    return %arg0, %c0_i32 : i32, i32
  }
}

module attributes {stable_mosaic.version = 11 : i64} {
  func.func @kernel(%arg0: i32, %arg1: memref<2x64x16xbf16, #tpu.memory_space<vmem>>, %arg2: memref<64x16xbf16, #tpu.memory_space<vmem>>) attributes {dimension_semantics = [#tpu.dimension_semantics<parallel>], iteration_bounds = array<i64: 1>, scalar_prefetch = 0 : i64, scratch_operands = 0 : i64, tpu.core_type = #tpu.core_type<tc>, window_params = [{transform_indices = @transform_0, window_bounds = array<i64: 2, 64, 16>}, {transform_indices = @transform_1, window_bounds = array<i64: 64, 16>}]} {
    %c0 = arith.constant 0 : index
    %c0_0 = arith.constant 0 : index
    %c0_1 = arith.constant 0 : index
    %0 = vector.load %arg1[%c0, %c0_0, %c0_1] : memref<2x64x16xbf16, #tpu.memory_space<vmem>>, vector<2x64x16xbf16>
    %1 = arith.extf %0 : vector<2x64x16xbf16> to vector<2x64x16xf32>
    %cst = arith.constant dense<0.000000e+00> : vector<64x16xf32>
    %2 = vector.multi_reduction <add>, %1, %cst [0] : vector<2x64x16xf32> to vector<64x16xf32>
    %cst_2 = arith.constant 2.000000e+00 : f32
    %3 = vector.broadcast %cst_2 : f32 to vector<64x16xf32>
    %4 = arith.divf %2, %3 : vector<64x16xf32>
    %5 = arith.truncf %4 : vector<64x16xf32> to vector<64x16xbf16>
    %c0_3 = arith.constant 0 : index
    %c0_4 = arith.constant 0 : index
    %6 = vector.load %arg2[%c0_3, %c0_4] : memref<64x16xbf16, #tpu.memory_space<vmem>>, vector<64x16xbf16>
    tpu.vector_store %arg2[%c0_3, %c0_4], %5 {strides = array<i32>} : memref<64x16xbf16, #tpu.memory_space<vmem>>, vector<64x16xbf16>,
    return
  }
  func.func @transform_0(%arg0: i32) -> (i32, i32, i32) {
    %c0_i32 = arith.constant 0 : i32
    %c0_i32_0 = arith.constant 0 : i32
    %c0_i32_1 = arith.constant 0 : i32
    return %c0_i32, %arg0, %c0_i32_0 : i32, i32, i32
  }
  func.func @transform_1(%arg0: i32) -> (i32, i32) {
    %c0_i32 = arith.constant 0 : i32
    %c0_i32_0 = arith.constant 0 : i32
    return %arg0, %c0_i32 : i32, i32
  }
}

module attributes {stable_mosaic.version = 11 : i64} {
  func.func @kernel(%arg0: i32, %arg1: memref<2x32x16xbf16, #tpu.memory_space<vmem>>, %arg2: memref<32x16xbf16, #tpu.memory_space<vmem>>) attributes {dimension_semantics = [#tpu.dimension_semantics<parallel>], iteration_bounds = array<i64: 1>, scalar_prefetch = 0 : i64, scratch_operands = 0 : i64, tpu.core_type = #tpu.core_type<tc>, window_params = [{transform_indices = @transform_0, window_bounds = array<i64: 2, 32, 16>}, {transform_indices = @transform_1, window_bounds = array<i64: 32, 16>}]} {
    %c0 = arith.constant 0 : index
    %c0_0 = arith.constant 0 : index
    %c0_1 = arith.constant 0 : index
    %0 = vector.load %arg1[%c0, %c0_0, %c0_1] : memref<2x32x16xbf16, #tpu.memory_space<vmem>>, vector<2x32x16xbf16>
    %1 = arith.extf %0 : vector<2x32x16xbf16> to vector<2x32x16xf32>
    %cst = arith.constant dense<0.000000e+00> : vector<32x16xf32>
    %2 = vector.multi_reduction <add>, %1, %cst [0] : vector<2x32x16xf32> to vector<32x16xf32>
    %cst_2 = arith.constant 2.000000e+00 : f32
    %3 = vector.broadcast %cst_2 : f32 to vector<32x16xf32>
    %4 = arith.divf %2, %3 : vector<32x16xf32>
    %5 = arith.truncf %4 : vector<32x16xf32> to vector<32x16xbf16>
    %c0_3 = arith.constant 0 : index
    %c0_4 = arith.constant 0 : index
    %6 = vector.load %arg2[%c0_3, %c0_4] : memref<32x16xbf16, #tpu.memory_space<vmem>>, vector<32x16xbf16>
    tpu.vector_store %arg2[%c0_3, %c0_4], %5 {strides = array<i32>} : memref<32x16xbf16, #tpu.memory_space<vmem>>, vector<32x16xbf16>,
    return
  }
  func.func @transform_0(%arg0: i32) -> (i32, i32, i32) {
    %c0_i32 = arith.constant 0 : i32
    %c0_i32_0 = arith.constant 0 : i32
    %c0_i32_1 = arith.constant 0 : i32
    return %c0_i32, %arg0, %c0_i32_0 : i32, i32, i32
  }
  func.func @transform_1(%arg0: i32) -> (i32, i32) {
    %c0_i32 = arith.constant 0 : i32
    %c0_i32_0 = arith.constant 0 : i32
    return %arg0, %c0_i32 : i32, i32
  }
}

module attributes {stable_mosaic.version = 11 : i64} {
  func.func @kernel(%arg0: i32, %arg1: memref<16x16xbf16, #tpu.memory_space<vmem>>, %arg2: memref<1x16xf32, #tpu.memory_space<vmem>>, %arg3: memref<1x16xf32, #tpu.memory_space<vmem>>, %arg4: memref<16x16xbf16, #tpu.memory_space<vmem>>, %arg5: memref<1x16xf32, #tpu.memory_space<vmem>>, %arg6: memref<1x16xf32, #tpu.memory_space<vmem>>, %arg7: memref<16x16xbf16, #tpu.memory_space<vmem>>) attributes {dimension_semantics = [#tpu.dimension_semantics<parallel>], iteration_bounds = array<i64: 1>, scalar_prefetch = 0 : i64, scratch_operands = 0 : i64, tpu.core_type = #tpu.core_type<tc>, window_params = [{transform_indices = @transform_0, window_bounds = array<i64: 16, 16>}, {pipeline_mode = #tpu.pipeline_mode<synchronous>, transform_indices = @transform_1, window_bounds = array<i64: 1, 16>}, {pipeline_mode = #tpu.pipeline_mode<synchronous>, transform_indices = @transform_2, window_bounds = array<i64: 1, 16>}, {pipeline_mode = #tpu.pipeline_mode<synchronous>, transform_indices = @transform_3, window_bounds = array<i64: 16, 16>}, {pipeline_mode = #tpu.pipeline_mode<synchronous>, transform_indices = @transform_4, window_bounds = array<i64: 1, 16>}, {pipeline_mode = #tpu.pipeline_mode<synchronous>, transform_indices = @transform_5, window_bounds = array<i64: 1, 16>}, {transform_indices = @transform_6, window_bounds = array<i64: 16, 16>}]} {
    %c0 = arith.constant 0 : index
    %c0_0 = arith.constant 0 : index
    %0 = vector.load %arg1[%c0, %c0_0] : memref<16x16xbf16, #tpu.memory_space<vmem>>, vector<16x16xbf16>
    %1 = arith.extf %0 : vector<16x16xbf16> to vector<16x16xf32>
    %c0_1 = arith.constant 0 : index
    %c0_2 = arith.constant 0 : index
    %2 = vector.load %arg2[%c0_1, %c0_2] : memref<1x16xf32, #tpu.memory_space<vmem>>, vector<1x16xf32>
    %3 = vector.broadcast %2 : vector<1x16xf32> to vector<16x16xf32>
    %4 = arith.mulf %1, %3 : vector<16x16xf32>
    %c0_3 = arith.constant 0 : index
    %c0_4 = arith.constant 0 : index
    %5 = vector.load %arg3[%c0_3, %c0_4] : memref<1x16xf32, #tpu.memory_space<vmem>>, vector<1x16xf32>
    %6 = vector.broadcast %5 : vector<1x16xf32> to vector<16x16xf32>
    %7 = arith.addf %4, %6 : vector<16x16xf32>
    %cst = arith.constant 0.000000e+00 : f32
    %8 = vector.broadcast %cst : f32 to vector<16x16xf32>
    %9 = arith.maximumf %7, %8 : vector<16x16xf32>
    %10 = arith.truncf %9 : vector<16x16xf32> to vector<16x16xbf16>
    %c0_5 = arith.constant 0 : index
    %c0_6 = arith.constant 0 : index
    %11 = vector.load %arg4[%c0_5, %c0_6] : memref<16x16xbf16, #tpu.memory_space<vmem>>, vector<16x16xbf16>
    %cst_7 = arith.constant dense<0.000000e+00> : vector<16x16xf32>
    %12 = tpu.matmul %10, %11, %cst_7 {dimension_numbers = #tpu.dot_dimension_numbers<[1], [0], [0], [1], [0, 0, 1, 1], [], []>} : vector<16x16xbf16>, vector<16x16xbf16>, vector<16x16xf32> -> vector<16x16xf32>
    %c0_8 = arith.constant 0 : index
    %c0_9 = arith.constant 0 : index
    %13 = vector.load %arg5[%c0_8, %c0_9] : memref<1x16xf32, #tpu.memory_space<vmem>>, vector<1x16xf32>
    %14 = vector.broadcast %13 : vector<1x16xf32> to vector<16x16xf32>
    %15 = arith.mulf %12, %14 : vector<16x16xf32>
    %c0_10 = arith.constant 0 : index
    %c0_11 = arith.constant 0 : index
    %16 = vector.load %arg6[%c0_10, %c0_11] : memref<1x16xf32, #tpu.memory_space<vmem>>, vector<1x16xf32>
    %17 = vector.broadcast %16 : vector<1x16xf32> to vector<16x16xf32>
    %18 = arith.addf %15, %17 : vector<16x16xf32>
    %cst_12 = arith.constant 0.000000e+00 : f32
    %19 = vector.broadcast %cst_12 : f32 to vector<16x16xf32>
    %20 = arith.maximumf %18, %19 : vector<16x16xf32>
    %21 = arith.truncf %20 : vector<16x16xf32> to vector<16x16xbf16>
    %c0_13 = arith.constant 0 : index
    %c0_14 = arith.constant 0 : index
    %22 = vector.load %arg7[%c0_13, %c0_14] : memref<16x16xbf16, #tpu.memory_space<vmem>>, vector<16x16xbf16>
    tpu.vector_store %arg7[%c0_13, %c0_14], %21 {strides = array<i32>} : memref<16x16xbf16, #tpu.memory_space<vmem>>, vector<16x16xbf16>,
    return
  }
  func.func @transform_0(%arg0: i32) -> (i32, i32) {
    %c0_i32 = arith.constant 0 : i32
    %c0_i32_0 = arith.constant 0 : i32
    return %arg0, %c0_i32 : i32, i32
  }
  func.func @transform_1(%arg0: i32) -> (i32, i32) {
    %c0_i32 = arith.constant 0 : i32
    %c0_i32_0 = arith.constant 0 : i32
    %c0_i32_1 = arith.constant 0 : i32
    return %c0_i32, %c0_i32_0 : i32, i32
  }
  func.func @transform_2(%arg0: i32) -> (i32, i32) {
    %c0_i32 = arith.constant 0 : i32
    %c0_i32_0 = arith.constant 0 : i32
    %c0_i32_1 = arith.constant 0 : i32
    return %c0_i32, %c0_i32_0 : i32, i32
  }
  func.func @transform_3(%arg0: i32) -> (i32, i32) {
    %c0_i32 = arith.constant 0 : i32
    %c0_i32_0 = arith.constant 0 : i32
    %c0_i32_1 = arith.constant 0 : i32
    return %c0_i32, %c0_i32_0 : i32, i32
  }
  func.func @transform_4(%arg0: i32) -> (i32, i32) {
    %c0_i32 = arith.constant 0 : i32
    %c0_i32_0 = arith.constant 0 : i32
    %c0_i32_1 = arith.constant 0 : i32
    return %c0_i32, %c0_i32_0 : i32, i32
  }
  func.func @transform_5(%arg0: i32) -> (i32, i32) {
    %c0_i32 = arith.constant 0 : i32
    %c0_i32_0 = arith.constant 0 : i32
    %c0_i32_1 = arith.constant 0 : i32
    return %c0_i32, %c0_i32_0 : i32, i32
  }
  func.func @transform_6(%arg0: i32) -> (i32, i32) {
    %c0_i32 = arith.constant 0 : i32
    %c0_i32_0 = arith.constant 0 : i32
    return %arg0, %c0_i32 : i32, i32
  }
}

module attributes {stable_mosaic.version = 11 : i64} {
  func.func @kernel(%arg0: i32, %arg1: memref<2x16x16xbf16, #tpu.memory_space<vmem>>, %arg2: memref<16x16xbf16, #tpu.memory_space<vmem>>) attributes {dimension_semantics = [#tpu.dimension_semantics<parallel>], iteration_bounds = array<i64: 1>, scalar_prefetch = 0 : i64, scratch_operands = 0 : i64, tpu.core_type = #tpu.core_type<tc>, window_params = [{transform_indices = @transform_0, window_bounds = array<i64: 2, 16, 16>}, {transform_indices = @transform_1, window_bounds = array<i64: 16, 16>}]} {
    %c0 = arith.constant 0 : index
    %c0_0 = arith.constant 0 : index
    %c0_1 = arith.constant 0 : index
    %0 = vector.load %arg1[%c0, %c0_0, %c0_1] : memref<2x16x16xbf16, #tpu.memory_space<vmem>>, vector<2x16x16xbf16>
    %1 = arith.extf %0 : vector<2x16x16xbf16> to vector<2x16x16xf32>
    %cst = arith.constant dense<0.000000e+00> : vector<16x16xf32>
    %2 = vector.multi_reduction <add>, %1, %cst [0] : vector<2x16x16xf32> to vector<16x16xf32>
    %cst_2 = arith.constant 2.000000e+00 : f32
    %3 = vector.broadcast %cst_2 : f32 to vector<16x16xf32>
    %4 = arith.divf %2, %3 : vector<16x16xf32>
    %5 = arith.truncf %4 : vector<16x16xf32> to vector<16x16xbf16>
    %c0_3 = arith.constant 0 : index
    %c0_4 = arith.constant 0 : index
    %6 = vector.load %arg2[%c0_3, %c0_4] : memref<16x16xbf16, #tpu.memory_space<vmem>>, vector<16x16xbf16>
    tpu.vector_store %arg2[%c0_3, %c0_4], %5 {strides = array<i32>} : memref<16x16xbf16, #tpu.memory_space<vmem>>, vector<16x16xbf16>,
    return
  }
  func.func @transform_0(%arg0: i32) -> (i32, i32, i32) {
    %c0_i32 = arith.constant 0 : i32
    %c0_i32_0 = arith.constant 0 : i32
    %c0_i32_1 = arith.constant 0 : i32
    return %c0_i32, %arg0, %c0_i32_0 : i32, i32, i32
  }
  func.func @transform_1(%arg0: i32) -> (i32, i32) {
    %c0_i32 = arith.constant 0 : i32
    %c0_i32_0 = arith.constant 0 : i32
    return %arg0, %c0_i32 : i32, i32
  }
}

module attributes {stable_mosaic.version = 11 : i64} {
  func.func @kernel(%arg0: i32, %arg1: memref<16x24xbf16, #tpu.memory_space<vmem>>, %arg2: memref<1x24xf32, #tpu.memory_space<vmem>>, %arg3: memref<1x24xf32, #tpu.memory_space<vmem>>, %arg4: memref<24x16xbf16, #tpu.memory_space<vmem>>, %arg5: memref<1x16xf32, #tpu.memory_space<vmem>>, %arg6: memref<1x16xf32, #tpu.memory_space<vmem>>, %arg7: memref<16x16xbf16, #tpu.memory_space<vmem>>) attributes {dimension_semantics = [#tpu.dimension_semantics<parallel>], iteration_bounds = array<i64: 1>, scalar_prefetch = 0 : i64, scratch_operands = 0 : i64, tpu.core_type = #tpu.core_type<tc>, window_params = [{transform_indices = @transform_0, window_bounds = array<i64: 16, 24>}, {pipeline_mode = #tpu.pipeline_mode<synchronous>, transform_indices = @transform_1, window_bounds = array<i64: 1, 24>}, {pipeline_mode = #tpu.pipeline_mode<synchronous>, transform_indices = @transform_2, window_bounds = array<i64: 1, 24>}, {pipeline_mode = #tpu.pipeline_mode<synchronous>, transform_indices = @transform_3, window_bounds = array<i64: 24, 16>}, {pipeline_mode = #tpu.pipeline_mode<synchronous>, transform_indices = @transform_4, window_bounds = array<i64: 1, 16>}, {pipeline_mode = #tpu.pipeline_mode<synchronous>, transform_indices = @transform_5, window_bounds = array<i64: 1, 16>}, {transform_indices = @transform_6, window_bounds = array<i64: 16, 16>}]} {
    %c0 = arith.constant 0 : index
    %c0_0 = arith.constant 0 : index
    %0 = vector.load %arg1[%c0, %c0_0] : memref<16x24xbf16, #tpu.memory_space<vmem>>, vector<16x24xbf16>
    %1 = arith.extf %0 : vector<16x24xbf16> to vector<16x24xf32>
    %c0_1 = arith.constant 0 : index
    %c0_2 = arith.constant 0 : index
    %2 = vector.load %arg2[%c0_1, %c0_2] : memref<1x24xf32, #tpu.memory_space<vmem>>, vector<1x24xf32>
    %3 = vector.broadcast %2 : vector<1x24xf32> to vector<16x24xf32>
    %4 = arith.mulf %1, %3 : vector<16x24xf32>
    %c0_3 = arith.constant 0 : index
    %c0_4 = arith.constant 0 : index
    %5 = vector.load %arg3[%c0_3, %c0_4] : memref<1x24xf32, #tpu.memory_space<vmem>>, vector<1x24xf32>
    %6 = vector.broadcast %5 : vector<1x24xf32> to vector<16x24xf32>
    %7 = arith.addf %4, %6 : vector<16x24xf32>
    %cst = arith.constant 0.000000e+00 : f32
    %8 = vector.broadcast %cst : f32 to vector<16x24xf32>
    %9 = arith.maximumf %7, %8 : vector<16x24xf32>
    %10 = arith.truncf %9 : vector<16x24xf32> to vector<16x24xbf16>
    %c0_5 = arith.constant 0 : index
    %c0_6 = arith.constant 0 : index
    %11 = vector.load %arg4[%c0_5, %c0_6] : memref<24x16xbf16, #tpu.memory_space<vmem>>, vector<24x16xbf16>
    %cst_7 = arith.constant dense<0.000000e+00> : vector<16x16xf32>
    %12 = tpu.matmul %10, %11, %cst_7 {dimension_numbers = #tpu.dot_dimension_numbers<[1], [0], [0], [1], [0, 0, 1, 1], [], []>} : vector<16x24xbf16>, vector<24x16xbf16>, vector<16x16xf32> -> vector<16x16xf32>
    %c0_8 = arith.constant 0 : index
    %c0_9 = arith.constant 0 : index
    %13 = vector.load %arg5[%c0_8, %c0_9] : memref<1x16xf32, #tpu.memory_space<vmem>>, vector<1x16xf32>
    %14 = vector.broadcast %13 : vector<1x16xf32> to vector<16x16xf32>
    %15 = arith.mulf %12, %14 : vector<16x16xf32>
    %c0_10 = arith.constant 0 : index
    %c0_11 = arith.constant 0 : index
    %16 = vector.load %arg6[%c0_10, %c0_11] : memref<1x16xf32, #tpu.memory_space<vmem>>, vector<1x16xf32>
    %17 = vector.broadcast %16 : vector<1x16xf32> to vector<16x16xf32>
    %18 = arith.addf %15, %17 : vector<16x16xf32>
    %cst_12 = arith.constant 0.000000e+00 : f32
    %19 = vector.broadcast %cst_12 : f32 to vector<16x16xf32>
    %20 = arith.maximumf %18, %19 : vector<16x16xf32>
    %21 = arith.truncf %20 : vector<16x16xf32> to vector<16x16xbf16>
    %c0_13 = arith.constant 0 : index
    %c0_14 = arith.constant 0 : index
    %22 = vector.load %arg7[%c0_13, %c0_14] : memref<16x16xbf16, #tpu.memory_space<vmem>>, vector<16x16xbf16>
    tpu.vector_store %arg7[%c0_13, %c0_14], %21 {strides = array<i32>} : memref<16x16xbf16, #tpu.memory_space<vmem>>, vector<16x16xbf16>,
    return
  }
  func.func @transform_0(%arg0: i32) -> (i32, i32) {
    %c0_i32 = arith.constant 0 : i32
    %c0_i32_0 = arith.constant 0 : i32
    return %arg0, %c0_i32 : i32, i32
  }
  func.func @transform_1(%arg0: i32) -> (i32, i32) {
    %c0_i32 = arith.constant 0 : i32
    %c0_i32_0 = arith.constant 0 : i32
    %c0_i32_1 = arith.constant 0 : i32
    return %c0_i32, %c0_i32_0 : i32, i32
  }
  func.func @transform_2(%arg0: i32) -> (i32, i32) {
    %c0_i32 = arith.constant 0 : i32
    %c0_i32_0 = arith.constant 0 : i32
    %c0_i32_1 = arith.constant 0 : i32
    return %c0_i32, %c0_i32_0 : i32, i32
  }
  func.func @transform_3(%arg0: i32) -> (i32, i32) {
    %c0_i32 = arith.constant 0 : i32
    %c0_i32_0 = arith.constant 0 : i32
    %c0_i32_1 = arith.constant 0 : i32
    return %c0_i32, %c0_i32_0 : i32, i32
  }
  func.func @transform_4(%arg0: i32) -> (i32, i32) {
    %c0_i32 = arith.constant 0 : i32
    %c0_i32_0 = arith.constant 0 : i32
    %c0_i32_1 = arith.constant 0 : i32
    return %c0_i32, %c0_i32_0 : i32, i32
  }
  func.func @transform_5(%arg0: i32) -> (i32, i32) {
    %c0_i32 = arith.constant 0 : i32
    %c0_i32_0 = arith.constant 0 : i32
    %c0_i32_1 = arith.constant 0 : i32
    return %c0_i32, %c0_i32_0 : i32, i32
  }
  func.func @transform_6(%arg0: i32) -> (i32, i32) {
    %c0_i32 = arith.constant 0 : i32
    %c0_i32_0 = arith.constant 0 : i32
    return %arg0, %c0_i32 : i32, i32
  }
}

module attributes {stable_mosaic.version = 11 : i64} {
  func.func @kernel(%arg0: i32, %arg1: i32, %arg2: i32, %arg3: memref<1x1x20x16xbf16, #tpu.memory_space<vmem>>, %arg4: memref<1x9x16x8xbf16, #tpu.memory_space<vmem>>, %arg5: memref<1x1x8x8xbf16, #tpu.memory_space<vmem>>, %arg6: memref<8x8xf32, #tpu.memory_space<vmem>>) attributes {dimension_semantics = [#tpu.dimension_semantics<parallel>, #tpu.dimension_semantics<parallel>, #tpu.dimension_semantics<arbitrary>], iteration_bounds = array<i64: 2, 2, 3>, scalar_prefetch = 0 : i64, scratch_operands = 1 : i64, tpu.core_type = #tpu.core_type<tc>, window_params = [{transform_indices = @transform_0, window_bounds = array<i64: 1, 1, 20, 16>}, {transform_indices = @transform_1, window_bounds = array<i64: 1, 9, 16, 8>}, {transform_indices = @transform_2, window_bounds = array<i64: 1, 1, 8, 8>}]} {
    %c0_i32 = arith.constant 0 : i32
    %0 = arith.cmpi eq, %arg2, %c0_i32 : i32
    %1 = arith.extui %0 : i1 to i32
    %c0_i32_0 = arith.constant 0 : i32
    %2 = arith.cmpi ne, %1, %c0_i32_0 : i32
    scf.if %2 {
      %cst_75 = arith.constant 0.000000e+00 : f32
      %62 = vector.broadcast %cst_75 : f32 to vector<8x8xf32>
      %c0_76 = arith.constant 0 : index
      %c0_77 = arith.constant 0 : index
      %63 = vector.load %arg6[%c0_76, %c0_77] : memref<8x8xf32, #tpu.memory_space<vmem>>, vector<8x8xf32>
      tpu.vector_store %arg6[%c0_76, %c0_77], %62 {strides = array<i32>} : memref<8x8xf32, #tpu.memory_space<vmem>>, vector<8x8xf32>,
    } else {
    }
    %c0 = arith.constant 0 : index
    %c0_1 = arith.constant 0 : index
    %3 = vector.load %arg6[%c0, %c0_1] : memref<8x8xf32, #tpu.memory_space<vmem>>, vector<8x8xf32>
    %c0_2 = arith.constant 0 : index
    %c0_3 = arith.constant 0 : index
    %c0_4 = arith.constant 0 : index
    %c0_5 = arith.constant 0 : index
    %4 = vector.load %arg3[%c0_2, %c0_3, %c0_4, %c0_5] : memref<1x1x20x16xbf16, #tpu.memory_space<vmem>>, vector<1x1x8x16xbf16>
    %5 = vector.shape_cast %4 : vector<1x1x8x16xbf16> to vector<8x16xbf16>
    %c0_6 = arith.constant 0 : index
    %c0_7 = arith.constant 0 : index
    %c0_8 = arith.constant 0 : index
    %c0_9 = arith.constant 0 : index
    %6 = vector.load %arg4[%c0_6, %c0_7, %c0_8, %c0_9] : memref<1x9x16x8xbf16, #tpu.memory_space<vmem>>, vector<1x1x16x8xbf16>
    %7 = vector.shape_cast %6 : vector<1x1x16x8xbf16> to vector<16x8xbf16>
    %cst = arith.constant dense<0.000000e+00> : vector<8x8xf32>
    %8 = tpu.matmul %5, %7, %cst {dimension_numbers = #tpu.dot_dimension_numbers<[1], [0], [0], [1], [0, 0, 1, 1], [], []>} : vector<8x16xbf16>, vector<16x8xbf16>, vector<8x8xf32> -> vector<8x8xf32>
    %9 = arith.addf %3, %8 : vector<8x8xf32>
    %c0_10 = arith.constant 0 : index
    %c0_11 = arith.constant 0 : index
    %c1 = arith.constant 1 : index
    %c0_12 = arith.constant 0 : index
    %10 = vector.load %arg3[%c0_10, %c0_11, %c1, %c0_12] : memref<1x1x20x16xbf16, #tpu.memory_space<vmem>>, vector<1x1x8x16xbf16>
    %11 = vector.shape_cast %10 : vector<1x1x8x16xbf16> to vector<8x16xbf16>
    %c0_13 = arith.constant 0 : index
    %c1_14 = arith.constant 1 : index
    %c0_15 = arith.constant 0 : index
    %c0_16 = arith.constant 0 : index
    %12 = vector.load %arg4[%c0_13, %c1_14, %c0_15, %c0_16] : memref<1x9x16x8xbf16, #tpu.memory_space<vmem>>, vector<1x1x16x8xbf16>
    %13 = vector.shape_cast %12 : vector<1x1x16x8xbf16> to vector<16x8xbf16>
    %cst_17 = arith.constant dense<0.000000e+00> : vector<8x8xf32>
    %14 = tpu.matmul %11, %13, %cst_17 {dimension_numbers = #tpu.dot_dimension_numbers<[1], [0], [0], [1], [0, 0, 1, 1], [], []>} : vector<8x16xbf16>, vector<16x8xbf16>, vector<8x8xf32> -> vector<8x8xf32>
    %15 = arith.addf %9, %14 : vector<8x8xf32>
    %c0_18 = arith.constant 0 : index
    %c0_19 = arith.constant 0 : index
    %c2 = arith.constant 2 : index
    %c0_20 = arith.constant 0 : index
    %16 = vector.load %arg3[%c0_18, %c0_19, %c2, %c0_20] : memref<1x1x20x16xbf16, #tpu.memory_space<vmem>>, vector<1x1x8x16xbf16>
    %17 = vector.shape_cast %16 : vector<1x1x8x16xbf16> to vector<8x16xbf16>
    %c0_21 = arith.constant 0 : index
    %c2_22 = arith.constant 2 : index
    %c0_23 = arith.constant 0 : index
    %c0_24 = arith.constant 0 : index
    %18 = vector.load %arg4[%c0_21, %c2_22, %c0_23, %c0_24] : memref<1x9x16x8xbf16, #tpu.memory_space<vmem>>, vector<1x1x16x8xbf16>
    %19 = vector.shape_cast %18 : vector<1x1x16x8xbf16> to vector<16x8xbf16>
    %cst_25 = arith.constant dense<0.000000e+00> : vector<8x8xf32>
    %20 = tpu.matmul %17, %19, %cst_25 {dimension_numbers = #tpu.dot_dimension_numbers<[1], [0], [0], [1], [0, 0, 1, 1], [], []>} : vector<8x16xbf16>, vector<16x8xbf16>, vector<8x8xf32> -> vector<8x8xf32>
    %21 = arith.addf %15, %20 : vector<8x8xf32>
    %c0_26 = arith.constant 0 : index
    %c0_27 = arith.constant 0 : index
    %c4 = arith.constant 4 : index
    %c0_28 = arith.constant 0 : index
    %22 = vector.load %arg3[%c0_26, %c0_27, %c4, %c0_28] : memref<1x1x20x16xbf16, #tpu.memory_space<vmem>>, vector<1x1x8x16xbf16>
    %23 = vector.shape_cast %22 : vector<1x1x8x16xbf16> to vector<8x16xbf16>
    %c0_29 = arith.constant 0 : index
    %c3 = arith.constant 3 : index
    %c0_30 = arith.constant 0 : index
    %c0_31 = arith.constant 0 : index
    %24 = vector.load %arg4[%c0_29, %c3, %c0_30, %c0_31] : memref<1x9x16x8xbf16, #tpu.memory_space<vmem>>, vector<1x1x16x8xbf16>
    %25 = vector.shape_cast %24 : vector<1x1x16x8xbf16> to vector<16x8xbf16>
    %cst_32 = arith.constant dense<0.000000e+00> : vector<8x8xf32>
    %26 = tpu.matmul %23, %25, %cst_32 {dimension_numbers = #tpu.dot_dimension_numbers<[1], [0], [0], [1], [0, 0, 1, 1], [], []>} : vector<8x16xbf16>, vector<16x8xbf16>, vector<8x8xf32> -> vector<8x8xf32>
    %27 = arith.addf %21, %26 : vector<8x8xf32>
    %c0_33 = arith.constant 0 : index
    %c0_34 = arith.constant 0 : index
    %c5 = arith.constant 5 : index
    %c0_35 = arith.constant 0 : index
    %28 = vector.load %arg3[%c0_33, %c0_34, %c5, %c0_35] : memref<1x1x20x16xbf16, #tpu.memory_space<vmem>>, vector<1x1x8x16xbf16>
    %29 = vector.shape_cast %28 : vector<1x1x8x16xbf16> to vector<8x16xbf16>
    %c0_36 = arith.constant 0 : index
    %c4_37 = arith.constant 4 : index
    %c0_38 = arith.constant 0 : index
    %c0_39 = arith.constant 0 : index
    %30 = vector.load %arg4[%c0_36, %c4_37, %c0_38, %c0_39] : memref<1x9x16x8xbf16, #tpu.memory_space<vmem>>, vector<1x1x16x8xbf16>
    %31 = vector.shape_cast %30 : vector<1x1x16x8xbf16> to vector<16x8xbf16>
    %cst_40 = arith.constant dense<0.000000e+00> : vector<8x8xf32>
    %32 = tpu.matmul %29, %31, %cst_40 {dimension_numbers = #tpu.dot_dimension_numbers<[1], [0], [0], [1], [0, 0, 1, 1], [], []>} : vector<8x16xbf16>, vector<16x8xbf16>, vector<8x8xf32> -> vector<8x8xf32>
    %33 = arith.addf %27, %32 : vector<8x8xf32>
    %c0_41 = arith.constant 0 : index
    %c0_42 = arith.constant 0 : index
    %c6 = arith.constant 6 : index
    %c0_43 = arith.constant 0 : index
    %34 = vector.load %arg3[%c0_41, %c0_42, %c6, %c0_43] : memref<1x1x20x16xbf16, #tpu.memory_space<vmem>>, vector<1x1x8x16xbf16>
    %35 = vector.shape_cast %34 : vector<1x1x8x16xbf16> to vector<8x16xbf16>
    %c0_44 = arith.constant 0 : index
    %c5_45 = arith.constant 5 : index
    %c0_46 = arith.constant 0 : index
    %c0_47 = arith.constant 0 : index
    %36 = vector.load %arg4[%c0_44, %c5_45, %c0_46, %c0_47] : memref<1x9x16x8xbf16, #tpu.memory_space<vmem>>, vector<1x1x16x8xbf16>
    %37 = vector.shape_cast %36 : vector<1x1x16x8xbf16> to vector<16x8xbf16>
    %cst_48 = arith.constant dense<0.000000e+00> : vector<8x8xf32>
    %38 = tpu.matmul %35, %37, %cst_48 {dimension_numbers = #tpu.dot_dimension_numbers<[1], [0], [0], [1], [0, 0, 1, 1], [], []>} : vector<8x16xbf16>, vector<16x8xbf16>, vector<8x8xf32> -> vector<8x8xf32>
    %39 = arith.addf %33, %38 : vector<8x8xf32>
    %c0_49 = arith.constant 0 : index
    %c0_50 = arith.constant 0 : index
    %c8 = arith.constant 8 : index
    %c0_51 = arith.constant 0 : index
    %40 = vector.load %arg3[%c0_49, %c0_50, %c8, %c0_51] : memref<1x1x20x16xbf16, #tpu.memory_space<vmem>>, vector<1x1x8x16xbf16>
    %41 = vector.shape_cast %40 : vector<1x1x8x16xbf16> to vector<8x16xbf16>
    %c0_52 = arith.constant 0 : index
    %c6_53 = arith.constant 6 : index
    %c0_54 = arith.constant 0 : index
    %c0_55 = arith.constant 0 : index
    %42 = vector.load %arg4[%c0_52, %c6_53, %c0_54, %c0_55] : memref<1x9x16x8xbf16, #tpu.memory_space<vmem>>, vector<1x1x16x8xbf16>
    %43 = vector.shape_cast %42 : vector<1x1x16x8xbf16> to vector<16x8xbf16>
    %cst_56 = arith.constant dense<0.000000e+00> : vector<8x8xf32>
    %44 = tpu.matmul %41, %43, %cst_56 {dimension_numbers = #tpu.dot_dimension_numbers<[1], [0], [0], [1], [0, 0, 1, 1], [], []>} : vector<8x16xbf16>, vector<16x8xbf16>, vector<8x8xf32> -> vector<8x8xf32>
    %45 = arith.addf %39, %44 : vector<8x8xf32>
    %c0_57 = arith.constant 0 : index
    %c0_58 = arith.constant 0 : index
    %c9 = arith.constant 9 : index
    %c0_59 = arith.constant 0 : index
    %46 = vector.load %arg3[%c0_57, %c0_58, %c9, %c0_59] : memref<1x1x20x16xbf16, #tpu.memory_space<vmem>>, vector<1x1x8x16xbf16>
    %47 = vector.shape_cast %46 : vector<1x1x8x16xbf16> to vector<8x16xbf16>
    %c0_60 = arith.constant 0 : index
    %c7 = arith.constant 7 : index
    %c0_61 = arith.constant 0 : index
    %c0_62 = arith.constant 0 : index
    %48 = vector.load %arg4[%c0_60, %c7, %c0_61, %c0_62] : memref<1x9x16x8xbf16, #tpu.memory_space<vmem>>, vector<1x1x16x8xbf16>
    %49 = vector.shape_cast %48 : vector<1x1x16x8xbf16> to vector<16x8xbf16>
    %cst_63 = arith.constant dense<0.000000e+00> : vector<8x8xf32>
    %50 = tpu.matmul %47, %49, %cst_63 {dimension_numbers = #tpu.dot_dimension_numbers<[1], [0], [0], [1], [0, 0, 1, 1], [], []>} : vector<8x16xbf16>, vector<16x8xbf16>, vector<8x8xf32> -> vector<8x8xf32>
    %51 = arith.addf %45, %50 : vector<8x8xf32>
    %c0_64 = arith.constant 0 : index
    %c0_65 = arith.constant 0 : index
    %c10 = arith.constant 10 : index
    %c0_66 = arith.constant 0 : index
    %52 = vector.load %arg3[%c0_64, %c0_65, %c10, %c0_66] : memref<1x1x20x16xbf16, #tpu.memory_space<vmem>>, vector<1x1x8x16xbf16>
    %53 = vector.shape_cast %52 : vector<1x1x8x16xbf16> to vector<8x16xbf16>
    %c0_67 = arith.constant 0 : index
    %c8_68 = arith.constant 8 : index
    %c0_69 = arith.constant 0 : index
    %c0_70 = arith.constant 0 : index
    %54 = vector.load %arg4[%c0_67, %c8_68, %c0_69, %c0_70] : memref<1x9x16x8xbf16, #tpu.memory_space<vmem>>, vector<1x1x16x8xbf16>
    %55 = vector.shape_cast %54 : vector<1x1x16x8xbf16> to vector<16x8xbf16>
    %cst_71 = arith.constant dense<0.000000e+00> : vector<8x8xf32>
    %56 = tpu.matmul %53, %55, %cst_71 {dimension_numbers = #tpu.dot_dimension_numbers<[1], [0], [0], [1], [0, 0, 1, 1], [], []>} : vector<8x16xbf16>, vector<16x8xbf16>, vector<8x8xf32> -> vector<8x8xf32>
    %57 = arith.addf %51, %56 : vector<8x8xf32>
    %c0_72 = arith.constant 0 : index
    %c0_73 = arith.constant 0 : index
    %58 = vector.load %arg6[%c0_72, %c0_73] : memref<8x8xf32, #tpu.memory_space<vmem>>, vector<8x8xf32>
    tpu.vector_store %arg6[%c0_72, %c0_73], %57 {strides = array<i32>} : memref<8x8xf32, #tpu.memory_space<vmem>>, vector<8x8xf32>,
    %c2_i32 = arith.constant 2 : i32
    %59 = arith.cmpi eq, %arg2, %c2_i32 : i32
    %60 = arith.extui %59 : i1 to i32
    %c0_i32_74 = arith.constant 0 : i32
    %61 = arith.cmpi ne, %60, %c0_i32_74 : i32
    scf.if %61 {
      %62 = arith.truncf %57 : vector<8x8xf32> to vector<8x8xbf16>
      %c0_75 = arith.constant 0 : index
      %c0_76 = arith.constant 0 : index
      %c0_77 = arith.constant 0 : index
      %c0_78 = arith.constant 0 : index
      %63 = vector.load %arg5[%c0_75, %c0_76, %c0_77, %c0_78] : memref<1x1x8x8xbf16, #tpu.memory_space<vmem>>, vector<1x1x8x8xbf16>
      %64 = vector.shape_cast %63 : vector<1x1x8x8xbf16> to vector<8x8xbf16>
      %65 = vector.shape_cast %62 : vector<8x8xbf16> to vector<1x1x8x8xbf16>
      tpu.vector_store %arg5[%c0_75, %c0_76, %c0_77, %c0_78], %65 {strides = array<i32>} : memref<1x1x8x8xbf16, #tpu.memory_space<vmem>>, vector<1x1x8x8xbf16>,
    } else {
    }
    return
  }
  func.func @transform_0(%arg0: i32, %arg1: i32, %arg2: i32) -> (i32, i32, i32, i32) {
    %0 = arith.addi %arg1, %arg2 : i32
    %c0_i32 = arith.constant 0 : i32
    %c0_i32_0 = arith.constant 0 : i32
    %c0_i32_1 = arith.constant 0 : i32
    return %arg0, %0, %c0_i32, %c0_i32_0 : i32, i32, i32, i32
  }
  func.func @transform_1(%arg0: i32, %arg1: i32, %arg2: i32) -> (i32, i32, i32, i32) {
    %c0_i32 = arith.constant 0 : i32
    %c0_i32_0 = arith.constant 0 : i32
    %c0_i32_1 = arith.constant 0 : i32
    %c0_i32_2 = arith.constant 0 : i32
    return %arg2, %c0_i32, %c0_i32_0, %c0_i32_1 : i32, i32, i32, i32
  }
  func.func @transform_2(%arg0: i32, %arg1: i32, %arg2: i32) -> (i32, i32, i32, i32) {
    %c0_i32 = arith.constant 0 : i32
    %c0_i32_0 = arith.constant 0 : i32
    %c0_i32_1 = arith.constant 0 : i32
    return %arg0, %arg1, %c0_i32, %c0_i32_0 : i32, i32, i32, i32
  }
}

module attributes {stable_mosaic.version = 11 : i64} {
  func.func @_gap_affine_kernel(%arg0: i32, %arg1: memref<2x8x32xbf16, #tpu.memory_space<vmem>>, %arg2: memref<1x32xf32, #tpu.memory_space<vmem>>, %arg3: memref<1x32xf32, #tpu.memory_space<vmem>>, %arg4: memref<2x32xf32, #tpu.memory_space<vmem>>) attributes {dimension_semantics = [#tpu.dimension_semantics<arbitrary>], iteration_bounds = array<i64: 1>, scalar_prefetch = 0 : i64, scratch_operands = 0 : i64, tpu.core_type = #tpu.core_type<tc>, window_params = [{pipeline_mode = #tpu.pipeline_mode<synchronous>, transform_indices = @transform_0, window_bounds = array<i64: 2, 8, 32>}, {pipeline_mode = #tpu.pipeline_mode<synchronous>, transform_indices = @transform_1, window_bounds = array<i64: 1, 32>}, {pipeline_mode = #tpu.pipeline_mode<synchronous>, transform_indices = @transform_2, window_bounds = array<i64: 1, 32>}, {pipeline_mode = #tpu.pipeline_mode<synchronous>, transform_indices = @transform_3, window_bounds = array<i64: 2, 32>}]} {
    %c0 = arith.constant 0 : index
    %c0_0 = arith.constant 0 : index
    %c0_1 = arith.constant 0 : index
    %0 = vector.load %arg1[%c0, %c0_0, %c0_1] : memref<2x8x32xbf16, #tpu.memory_space<vmem>>, vector<2x8x32xbf16>
    %1 = arith.extf %0 : vector<2x8x32xbf16> to vector<2x8x32xf32>
    %cst = arith.constant dense<0.000000e+00> : vector<2x32xf32>
    %2 = vector.multi_reduction <add>, %1, %cst [1] : vector<2x8x32xf32> to vector<2x32xf32>
    %cst_2 = arith.constant 8.000000e+00 : f32
    %3 = vector.broadcast %cst_2 : f32 to vector<2x32xf32>
    %4 = arith.divf %2, %3 : vector<2x32xf32>
    %c0_3 = arith.constant 0 : index
    %c0_4 = arith.constant 0 : index
    %5 = vector.load %arg2[%c0_3, %c0_4] : memref<1x32xf32, #tpu.memory_space<vmem>>, vector<1x32xf32>
    %6 = vector.broadcast %5 : vector<1x32xf32> to vector<2x32xf32>
    %7 = arith.mulf %4, %6 : vector<2x32xf32>
    %c0_5 = arith.constant 0 : index
    %c0_6 = arith.constant 0 : index
    %8 = vector.load %arg3[%c0_5, %c0_6] : memref<1x32xf32, #tpu.memory_space<vmem>>, vector<1x32xf32>
    %9 = vector.broadcast %8 : vector<1x32xf32> to vector<2x32xf32>
    %10 = arith.addf %7, %9 : vector<2x32xf32>
    %c0_7 = arith.constant 0 : index
    %c0_8 = arith.constant 0 : index
    %11 = vector.load %arg4[%c0_7, %c0_8] : memref<2x32xf32, #tpu.memory_space<vmem>>, vector<2x32xf32>
    tpu.vector_store %arg4[%c0_7, %c0_8], %10 {strides = array<i32>} : memref<2x32xf32, #tpu.memory_space<vmem>>, vector<2x32xf32>,
    return
  }
  func.func @transform_0(%arg0: i32) -> (i32, i32, i32) {
    %c0_i32 = arith.constant 0 : i32
    %c0_i32_0 = arith.constant 0 : i32
    %c0_i32_1 = arith.constant 0 : i32
    %c0_i32_2 = arith.constant 0 : i32
    return %c0_i32, %c0_i32_0, %c0_i32_1 : i32, i32, i32
  }
  func.func @transform_1(%arg0: i32) -> (i32, i32) {
    %c0_i32 = arith.constant 0 : i32
    %c0_i32_0 = arith.constant 0 : i32
    %c0_i32_1 = arith.constant 0 : i32
    return %c0_i32, %c0_i32_0 : i32, i32
  }
  func.func @transform_2(%arg0: i32) -> (i32, i32) {
    %c0_i32 = arith.constant 0 : i32
    %c0_i32_0 = arith.constant 0 : i32
    %c0_i32_1 = arith.constant 0 : i32
    return %c0_i32, %c0_i32_0 : i32, i32
  }
  func.func @transform_3(%arg0: i32) -> (i32, i32) {
    %c0_i32 = arith.constant 0 : i32
    %c0_i32_0 = arith.constant 0 : i32
    %c0_i32_1 = arith.constant 0 : i32
    return %c0_i32, %c0_i32_0 : i32, i32
  }
}

module attributes {stable_mosaic.version = 11 : i64} {
  func.func @_head_kernel(%arg0: i32, %arg1: memref<2x32xf32, #tpu.memory_space<vmem>>, %arg2: memref<32x3xf32, #tpu.memory_space<vmem>>, %arg3: memref<1x3xf32, #tpu.memory_space<vmem>>, %arg4: memref<2x3xf32, #tpu.memory_space<vmem>>) attributes {dimension_semantics = [#tpu.dimension_semantics<arbitrary>], iteration_bounds = array<i64: 1>, scalar_prefetch = 0 : i64, scratch_operands = 0 : i64, tpu.core_type = #tpu.core_type<tc>, window_params = [{pipeline_mode = #tpu.pipeline_mode<synchronous>, transform_indices = @transform_0, window_bounds = array<i64: 2, 32>}, {pipeline_mode = #tpu.pipeline_mode<synchronous>, transform_indices = @transform_1, window_bounds = array<i64: 32, 3>}, {pipeline_mode = #tpu.pipeline_mode<synchronous>, transform_indices = @transform_2, window_bounds = array<i64: 1, 3>}, {pipeline_mode = #tpu.pipeline_mode<synchronous>, transform_indices = @transform_3, window_bounds = array<i64: 2, 3>}]} {
    %c0 = arith.constant 0 : index
    %c0_0 = arith.constant 0 : index
    %0 = vector.load %arg1[%c0, %c0_0] : memref<2x32xf32, #tpu.memory_space<vmem>>, vector<2x32xf32>
    %cst = arith.constant 0.000000e+00 : f32
    %1 = vector.broadcast %cst : f32 to vector<2x32xf32>
    %2 = arith.maximumf %0, %1 : vector<2x32xf32>
    %3 = arith.mulf %2, %2 : vector<2x32xf32>
    %cst_1 = arith.constant dense<0.000000e+00> : vector<2xf32>
    %4 = vector.multi_reduction <add>, %3, %cst_1 [1] : vector<2x32xf32> to vector<2xf32>
    %5 = vector.shape_cast %4 : vector<2xf32> to vector<2x1xf32>
    %cst_2 = arith.constant 1.000000e-24 : f32
    %6 = vector.broadcast %cst_2 : f32 to vector<2x1xf32>
    %7 = arith.maximumf %5, %6 : vector<2x1xf32>
    %8 = math.rsqrt %7 : vector<2x1xf32>
    %9 = vector.broadcast %8 : vector<2x1xf32> to vector<2x32xf32>
    %10 = arith.mulf %2, %9 : vector<2x32xf32>
    %c0_3 = arith.constant 0 : index
    %c0_4 = arith.constant 0 : index
    %11 = vector.load %arg2[%c0_3, %c0_4] : memref<32x3xf32, #tpu.memory_space<vmem>>, vector<32x3xf32>
    %cst_5 = arith.constant dense<0.000000e+00> : vector<2x3xf32>
    %12 = tpu.matmul %10, %11, %cst_5 {dimension_numbers = #tpu.dot_dimension_numbers<[1], [0], [0], [1], [0, 0, 1, 1], [], []>} : vector<2x32xf32>, vector<32x3xf32>, vector<2x3xf32> -> vector<2x3xf32>
    %c0_6 = arith.constant 0 : index
    %c0_7 = arith.constant 0 : index
    %13 = vector.load %arg3[%c0_6, %c0_7] : memref<1x3xf32, #tpu.memory_space<vmem>>, vector<1x3xf32>
    %14 = vector.broadcast %13 : vector<1x3xf32> to vector<2x3xf32>
    %15 = arith.addf %12, %14 : vector<2x3xf32>
    %16 = arith.mulf %15, %15 : vector<2x3xf32>
    %cst_8 = arith.constant dense<0.000000e+00> : vector<2xf32>
    %17 = vector.multi_reduction <add>, %16, %cst_8 [1] : vector<2x3xf32> to vector<2xf32>
    %18 = vector.shape_cast %17 : vector<2xf32> to vector<2x1xf32>
    %cst_9 = arith.constant 1.000000e-24 : f32
    %19 = vector.broadcast %cst_9 : f32 to vector<2x1xf32>
    %20 = arith.maximumf %18, %19 : vector<2x1xf32>
    %21 = math.rsqrt %20 : vector<2x1xf32>
    %22 = vector.broadcast %21 : vector<2x1xf32> to vector<2x3xf32>
    %23 = arith.mulf %15, %22 : vector<2x3xf32>
    %c0_10 = arith.constant 0 : index
    %c0_11 = arith.constant 0 : index
    %24 = vector.load %arg4[%c0_10, %c0_11] : memref<2x3xf32, #tpu.memory_space<vmem>>, vector<2x3xf32>
    tpu.vector_store %arg4[%c0_10, %c0_11], %23 {strides = array<i32>} : memref<2x3xf32, #tpu.memory_space<vmem>>, vector<2x3xf32>,
    return
  }
  func.func @transform_0(%arg0: i32) -> (i32, i32) {
    %c0_i32 = arith.constant 0 : i32
    %c0_i32_0 = arith.constant 0 : i32
    %c0_i32_1 = arith.constant 0 : i32
    return %c0_i32, %c0_i32_0 : i32, i32
  }
  func.func @transform_1(%arg0: i32) -> (i32, i32) {
    %c0_i32 = arith.constant 0 : i32
    %c0_i32_0 = arith.constant 0 : i32
    %c0_i32_1 = arith.constant 0 : i32
    return %c0_i32, %c0_i32_0 : i32, i32
  }
  func.func @transform_2(%arg0: i32) -> (i32, i32) {
    %c0_i32 = arith.constant 0 : i32
    %c0_i32_0 = arith.constant 0 : i32
    %c0_i32_1 = arith.constant 0 : i32
    return %c0_i32, %c0_i32_0 : i32, i32
  }
  func.func @transform_3(%arg0: i32) -> (i32, i32) {
    %c0_i32 = arith.constant 0 : i32
    %c0_i32_0 = arith.constant 0 : i32
    %c0_i32_1 = arith.constant 0 : i32
    return %c0_i32, %c0_i32_0 : i32, i32
  }
}

</mosaic_0001>

<llo_original>
// kernel: densenet_mm_forward.36
$region0: #{densenet_mm_forward.36}
  #allocation0 [shape = 'u32[]', space=smem, size = 0x4, offset = 0x4, fixed_abs, tag = 'smem constant byte address 0x4 - core index']
  #allocation1 [shape = 'u32[144,128]{1,0:T(1,128)}', space=vmem, size = 0x12000, scoped, tag = 'internal scratch']
  %s0 = inlined_call_operand.vmem [shape: bf16[1024,343], index: 0, kind: input, shape index: {}]
  %s1 = inlined_call_operand.vmem [shape: f32[1,343], index: 1, kind: input, shape index: {}]
  %s2 = inlined_call_operand.vmem [shape: f32[1,343], index: 2, kind: input, shape index: {}]
  %s3 = inlined_call_operand.vmem [shape: bf16[343,16], index: 3, kind: input, shape index: {}]
  %s4 = inlined_call_operand.vmem [shape: f32[1,16], index: 4, kind: input, shape index: {}]
  %s5 = inlined_call_operand.vmem [shape: f32[1,16], index: 5, kind: input, shape index: {}]
  %s6 = inlined_call_operand.vmem [shape: bf16[1024,16], index: 6, kind: output, shape index: {}]
  %s7 = sld [smem:[#allocation0]]
  $region57: #{densenet_mm_forward.36} parent=0
    _
  %s9 = ssub.s32 1, %s7
  %s10 = scalar_select 0, %s9, %s7
  loop: start=0, step=1, limit=4
  $region2: #{densenet_mm_forward.36} parent=0 // loop_pre_header
    _
  $region3: #{densenet_mm_forward.36} parent=0 // loop_header
    %s12 = sphi 0, %s16
    %p13 = scmp.ge.s32.totalorder %s12, 4
    %s22 = sphi 0, %s24
    %s25 = sphi 0, %s22
    %s26 = sphi 0, %s25
    %s42 = sphi 0, %s26
    %s46 = sphi 0, %s46
    %s48 = sphi 0, %s46
    %s49 = sphi 0, %s48
    %s63 = sphi 0, %s49
    %s67 = sphi 0, %s67
    %s69 = sphi 0, %s67
    %s70 = sphi 0, %s69
    %s84 = sphi 0, %s70
    %s88 = sphi 0, %s88
    %s90 = sphi 0, %s88
    %s91 = sphi 0, %s90
    %s105 = sphi 0, %s91
    %s109 = sphi 0, %s109
    %s111 = sphi 0, %s109
    %s112 = sphi 0, %s111
    %s126 = sphi 0, %s112
    %s130 = sphi 0, %s130
    %s132 = sphi 0, %s130
    %s133 = sphi 0, %s132
    %s147 = sphi 0, %s133
    %s153 = sphi 0, %s155
    %s156 = sphi 0, %s153
    %s157 = sphi 0, %s156
    %s173 = sphi 0, %s157
  $region4: #{densenet_mm_forward.36} parent=0 // loop_header_branch
    %15 = sbr.rel (%p13) target = $region8
  $region5: #{densenet_mm_forward.36} parent=0 // loop_body
    %s17 = ssub.s32 %s12, 1
    %s18 = ssub.s32 %s12, 2
    %s19 = sadd.s32 %s12, 1
    %s20 = ssub.s32 %s12, %s19
    %p21 = scmp.eq.s32.totalorder %s20, 0
    %s23 = sadd.s32 %s22, 1
    %s24 = scalar_select %p21, %s22, %s23
    %p27 = pneg %p21
    %p28 = scmp.eq.s32.totalorder %s12, 1
    %p29 = por %p27, %p28
    %p30 = scmp.ne.s32.totalorder %s22, %s25
    %p31 = scmp.eq.s32.totalorder %s12, 0
    %p32 = por %p30, %p31
    %p33 = scmp.ne.s32.totalorder %s22, %s25
    %p34 = scmp.eq.s32.totalorder %s17, 1
    %p35 = por %p33, %p34
    %p36 = scmp.ne.s32.totalorder %s25, %s26
    %p37 = scmp.eq.s32.totalorder %s17, 0
    %p38 = por %p36, %p37
    %p39 = scmp.ne.s32.totalorder %s25, %s26
    %p40 = scmp.eq.s32.totalorder %s18, 1
    %p41 = por %p39, %p40
    %p43 = scmp.ne.s32.totalorder %s26, %s42
    %p44 = scmp.eq.s32.totalorder %s18, 0
    %p45 = por %p43, %p44
    %s47 = sadd.s32 %s46, 1
    %p50 = scmp.eq.s32.totalorder %s12, 1
    %p51 = scmp.ne.s32.totalorder %s46, %s48
    %p52 = scmp.eq.s32.totalorder %s12, 0
    %p53 = por %p51, %p52
    %p54 = scmp.ne.s32.totalorder %s46, %s48
    %p55 = scmp.eq.s32.totalorder %s17, 1
    %p56 = por %p54, %p55
    %p57 = scmp.ne.s32.totalorder %s48, %s49
    %p58 = scmp.eq.s32.totalorder %s17, 0
    %p59 = por %p57, %p58
    %p60 = scmp.ne.s32.totalorder %s48, %s49
    %p61 = scmp.eq.s32.totalorder %s18, 1
    %p62 = por %p60, %p61
    %p64 = scmp.ne.s32.totalorder %s49, %s63
    %p65 = scmp.eq.s32.totalorder %s18, 0
    %p66 = por %p64, %p65
    %s68 = sadd.s32 %s67, 1
    %p71 = scmp.eq.s32.totalorder %s12, 1
    %p72 = scmp.ne.s32.totalorder %s67, %s69
    %p73 = scmp.eq.s32.totalorder %s12, 0
    %p74 = por %p72, %p73
    %p75 = scmp.ne.s32.totalorder %s67, %s69
    %p76 = scmp.eq.s32.totalorder %s17, 1
    %p77 = por %p75, %p76
    %p78 = scmp.ne.s32.totalorder %s69, %s70
    %p79 = scmp.eq.s32.totalorder %s17, 0
    %p80 = por %p78, %p79
    %p81 = scmp.ne.s32.totalorder %s69, %s70
    %p82 = scmp.eq.s32.totalorder %s18, 1
    %p83 = por %p81, %p82
    %p85 = scmp.ne.s32.totalorder %s70, %s84
    %p86 = scmp.eq.s32.totalorder %s18, 0
    %p87 = por %p85, %p86
    %s89 = sadd.s32 %s88, 1
    %p92 = scmp.eq.s32.totalorder %s12, 1
    %p93 = scmp.ne.s32.totalorder %s88, %s90
    %p94 = scmp.eq.s32.totalorder %s12, 0
    %p95 = por %p93, %p94
    %p96 = scmp.ne.s32.totalorder %s88, %s90
    %p97 = scmp.eq.s32.totalorder %s17, 1
    %p98 = por %p96, %p97
    %p99 = scmp.ne.s32.totalorder %s90, %s91
    %p100 = scmp.eq.s32.totalorder %s17, 0
    %p101 = por %p99, %p100
    %p102 = scmp.ne.s32.totalorder %s90, %s91
    %p103 = scmp.eq.s32.totalorder %s18, 1
    %p104 = por %p102, %p103
    %p106 = scmp.ne.s32.totalorder %s91, %s105
    %p107 = scmp.eq.s32.totalorder %s18, 0
    %p108 = por %p106, %p107
    %s110 = sadd.s32 %s109, 1
    %p113 = scmp.eq.s32.totalorder %s12, 1
    %p114 = scmp.ne.s32.totalorder %s109, %s111
    %p115 = scmp.eq.s32.totalorder %s12, 0
    %p116 = por %p114, %p115
    %p117 = scmp.ne.s32.totalorder %s109, %s111
    %p118 = scmp.eq.s32.totalorder %s17, 1
    %p119 = por %p117, %p118
    %p120 = scmp.ne.s32.totalorder %s111, %s112
    %p121 = scmp.eq.s32.totalorder %s17, 0
    %p122 = por %p120, %p121
    %p123 = scmp.ne.s32.totalorder %s111, %s112
    %p124 = scmp.eq.s32.totalorder %s18, 1
    %p125 = por %p123, %p124
    %p127 = scmp.ne.s32.totalorder %s112, %s126
    %p128 = scmp.eq.s32.totalorder %s18, 0
    %p129 = por %p127, %p128
    %s131 = sadd.s32 %s130, 1
    %p134 = scmp.eq.s32.totalorder %s12, 1
    %p135 = scmp.ne.s32.totalorder %s130, %s132
    %p136 = scmp.eq.s32.totalorder %s12, 0
    %p137 = por %p135, %p136
    %p138 = scmp.ne.s32.totalorder %s130, %s132
    %p139 = scmp.eq.s32.totalorder %s17, 1
    %p140 = por %p138, %p139
    %p141 = scmp.ne.s32.totalorder %s132, %s133
    %p142 = scmp.eq.s32.totalorder %s17, 0
    %p143 = por %p141, %p142
    %p144 = scmp.ne.s32.totalorder %s132, %s133
    %p145 = scmp.eq.s32.totalorder %s18, 1
    %p146 = por %p144, %p145
    %p148 = scmp.ne.s32.totalorder %s133, %s147
    %p149 = scmp.eq.s32.totalorder %s18, 0
    %p150 = por %p148, %p149
    %s151 = ssub.s32 %s12, %s19
    %p152 = scmp.eq.s32.totalorder %s151, 0
    %s154 = sadd.s32 %s153, 1
    %s155 = scalar_select %p152, %s153, %s154
    %p158 = pneg %p152
    %p159 = scmp.eq.s32.totalorder %s12, 1
    %p160 = por %p158, %p159
    %p161 = scmp.ne.s32.totalorder %s153, %s156
    %p162 = scmp.eq.s32.totalorder %s12, 0
    %p163 = por %p161, %p162
    %p164 = scmp.ne.s32.totalorder %s153, %s156
    %p165 = scmp.eq.s32.totalorder %s17, 1
    %p166 = por %p164, %p165
    %p167 = scmp.ne.s32.totalorder %s156, %s157
    %p168 = scmp.eq.s32.totalorder %s17, 0
    %p169 = por %p167, %p168
    %p170 = scmp.ne.s32.totalorder %s156, %s157
    %p171 = scmp.eq.s32.totalorder %s18, 1
    %p172 = por %p170, %p171
    %p174 = scmp.ne.s32.totalorder %s157, %s173
    %p175 = scmp.eq.s32.totalorder %s18, 0
    %p176 = por %p174, %p175
    %p177 = scmp.le.s32.totalorder 1, %s12
    %p178 = scmp.lt.s32.totalorder %s12, 3
    %p179 = pnand %p177, %p178
    %p180 = pneg %p179
    // Predicated region
    $region9: #{densenet_mm_forward.36} parent=5 // pred_check
      _
    $region10: #{densenet_mm_forward.36} parent=5 // pred_check_branch
      %182 = sbr.rel (%p179) target = $region12
    $region11: #{densenet_mm_forward.36} parent=5 // pred_region
      %s183 = ssub.s32 %s12, 1
      // Predicated region
      $region13: #{densenet_mm_forward.36} parent=11 // pred_check
        %p184 = pneg %p59
      $region14: #{densenet_mm_forward.36} parent=11 // pred_check_branch
        %186 = sbr.rel (%p184) target = $region16
      $region15: #{densenet_mm_forward.36} parent=11 // pred_region
        _
      $region16: #{densenet_mm_forward.36} parent=11 // pred_fallthru
        _
      // Predicated region
      $region17: #{densenet_mm_forward.36} parent=11 // pred_check
        %p187 = pneg %p80
      $region18: #{densenet_mm_forward.36} parent=11 // pred_check_branch
        %189 = sbr.rel (%p187) target = $region20
      $region19: #{densenet_mm_forward.36} parent=11 // pred_region
        _
      $region20: #{densenet_mm_forward.36} parent=11 // pred_fallthru
        _
      // Predicated region
      $region21: #{densenet_mm_forward.36} parent=11 // pred_check
        %p190 = pneg %p101
      $region22: #{densenet_mm_forward.36} parent=11 // pred_check_branch
        %192 = sbr.rel (%p190) target = $region24
      $region23: #{densenet_mm_forward.36} parent=11 // pred_region
        _
      $region24: #{densenet_mm_forward.36} parent=11 // pred_fallthru
        _
      // Predicated region
      $region25: #{densenet_mm_forward.36} parent=11 // pred_check
        %p193 = pneg %p122
      $region26: #{densenet_mm_forward.36} parent=11 // pred_check_branch
        %195 = sbr.rel (%p193) target = $region28
      $region27: #{densenet_mm_forward.36} parent=11 // pred_region
        _
      $region28: #{densenet_mm_forward.36} parent=11 // pred_fallthru
        _
      // Predicated region
      $region29: #{densenet_mm_forward.36} parent=11 // pred_check
        %p196 = pneg %p143
      $region30: #{densenet_mm_forward.36} parent=11 // pred_check_branch
        %198 = sbr.rel (%p196) target = $region32
      $region31: #{densenet_mm_forward.36} parent=11 // pred_region
        _
      $region32: #{densenet_mm_forward.36} parent=11 // pred_fallthru
        _
    $region12: #{densenet_mm_forward.36} parent=5 // pred_fallthru
      _
    %p199 = scmp.lt.s32.totalorder %s12, 2
    // Predicated region
    $region33: #{densenet_mm_forward.36} parent=5 // pred_check
      %p200 = pneg %p199
    $region34: #{densenet_mm_forward.36} parent=5 // pred_check_branch
      %202 = sbr.rel (%p200) target = $region36
    $region35: #{densenet_mm_forward.36} parent=5 // pred_region
      // Predicated region
      $region37: #{densenet_mm_forward.36} parent=35 // pred_check
        %p203 = pneg %p32
      $region38: #{densenet_mm_forward.36} parent=35 // pred_check_branch
        %205 = sbr.rel (%p203) target = $region40
      $region39: #{densenet_mm_forward.36} parent=35 // pred_region
        %s206 = smul.u32 64, %s12
        %p207 = scmp.lt.s32.totalorder %s206, 127
        %s208 = scalar_select %p207, %s206, 127
        %s209 = smul.addr %s208, 3
        %s210 = smul.addr %s209, 4
        %s211 = scalar_lea.vmem %s0, %s210
        %s212 = smul.u32 64, %s12
      $region40: #{densenet_mm_forward.36} parent=35 // pred_fallthru
        _
    $region36: #{densenet_mm_forward.36} parent=5 // pred_fallthru
      _
    %p213 = scmp.le.s32.totalorder 1, %s12
    %p214 = scmp.lt.s32.totalorder %s12, 3
    %p215 = pnand %p213, %p214
    %p216 = pneg %p215
    // Predicated region
    $region41: #{densenet_mm_forward.36} parent=5 // pred_check
      _
    $region42: #{densenet_mm_forward.36} parent=5 // pred_check_branch
      %218 = sbr.rel (%p215) target = $region44
    $region43: #{densenet_mm_forward.36} parent=5 // pred_region
      %s219 = ssub.s32 %s12, 1
      %s220 = smul.u32 64, %s17
      %p221 = scmp.lt.s32.totalorder %s220, 127
      %s222 = scalar_select %p221, %s220, 127
      %s223 = smul.addr %s222, 3
      %s224 = smul.addr %s223, 4
      %s225 = scalar_lea.vmem %s0, %s224
      %p226 = pneg %p38
      %p227 = pneg %p35
      %p228 = pneg %p59
      %p229 = pneg %p56
      %p230 = pneg %p80
      %p231 = pneg %p77
      %p232 = pneg %p101
      %p233 = pneg %p98
      %p234 = pneg %p122
      %p235 = pneg %p119
      %p236 = pneg %p143
      %p237 = pneg %p140
      %p238 = pneg %p169
      %p239 = pneg %p166
      %s240 = smul.u32 64, %s17
      %p241 = scmp.lt.s32.totalorder %s240, 127
      %s242 = scalar_select %p241, %s240, 127
      %s243 = smul.addr %s242, 4
      %s244 = scalar_lea.vmem %s6, %s243
      %s245 = smul.u32 64, %s17
      %p246 = scmp.lt.s32.totalorder %s245, 127
      %s247 = scalar_select %p246, %s245, 127
      %s248 = smul.addr %s247, 3
      %s249 = smul.addr %s248, 4
      %s250 = scalar_lea.vmem %s0, %s249
      %s251 = smul.u32 64, %s17
      %s252 = smul.u32 64, %s17
      %p253 = scmp.lt.s32.totalorder %s252, 127
      %s254 = scalar_select %p253, %s252, 127
      %s255 = smul.addr %s254, 4
      %s256 = scalar_lea.vmem %s6, %s255
      %s257 = smul.u32 64, %s17
      %v259 = vld [vmem:[%s250] sm:$0xff]
      %v260 = vld [vmem:[%s250 + $0x8] sm:$0xf]
      %v261 = vld [vmem:[%s250 + $0xc] sm:$0xff]
      %v262 = vld [vmem:[%s250 + $0x14] sm:$0xf]
      %v263 = vld [vmem:[%s250 + $0x18] sm:$0xff]
      %v264 = vld [vmem:[%s250 + $0x20] sm:$0xf]
      %v265 = vld [vmem:[%s250 + $0x24] sm:$0xff]
      %v266 = vld [vmem:[%s250 + $0x2c] sm:$0xf]
      %v267 = vld [vmem:[%s250 + $0x30] sm:$0xff]
      %v268 = vld [vmem:[%s250 + $0x38] sm:$0xf]
      %v269 = vld [vmem:[%s250 + $0x3c] sm:$0xff]
      %v270 = vld [vmem:[%s250 + $0x44] sm:$0xf]
      %v271 = vld [vmem:[%s250 + $0x48] sm:$0xff]
      %v272 = vld [vmem:[%s250 + $0x50] sm:$0xf]
      %v273 = vld [vmem:[%s250 + $0x54] sm:$0xff]
      %v274 = vld [vmem:[%s250 + $0x5c] sm:$0xf]
      %v275 = vld [vmem:[%s250 + $0x60] sm:$0xff]
      %v276 = vld [vmem:[%s250 + $0x68] sm:$0xf]
      %v277 = vld [vmem:[%s250 + $0x6c] sm:$0xff]
      %v278 = vld [vmem:[%s250 + $0x74] sm:$0xf]
      %v279 = vld [vmem:[%s250 + $0x78] sm:$0xff]
      %v280 = vld [vmem:[%s250 + $0x80] sm:$0xf]
      %v281 = vld [vmem:[%s250 + $0x84] sm:$0xff]
      %v282 = vld [vmem:[%s250 + $0x8c] sm:$0xf]
      %v283 = vld [vmem:[%s250 + $0x90] sm:$0xff]
      %v284 = vld [vmem:[%s250 + $0x98] sm:$0xf]
      %v285 = vld [vmem:[%s250 + $0x9c] sm:$0xff]
      %v286 = vld [vmem:[%s250 + $0xa4] sm:$0xf]
      %v287 = vld [vmem:[%s250 + $0xa8] sm:$0xff]
      %v288 = vld [vmem:[%s250 + $0xb0] sm:$0xf]
      %v289 = vld [vmem:[%s250 + $0xb4] sm:$0xff]
      %v290 = vld [vmem:[%s250 + $0xbc] sm:$0xf]
      %v291 = vld [vmem:[%s250 + $0xc0] sm:$0xff]
      %v292 = vld [vmem:[%s250 + $0xc8] sm:$0xf]
      %v293 = vld [vmem:[%s250 + $0xcc] sm:$0xff]
      %v294 = vld [vmem:[%s250 + $0xd4] sm:$0xf]
      %v295 = vld [vmem:[%s250 + $0xd8] sm:$0xff]
      %v296 = vld [vmem:[%s250 + $0xe0] sm:$0xf]
      %v297 = vld [vmem:[%s250 + $0xe4] sm:$0xff]
      %v298 = vld [vmem:[%s250 + $0xec] sm:$0xf]
      %v299 = vld [vmem:[%s250 + $0xf0] sm:$0xff]
      %v300 = vld [vmem:[%s250 + $0xf8] sm:$0xf]
      %v301 = vld [vmem:[%s250 + $0xfc] sm:$0xff]
      %v302 = vld [vmem:[%s250 + $0x104] sm:$0xf]
      %v303 = vld [vmem:[%s250 + $0x108] sm:$0xff]
      %v304 = vld [vmem:[%s250 + $0x110] sm:$0xf]
      %v305 = vld [vmem:[%s250 + $0x114] sm:$0xff]
      %v306 = vld [vmem:[%s250 + $0x11c] sm:$0xf]
      %v307 = vld [vmem:[%s250 + $0x120] sm:$0xff]
      %v308 = vld [vmem:[%s250 + $0x128] sm:$0xf]
      %v309 = vld [vmem:[%s250 + $0x12c] sm:$0xff]
      %v310 = vld [vmem:[%s250 + $0x134] sm:$0xf]
      %v311 = vld [vmem:[%s250 + $0x138] sm:$0xff]
      %v312 = vld [vmem:[%s250 + $0x140] sm:$0xf]
      %v313 = vld [vmem:[%s250 + $0x144] sm:$0xff]
      %v314 = vld [vmem:[%s250 + $0x14c] sm:$0xf]
      %v315 = vld [vmem:[%s250 + $0x150] sm:$0xff]
      %v316 = vld [vmem:[%s250 + $0x158] sm:$0xf]
      %v317 = vld [vmem:[%s250 + $0x15c] sm:$0xff]
      %v318 = vld [vmem:[%s250 + $0x164] sm:$0xf]
      %v319 = vld [vmem:[%s250 + $0x168] sm:$0xff]
      %v320 = vld [vmem:[%s250 + $0x170] sm:$0xf]
      %v321 = vld [vmem:[%s250 + $0x174] sm:$0xff]
      %v322 = vld [vmem:[%s250 + $0x17c] sm:$0xf]
      %v323 = vld [vmem:[%s250 + $0x180] sm:$0xff]
      %v324 = vld [vmem:[%s250 + $0x188] sm:$0xf]
      %v325 = vld [vmem:[%s250 + $0x18c] sm:$0xff]
      %v326 = vld [vmem:[%s250 + $0x194] sm:$0xf]
      %v327 = vld [vmem:[%s250 + $0x198] sm:$0xff]
      %v328 = vld [vmem:[%s250 + $0x1a0] sm:$0xf]
      %v329 = vld [vmem:[%s250 + $0x1a4] sm:$0xff]
      %v330 = vld [vmem:[%s250 + $0x1ac] sm:$0xf]
      %v331 = vld [vmem:[%s250 + $0x1b0] sm:$0xff]
      %v332 = vld [vmem:[%s250 + $0x1b8] sm:$0xf]
      %v333 = vld [vmem:[%s250 + $0x1bc] sm:$0xff]
      %v334 = vld [vmem:[%s250 + $0x1c4] sm:$0xf]
      %v335 = vld [vmem:[%s250 + $0x1c8] sm:$0xff]
      %v336 = vld [vmem:[%s250 + $0x1d0] sm:$0xf]
      %v337 = vld [vmem:[%s250 + $0x1d4] sm:$0xff]
      %v338 = vld [vmem:[%s250 + $0x1dc] sm:$0xf]
      %v339 = vld [vmem:[%s250 + $0x1e0] sm:$0xff]
      %v340 = vld [vmem:[%s250 + $0x1e8] sm:$0xf]
      %v341 = vld [vmem:[%s250 + $0x1ec] sm:$0xff]
      %v342 = vld [vmem:[%s250 + $0x1f4] sm:$0xf]
      %v343 = vld [vmem:[%s250 + $0x1f8] sm:$0xff]
      %v344 = vld [vmem:[%s250 + $0x200] sm:$0xf]
      %v345 = vld [vmem:[%s250 + $0x204] sm:$0xff]
      %v346 = vld [vmem:[%s250 + $0x20c] sm:$0xf]
      %v347 = vld [vmem:[%s250 + $0x210] sm:$0xff]
      %v348 = vld [vmem:[%s250 + $0x218] sm:$0xf]
      %v349 = vld [vmem:[%s250 + $0x21c] sm:$0xff]
      %v350 = vld [vmem:[%s250 + $0x224] sm:$0xf]
      %v351 = vld [vmem:[%s250 + $0x228] sm:$0xff]
      %v352 = vld [vmem:[%s250 + $0x230] sm:$0xf]
      %v353 = vld [vmem:[%s250 + $0x234] sm:$0xff]
      %v354 = vld [vmem:[%s250 + $0x23c] sm:$0xf]
      %v355 = vld [vmem:[%s250 + $0x240] sm:$0xff]
      %v356 = vld [vmem:[%s250 + $0x248] sm:$0xf]
      %v357 = vld [vmem:[%s250 + $0x24c] sm:$0xff]
      %v358 = vld [vmem:[%s250 + $0x254] sm:$0xf]
      %v359 = vld [vmem:[%s250 + $0x258] sm:$0xff]
      %v360 = vld [vmem:[%s250 + $0x260] sm:$0xf]
      %v361 = vld [vmem:[%s250 + $0x264] sm:$0xff]
      %v362 = vld [vmem:[%s250 + $0x26c] sm:$0xf]
      %v363 = vld [vmem:[%s250 + $0x270] sm:$0xff]
      %v364 = vld [vmem:[%s250 + $0x278] sm:$0xf]
      %v365 = vld [vmem:[%s250 + $0x27c] sm:$0xff]
      %v366 = vld [vmem:[%s250 + $0x284] sm:$0xf]
      %v367 = vld [vmem:[%s250 + $0x288] sm:$0xff]
      %v368 = vld [vmem:[%s250 + $0x290] sm:$0xf]
      %v369 = vld [vmem:[%s250 + $0x294] sm:$0xff]
      %v370 = vld [vmem:[%s250 + $0x29c] sm:$0xf]
      %v371 = vld [vmem:[%s250 + $0x2a0] sm:$0xff]
      %v372 = vld [vmem:[%s250 + $0x2a8] sm:$0xf]
      %v373 = vld [vmem:[%s250 + $0x2ac] sm:$0xff]
      %v374 = vld [vmem:[%s250 + $0x2b4] sm:$0xf]
      %v375 = vld [vmem:[%s250 + $0x2b8] sm:$0xff]
      %v376 = vld [vmem:[%s250 + $0x2c0] sm:$0xf]
      %v377 = vld [vmem:[%s250 + $0x2c4] sm:$0xff]
      %v378 = vld [vmem:[%s250 + $0x2cc] sm:$0xf]
      %v379 = vld [vmem:[%s250 + $0x2d0] sm:$0xff]
      %v380 = vld [vmem:[%s250 + $0x2d8] sm:$0xf]
      %v381 = vld [vmem:[%s250 + $0x2dc] sm:$0xff]
      %v382 = vld [vmem:[%s250 + $0x2e4] sm:$0xf]
      %v383 = vld [vmem:[%s250 + $0x2e8] sm:$0xff]
      %v384 = vld [vmem:[%s250 + $0x2f0] sm:$0xf]
      %v385 = vld [vmem:[%s250 + $0x2f4] sm:$0xff]
      %v386 = vld [vmem:[%s250 + $0x2fc] sm:$0xf]
      %v387 = vld [vmem:[%s3] sm:$0xf]
      %v388 = vld [vmem:[%s3 + $0x4] sm:$0xf]
      %v389 = vld [vmem:[%s3 + $0x8] sm:$0xf]
      %v390 = vld [vmem:[%s3 + $0xc] sm:$0xf]
      %v391 = vld [vmem:[%s3 + $0x10] sm:$0xf]
      %v392 = vld [vmem:[%s3 + $0x14] sm:$0xf]
      %v393 = vld [vmem:[%s3 + $0x18] sm:$0xf]
      %v394 = vld [vmem:[%s3 + $0x1c] sm:$0xf]
      %v395 = vld [vmem:[%s3 + $0x20] sm:$0xf]
      %v396 = vld [vmem:[%s3 + $0x24] sm:$0xf]
      %v397 = vld [vmem:[%s3 + $0x28] sm:$0xf]
      %v398 = vld [vmem:[%s3 + $0x2c] sm:$0xf]
      %v399 = vld [vmem:[%s3 + $0x30] sm:$0xf]
      %v400 = vld [vmem:[%s3 + $0x34] sm:$0xf]
      %v401 = vld [vmem:[%s3 + $0x38] sm:$0xf]
      %v402 = vld [vmem:[%s3 + $0x3c] sm:$0xf]
      %v403 = vld [vmem:[%s3 + $0x40] sm:$0xf]
      %v404 = vld [vmem:[%s3 + $0x44] sm:$0xf]
      %v405 = vld [vmem:[%s3 + $0x48] sm:$0xf]
      %v406 = vld [vmem:[%s3 + $0x4c] sm:$0xf]
      %v407 = vld [vmem:[%s3 + $0x50] sm:$0xf]
      %v408 = vld [vmem:[%s3 + $0x54] sm:$0xf]
      %v409 = vld [vmem:[%s3 + $0x58] sm:$0xf]
      %v410 = vld [vmem:[%s3 + $0x5c] sm:$0xf]
      %v411 = vld [vmem:[%s3 + $0x60] sm:$0xf]
      %v412 = vld [vmem:[%s3 + $0x64] sm:$0xf]
      %v413 = vld [vmem:[%s3 + $0x68] sm:$0xf]
      %v414 = vld [vmem:[%s3 + $0x6c] sm:$0xf]
      %v415 = vld [vmem:[%s3 + $0x70] sm:$0xf]
      %v416 = vld [vmem:[%s3 + $0x74] sm:$0xf]
      %v417 = vld [vmem:[%s3 + $0x78] sm:$0xf]
      %v418 = vld [vmem:[%s3 + $0x7c] sm:$0xf]
      %v419 = vld [vmem:[%s3 + $0x80] sm:$0xf]
      %v420 = vld [vmem:[%s3 + $0x84] sm:$0xf]
      %v421 = vld [vmem:[%s3 + $0x88] sm:$0xf]
      %v422 = vld [vmem:[%s3 + $0x8c] sm:$0xf]
      %v423 = vld [vmem:[%s3 + $0x90] sm:$0xf]
      %v424 = vld [vmem:[%s3 + $0x94] sm:$0xf]
      %v425 = vld [vmem:[%s3 + $0x98] sm:$0xf]
      %v426 = vld [vmem:[%s3 + $0x9c] sm:$0xf]
      %v427 = vld [vmem:[%s3 + $0xa0] sm:$0xf]
      %v428 = vld [vmem:[%s3 + $0xa4] sm:$0xf]
      %v429 = vld [vmem:[%s3 + $0xa8] sm:$0xf]
      %v558 = vunpack.c.l.b16 %v259
      %v559 = vunpack.c.h.b16 %v259
      %v560 = vunpack.c.l.b16 %v260
      %v561 = vunpack.c.l.b16 %v261
      %v562 = vunpack.c.h.b16 %v261
      %v563 = vunpack.c.l.b16 %v262
      %v564 = vunpack.c.l.b16 %v263
      %v565 = vunpack.c.h.b16 %v263
      %v566 = vunpack.c.l.b16 %v264
      %v567 = vunpack.c.l.b16 %v265
      %v568 = vunpack.c.h.b16 %v265
      %v569 = vunpack.c.l.b16 %v266
      %v570 = vunpack.c.l.b16 %v267
      %v571 = vunpack.c.h.b16 %v267
      %v572 = vunpack.c.l.b16 %v268
      %v573 = vunpack.c.l.b16 %v269
      %v574 = vunpack.c.h.b16 %v269
      %v575 = vunpack.c.l.b16 %v270
      %v576 = vunpack.c.l.b16 %v271
      %v577 = vunpack.c.h.b16 %v271
      %v578 = vunpack.c.l.b16 %v272
      %v579 = vunpack.c.l.b16 %v273
      %v580 = vunpack.c.h.b16 %v273
      %v581 = vunpack.c.l.b16 %v274
      %v582 = vunpack.c.l.b16 %v275
      %v583 = vunpack.c.h.b16 %v275
      %v584 = vunpack.c.l.b16 %v276
      %v585 = vunpack.c.l.b16 %v277
      %v586 = vunpack.c.h.b16 %v277
      %v587 = vunpack.c.l.b16 %v278
      %v588 = vunpack.c.l.b16 %v279
      %v589 = vunpack.c.h.b16 %v279
      %v590 = vunpack.c.l.b16 %v280
      %v591 = vunpack.c.l.b16 %v281
      %v592 = vunpack.c.h.b16 %v281
      %v593 = vunpack.c.l.b16 %v282
      %v594 = vunpack.c.l.b16 %v283
      %v595 = vunpack.c.h.b16 %v283
      %v596 = vunpack.c.l.b16 %v284
      %v597 = vunpack.c.l.b16 %v285
      %v598 = vunpack.c.h.b16 %v285
      %v599 = vunpack.c.l.b16 %v286
      %v600 = vunpack.c.l.b16 %v287
      %v601 = vunpack.c.h.b16 %v287
      %v602 = vunpack.c.l.b16 %v288
      %v603 = vunpack.c.l.b16 %v289
      %v604 = vunpack.c.h.b16 %v289
      %v605 = vunpack.c.l.b16 %v290
      %v606 = vunpack.c.l.b16 %v291
      %v607 = vunpack.c.h.b16 %v291
      %v608 = vunpack.c.l.b16 %v292
      %v609 = vunpack.c.l.b16 %v293
      %v610 = vunpack.c.h.b16 %v293
      %v611 = vunpack.c.l.b16 %v294
      %v612 = vunpack.c.l.b16 %v295
      %v613 = vunpack.c.h.b16 %v295
      %v614 = vunpack.c.l.b16 %v296
      %v615 = vunpack.c.l.b16 %v297
      %v616 = vunpack.c.h.b16 %v297
      %v617 = vunpack.c.l.b16 %v298
      %v618 = vunpack.c.l.b16 %v299
      %v619 = vunpack.c.h.b16 %v299
      %v620 = vunpack.c.l.b16 %v300
      %v621 = vunpack.c.l.b16 %v301
      %v622 = vunpack.c.h.b16 %v301
      %v623 = vunpack.c.l.b16 %v302
      %v624 = vunpack.c.l.b16 %v303
      %v625 = vunpack.c.h.b16 %v303
      %v626 = vunpack.c.l.b16 %v304
      %v627 = vunpack.c.l.b16 %v305
      %v628 = vunpack.c.h.b16 %v305
      %v629 = vunpack.c.l.b16 %v306
      %v630 = vunpack.c.l.b16 %v307
      %v631 = vunpack.c.h.b16 %v307
      %v632 = vunpack.c.l.b16 %v308
      %v633 = vunpack.c.l.b16 %v309
      %v634 = vunpack.c.h.b16 %v309
      %v635 = vunpack.c.l.b16 %v310
      %v636 = vunpack.c.l.b16 %v311
      %v637 = vunpack.c.h.b16 %v311
      %v638 = vunpack.c.l.b16 %v312
      %v639 = vunpack.c.l.b16 %v313
      %v640 = vunpack.c.h.b16 %v313
      %v641 = vunpack.c.l.b16 %v314
      %v642 = vunpack.c.l.b16 %v315
      %v643 = vunpack.c.h.b16 %v315
      %v644 = vunpack.c.l.b16 %v316
      %v645 = vunpack.c.l.b16 %v317
      %v646 = vunpack.c.h.b16 %v317
      %v647 = vunpack.c.l.b16 %v318
      %v648 = vunpack.c.l.b16 %v319
      %v649 = vunpack.c.h.b16 %v319
      %v650 = vunpack.c.l.b16 %v320
      %v651 = vunpack.c.l.b16 %v321
      %v652 = vunpack.c.h.b16 %v321
      %v653 = vunpack.c.l.b16 %v322
      %v654 = vunpack.c.l.b16 %v323
      %v655 = vunpack.c.h.b16 %v323
      %v656 = vunpack.c.l.b16 %v324
      %v657 = vunpack.c.l.b16 %v325
      %v658 = vunpack.c.h.b16 %v325
      %v659 = vunpack.c.l.b16 %v326
      %v660 = vunpack.c.l.b16 %v327
      %v661 = vunpack.c.h.b16 %v327
      %v662 = vunpack.c.l.b16 %v328
      %v663 = vunpack.c.l.b16 %v329
      %v664 = vunpack.c.h.b16 %v329
      %v665 = vunpack.c.l.b16 %v330
      %v666 = vunpack.c.l.b16 %v331
      %v667 = vunpack.c.h.b16 %v331
      %v668 = vunpack.c.l.b16 %v332
      %v669 = vunpack.c.l.b16 %v333
      %v670 = vunpack.c.h.b16 %v333
      %v671 = vunpack.c.l.b16 %v334
      %v672 = vunpack.c.l.b16 %v335
      %v673 = vunpack.c.h.b16 %v335
      %v674 = vunpack.c.l.b16 %v336
      %v675 = vunpack.c.l.b16 %v337
      %v676 = vunpack.c.h.b16 %v337
      %v677 = vunpack.c.l.b16 %v338
      %v678 = vunpack.c.l.b16 %v339
      %v679 = vunpack.c.h.b16 %v339
      %v680 = vunpack.c.l.b16 %v340
      %v681 = vunpack.c.l.b16 %v341
      %v682 = vunpack.c.h.b16 %v341
      %v683 = vunpack.c.l.b16 %v342
      %v684 = vunpack.c.l.b16 %v343
      %v685 = vunpack.c.h.b16 %v343
      %v686 = vunpack.c.l.b16 %v344
      %v687 = vunpack.c.l.b16 %v345
      %v688 = vunpack.c.h.b16 %v345
      %v689 = vunpack.c.l.b16 %v346
      %v690 = vunpack.c.l.b16 %v347
      %v691 = vunpack.c.h.b16 %v347
      %v692 = vunpack.c.l.b16 %v348
      %v693 = vunpack.c.l.b16 %v349
      %v694 = vunpack.c.h.b16 %v349
      %v695 = vunpack.c.l.b16 %v350
      %v696 = vunpack.c.l.b16 %v351
      %v697 = vunpack.c.h.b16 %v351
      %v698 = vunpack.c.l.b16 %v352
      %v699 = vunpack.c.l.b16 %v353
      %v700 = vunpack.c.h.b16 %v353
      %v701 = vunpack.c.l.b16 %v354
      %v702 = vunpack.c.l.b16 %v355
      %v703 = vunpack.c.h.b16 %v355
      %v704 = vunpack.c.l.b16 %v356
      %v705 = vunpack.c.l.b16 %v357
      %v706 = vunpack.c.h.b16 %v357
      %v707 = vunpack.c.l.b16 %v358
      %v708 = vunpack.c.l.b16 %v359
      %v709 = vunpack.c.h.b16 %v359
      %v710 = vunpack.c.l.b16 %v360
      %v711 = vunpack.c.l.b16 %v361
      %v712 = vunpack.c.h.b16 %v361
      %v713 = vunpack.c.l.b16 %v362
      %v714 = vunpack.c.l.b16 %v363
      %v715 = vunpack.c.h.b16 %v363
      %v716 = vunpack.c.l.b16 %v364
      %v717 = vunpack.c.l.b16 %v365
      %v718 = vunpack.c.h.b16 %v365
      %v719 = vunpack.c.l.b16 %v366
      %v720 = vunpack.c.l.b16 %v367
      %v721 = vunpack.c.h.b16 %v367
      %v722 = vunpack.c.l.b16 %v368
      %v723 = vunpack.c.l.b16 %v369
      %v724 = vunpack.c.h.b16 %v369
      %v725 = vunpack.c.l.b16 %v370
      %v726 = vunpack.c.l.b16 %v371
      %v727 = vunpack.c.h.b16 %v371
      %v728 = vunpack.c.l.b16 %v372
      %v729 = vunpack.c.l.b16 %v373
      %v730 = vunpack.c.h.b16 %v373
      %v731 = vunpack.c.l.b16 %v374
      %v732 = vunpack.c.l.b16 %v375
      %v733 = vunpack.c.h.b16 %v375
      %v734 = vunpack.c.l.b16 %v376
      %v735 = vunpack.c.l.b16 %v377
      %v736 = vunpack.c.h.b16 %v377
      %v737 = vunpack.c.l.b16 %v378
      %v738 = vunpack.c.l.b16 %v379
      %v739 = vunpack.c.h.b16 %v379
      %v740 = vunpack.c.l.b16 %v380
      %v741 = vunpack.c.l.b16 %v381
      %v742 = vunpack.c.h.b16 %v381
      %v743 = vunpack.c.l.b16 %v382
      %v744 = vunpack.c.l.b16 %v383
      %v745 = vunpack.c.h.b16 %v383
      %v746 = vunpack.c.l.b16 %v384
      %v747 = vunpack.c.l.b16 %v385
      %v748 = vunpack.c.h.b16 %v385
      %v749 = vunpack.c.l.b16 %v386
      %v750 = vpack.c.b16 %v561, %v558
      %v751 = vpack.c.b16 %v562, %v559
      %v752 = vpack.c.b16 %v563, %v560
      %v753 = vpack.c.b16 %v567, %v564
      %v754 = vpack.c.b16 %v568, %v565
      %v755 = vpack.c.b16 %v569, %v566
      %v756 = vpack.c.b16 %v573, %v570
      %v757 = vpack.c.b16 %v574, %v571
      %v758 = vpack.c.b16 %v575, %v572
      %v759 = vpack.c.b16 %v579, %v576
      %v760 = vpack.c.b16 %v580, %v577
      %v761 = vpack.c.b16 %v581, %v578
      %v762 = vpack.c.b16 %v585, %v582
      %v763 = vpack.c.b16 %v586, %v583
      %v764 = vpack.c.b16 %v587, %v584
      %v765 = vpack.c.b16 %v591, %v588
      %v766 = vpack.c.b16 %v592, %v589
      %v767 = vpack.c.b16 %v593, %v590
      %v768 = vpack.c.b16 %v597, %v594
      %v769 = vpack.c.b16 %v598, %v595
      %v770 = vpack.c.b16 %v599, %v596
      %v771 = vpack.c.b16 %v603, %v600
      %v772 = vpack.c.b16 %v604, %v601
      %v773 = vpack.c.b16 %v605, %v602
      %v774 = vpack.c.b16 %v609, %v606
      %v775 = vpack.c.b16 %v610, %v607
      %v776 = vpack.c.b16 %v611, %v608
      %v777 = vpack.c.b16 %v615, %v612
      %v778 = vpack.c.b16 %v616, %v613
      %v779 = vpack.c.b16 %v617, %v614
      %v780 = vpack.c.b16 %v621, %v618
      %v781 = vpack.c.b16 %v622, %v619
      %v782 = vpack.c.b16 %v623, %v620
      %v783 = vpack.c.b16 %v627, %v624
      %v784 = vpack.c.b16 %v628, %v625
      %v785 = vpack.c.b16 %v629, %v626
      %v786 = vpack.c.b16 %v633, %v630
      %v787 = vpack.c.b16 %v634, %v631
      %v788 = vpack.c.b16 %v635, %v632
      %v789 = vpack.c.b16 %v639, %v636
      %v790 = vpack.c.b16 %v640, %v637
      %v791 = vpack.c.b16 %v641, %v638
      %v792 = vpack.c.b16 %v645, %v642
      %v793 = vpack.c.b16 %v646, %v643
      %v794 = vpack.c.b16 %v647, %v644
      %v795 = vpack.c.b16 %v651, %v648
      %v796 = vpack.c.b16 %v652, %v649
      %v797 = vpack.c.b16 %v653, %v650
      %v798 = vpack.c.b16 %v657, %v654
      %v799 = vpack.c.b16 %v658, %v655
      %v800 = vpack.c.b16 %v659, %v656
      %v801 = vpack.c.b16 %v663, %v660
      %v802 = vpack.c.b16 %v664, %v661
      %v803 = vpack.c.b16 %v665, %v662
      %v804 = vpack.c.b16 %v669, %v666
      %v805 = vpack.c.b16 %v670, %v667
      %v806 = vpack.c.b16 %v671, %v668
      %v807 = vpack.c.b16 %v675, %v672
      %v808 = vpack.c.b16 %v676, %v673
      %v809 = vpack.c.b16 %v677, %v674
      %v810 = vpack.c.b16 %v681, %v678
      %v811 = vpack.c.b16 %v682, %v679
      %v812 = vpack.c.b16 %v683, %v680
      %v813 = vpack.c.b16 %v687, %v684
      %v814 = vpack.c.b16 %v688, %v685
      %v815 = vpack.c.b16 %v689, %v686
      %v816 = vpack.c.b16 %v693, %v690
      %v817 = vpack.c.b16 %v694, %v691
      %v818 = vpack.c.b16 %v695, %v692
      %v819 = vpack.c.b16 %v699, %v696
      %v820 = vpack.c.b16 %v700, %v697
      %v821 = vpack.c.b16 %v701, %v698
      %v822 = vpack.c.b16 %v705, %v702
      %v823 = vpack.c.b16 %v706, %v703
      %v824 = vpack.c.b16 %v707, %v704
      %v825 = vpack.c.b16 %v711, %v708
      %v826 = vpack.c.b16 %v712, %v709
      %v827 = vpack.c.b16 %v713, %v710
      %v828 = vpack.c.b16 %v717, %v714
      %v829 = vpack.c.b16 %v718, %v715
      %v830 = vpack.c.b16 %v719, %v716
      %v831 = vpack.c.b16 %v723, %v720
      %v832 = vpack.c.b16 %v724, %v721
      %v833 = vpack.c.b16 %v725, %v722
      %v834 = vpack.c.b16 %v729, %v726
      %v835 = vpack.c.b16 %v730, %v727
      %v836 = vpack.c.b16 %v731, %v728
      %v837 = vpack.c.b16 %v735, %v732
      %v838 = vpack.c.b16 %v736, %v733
      %v839 = vpack.c.b16 %v737, %v734
      %v840 = vpack.c.b16 %v741, %v738
      %v841 = vpack.c.b16 %v742, %v739
      %v842 = vpack.c.b16 %v743, %v740
      %v843 = vpack.c.b16 %v747, %v744
      %v844 = vpack.c.b16 %v748, %v745
      %v845 = vpack.c.b16 %v749, %v746
      %v953 = vunpack.c.l.b16 %v387
      %v954 = vunpack.c.l.b16 %v388
      %v955 = vunpack.c.l.b16 %v389
      %v956 = vunpack.c.l.b16 %v390
      %v957 = vunpack.c.l.b16 %v391
      %v958 = vunpack.c.l.b16 %v392
      %v959 = vunpack.c.l.b16 %v393
      %v960 = vunpack.c.l.b16 %v394
      %v961 = vunpack.c.l.b16 %v395
      %v962 = vunpack.c.l.b16 %v396
      %v963 = vunpack.c.l.b16 %v397
      %v964 = vunpack.c.l.b16 %v398
      %v965 = vunpack.c.l.b16 %v399
      %v966 = vunpack.c.l.b16 %v400
      %v967 = vunpack.c.l.b16 %v401
      %v968 = vunpack.c.l.b16 %v402
      %v969 = vunpack.c.l.b16 %v403
      %v970 = vunpack.c.l.b16 %v404
      %v971 = vunpack.c.l.b16 %v405
      %v972 = vunpack.c.l.b16 %v406
      %v973 = vunpack.c.l.b16 %v407
      %v974 = vunpack.c.l.b16 %v408
      %v975 = vunpack.c.l.b16 %v409
      %v976 = vunpack.c.l.b16 %v410
      %v977 = vunpack.c.l.b16 %v411
      %v978 = vunpack.c.l.b16 %v412
      %v979 = vunpack.c.l.b16 %v413
      %v980 = vunpack.c.l.b16 %v414
      %v981 = vunpack.c.l.b16 %v415
      %v982 = vunpack.c.l.b16 %v416
      %v983 = vunpack.c.l.b16 %v417
      %v984 = vunpack.c.l.b16 %v418
      %v985 = vunpack.c.l.b16 %v419
      %v986 = vunpack.c.l.b16 %v420
      %v987 = vunpack.c.l.b16 %v421
      %v988 = vunpack.c.l.b16 %v422
      %v989 = vunpack.c.l.b16 %v423
      %v990 = vunpack.c.l.b16 %v424
      %v991 = vunpack.c.l.b16 %v425
      %v992 = vunpack.c.l.b16 %v426
      %v993 = vunpack.c.l.b16 %v427
      %v994 = vunpack.c.l.b16 %v428
      %v995 = vunpack.c.l.b16 %v429
      %v996 = vpack.c.b16 %v954, %v953
      %v997 = vpack.c.b16 %v956, %v955
      %v998 = vpack.c.b16 %v958, %v957
      %v999 = vpack.c.b16 %v960, %v959
      %v1000 = vpack.c.b16 %v962, %v961
      %v1001 = vpack.c.b16 %v964, %v963
      %v1002 = vpack.c.b16 %v966, %v965
      %v1003 = vpack.c.b16 %v968, %v967
      %v1004 = vpack.c.b16 %v970, %v969
      %v1005 = vpack.c.b16 %v972, %v971
      %v1006 = vpack.c.b16 %v974, %v973
      %v1007 = vpack.c.b16 %v976, %v975
      %v1008 = vpack.c.b16 %v978, %v977
      %v1009 = vpack.c.b16 %v980, %v979
      %v1010 = vpack.c.b16 %v982, %v981
      %v1011 = vpack.c.b16 %v984, %v983
      %v1012 = vpack.c.b16 %v986, %v985
      %v1013 = vpack.c.b16 %v988, %v987
      %v1014 = vpack.c.b16 %v990, %v989
      %v1015 = vpack.c.b16 %v992, %v991
      %v1016 = vpack.c.b16 %v994, %v993
      %v1017 = vpack.c.b16 %v995, %v995
      %vm1039 = vcmask 711680
      %v1041 = vsel %vm1039, %v752, 0
      %v1044 = vsel %vm1039, %v755, 0
      %v1047 = vsel %vm1039, %v758, 0
      %v1050 = vsel %vm1039, %v761, 0
      %v1053 = vsel %vm1039, %v764, 0
      %v1056 = vsel %vm1039, %v767, 0
      %v1059 = vsel %vm1039, %v770, 0
      %v1062 = vsel %vm1039, %v773, 0
      %v1065 = vsel %vm1039, %v776, 0
      %v1068 = vsel %vm1039, %v779, 0
      %v1071 = vsel %vm1039, %v782, 0
      %v1074 = vsel %vm1039, %v785, 0
      %v1077 = vsel %vm1039, %v788, 0
      %v1080 = vsel %vm1039, %v791, 0
      %v1083 = vsel %vm1039, %v794, 0
      %v1086 = vsel %vm1039, %v797, 0
      %v1089 = vsel %vm1039, %v800, 0
      %v1092 = vsel %vm1039, %v803, 0
      %v1095 = vsel %vm1039, %v806, 0
      %v1098 = vsel %vm1039, %v809, 0
      %v1101 = vsel %vm1039, %v812, 0
      %v1104 = vsel %vm1039, %v815, 0
      %v1107 = vsel %vm1039, %v818, 0
      %v1110 = vsel %vm1039, %v821, 0
      %v1113 = vsel %vm1039, %v824, 0
      %v1116 = vsel %vm1039, %v827, 0
      %v1119 = vsel %vm1039, %v830, 0
      %v1122 = vsel %vm1039, %v833, 0
      %v1125 = vsel %vm1039, %v836, 0
      %v1128 = vsel %vm1039, %v839, 0
      %v1131 = vsel %vm1039, %v842, 0
      %v1134 = vsel %vm1039, %v845, 0
      %vm1136 = vcmask 1042432
      %vm1137 = vcmask 1043456
      %v1138 = vsel %vm1136, 4294967295, 65535
      %v1139 = vsel %vm1137, %v1138, 0
      %v1141 = vand.u32 %v1017, %v1139
      %1143 = vmatprep.subr.bf16.mxu0 0
      %1144 = vmatpush1.bf16.msra.mxu0 %v996
      %1145 = vmatprep.subr.bf16.mxu0 0
      %1146 = vmatpush1.bf16.msra.mxu0 %v997
      %1147 = vmatprep.subr.bf16.mxu0 0
      %1148 = vmatpush1.bf16.msra.mxu0 %v998
      %1149 = vmatprep.subr.bf16.mxu0 0
      %1150 = vmatpush1.bf16.msra.mxu0 %v999
      %1151 = vmatprep.subr.bf16.mxu0 0
      %1152 = vmatpush1.bf16.msra.mxu0 %v1000
      %1153 = vmatprep.subr.bf16.mxu0 0
      %1154 = vmatpush1.bf16.msra.mxu0 %v1001
      %1155 = vmatprep.subr.bf16.mxu0 0
      %1156 = vmatpush1.bf16.msra.mxu0 %v1002
      %1157 = vmatprep.subr.bf16.mxu0 0
      %1158 = vmatpush1.bf16.msra.mxu0 %v1003
      %1159 = vmatprep.subr.bf16.mxu0 0
      %1160 = vmatpush1.bf16.msra.mxu0 %v1004
      %1161 = vmatprep.subr.bf16.mxu0 0
      %1162 = vmatpush1.bf16.msra.mxu0 %v1005
      %1163 = vmatprep.subr.bf16.mxu0 0
      %1164 = vmatpush1.bf16.msra.mxu0 %v1006
      %1165 = vmatprep.subr.bf16.mxu0 0
      %1166 = vmatpush1.bf16.msra.mxu0 %v1007
      %1167 = vmatprep.subr.bf16.mxu0 0
      %1168 = vmatpush1.bf16.msra.mxu0 %v1008
      %1169 = vmatprep.subr.bf16.mxu0 0
      %1170 = vmatpush1.bf16.msra.mxu0 %v1009
      %1171 = vmatprep.subr.bf16.mxu0 0
      %1172 = vmatpush1.bf16.msra.mxu0 %v1010
      %1173 = vmatprep.subr.bf16.mxu0 0
      %1174 = vmatpush1.bf16.msra.mxu0 %v1011
      %1175 = vmatprep.mubr.bf16.mxu0 %v751
      %1176 = vmatmul.mubr.bf16.gmra.mrb[0].mxu0 %v750
      %v1177 = vpop.f32.mrb[0].mxu0
      %v1178 = vadd.f32 0.0, %v1177
      %v1179 = vpop.f32.mrb[0].mxu0
      %v1180 = vpop.f32.mrb[0].mxu0
      %v1181 = vadd.f32 0.0, %v1180
      %v1182 = vpop.f32.mrb[0].mxu0
      %1183 = vmatprep.mubr.bf16.mxu0 %v754
      %1184 = vmatmul.mubr.bf16.gmra.mrb[0].mxu0 %v753
      %v1185 = vpop.f32.mrb[0].mxu0
      %v1186 = vadd.f32 0.0, %v1185
      %v1187 = vpop.f32.mrb[0].mxu0
      %v1188 = vpop.f32.mrb[0].mxu0
      %v1189 = vadd.f32 0.0, %v1188
      %v1190 = vpop.f32.mrb[0].mxu0
      %1191 = vmatprep.mubr.bf16.mxu0 %v757
      %1192 = vmatmul.mubr.bf16.gmra.mrb[0].mxu0 %v756
      %v1193 = vpop.f32.mrb[0].mxu0
      %v1194 = vadd.f32 0.0, %v1193
      %v1195 = vpop.f32.mrb[0].mxu0
      %v1196 = vpop.f32.mrb[0].mxu0
      %v1197 = vadd.f32 0.0, %v1196
      %v1198 = vpop.f32.mrb[0].mxu0
      %1199 = vmatprep.mubr.bf16.mxu0 %v760
      %1200 = vmatmul.mubr.bf16.gmra.mrb[0].mxu0 %v759
      %v1201 = vpop.f32.mrb[0].mxu0
      %v1202 = vadd.f32 0.0, %v1201
      %v1203 = vpop.f32.mrb[0].mxu0
      %v1204 = vpop.f32.mrb[0].mxu0
      %v1205 = vadd.f32 0.0, %v1204
      %v1206 = vpop.f32.mrb[0].mxu0
      %1207 = vmatprep.mubr.bf16.mxu0 %v763
      %1208 = vmatmul.mubr.bf16.gmra.mrb[0].mxu0 %v762
      %v1209 = vpop.f32.mrb[0].mxu0
      %v1210 = vadd.f32 0.0, %v1209
      %v1211 = vpop.f32.mrb[0].mxu0
      %v1212 = vpop.f32.mrb[0].mxu0
      %v1213 = vadd.f32 0.0, %v1212
      %v1214 = vpop.f32.mrb[0].mxu0
      %1215 = vmatprep.mubr.bf16.mxu0 %v766
      %1216 = vmatmul.mubr.bf16.gmra.mrb[0].mxu0 %v765
      %v1217 = vpop.f32.mrb[0].mxu0
      %v1218 = vadd.f32 0.0, %v1217
      %v1219 = vpop.f32.mrb[0].mxu0
      %v1220 = vpop.f32.mrb[0].mxu0
      %v1221 = vadd.f32 0.0, %v1220
      %v1222 = vpop.f32.mrb[0].mxu0
      %1223 = vmatprep.mubr.bf16.mxu0 %v769
      %1224 = vmatmul.mubr.bf16.gmra.mrb[0].mxu0 %v768
      %v1225 = vpop.f32.mrb[0].mxu0
      %v1226 = vadd.f32 0.0, %v1225
      %v1227 = vpop.f32.mrb[0].mxu0
      %v1228 = vpop.f32.mrb[0].mxu0
      %v1229 = vadd.f32 0.0, %v1228
      %v1230 = vpop.f32.mrb[0].mxu0
      %1231 = vmatprep.mubr.bf16.mxu0 %v772
      %1232 = vmatmul.mubr.bf16.gmra.mrb[0].mxu0 %v771
      %v1233 = vpop.f32.mrb[0].mxu0
      %v1234 = vadd.f32 0.0, %v1233
      %v1235 = vpop.f32.mrb[0].mxu0
      %v1236 = vpop.f32.mrb[0].mxu0
      %v1237 = vadd.f32 0.0, %v1236
      %v1238 = vpop.f32.mrb[0].mxu0
      %1239 = vmatprep.mubr.bf16.mxu0 %v775
      %1240 = vmatmul.mubr.bf16.gmra.mrb[0].mxu0 %v774
      %v1241 = vpop.f32.mrb[0].mxu0
      %v1242 = vadd.f32 0.0, %v1241
      %v1243 = vpop.f32.mrb[0].mxu0
      %v1244 = vpop.f32.mrb[0].mxu0
      %v1245 = vadd.f32 0.0, %v1244
      %v1246 = vpop.f32.mrb[0].mxu0
      %1247 = vmatprep.mubr.bf16.mxu0 %v778
      %1248 = vmatmul.mubr.bf16.gmra.mrb[0].mxu0 %v777
      %v1249 = vpop.f32.mrb[0].mxu0
      %v1250 = vadd.f32 0.0, %v1249
      %v1251 = vpop.f32.mrb[0].mxu0
      %v1252 = vpop.f32.mrb[0].mxu0
      %v1253 = vadd.f32 0.0, %v1252
      %v1254 = vpop.f32.mrb[0].mxu0
      %1255 = vmatprep.mubr.bf16.mxu0 %v781
      %1256 = vmatmul.mubr.bf16.gmra.mrb[0].mxu0 %v780
      %v1257 = vpop.f32.mrb[0].mxu0
      %v1258 = vadd.f32 0.0, %v1257
      %v1259 = vpop.f32.mrb[0].mxu0
      %v1260 = vpop.f32.mrb[0].mxu0
      %v1261 = vadd.f32 0.0, %v1260
      %v1262 = vpop.f32.mrb[0].mxu0
      %1263 = vmatprep.mubr.bf16.mxu0 %v784
      %1264 = vmatmul.mubr.bf16.gmra.mrb[0].mxu0 %v783
      %v1265 = vpop.f32.mrb[0].mxu0
      %v1266 = vadd.f32 0.0, %v1265
      %v1267 = vpop.f32.mrb[0].mxu0
      %v1268 = vpop.f32.mrb[0].mxu0
      %v1269 = vadd.f32 0.0, %v1268
      %v1270 = vpop.f32.mrb[0].mxu0
      %1271 = vmatprep.mubr.bf16.mxu0 %v787
      %1272 = vmatmul.mubr.bf16.gmra.mrb[0].mxu0 %v786
      %v1273 = vpop.f32.mrb[0].mxu0
      %v1274 = vadd.f32 0.0, %v1273
      %v1275 = vpop.f32.mrb[0].mxu0
      %v1276 = vpop.f32.mrb[0].mxu0
      %v1277 = vadd.f32 0.0, %v1276
      %v1278 = vpop.f32.mrb[0].mxu0
      %1279 = vmatprep.mubr.bf16.mxu0 %v790
      %1280 = vmatmul.mubr.bf16.gmra.mrb[0].mxu0 %v789
      %v1281 = vpop.f32.mrb[0].mxu0
      %v1282 = vadd.f32 0.0, %v1281
      %v1283 = vpop.f32.mrb[0].mxu0
      %v1284 = vpop.f32.mrb[0].mxu0
      %v1285 = vadd.f32 0.0, %v1284
      %v1286 = vpop.f32.mrb[0].mxu0
      %1287 = vmatprep.mubr.bf16.mxu0 %v793
      %1288 = vmatmul.mubr.bf16.gmra.mrb[0].mxu0 %v792
      %v1289 = vpop.f32.mrb[0].mxu0
      %v1290 = vadd.f32 0.0, %v1289
      %v1291 = vpop.f32.mrb[0].mxu0
      %v1292 = vpop.f32.mrb[0].mxu0
      %v1293 = vadd.f32 0.0, %v1292
      %v1294 = vpop.f32.mrb[0].mxu0
      %1295 = vmatprep.mubr.bf16.mxu0 %v796
      %1296 = vmatmul.mubr.bf16.gmra.mrb[0].mxu0 %v795
      %v1297 = vpop.f32.mrb[0].mxu0
      %v1298 = vadd.f32 0.0, %v1297
      %v1299 = vpop.f32.mrb[0].mxu0
      %v1300 = vpop.f32.mrb[0].mxu0
      %v1301 = vadd.f32 0.0, %v1300
      %v1302 = vpop.f32.mrb[0].mxu0
      %1303 = vmatprep.mubr.bf16.mxu0 %v799
      %1304 = vmatmul.mubr.bf16.gmra.mrb[0].mxu0 %v798
      %v1305 = vpop.f32.mrb[0].mxu0
      %v1306 = vadd.f32 0.0, %v1305
      %v1307 = vpop.f32.mrb[0].mxu0
      %v1308 = vpop.f32.mrb[0].mxu0
      %v1309 = vadd.f32 0.0, %v1308
      %v1310 = vpop.f32.mrb[0].mxu0
      %1311 = vmatprep.mubr.bf16.mxu0 %v802
      %1312 = vmatmul.mubr.bf16.gmra.mrb[0].mxu0 %v801
      %v1313 = vpop.f32.mrb[0].mxu0
      %v1314 = vadd.f32 0.0, %v1313
      %v1315 = vpop.f32.mrb[0].mxu0
      %v1316 = vpop.f32.mrb[0].mxu0
      %v1317 = vadd.f32 0.0, %v1316
      %v1318 = vpop.f32.mrb[0].mxu0
      %1319 = vmatprep.mubr.bf16.mxu0 %v805
      %1320 = vmatmul.mubr.bf16.gmra.mrb[0].mxu0 %v804
      %v1321 = vpop.f32.mrb[0].mxu0
      %v1322 = vadd.f32 0.0, %v1321
      %v1323 = vpop.f32.mrb[0].mxu0
      %v1324 = vpop.f32.mrb[0].mxu0
      %v1325 = vadd.f32 0.0, %v1324
      %v1326 = vpop.f32.mrb[0].mxu0
      %1327 = vmatprep.mubr.bf16.mxu0 %v808
      %1328 = vmatmul.mubr.bf16.gmra.mrb[0].mxu0 %v807
      %v1329 = vpop.f32.mrb[0].mxu0
      %v1330 = vadd.f32 0.0, %v1329
      %v1331 = vpop.f32.mrb[0].mxu0
      %v1332 = vpop.f32.mrb[0].mxu0
      %v1333 = vadd.f32 0.0, %v1332
      %v1334 = vpop.f32.mrb[0].mxu0
      %1335 = vmatprep.mubr.bf16.mxu0 %v811
      %1336 = vmatmul.mubr.bf16.gmra.mrb[0].mxu0 %v810
      %v1337 = vpop.f32.mrb[0].mxu0
      %v1338 = vadd.f32 0.0, %v1337
      %v1339 = vpop.f32.mrb[0].mxu0
      %v1340 = vpop.f32.mrb[0].mxu0
      %v1341 = vadd.f32 0.0, %v1340
      %v1342 = vpop.f32.mrb[0].mxu0
      %1343 = vmatprep.mubr.bf16.mxu0 %v814
      %1344 = vmatmul.mubr.bf16.gmra.mrb[0].mxu0 %v813
      %v1345 = vpop.f32.mrb[0].mxu0
      %v1346 = vadd.f32 0.0, %v1345
      %v1347 = vpop.f32.mrb[0].mxu0
      %v1348 = vpop.f32.mrb[0].mxu0
      %v1349 = vadd.f32 0.0, %v1348
      %v1350 = vpop.f32.mrb[0].mxu0
      %1351 = vmatprep.mubr.bf16.mxu0 %v817
      %1352 = vmatmul.mubr.bf16.gmra.mrb[0].mxu0 %v816
      %v1353 = vpop.f32.mrb[0].mxu0
      %v1354 = vadd.f32 0.0, %v1353
      %v1355 = vpop.f32.mrb[0].mxu0
      %v1356 = vpop.f32.mrb[0].mxu0
      %v1357 = vadd.f32 0.0, %v1356
      %v1358 = vpop.f32.mrb[0].mxu0
      %1359 = vmatprep.mubr.bf16.mxu0 %v820
      %1360 = vmatmul.mubr.bf16.gmra.mrb[0].mxu0 %v819
      %v1361 = vpop.f32.mrb[0].mxu0
      %v1362 = vadd.f32 0.0, %v1361
      %v1363 = vpop.f32.mrb[0].mxu0
      %v1364 = vpop.f32.mrb[0].mxu0
      %v1365 = vadd.f32 0.0, %v1364
      %v1366 = vpop.f32.mrb[0].mxu0
      %1367 = vmatprep.mubr.bf16.mxu0 %v823
      %1368 = vmatmul.mubr.bf16.gmra.mrb[0].mxu0 %v822
      %v1369 = vpop.f32.mrb[0].mxu0
      %v1370 = vadd.f32 0.0, %v1369
      %v1371 = vpop.f32.mrb[0].mxu0
      %v1372 = vpop.f32.mrb[0].mxu0
      %v1373 = vadd.f32 0.0, %v1372
      %v1374 = vpop.f32.mrb[0].mxu0
      %1375 = vmatprep.mubr.bf16.mxu0 %v826
      %1376 = vmatmul.mubr.bf16.gmra.mrb[0].mxu0 %v825
      %v1377 = vpop.f32.mrb[0].mxu0
      %v1378 = vadd.f32 0.0, %v1377
      %v1379 = vpop.f32.mrb[0].mxu0
      %v1380 = vpop.f32.mrb[0].mxu0
      %v1381 = vadd.f32 0.0, %v1380
      %v1382 = vpop.f32.mrb[0].mxu0
      %1383 = vmatprep.mubr.bf16.mxu0 %v829
      %1384 = vmatmul.mubr.bf16.gmra.mrb[0].mxu0 %v828
      %v1385 = vpop.f32.mrb[0].mxu0
      %v1386 = vadd.f32 0.0, %v1385
      %v1387 = vpop.f32.mrb[0].mxu0
      %v1388 = vpop.f32.mrb[0].mxu0
      %v1389 = vadd.f32 0.0, %v1388
      %v1390 = vpop.f32.mrb[0].mxu0
      %1391 = vmatprep.mubr.bf16.mxu0 %v832
      %1392 = vmatmul.mubr.bf16.gmra.mrb[0].mxu0 %v831
      %v1393 = vpop.f32.mrb[0].mxu0
      %v1394 = vadd.f32 0.0, %v1393
      %v1395 = vpop.f32.mrb[0].mxu0
      %v1396 = vpop.f32.mrb[0].mxu0
      %v1397 = vadd.f32 0.0, %v1396
      %v1398 = vpop.f32.mrb[0].mxu0
      %1399 = vmatprep.mubr.bf16.mxu0 %v835
      %1400 = vmatmul.mubr.bf16.gmra.mrb[0].mxu0 %v834
      %v1401 = vpop.f32.mrb[0].mxu0
      %v1402 = vadd.f32 0.0, %v1401
      %v1403 = vpop.f32.mrb[0].mxu0
      %v1404 = vpop.f32.mrb[0].mxu0
      %v1405 = vadd.f32 0.0, %v1404
      %v1406 = vpop.f32.mrb[0].mxu0
      %1407 = vmatprep.mubr.bf16.mxu0 %v838
      %1408 = vmatmul.mubr.bf16.gmra.mrb[0].mxu0 %v837
      %v1409 = vpop.f32.mrb[0].mxu0
      %v1410 = vadd.f32 0.0, %v1409
      %v1411 = vpop.f32.mrb[0].mxu0
      %v1412 = vpop.f32.mrb[0].mxu0
      %v1413 = vadd.f32 0.0, %v1412
      %v1414 = vpop.f32.mrb[0].mxu0
      %1415 = vmatprep.mubr.bf16.mxu0 %v841
      %1416 = vmatmul.mubr.bf16.gmra.mrb[0].mxu0 %v840
      %v1417 = vpop.f32.mrb[0].mxu0
      %v1418 = vadd.f32 0.0, %v1417
      %v1419 = vpop.f32.mrb[0].mxu0
      %v1420 = vpop.f32.mrb[0].mxu0
      %v1421 = vadd.f32 0.0, %v1420
      %v1422 = vpop.f32.mrb[0].mxu0
      %1423 = vmatprep.mubr.bf16.mxu0 %v844
      %1424 = vmatmul.mubr.bf16.gmra.mrb[0].mxu0 %v843
      %v1425 = vpop.f32.mrb[0].mxu0
      %v1426 = vadd.f32 0.0, %v1425
      %v1427 = vpop.f32.mrb[0].mxu0
      %v1428 = vpop.f32.mrb[0].mxu0
      %v1429 = vadd.f32 0.0, %v1428
      %v1430 = vpop.f32.mrb[0].mxu0
      %1431 = vdwg.mxu0
      %1432 = vmatprep.subr.bf16.mxu0 0
      %1433 = vmatpush1.bf16.msra.mxu0 %v1012
      %1434 = vmatprep.subr.bf16.mxu0 0
      %1435 = vmatpush1.bf16.msra.mxu0 %v1013
      %1436 = vmatprep.subr.bf16.mxu0 0
      %1437 = vmatpush1.bf16.msra.mxu0 %v1014
      %1438 = vmatprep.subr.bf16.mxu0 0
      %1439 = vmatpush1.bf16.msra.mxu0 %v1015
      %1440 = vmatprep.subr.bf16.mxu0 0
      %1441 = vmatpush1.bf16.msra.mxu0 %v1016
      %1442 = vmatprep.subr.bf16.mxu0 0
      %1443 = vmatpush1.bf16.msra.mxu0 %v1141
      %1444 = vmatprep.subr.bf16.mxu0 0
      %1445 = vmatpush1.bf16.msra.mxu0 0
      %1446 = vmatprep.subr.bf16.mxu0 0
      %1447 = vmatpush1.bf16.msra.mxu0 0
      %1448 = vmatprep.subr.bf16.mxu0 0
      %1449 = vmatpush1.bf16.msra.mxu0 0
      %1450 = vmatprep.subr.bf16.mxu0 0
      %1451 = vmatpush1.bf16.msra.mxu0 0
      %1452 = vmatprep.subr.bf16.mxu0 0
      %1453 = vmatpush1.bf16.msra.mxu0 0
      %1454 = vmatprep.subr.bf16.mxu0 0
      %1455 = vmatpush1.bf16.msra.mxu0 0
      %1456 = vmatprep.subr.bf16.mxu0 0
      %1457 = vmatpush1.bf16.msra.mxu0 0
      %1458 = vmatprep.subr.bf16.mxu0 0
      %1459 = vmatpush1.bf16.msra.mxu0 0
      %1460 = vmatprep.subr.bf16.mxu0 0
      %1461 = vmatpush1.bf16.msra.mxu0 0
      %1462 = vmatprep.subr.bf16.mxu0 0
      %1463 = vmatpush1.bf16.msra.mxu0 0
      %1464 = vmatprep.mubr.bf16.mxu0 0
      %1465 = vmatmul.mubr.bf16.gmra.mrb[0].mxu0 %v1041
      %v1466 = vpop.f32.mrb[0].mxu0
      %v1467 = vadd.f32 %v1178, %v1466
      %v1468 = vpop.f32.mrb[0].mxu0
      %v1469 = vpop.f32.mrb[0].mxu0
      %v1470 = vadd.f32 %v1181, %v1469
      %v1471 = vpop.f32.mrb[0].mxu0
      %1472 = vmatprep.mubr.bf16.mxu0 0
      %1473 = vmatmul.mubr.bf16.gmra.mrb[0].mxu0 %v1044
      %v1474 = vpop.f32.mrb[0].mxu0
      %v1475 = vadd.f32 %v1186, %v1474
      %v1476 = vpop.f32.mrb[0].mxu0
      %v1477 = vpop.f32.mrb[0].mxu0
      %v1478 = vadd.f32 %v1189, %v1477
      %v1479 = vpop.f32.mrb[0].mxu0
      %1480 = vmatprep.mubr.bf16.mxu0 0
      %1481 = vmatmul.mubr.bf16.gmra.mrb[0].mxu0 %v1047
      %v1482 = vpop.f32.mrb[0].mxu0
      %v1483 = vadd.f32 %v1194, %v1482
      %v1484 = vpop.f32.mrb[0].mxu0
      %v1485 = vpop.f32.mrb[0].mxu0
      %v1486 = vadd.f32 %v1197, %v1485
      %v1487 = vpop.f32.mrb[0].mxu0
      %1488 = vmatprep.mubr.bf16.mxu0 0
      %1489 = vmatmul.mubr.bf16.gmra.mrb[0].mxu0 %v1050
      %v1490 = vpop.f32.mrb[0].mxu0
      %v1491 = vadd.f32 %v1202, %v1490
      %v1492 = vpop.f32.mrb[0].mxu0
      %v1493 = vpop.f32.mrb[0].mxu0
      %v1494 = vadd.f32 %v1205, %v1493
      %v1495 = vpop.f32.mrb[0].mxu0
      %1496 = vmatprep.mubr.bf16.mxu0 0
      %1497 = vmatmul.mubr.bf16.gmra.mrb[0].mxu0 %v1053
      %v1498 = vpop.f32.mrb[0].mxu0
      %v1499 = vadd.f32 %v1210, %v1498
      %v1500 = vpop.f32.mrb[0].mxu0
      %v1501 = vpop.f32.mrb[0].mxu0
      %v1502 = vadd.f32 %v1213, %v1501
      %v1503 = vpop.f32.mrb[0].mxu0
      %1504 = vmatprep.mubr.bf16.mxu0 0
      %1505 = vmatmul.mubr.bf16.gmra.mrb[0].mxu0 %v1056
      %v1506 = vpop.f32.mrb[0].mxu0
      %v1507 = vadd.f32 %v1218, %v1506
      %v1508 = vpop.f32.mrb[0].mxu0
      %v1509 = vpop.f32.mrb[0].mxu0
      %v1510 = vadd.f32 %v1221, %v1509
      %v1511 = vpop.f32.mrb[0].mxu0
      %1512 = vmatprep.mubr.bf16.mxu0 0
      %1513 = vmatmul.mubr.bf16.gmra.mrb[0].mxu0 %v1059
      %v1514 = vpop.f32.mrb[0].mxu0
      %v1515 = vadd.f32 %v1226, %v1514
      %v1516 = vpop.f32.mrb[0].mxu0
      %v1517 = vpop.f32.mrb[0].mxu0
      %v1518 = vadd.f32 %v1229, %v1517
      %v1519 = vpop.f32.mrb[0].mxu0
      %1520 = vmatprep.mubr.bf16.mxu0 0
      %1521 = vmatmul.mubr.bf16.gmra.mrb[0].mxu0 %v1062
      %v1522 = vpop.f32.mrb[0].mxu0
      %v1523 = vadd.f32 %v1234, %v1522
      %v1524 = vpop.f32.mrb[0].mxu0
      %v1525 = vpop.f32.mrb[0].mxu0
      %v1526 = vadd.f32 %v1237, %v1525
      %v1527 = vpop.f32.mrb[0].mxu0
      %1528 = vmatprep.mubr.bf16.mxu0 0
      %1529 = vmatmul.mubr.bf16.gmra.mrb[0].mxu0 %v1065
      %v1530 = vpop.f32.mrb[0].mxu0
      %v1531 = vadd.f32 %v1242, %v1530
      %v1532 = vpop.f32.mrb[0].mxu0
      %v1533 = vpop.f32.mrb[0].mxu0
      %v1534 = vadd.f32 %v1245, %v1533
      %v1535 = vpop.f32.mrb[0].mxu0
      %1536 = vmatprep.mubr.bf16.mxu0 0
      %1537 = vmatmul.mubr.bf16.gmra.mrb[0].mxu0 %v1068
      %v1538 = vpop.f32.mrb[0].mxu0
      %v1539 = vadd.f32 %v1250, %v1538
      %v1540 = vpop.f32.mrb[0].mxu0
      %v1541 = vpop.f32.mrb[0].mxu0
      %v1542 = vadd.f32 %v1253, %v1541
      %v1543 = vpop.f32.mrb[0].mxu0
      %1544 = vmatprep.mubr.bf16.mxu0 0
      %1545 = vmatmul.mubr.bf16.gmra.mrb[0].mxu0 %v1071
      %v1546 = vpop.f32.mrb[0].mxu0
      %v1547 = vadd.f32 %v1258, %v1546
      %v1548 = vpop.f32.mrb[0].mxu0
      %v1549 = vpop.f32.mrb[0].mxu0
      %v1550 = vadd.f32 %v1261, %v1549
      %v1551 = vpop.f32.mrb[0].mxu0
      %1552 = vmatprep.mubr.bf16.mxu0 0
      %1553 = vmatmul.mubr.bf16.gmra.mrb[0].mxu0 %v1074
      %v1554 = vpop.f32.mrb[0].mxu0
      %v1555 = vadd.f32 %v1266, %v1554
      %v1556 = vpop.f32.mrb[0].mxu0
      %v1557 = vpop.f32.mrb[0].mxu0
      %v1558 = vadd.f32 %v1269, %v1557
      %v1559 = vpop.f32.mrb[0].mxu0
      %1560 = vmatprep.mubr.bf16.mxu0 0
      %1561 = vmatmul.mubr.bf16.gmra.mrb[0].mxu0 %v1077
      %v1562 = vpop.f32.mrb[0].mxu0
      %v1563 = vadd.f32 %v1274, %v1562
      %v1564 = vpop.f32.mrb[0].mxu0
      %v1565 = vpop.f32.mrb[0].mxu0
      %v1566 = vadd.f32 %v1277, %v1565
      %v1567 = vpop.f32.mrb[0].mxu0
      %1568 = vmatprep.mubr.bf16.mxu0 0
      %1569 = vmatmul.mubr.bf16.gmra.mrb[0].mxu0 %v1080
      %v1570 = vpop.f32.mrb[0].mxu0
      %v1571 = vadd.f32 %v1282, %v1570
      %v1572 = vpop.f32.mrb[0].mxu0
      %v1573 = vpop.f32.mrb[0].mxu0
      %v1574 = vadd.f32 %v1285, %v1573
      %v1575 = vpop.f32.mrb[0].mxu0
      %1576 = vmatprep.mubr.bf16.mxu0 0
      %1577 = vmatmul.mubr.bf16.gmra.mrb[0].mxu0 %v1083
      %v1578 = vpop.f32.mrb[0].mxu0
      %v1579 = vadd.f32 %v1290, %v1578
      %v1580 = vpop.f32.mrb[0].mxu0
      %v1581 = vpop.f32.mrb[0].mxu0
      %v1582 = vadd.f32 %v1293, %v1581
      %v1583 = vpop.f32.mrb[0].mxu0
      %1584 = vmatprep.mubr.bf16.mxu0 0
      %1585 = vmatmul.mubr.bf16.gmra.mrb[0].mxu0 %v1086
      %v1586 = vpop.f32.mrb[0].mxu0
      %v1587 = vadd.f32 %v1298, %v1586
      %v1588 = vpop.f32.mrb[0].mxu0
      %v1589 = vpop.f32.mrb[0].mxu0
      %v1590 = vadd.f32 %v1301, %v1589
      %v1591 = vpop.f32.mrb[0].mxu0
      %1592 = vmatprep.mubr.bf16.mxu0 0
      %1593 = vmatmul.mubr.bf16.gmra.mrb[0].mxu0 %v1089
      %v1594 = vpop.f32.mrb[0].mxu0
      %v1595 = vadd.f32 %v1306, %v1594
      %v1596 = vpop.f32.mrb[0].mxu0
      %v1597 = vpop.f32.mrb[0].mxu0
      %v1598 = vadd.f32 %v1309, %v1597
      %v1599 = vpop.f32.mrb[0].mxu0
      %1600 = vmatprep.mubr.bf16.mxu0 0
      %1601 = vmatmul.mubr.bf16.gmra.mrb[0].mxu0 %v1092
      %v1602 = vpop.f32.mrb[0].mxu0
      %v1603 = vadd.f32 %v1314, %v1602
      %v1604 = vpop.f32.mrb[0].mxu0
      %v1605 = vpop.f32.mrb[0].mxu0
      %v1606 = vadd.f32 %v1317, %v1605
      %v1607 = vpop.f32.mrb[0].mxu0
      %1608 = vmatprep.mubr.bf16.mxu0 0
      %1609 = vmatmul.mubr.bf16.gmra.mrb[0].mxu0 %v1095
      %v1610 = vpop.f32.mrb[0].mxu0
      %v1611 = vadd.f32 %v1322, %v1610
      %v1612 = vpop.f32.mrb[0].mxu0
      %v1613 = vpop.f32.mrb[0].mxu0
      %v1614 = vadd.f32 %v1325, %v1613
      %v1615 = vpop.f32.mrb[0].mxu0
      %1616 = vmatprep.mubr.bf16.mxu0 0
      %1617 = vmatmul.mubr.bf16.gmra.mrb[0].mxu0 %v1098
      %v1618 = vpop.f32.mrb[0].mxu0
      %v1619 = vadd.f32 %v1330, %v1618
      %v1620 = vpop.f32.mrb[0].mxu0
      %v1621 = vpop.f32.mrb[0].mxu0
      %v1622 = vadd.f32 %v1333, %v1621
      %v1623 = vpop.f32.mrb[0].mxu0
      %1624 = vmatprep.mubr.bf16.mxu0 0
      %1625 = vmatmul.mubr.bf16.gmra.mrb[0].mxu0 %v1101
      %v1626 = vpop.f32.mrb[0].mxu0
      %v1627 = vadd.f32 %v1338, %v1626
      %v1628 = vpop.f32.mrb[0].mxu0
      %v1629 = vpop.f32.mrb[0].mxu0
      %v1630 = vadd.f32 %v1341, %v1629
      %v1631 = vpop.f32.mrb[0].mxu0
      %1632 = vmatprep.mubr.bf16.mxu0 0
      %1633 = vmatmul.mubr.bf16.gmra.mrb[0].mxu0 %v1104
      %v1634 = vpop.f32.mrb[0].mxu0
      %v1635 = vadd.f32 %v1346, %v1634
      %v1636 = vpop.f32.mrb[0].mxu0
      %v1637 = vpop.f32.mrb[0].mxu0
      %v1638 = vadd.f32 %v1349, %v1637
      %v1639 = vpop.f32.mrb[0].mxu0
      %1640 = vmatprep.mubr.bf16.mxu0 0
      %1641 = vmatmul.mubr.bf16.gmra.mrb[0].mxu0 %v1107
      %v1642 = vpop.f32.mrb[0].mxu0
      %v1643 = vadd.f32 %v1354, %v1642
      %v1644 = vpop.f32.mrb[0].mxu0
      %v1645 = vpop.f32.mrb[0].mxu0
      %v1646 = vadd.f32 %v1357, %v1645
      %v1647 = vpop.f32.mrb[0].mxu0
      %1648 = vmatprep.mubr.bf16.mxu0 0
      %1649 = vmatmul.mubr.bf16.gmra.mrb[0].mxu0 %v1110
      %v1650 = vpop.f32.mrb[0].mxu0
      %v1651 = vadd.f32 %v1362, %v1650
      %v1652 = vpop.f32.mrb[0].mxu0
      %v1653 = vpop.f32.mrb[0].mxu0
      %v1654 = vadd.f32 %v1365, %v1653
      %v1655 = vpop.f32.mrb[0].mxu0
      %1656 = vmatprep.mubr.bf16.mxu0 0
      %1657 = vmatmul.mubr.bf16.gmra.mrb[0].mxu0 %v1113
      %v1658 = vpop.f32.mrb[0].mxu0
      %v1659 = vadd.f32 %v1370, %v1658
      %v1660 = vpop.f32.mrb[0].mxu0
      %v1661 = vpop.f32.mrb[0].mxu0
      %v1662 = vadd.f32 %v1373, %v1661
      %v1663 = vpop.f32.mrb[0].mxu0
      %1664 = vmatprep.mubr.bf16.mxu0 0
      %1665 = vmatmul.mubr.bf16.gmra.mrb[0].mxu0 %v1116
      %v1666 = vpop.f32.mrb[0].mxu0
      %v1667 = vadd.f32 %v1378, %v1666
      %v1668 = vpop.f32.mrb[0].mxu0
      %v1669 = vpop.f32.mrb[0].mxu0
      %v1670 = vadd.f32 %v1381, %v1669
      %v1671 = vpop.f32.mrb[0].mxu0
      %1672 = vmatprep.mubr.bf16.mxu0 0
      %1673 = vmatmul.mubr.bf16.gmra.mrb[0].mxu0 %v1119
      %v1674 = vpop.f32.mrb[0].mxu0
      %v1675 = vadd.f32 %v1386, %v1674
      %v1676 = vpop.f32.mrb[0].mxu0
      %v1677 = vpop.f32.mrb[0].mxu0
      %v1678 = vadd.f32 %v1389, %v1677
      %v1679 = vpop.f32.mrb[0].mxu0
      %1680 = vmatprep.mubr.bf16.mxu0 0
      %1681 = vmatmul.mubr.bf16.gmra.mrb[0].mxu0 %v1122
      %v1682 = vpop.f32.mrb[0].mxu0
      %v1683 = vadd.f32 %v1394, %v1682
      %v1684 = vpop.f32.mrb[0].mxu0
      %v1685 = vpop.f32.mrb[0].mxu0
      %v1686 = vadd.f32 %v1397, %v1685
      %v1687 = vpop.f32.mrb[0].mxu0
      %1688 = vmatprep.mubr.bf16.mxu0 0
      %1689 = vmatmul.mubr.bf16.gmra.mrb[0].mxu0 %v1125
      %v1690 = vpop.f32.mrb[0].mxu0
      %v1691 = vadd.f32 %v1402, %v1690
      %v1692 = vpop.f32.mrb[0].mxu0
      %v1693 = vpop.f32.mrb[0].mxu0
      %v1694 = vadd.f32 %v1405, %v1693
      %v1695 = vpop.f32.mrb[0].mxu0
      %1696 = vmatprep.mubr.bf16.mxu0 0
      %1697 = vmatmul.mubr.bf16.gmra.mrb[0].mxu0 %v1128
      %v1698 = vpop.f32.mrb[0].mxu0
      %v1699 = vadd.f32 %v1410, %v1698
      %v1700 = vpop.f32.mrb[0].mxu0
      %v1701 = vpop.f32.mrb[0].mxu0
      %v1702 = vadd.f32 %v1413, %v1701
      %v1703 = vpop.f32.mrb[0].mxu0
      %1704 = vmatprep.mubr.bf16.mxu0 0
      %1705 = vmatmul.mubr.bf16.gmra.mrb[0].mxu0 %v1131
      %v1706 = vpop.f32.mrb[0].mxu0
      %v1707 = vadd.f32 %v1418, %v1706
      %v1708 = vpop.f32.mrb[0].mxu0
      %v1709 = vpop.f32.mrb[0].mxu0
      %v1710 = vadd.f32 %v1421, %v1709
      %v1711 = vpop.f32.mrb[0].mxu0
      %1712 = vmatprep.mubr.bf16.mxu0 0
      %1713 = vmatmul.mubr.bf16.gmra.mrb[0].mxu0 %v1134
      %v1714 = vpop.f32.mrb[0].mxu0
      %v1715 = vadd.f32 %v1426, %v1714
      %v1716 = vpop.f32.mrb[0].mxu0
      %v1717 = vpop.f32.mrb[0].mxu0
      %v1718 = vadd.f32 %v1429, %v1717
      %v1719 = vpop.f32.mrb[0].mxu0
      %1720 = vdwg.mxu0
      %v1721 = vld [vmem:[%s4] sm:$0x1]
      %v1723 = vlaneseq
      %v1724 = vshrl.u32 %v1723, 7
      %v1725 = vsub.s32 0, %v1724
      %v1726 = vrot.slane %v1721, %v1725
      %v1728 = vmul.f32 %v1467, %v1726
      %v1729 = vmul.f32 %v1470, %v1726
      %v1730 = vmul.f32 %v1475, %v1726
      %v1731 = vmul.f32 %v1478, %v1726
      %v1732 = vmul.f32 %v1483, %v1726
      %v1733 = vmul.f32 %v1486, %v1726
      %v1734 = vmul.f32 %v1491, %v1726
      %v1735 = vmul.f32 %v1494, %v1726
      %v1736 = vmul.f32 %v1499, %v1726
      %v1737 = vmul.f32 %v1502, %v1726
      %v1738 = vmul.f32 %v1507, %v1726
      %v1739 = vmul.f32 %v1510, %v1726
      %v1740 = vmul.f32 %v1515, %v1726
      %v1741 = vmul.f32 %v1518, %v1726
      %v1742 = vmul.f32 %v1523, %v1726
      %v1743 = vmul.f32 %v1526, %v1726
      %v1744 = vmul.f32 %v1531, %v1726
      %v1745 = vmul.f32 %v1534, %v1726
      %v1746 = vmul.f32 %v1539, %v1726
      %v1747 = vmul.f32 %v1542, %v1726
      %v1748 = vmul.f32 %v1547, %v1726
      %v1749 = vmul.f32 %v1550, %v1726
      %v1750 = vmul.f32 %v1555, %v1726
      %v1751 = vmul.f32 %v1558, %v1726
      %v1752 = vmul.f32 %v1563, %v1726
      %v1753 = vmul.f32 %v1566, %v1726
      %v1754 = vmul.f32 %v1571, %v1726
      %v1755 = vmul.f32 %v1574, %v1726
      %v1756 = vmul.f32 %v1579, %v1726
      %v1757 = vmul.f32 %v1582, %v1726
      %v1758 = vmul.f32 %v1587, %v1726
      %v1759 = vmul.f32 %v1590, %v1726
      %v1760 = vmul.f32 %v1595, %v1726
      %v1761 = vmul.f32 %v1598, %v1726
      %v1762 = vmul.f32 %v1603, %v1726
      %v1763 = vmul.f32 %v1606, %v1726
      %v1764 = vmul.f32 %v1611, %v1726
      %v1765 = vmul.f32 %v1614, %v1726
      %v1766 = vmul.f32 %v1619, %v1726
      %v1767 = vmul.f32 %v1622, %v1726
      %v1768 = vmul.f32 %v1627, %v1726
      %v1769 = vmul.f32 %v1630, %v1726
      %v1770 = vmul.f32 %v1635, %v1726
      %v1771 = vmul.f32 %v1638, %v1726
      %v1772 = vmul.f32 %v1643, %v1726
      %v1773 = vmul.f32 %v1646, %v1726
      %v1774 = vmul.f32 %v1651, %v1726
      %v1775 = vmul.f32 %v1654, %v1726
      %v1776 = vmul.f32 %v1659, %v1726
      %v1777 = vmul.f32 %v1662, %v1726
      %v1778 = vmul.f32 %v1667, %v1726
      %v1779 = vmul.f32 %v1670, %v1726
      %v1780 = vmul.f32 %v1675, %v1726
      %v1781 = vmul.f32 %v1678, %v1726
      %v1782 = vmul.f32 %v1683, %v1726
      %v1783 = vmul.f32 %v1686, %v1726
      %v1784 = vmul.f32 %v1691, %v1726
      %v1785 = vmul.f32 %v1694, %v1726
      %v1786 = vmul.f32 %v1699, %v1726
      %v1787 = vmul.f32 %v1702, %v1726
      %v1788 = vmul.f32 %v1707, %v1726
      %v1789 = vmul.f32 %v1710, %v1726
      %v1790 = vmul.f32 %v1715, %v1726
      %v1791 = vmul.f32 %v1718, %v1726
      %v1792 = vld [vmem:[%s5] sm:$0x1]
      %v1794 = vlaneseq
      %v1795 = vshrl.u32 %v1794, 7
      %v1796 = vsub.s32 0, %v1795
      %v1797 = vrot.slane %v1792, %v1796
      %v1799 = vadd.f32 %v1728, %v1797
      %v1800 = vadd.f32 %v1729, %v1797
      %v1801 = vadd.f32 %v1730, %v1797
      %v1802 = vadd.f32 %v1731, %v1797
      %v1803 = vadd.f32 %v1732, %v1797
      %v1804 = vadd.f32 %v1733, %v1797
      %v1805 = vadd.f32 %v1734, %v1797
      %v1806 = vadd.f32 %v1735, %v1797
      %v1807 = vadd.f32 %v1736, %v1797
      %v1808 = vadd.f32 %v1737, %v1797
      %v1809 = vadd.f32 %v1738, %v1797
      %v1810 = vadd.f32 %v1739, %v1797
      %v1811 = vadd.f32 %v1740, %v1797
      %v1812 = vadd.f32 %v1741, %v1797
      %v1813 = vadd.f32 %v1742, %v1797
      %v1814 = vadd.f32 %v1743, %v1797
      %v1815 = vadd.f32 %v1744, %v1797
      %v1816 = vadd.f32 %v1745, %v1797
      %v1817 = vadd.f32 %v1746, %v1797
      %v1818 = vadd.f32 %v1747, %v1797
      %v1819 = vadd.f32 %v1748, %v1797
      %v1820 = vadd.f32 %v1749, %v1797
      %v1821 = vadd.f32 %v1750, %v1797
      %v1822 = vadd.f32 %v1751, %v1797
      %v1823 = vadd.f32 %v1752, %v1797
      %v1824 = vadd.f32 %v1753, %v1797
      %v1825 = vadd.f32 %v1754, %v1797
      %v1826 = vadd.f32 %v1755, %v1797
      %v1827 = vadd.f32 %v1756, %v1797
      %v1828 = vadd.f32 %v1757, %v1797
      %v1829 = vadd.f32 %v1758, %v1797
      %v1830 = vadd.f32 %v1759, %v1797
      %v1831 = vadd.f32 %v1760, %v1797
      %v1832 = vadd.f32 %v1761, %v1797
      %v1833 = vadd.f32 %v1762, %v1797
      %v1834 = vadd.f32 %v1763, %v1797
      %v1835 = vadd.f32 %v1764, %v1797
      %v1836 = vadd.f32 %v1765, %v1797
      %v1837 = vadd.f32 %v1766, %v1797
      %v1838 = vadd.f32 %v1767, %v1797
      %v1839 = vadd.f32 %v1768, %v1797
      %v1840 = vadd.f32 %v1769, %v1797
      %v1841 = vadd.f32 %v1770, %v1797
      %v1842 = vadd.f32 %v1771, %v1797
      %v1843 = vadd.f32 %v1772, %v1797
      %v1844 = vadd.f32 %v1773, %v1797
      %v1845 = vadd.f32 %v1774, %v1797
      %v1846 = vadd.f32 %v1775, %v1797
      %v1847 = vadd.f32 %v1776, %v1797
      %v1848 = vadd.f32 %v1777, %v1797
      %v1849 = vadd.f32 %v1778, %v1797
      %v1850 = vadd.f32 %v1779, %v1797
      %v1851 = vadd.f32 %v1780, %v1797
      %v1852 = vadd.f32 %v1781, %v1797
      %v1853 = vadd.f32 %v1782, %v1797
      %v1854 = vadd.f32 %v1783, %v1797
      %v1855 = vadd.f32 %v1784, %v1797
      %v1856 = vadd.f32 %v1785, %v1797
      %v1857 = vadd.f32 %v1786, %v1797
      %v1858 = vadd.f32 %v1787, %v1797
      %v1859 = vadd.f32 %v1788, %v1797
      %v1860 = vadd.f32 %v1789, %v1797
      %v1861 = vadd.f32 %v1790, %v1797
      %v1862 = vadd.f32 %v1791, %v1797
      %v1863 = vmax.f32 %v1799, 0.0
      %v1864 = vmax.f32 %v1800, 0.0
      %v1865 = vmax.f32 %v1801, 0.0
      %v1866 = vmax.f32 %v1802, 0.0
      %v1867 = vmax.f32 %v1803, 0.0
      %v1868 = vmax.f32 %v1804, 0.0
      %v1869 = vmax.f32 %v1805, 0.0
      %v1870 = vmax.f32 %v1806, 0.0
      %v1871 = vmax.f32 %v1807, 0.0
      %v1872 = vmax.f32 %v1808, 0.0
      %v1873 = vmax.f32 %v1809, 0.0
      %v1874 = vmax.f32 %v1810, 0.0
      %v1875 = vmax.f32 %v1811, 0.0
      %v1876 = vmax.f32 %v1812, 0.0
      %v1877 = vmax.f32 %v1813, 0.0
      %v1878 = vmax.f32 %v1814, 0.0
      %v1879 = vmax.f32 %v1815, 0.0
      %v1880 = vmax.f32 %v1816, 0.0
      %v1881 = vmax.f32 %v1817, 0.0
      %v1882 = vmax.f32 %v1818, 0.0
      %v1883 = vmax.f32 %v1819, 0.0
      %v1884 = vmax.f32 %v1820, 0.0
      %v1885 = vmax.f32 %v1821, 0.0
      %v1886 = vmax.f32 %v1822, 0.0
      %v1887 = vmax.f32 %v1823, 0.0
      %v1888 = vmax.f32 %v1824, 0.0
      %v1889 = vmax.f32 %v1825, 0.0
      %v1890 = vmax.f32 %v1826, 0.0
      %v1891 = vmax.f32 %v1827, 0.0
      %v1892 = vmax.f32 %v1828, 0.0
      %v1893 = vmax.f32 %v1829, 0.0
      %v1894 = vmax.f32 %v1830, 0.0
      %v1895 = vmax.f32 %v1831, 0.0
      %v1896 = vmax.f32 %v1832, 0.0
      %v1897 = vmax.f32 %v1833, 0.0
      %v1898 = vmax.f32 %v1834, 0.0
      %v1899 = vmax.f32 %v1835, 0.0
      %v1900 = vmax.f32 %v1836, 0.0
      %v1901 = vmax.f32 %v1837, 0.0
      %v1902 = vmax.f32 %v1838, 0.0
      %v1903 = vmax.f32 %v1839, 0.0
      %v1904 = vmax.f32 %v1840, 0.0
      %v1905 = vmax.f32 %v1841, 0.0
      %v1906 = vmax.f32 %v1842, 0.0
      %v1907 = vmax.f32 %v1843, 0.0
      %v1908 = vmax.f32 %v1844, 0.0
      %v1909 = vmax.f32 %v1845, 0.0
      %v1910 = vmax.f32 %v1846, 0.0
      %v1911 = vmax.f32 %v1847, 0.0
      %v1912 = vmax.f32 %v1848, 0.0
      %v1913 = vmax.f32 %v1849, 0.0
      %v1914 = vmax.f32 %v1850, 0.0
      %v1915 = vmax.f32 %v1851, 0.0
      %v1916 = vmax.f32 %v1852, 0.0
      %v1917 = vmax.f32 %v1853, 0.0
      %v1918 = vmax.f32 %v1854, 0.0
      %v1919 = vmax.f32 %v1855, 0.0
      %v1920 = vmax.f32 %v1856, 0.0
      %v1921 = vmax.f32 %v1857, 0.0
      %v1922 = vmax.f32 %v1858, 0.0
      %v1923 = vmax.f32 %v1859, 0.0
      %v1924 = vmax.f32 %v1860, 0.0
      %v1925 = vmax.f32 %v1861, 0.0
      %v1926 = vmax.f32 %v1862, 0.0
      %v1927 = vpack.c.bf16 %v1864, %v1863
      %v1928 = vpack.c.bf16 %v1866, %v1865
      %v1929 = vpack.c.bf16 %v1868, %v1867
      %v1930 = vpack.c.bf16 %v1870, %v1869
      %v1931 = vpack.c.bf16 %v1872, %v1871
      %v1932 = vpack.c.bf16 %v1874, %v1873
      %v1933 = vpack.c.bf16 %v1876, %v1875
      %v1934 = vpack.c.bf16 %v1878, %v1877
      %v1935 = vpack.c.bf16 %v1880, %v1879
      %v1936 = vpack.c.bf16 %v1882, %v1881
      %v1937 = vpack.c.bf16 %v1884, %v1883
      %v1938 = vpack.c.bf16 %v1886, %v1885
      %v1939 = vpack.c.bf16 %v1888, %v1887
      %v1940 = vpack.c.bf16 %v1890, %v1889
      %v1941 = vpack.c.bf16 %v1892, %v1891
      %v1942 = vpack.c.bf16 %v1894, %v1893
      %v1943 = vpack.c.bf16 %v1896, %v1895
      %v1944 = vpack.c.bf16 %v1898, %v1897
      %v1945 = vpack.c.bf16 %v1900, %v1899
      %v1946 = vpack.c.bf16 %v1902, %v1901
      %v1947 = vpack.c.bf16 %v1904, %v1903
      %v1948 = vpack.c.bf16 %v1906, %v1905
      %v1949 = vpack.c.bf16 %v1908, %v1907
      %v1950 = vpack.c.bf16 %v1910, %v1909
      %v1951 = vpack.c.bf16 %v1912, %v1911
      %v1952 = vpack.c.bf16 %v1914, %v1913
      %v1953 = vpack.c.bf16 %v1916, %v1915
      %v1954 = vpack.c.bf16 %v1918, %v1917
      %v1955 = vpack.c.bf16 %v1920, %v1919
      %v1956 = vpack.c.bf16 %v1922, %v1921
      %v1957 = vpack.c.bf16 %v1924, %v1923
      %v1958 = vpack.c.bf16 %v1926, %v1925
      %v1991 = vunpack.c.l.b16 %v1927
      %v1992 = vunpack.c.h.b16 %v1927
      %v1993 = vunpack.c.l.b16 %v1928
      %v1994 = vunpack.c.h.b16 %v1928
      %v1995 = vunpack.c.l.b16 %v1929
      %v1996 = vunpack.c.h.b16 %v1929
      %v1997 = vunpack.c.l.b16 %v1930
      %v1998 = vunpack.c.h.b16 %v1930
      %v1999 = vunpack.c.l.b16 %v1931
      %v2000 = vunpack.c.h.b16 %v1931
      %v2001 = vunpack.c.l.b16 %v1932
      %v2002 = vunpack.c.h.b16 %v1932
      %v2003 = vunpack.c.l.b16 %v1933
      %v2004 = vunpack.c.h.b16 %v1933
      %v2005 = vunpack.c.l.b16 %v1934
      %v2006 = vunpack.c.h.b16 %v1934
      %v2007 = vunpack.c.l.b16 %v1935
      %v2008 = vunpack.c.h.b16 %v1935
      %v2009 = vunpack.c.l.b16 %v1936
      %v2010 = vunpack.c.h.b16 %v1936
      %v2011 = vunpack.c.l.b16 %v1937
      %v2012 = vunpack.c.h.b16 %v1937
      %v2013 = vunpack.c.l.b16 %v1938
      %v2014 = vunpack.c.h.b16 %v1938
      %v2015 = vunpack.c.l.b16 %v1939
      %v2016 = vunpack.c.h.b16 %v1939
      %v2017 = vunpack.c.l.b16 %v1940
      %v2018 = vunpack.c.h.b16 %v1940
      %v2019 = vunpack.c.l.b16 %v1941
      %v2020 = vunpack.c.h.b16 %v1941
      %v2021 = vunpack.c.l.b16 %v1942
      %v2022 = vunpack.c.h.b16 %v1942
      %v2023 = vunpack.c.l.b16 %v1943
      %v2024 = vunpack.c.h.b16 %v1943
      %v2025 = vunpack.c.l.b16 %v1944
      %v2026 = vunpack.c.h.b16 %v1944
      %v2027 = vunpack.c.l.b16 %v1945
      %v2028 = vunpack.c.h.b16 %v1945
      %v2029 = vunpack.c.l.b16 %v1946
      %v2030 = vunpack.c.h.b16 %v1946
      %v2031 = vunpack.c.l.b16 %v1947
      %v2032 = vunpack.c.h.b16 %v1947
      %v2033 = vunpack.c.l.b16 %v1948
      %v2034 = vunpack.c.h.b16 %v1948
      %v2035 = vunpack.c.l.b16 %v1949
      %v2036 = vunpack.c.h.b16 %v1949
      %v2037 = vunpack.c.l.b16 %v1950
      %v2038 = vunpack.c.h.b16 %v1950
      %v2039 = vunpack.c.l.b16 %v1951
      %v2040 = vunpack.c.h.b16 %v1951
      %v2041 = vunpack.c.l.b16 %v1952
      %v2042 = vunpack.c.h.b16 %v1952
      %v2043 = vunpack.c.l.b16 %v1953
      %v2044 = vunpack.c.h.b16 %v1953
      %v2045 = vunpack.c.l.b16 %v1954
      %v2046 = vunpack.c.h.b16 %v1954
      %v2047 = vunpack.c.l.b16 %v1955
      %v2048 = vunpack.c.h.b16 %v1955
      %v2049 = vunpack.c.l.b16 %v1956
      %v2050 = vunpack.c.h.b16 %v1956
      %v2051 = vunpack.c.l.b16 %v1957
      %v2052 = vunpack.c.h.b16 %v1957
      %v2053 = vunpack.c.l.b16 %v1958
      %v2054 = vunpack.c.h.b16 %v1958
      %v2055 = vpack.c.b16 %v1991, %v1991
      %v2056 = vpack.c.b16 %v1992, %v1992
      %v2057 = vpack.c.b16 %v1993, %v1993
      %v2058 = vpack.c.b16 %v1994, %v1994
      %v2059 = vpack.c.b16 %v1995, %v1995
      %v2060 = vpack.c.b16 %v1996, %v1996
      %v2061 = vpack.c.b16 %v1997, %v1997
      %v2062 = vpack.c.b16 %v1998, %v1998
      %v2063 = vpack.c.b16 %v1999, %v1999
      %v2064 = vpack.c.b16 %v2000, %v2000
      %v2065 = vpack.c.b16 %v2001, %v2001
      %v2066 = vpack.c.b16 %v2002, %v2002
      %v2067 = vpack.c.b16 %v2003, %v2003
      %v2068 = vpack.c.b16 %v2004, %v2004
      %v2069 = vpack.c.b16 %v2005, %v2005
      %v2070 = vpack.c.b16 %v2006, %v2006
      %v2071 = vpack.c.b16 %v2007, %v2007
      %v2072 = vpack.c.b16 %v2008, %v2008
      %v2073 = vpack.c.b16 %v2009, %v2009
      %v2074 = vpack.c.b16 %v2010, %v2010
      %v2075 = vpack.c.b16 %v2011, %v2011
      %v2076 = vpack.c.b16 %v2012, %v2012
      %v2077 = vpack.c.b16 %v2013, %v2013
      %v2078 = vpack.c.b16 %v2014, %v2014
      %v2079 = vpack.c.b16 %v2015, %v2015
      %v2080 = vpack.c.b16 %v2016, %v2016
      %v2081 = vpack.c.b16 %v2017, %v2017
      %v2082 = vpack.c.b16 %v2018, %v2018
      %v2083 = vpack.c.b16 %v2019, %v2019
      %v2084 = vpack.c.b16 %v2020, %v2020
      %v2085 = vpack.c.b16 %v2021, %v2021
      %v2086 = vpack.c.b16 %v2022, %v2022
      %v2087 = vpack.c.b16 %v2023, %v2023
      %v2088 = vpack.c.b16 %v2024, %v2024
      %v2089 = vpack.c.b16 %v2025, %v2025
      %v2090 = vpack.c.b16 %v2026, %v2026
      %v2091 = vpack.c.b16 %v2027, %v2027
      %v2092 = vpack.c.b16 %v2028, %v2028
      %v2093 = vpack.c.b16 %v2029, %v2029
      %v2094 = vpack.c.b16 %v2030, %v2030
      %v2095 = vpack.c.b16 %v2031, %v2031
      %v2096 = vpack.c.b16 %v2032, %v2032
      %v2097 = vpack.c.b16 %v2033, %v2033
      %v2098 = vpack.c.b16 %v2034, %v2034
      %v2099 = vpack.c.b16 %v2035, %v2035
      %v2100 = vpack.c.b16 %v2036, %v2036
      %v2101 = vpack.c.b16 %v2037, %v2037
      %v2102 = vpack.c.b16 %v2038, %v2038
      %v2103 = vpack.c.b16 %v2039, %v2039
      %v2104 = vpack.c.b16 %v2040, %v2040
      %v2105 = vpack.c.b16 %v2041, %v2041
      %v2106 = vpack.c.b16 %v2042, %v2042
      %v2107 = vpack.c.b16 %v2043, %v2043
      %v2108 = vpack.c.b16 %v2044, %v2044
      %v2109 = vpack.c.b16 %v2045, %v2045
      %v2110 = vpack.c.b16 %v2046, %v2046
      %v2111 = vpack.c.b16 %v2047, %v2047
      %v2112 = vpack.c.b16 %v2048, %v2048
      %v2113 = vpack.c.b16 %v2049, %v2049
      %v2114 = vpack.c.b16 %v2050, %v2050
      %v2115 = vpack.c.b16 %v2051, %v2051
      %v2116 = vpack.c.b16 %v2052, %v2052
      %v2117 = vpack.c.b16 %v2053, %v2053
      %v2118 = vpack.c.b16 %v2054, %v2054
      %vm2183 = vcmask 125952
      %2184 = vst.msk [vmem:[%s256] sm:$0xf] %vm2183, %v2055
      %2185 = vst.msk [vmem:[%s256 + $0x4] sm:$0xf] %vm2183, %v2056
      %2186 = vst.msk [vmem:[%s256 + $0x8] sm:$0xf] %vm2183, %v2057
      %2187 = vst.msk [vmem:[%s256 + $0xc] sm:$0xf] %vm2183, %v2058
      %2188 = vst.msk [vmem:[%s256 + $0x10] sm:$0xf] %vm2183, %v2059
      %2189 = vst.msk [vmem:[%s256 + $0x14] sm:$0xf] %vm2183, %v2060
      %2190 = vst.msk [vmem:[%s256 + $0x18] sm:$0xf] %vm2183, %v2061
      %2191 = vst.msk [vmem:[%s256 + $0x1c] sm:$0xf] %vm2183, %v2062
      %2192 = vst.msk [vmem:[%s256 + $0x20] sm:$0xf] %vm2183, %v2063
      %2193 = vst.msk [vmem:[%s256 + $0x24] sm:$0xf] %vm2183, %v2064
      %2194 = vst.msk [vmem:[%s256 + $0x28] sm:$0xf] %vm2183, %v2065
      %2195 = vst.msk [vmem:[%s256 + $0x2c] sm:$0xf] %vm2183, %v2066
      %2196 = vst.msk [vmem:[%s256 + $0x30] sm:$0xf] %vm2183, %v2067
      %2197 = vst.msk [vmem:[%s256 + $0x34] sm:$0xf] %vm2183, %v2068
      %2198 = vst.msk [vmem:[%s256 + $0x38] sm:$0xf] %vm2183, %v2069
      %2199 = vst.msk [vmem:[%s256 + $0x3c] sm:$0xf] %vm2183, %v2070
      %2200 = vst.msk [vmem:[%s256 + $0x40] sm:$0xf] %vm2183, %v2071
      %2201 = vst.msk [vmem:[%s256 + $0x44] sm:$0xf] %vm2183, %v2072
      %2202 = vst.msk [vmem:[%s256 + $0x48] sm:$0xf] %vm2183, %v2073
      %2203 = vst.msk [vmem:[%s256 + $0x4c] sm:$0xf] %vm2183, %v2074
      %2204 = vst.msk [vmem:[%s256 + $0x50] sm:$0xf] %vm2183, %v2075
      %2205 = vst.msk [vmem:[%s256 + $0x54] sm:$0xf] %vm2183, %v2076
      %2206 = vst.msk [vmem:[%s256 + $0x58] sm:$0xf] %vm2183, %v2077
      %2207 = vst.msk [vmem:[%s256 + $0x5c] sm:$0xf] %vm2183, %v2078
      %2208 = vst.msk [vmem:[%s256 + $0x60] sm:$0xf] %vm2183, %v2079
      %2209 = vst.msk [vmem:[%s256 + $0x64] sm:$0xf] %vm2183, %v2080
      %2210 = vst.msk [vmem:[%s256 + $0x68] sm:$0xf] %vm2183, %v2081
      %2211 = vst.msk [vmem:[%s256 + $0x6c] sm:$0xf] %vm2183, %v2082
      %2212 = vst.msk [vmem:[%s256 + $0x70] sm:$0xf] %vm2183, %v2083
      %2213 = vst.msk [vmem:[%s256 + $0x74] sm:$0xf] %vm2183, %v2084
      %2214 = vst.msk [vmem:[%s256 + $0x78] sm:$0xf] %vm2183, %v2085
      %2215 = vst.msk [vmem:[%s256 + $0x7c] sm:$0xf] %vm2183, %v2086
      %2216 = vst.msk [vmem:[%s256 + $0x80] sm:$0xf] %vm2183, %v2087
      %2217 = vst.msk [vmem:[%s256 + $0x84] sm:$0xf] %vm2183, %v2088
      %2218 = vst.msk [vmem:[%s256 + $0x88] sm:$0xf] %vm2183, %v2089
      %2219 = vst.msk [vmem:[%s256 + $0x8c] sm:$0xf] %vm2183, %v2090
      %2220 = vst.msk [vmem:[%s256 + $0x90] sm:$0xf] %vm2183, %v2091
      %2221 = vst.msk [vmem:[%s256 + $0x94] sm:$0xf] %vm2183, %v2092
      %2222 = vst.msk [vmem:[%s256 + $0x98] sm:$0xf] %vm2183, %v2093
      %2223 = vst.msk [vmem:[%s256 + $0x9c] sm:$0xf] %vm2183, %v2094
      %2224 = vst.msk [vmem:[%s256 + $0xa0] sm:$0xf] %vm2183, %v2095
      %2225 = vst.msk [vmem:[%s256 + $0xa4] sm:$0xf] %vm2183, %v2096
      %2226 = vst.msk [vmem:[%s256 + $0xa8] sm:$0xf] %vm2183, %v2097
      %2227 = vst.msk [vmem:[%s256 + $0xac] sm:$0xf] %vm2183, %v2098
      %2228 = vst.msk [vmem:[%s256 + $0xb0] sm:$0xf] %vm2183, %v2099
      %2229 = vst.msk [vmem:[%s256 + $0xb4] sm:$0xf] %vm2183, %v2100
      %2230 = vst.msk [vmem:[%s256 + $0xb8] sm:$0xf] %vm2183, %v2101
      %2231 = vst.msk [vmem:[%s256 + $0xbc] sm:$0xf] %vm2183, %v2102
      %2232 = vst.msk [vmem:[%s256 + $0xc0] sm:$0xf] %vm2183, %v2103
      %2233 = vst.msk [vmem:[%s256 + $0xc4] sm:$0xf] %vm2183, %v2104
      %2234 = vst.msk [vmem:[%s256 + $0xc8] sm:$0xf] %vm2183, %v2105
      %2235 = vst.msk [vmem:[%s256 + $0xcc] sm:$0xf] %vm2183, %v2106
      %2236 = vst.msk [vmem:[%s256 + $0xd0] sm:$0xf] %vm2183, %v2107
      %2237 = vst.msk [vmem:[%s256 + $0xd4] sm:$0xf] %vm2183, %v2108
      %2238 = vst.msk [vmem:[%s256 + $0xd8] sm:$0xf] %vm2183, %v2109
      %2239 = vst.msk [vmem:[%s256 + $0xdc] sm:$0xf] %vm2183, %v2110
      %2240 = vst.msk [vmem:[%s256 + $0xe0] sm:$0xf] %vm2183, %v2111
      %2241 = vst.msk [vmem:[%s256 + $0xe4] sm:$0xf] %vm2183, %v2112
      %2242 = vst.msk [vmem:[%s256 + $0xe8] sm:$0xf] %vm2183, %v2113
      %2243 = vst.msk [vmem:[%s256 + $0xec] sm:$0xf] %vm2183, %v2114
      %2244 = vst.msk [vmem:[%s256 + $0xf0] sm:$0xf] %vm2183, %v2115
      %2245 = vst.msk [vmem:[%s256 + $0xf4] sm:$0xf] %vm2183, %v2116
      %2246 = vst.msk [vmem:[%s256 + $0xf8] sm:$0xf] %vm2183, %v2117
      %2247 = vst.msk [vmem:[%s256 + $0xfc] sm:$0xf] %vm2183, %v2118
      %s2248 = smul.u32 64, %s17
      %p2249 = scmp.lt.s32.totalorder %s2248, 127
      %s2250 = scalar_select %p2249, %s2248, 127
      %s2251 = smul.addr %s2250, 4
      %s2252 = scalar_lea.vmem %s6, %s2251
      // Predicated region
      $region45: #{densenet_mm_forward.36} parent=43 // pred_check
        %p2253 = pneg %p166
      $region46: #{densenet_mm_forward.36} parent=43 // pred_check_branch
        %2255 = sbr.rel (%p2253) target = $region48
      $region47: #{densenet_mm_forward.36} parent=43 // pred_region
        %s2256 = smul.u32 64, %s17
      $region48: #{densenet_mm_forward.36} parent=43 // pred_fallthru
        _
    $region44: #{densenet_mm_forward.36} parent=5 // pred_fallthru
      _
    %p2257 = scmp.le.s32.totalorder 2, %s12
    // Predicated region
    $region49: #{densenet_mm_forward.36} parent=5 // pred_check
      %p2258 = pneg %p2257
    $region50: #{densenet_mm_forward.36} parent=5 // pred_check_branch
      %2260 = sbr.rel (%p2258) target = $region52
    $region51: #{densenet_mm_forward.36} parent=5 // pred_region
      %s2261 = ssub.s32 %s12, 2
      // Predicated region
      $region53: #{densenet_mm_forward.36} parent=51 // pred_check
        %p2262 = pneg %p172
      $region54: #{densenet_mm_forward.36} parent=51 // pred_check_branch
        %2264 = sbr.rel (%p2262) target = $region56
      $region55: #{densenet_mm_forward.36} parent=51 // pred_region
        %s2265 = smul.u32 64, %s18
        %p2266 = scmp.lt.s32.totalorder %s2265, 127
        %s2267 = scalar_select %p2266, %s2265, 127
        %s2268 = smul.addr %s2267, 4
        %s2269 = scalar_lea.vmem %s6, %s2268
      $region56: #{densenet_mm_forward.36} parent=51 // pred_fallthru
        _
    $region52: #{densenet_mm_forward.36} parent=5 // pred_fallthru
      _
  $region6: #{densenet_mm_forward.36} parent=0 // loop_footer
    %s16 = sadd.s32 1, %s12
  $region7: #{densenet_mm_forward.36} parent=0 // loop_footer_branch
    %11 = sbr.rel target = $region3
  $region8: #{densenet_mm_forward.36} parent=0 // loop_exit
    _

// kernel: densenet_mm_forward.37
$region0: #{densenet_mm_forward.37}
  #allocation0 [shape = 'u32[]', space=smem, size = 0x4, offset = 0x4, fixed_abs, tag = 'smem constant byte address 0x4 - core index']
  #allocation1 [shape = 'u32[144,128]{1,0:T(1,128)}', space=vmem, size = 0x12000, scoped, tag = 'internal scratch']
  %s0 = inlined_call_operand.vmem [shape: bf16[3,512,16], index: 0, kind: input, shape index: {}]
  %s1 = inlined_call_operand.vmem [shape: bf16[512,16], index: 1, kind: output, shape index: {}]
  %s2 = sld [smem:[#allocation0]]
  $region14: #{densenet_mm_forward.37} parent=0
    _
  %s4 = ssub.s32 1, %s2
  %s5 = scalar_select 0, %s4, %s2
  // Predicated region
  $region2: #{densenet_mm_forward.37} parent=0 // pred_check
    _
  $region3: #{densenet_mm_forward.37} parent=0 // pred_check_branch
    %7 = sbr.rel (0) target = $region5
  $region4: #{densenet_mm_forward.37} parent=0 // pred_region
    _
  $region5: #{densenet_mm_forward.37} parent=0 // pred_fallthru
    _
  %v8 = vld [vmem:[%s0] sm:$0xf]
  %v9 = vld [vmem:[%s0 + $0x4] sm:$0xf]
  %v10 = vld [vmem:[%s0 + $0x8] sm:$0xf]
  %v11 = vld [vmem:[%s0 + $0xc] sm:$0xf]
  %v12 = vld [vmem:[%s0 + $0x10] sm:$0xf]
  %v13 = vld [vmem:[%s0 + $0x14] sm:$0xf]
  %v14 = vld [vmem:[%s0 + $0x18] sm:$0xf]
  %v15 = vld [vmem:[%s0 + $0x1c] sm:$0xf]
  %v16 = vld [vmem:[%s0 + $0x20] sm:$0xf]
  %v17 = vld [vmem:[%s0 + $0x24] sm:$0xf]
  %v18 = vld [vmem:[%s0 + $0x28] sm:$0xf]
  %v19 = vld [vmem:[%s0 + $0x2c] sm:$0xf]
  %v20 = vld [vmem:[%s0 + $0x30] sm:$0xf]
  %v21 = vld [vmem:[%s0 + $0x34] sm:$0xf]
  %v22 = vld [vmem:[%s0 + $0x38] sm:$0xf]
  %v23 = vld [vmem:[%s0 + $0x3c] sm:$0xf]
  %v24 = vld [vmem:[%s0 + $0x40] sm:$0xf]
  %v25 = vld [vmem:[%s0 + $0x44] sm:$0xf]
  %v26 = vld [vmem:[%s0 + $0x48] sm:$0xf]
  %v27 = vld [vmem:[%s0 + $0x4c] sm:$0xf]
  %v28 = vld [vmem:[%s0 + $0x50] sm:$0xf]
  %v29 = vld [vmem:[%s0 + $0x54] sm:$0xf]
  %v30 = vld [vmem:[%s0 + $0x58] sm:$0xf]
  %v31 = vld [vmem:[%s0 + $0x5c] sm:$0xf]
  %v32 = vld [vmem:[%s0 + $0x60] sm:$0xf]
  %v33 = vld [vmem:[%s0 + $0x64] sm:$0xf]
  %v34 = vld [vmem:[%s0 + $0x68] sm:$0xf]
  %v35 = vld [vmem:[%s0 + $0x6c] sm:$0xf]
  %v36 = vld [vmem:[%s0 + $0x70] sm:$0xf]
  %v37 = vld [vmem:[%s0 + $0x74] sm:$0xf]
  %v38 = vld [vmem:[%s0 + $0x78] sm:$0xf]
  %v39 = vld [vmem:[%s0 + $0x7c] sm:$0xf]
  %v40 = vld [vmem:[%s0 + $0x80] sm:$0xf]
  %v41 = vld [vmem:[%s0 + $0x84] sm:$0xf]
  %v42 = vld [vmem:[%s0 + $0x88] sm:$0xf]
  %v43 = vld [vmem:[%s0 + $0x8c] sm:$0xf]
  %v44 = vld [vmem:[%s0 + $0x90] sm:$0xf]
  %v45 = vld [vmem:[%s0 + $0x94] sm:$0xf]
  %v46 = vld [vmem:[%s0 + $0x98] sm:$0xf]
  %v47 = vld [vmem:[%s0 + $0x9c] sm:$0xf]
  %v48 = vld [vmem:[%s0 + $0xa0] sm:$0xf]
  %v49 = vld [vmem:[%s0 + $0xa4] sm:$0xf]
  %v50 = vld [vmem:[%s0 + $0xa8] sm:$0xf]
  %v51 = vld [vmem:[%s0 + $0xac] sm:$0xf]
  %v52 = vld [vmem:[%s0 + $0xb0] sm:$0xf]
  %v53 = vld [vmem:[%s0 + $0xb4] sm:$0xf]
  %v54 = vld [vmem:[%s0 + $0xb8] sm:$0xf]
  %v55 = vld [vmem:[%s0 + $0xbc] sm:$0xf]
  %v56 = vld [vmem:[%s0 + $0xc0] sm:$0xf]
  %v57 = vld [vmem:[%s0 + $0xc4] sm:$0xf]
  %v58 = vld [vmem:[%s0 + $0xc8] sm:$0xf]
  %v59 = vld [vmem:[%s0 + $0xcc] sm:$0xf]
  %v60 = vld [vmem:[%s0 + $0xd0] sm:$0xf]
  %v61 = vld [vmem:[%s0 + $0xd4] sm:$0xf]
  %v62 = vld [vmem:[%s0 + $0xd8] sm:$0xf]
  %v63 = vld [vmem:[%s0 + $0xdc] sm:$0xf]
  %v64 = vld [vmem:[%s0 + $0xe0] sm:$0xf]
  %v65 = vld [vmem:[%s0 + $0xe4] sm:$0xf]
  %v66 = vld [vmem:[%s0 + $0xe8] sm:$0xf]
  %v67 = vld [vmem:[%s0 + $0xec] sm:$0xf]
  %v68 = vld [vmem:[%s0 + $0xf0] sm:$0xf]
  %v69 = vld [vmem:[%s0 + $0xf4] sm:$0xf]
  %v70 = vld [vmem:[%s0 + $0xf8] sm:$0xf]
  %v71 = vld [vmem:[%s0 + $0xfc] sm:$0xf]
  %v72 = vld [vmem:[%s0 + $0x100] sm:$0xf]
  %v73 = vld [vmem:[%s0 + $0x104] sm:$0xf]
  %v74 = vld [vmem:[%s0 + $0x108] sm:$0xf]
  %v75 = vld [vmem:[%s0 + $0x10c] sm:$0xf]
  %v76 = vld [vmem:[%s0 + $0x110] sm:$0xf]
  %v77 = vld [vmem:[%s0 + $0x114] sm:$0xf]
  %v78 = vld [vmem:[%s0 + $0x118] sm:$0xf]
  %v79 = vld [vmem:[%s0 + $0x11c] sm:$0xf]
  %v80 = vld [vmem:[%s0 + $0x120] sm:$0xf]
  %v81 = vld [vmem:[%s0 + $0x124] sm:$0xf]
  %v82 = vld [vmem:[%s0 + $0x128] sm:$0xf]
  %v83 = vld [vmem:[%s0 + $0x12c] sm:$0xf]
  %v84 = vld [vmem:[%s0 + $0x130] sm:$0xf]
  %v85 = vld [vmem:[%s0 + $0x134] sm:$0xf]
  %v86 = vld [vmem:[%s0 + $0x138] sm:$0xf]
  %v87 = vld [vmem:[%s0 + $0x13c] sm:$0xf]
  %v88 = vld [vmem:[%s0 + $0x140] sm:$0xf]
  %v89 = vld [vmem:[%s0 + $0x144] sm:$0xf]
  %v90 = vld [vmem:[%s0 + $0x148] sm:$0xf]
  %v91 = vld [vmem:[%s0 + $0x14c] sm:$0xf]
  %v92 = vld [vmem:[%s0 + $0x150] sm:$0xf]
  %v93 = vld [vmem:[%s0 + $0x154] sm:$0xf]
  %v94 = vld [vmem:[%s0 + $0x158] sm:$0xf]
  %v95 = vld [vmem:[%s0 + $0x15c] sm:$0xf]
  %v96 = vld [vmem:[%s0 + $0x160] sm:$0xf]
  %v97 = vld [vmem:[%s0 + $0x164] sm:$0xf]
  %v98 = vld [vmem:[%s0 + $0x168] sm:$0xf]
  %v99 = vld [vmem:[%s0 + $0x16c] sm:$0xf]
  %v100 = vld [vmem:[%s0 + $0x170] sm:$0xf]
  %v101 = vld [vmem:[%s0 + $0x174] sm:$0xf]
  %v102 = vld [vmem:[%s0 + $0x178] sm:$0xf]
  %v103 = vld [vmem:[%s0 + $0x17c] sm:$0xf]
  %v104 = vld [vmem:[%s0 + $0x180] sm:$0xf]
  %v105 = vld [vmem:[%s0 + $0x184] sm:$0xf]
  %v106 = vld [vmem:[%s0 + $0x188] sm:$0xf]
  %v107 = vld [vmem:[%s0 + $0x18c] sm:$0xf]
  %v108 = vld [vmem:[%s0 + $0x190] sm:$0xf]
  %v109 = vld [vmem:[%s0 + $0x194] sm:$0xf]
  %v110 = vld [vmem:[%s0 + $0x198] sm:$0xf]
  %v111 = vld [vmem:[%s0 + $0x19c] sm:$0xf]
  %v112 = vld [vmem:[%s0 + $0x1a0] sm:$0xf]
  %v113 = vld [vmem:[%s0 + $0x1a4] sm:$0xf]
  %v114 = vld [vmem:[%s0 + $0x1a8] sm:$0xf]
  %v115 = vld [vmem:[%s0 + $0x1ac] sm:$0xf]
  %v116 = vld [vmem:[%s0 + $0x1b0] sm:$0xf]
  %v117 = vld [vmem:[%s0 + $0x1b4] sm:$0xf]
  %v118 = vld [vmem:[%s0 + $0x1b8] sm:$0xf]
  %v119 = vld [vmem:[%s0 + $0x1bc] sm:$0xf]
  %v120 = vld [vmem:[%s0 + $0x1c0] sm:$0xf]
  %v121 = vld [vmem:[%s0 + $0x1c4] sm:$0xf]
  %v122 = vld [vmem:[%s0 + $0x1c8] sm:$0xf]
  %v123 = vld [vmem:[%s0 + $0x1cc] sm:$0xf]
  %v124 = vld [vmem:[%s0 + $0x1d0] sm:$0xf]
  %v125 = vld [vmem:[%s0 + $0x1d4] sm:$0xf]
  %v126 = vld [vmem:[%s0 + $0x1d8] sm:$0xf]
  %v127 = vld [vmem:[%s0 + $0x1dc] sm:$0xf]
  %v128 = vld [vmem:[%s0 + $0x1e0] sm:$0xf]
  %v129 = vld [vmem:[%s0 + $0x1e4] sm:$0xf]
  %v130 = vld [vmem:[%s0 + $0x1e8] sm:$0xf]
  %v131 = vld [vmem:[%s0 + $0x1ec] sm:$0xf]
  %v132 = vld [vmem:[%s0 + $0x1f0] sm:$0xf]
  %v133 = vld [vmem:[%s0 + $0x1f4] sm:$0xf]
  %v134 = vld [vmem:[%s0 + $0x1f8] sm:$0xf]
  %v135 = vld [vmem:[%s0 + $0x1fc] sm:$0xf]
  %v136 = vld [vmem:[%s0 + $0x200] sm:$0xf]
  %v137 = vld [vmem:[%s0 + $0x204] sm:$0xf]
  %v138 = vld [vmem:[%s0 + $0x208] sm:$0xf]
  %v139 = vld [vmem:[%s0 + $0x20c] sm:$0xf]
  %v140 = vld [vmem:[%s0 + $0x210] sm:$0xf]
  %v141 = vld [vmem:[%s0 + $0x214] sm:$0xf]
  %v142 = vld [vmem:[%s0 + $0x218] sm:$0xf]
  %v143 = vld [vmem:[%s0 + $0x21c] sm:$0xf]
  %v144 = vld [vmem:[%s0 + $0x220] sm:$0xf]
  %v145 = vld [vmem:[%s0 + $0x224] sm:$0xf]
  %v146 = vld [vmem:[%s0 + $0x228] sm:$0xf]
  %v147 = vld [vmem:[%s0 + $0x22c] sm:$0xf]
  %v148 = vld [vmem:[%s0 + $0x230] sm:$0xf]
  %v149 = vld [vmem:[%s0 + $0x234] sm:$0xf]
  %v150 = vld [vmem:[%s0 + $0x238] sm:$0xf]
  %v151 = vld [vmem:[%s0 + $0x23c] sm:$0xf]
  %v152 = vld [vmem:[%s0 + $0x240] sm:$0xf]
  %v153 = vld [vmem:[%s0 + $0x244] sm:$0xf]
  %v154 = vld [vmem:[%s0 + $0x248] sm:$0xf]
  %v155 = vld [vmem:[%s0 + $0x24c] sm:$0xf]
  %v156 = vld [vmem:[%s0 + $0x250] sm:$0xf]
  %v157 = vld [vmem:[%s0 + $0x254] sm:$0xf]
  %v158 = vld [vmem:[%s0 + $0x258] sm:$0xf]
  %v159 = vld [vmem:[%s0 + $0x25c] sm:$0xf]
  %v160 = vld [vmem:[%s0 + $0x260] sm:$0xf]
  %v161 = vld [vmem:[%s0 + $0x264] sm:$0xf]
  %v162 = vld [vmem:[%s0 + $0x268] sm:$0xf]
  %v163 = vld [vmem:[%s0 + $0x26c] sm:$0xf]
  %v164 = vld [vmem:[%s0 + $0x270] sm:$0xf]
  %v165 = vld [vmem:[%s0 + $0x274] sm:$0xf]
  %v166 = vld [vmem:[%s0 + $0x278] sm:$0xf]
  %v167 = vld [vmem:[%s0 + $0x27c] sm:$0xf]
  %v168 = vld [vmem:[%s0 + $0x280] sm:$0xf]
  %v169 = vld [vmem:[%s0 + $0x284] sm:$0xf]
  %v170 = vld [vmem:[%s0 + $0x288] sm:$0xf]
  %v171 = vld [vmem:[%s0 + $0x28c] sm:$0xf]
  %v172 = vld [vmem:[%s0 + $0x290] sm:$0xf]
  %v173 = vld [vmem:[%s0 + $0x294] sm:$0xf]
  %v174 = vld [vmem:[%s0 + $0x298] sm:$0xf]
  %v175 = vld [vmem:[%s0 + $0x29c] sm:$0xf]
  %v176 = vld [vmem:[%s0 + $0x2a0] sm:$0xf]
  %v177 = vld [vmem:[%s0 + $0x2a4] sm:$0xf]
  %v178 = vld [vmem:[%s0 + $0x2a8] sm:$0xf]
  %v179 = vld [vmem:[%s0 + $0x2ac] sm:$0xf]
  %v180 = vld [vmem:[%s0 + $0x2b0] sm:$0xf]
  %v181 = vld [vmem:[%s0 + $0x2b4] sm:$0xf]
  %v182 = vld [vmem:[%s0 + $0x2b8] sm:$0xf]
  %v183 = vld [vmem:[%s0 + $0x2bc] sm:$0xf]
  %v184 = vld [vmem:[%s0 + $0x2c0] sm:$0xf]
  %v185 = vld [vmem:[%s0 + $0x2c4] sm:$0xf]
  %v186 = vld [vmem:[%s0 + $0x2c8] sm:$0xf]
  %v187 = vld [vmem:[%s0 + $0x2cc] sm:$0xf]
  %v188 = vld [vmem:[%s0 + $0x2d0] sm:$0xf]
  %v189 = vld [vmem:[%s0 + $0x2d4] sm:$0xf]
  %v190 = vld [vmem:[%s0 + $0x2d8] sm:$0xf]
  %v191 = vld [vmem:[%s0 + $0x2dc] sm:$0xf]
  %v192 = vld [vmem:[%s0 + $0x2e0] sm:$0xf]
  %v193 = vld [vmem:[%s0 + $0x2e4] sm:$0xf]
  %v194 = vld [vmem:[%s0 + $0x2e8] sm:$0xf]
  %v195 = vld [vmem:[%s0 + $0x2ec] sm:$0xf]
  %v196 = vld [vmem:[%s0 + $0x2f0] sm:$0xf]
  %v197 = vld [vmem:[%s0 + $0x2f4] sm:$0xf]
  %v198 = vld [vmem:[%s0 + $0x2f8] sm:$0xf]
  %v199 = vld [vmem:[%s0 + $0x2fc] sm:$0xf]
  %v200 = vunpack.c.l.bf16 %v8
  %v201 = vunpack.c.l.bf16 %v9
  %v202 = vunpack.c.l.bf16 %v10
  %v203 = vunpack.c.l.bf16 %v11
  %v204 = vunpack.c.l.bf16 %v12
  %v205 = vunpack.c.l.bf16 %v13
  %v206 = vunpack.c.l.bf16 %v14
  %v207 = vunpack.c.l.bf16 %v15
  %v208 = vunpack.c.l.bf16 %v16
  %v209 = vunpack.c.l.bf16 %v17
  %v210 = vunpack.c.l.bf16 %v18
  %v211 = vunpack.c.l.bf16 %v19
  %v212 = vunpack.c.l.bf16 %v20
  %v213 = vunpack.c.l.bf16 %v21
  %v214 = vunpack.c.l.bf16 %v22
  %v215 = vunpack.c.l.bf16 %v23
  %v216 = vunpack.c.l.bf16 %v24
  %v217 = vunpack.c.l.bf16 %v25
  %v218 = vunpack.c.l.bf16 %v26
  %v219 = vunpack.c.l.bf16 %v27
  %v220 = vunpack.c.l.bf16 %v28
  %v221 = vunpack.c.l.bf16 %v29
  %v222 = vunpack.c.l.bf16 %v30
  %v223 = vunpack.c.l.bf16 %v31
  %v224 = vunpack.c.l.bf16 %v32
  %v225 = vunpack.c.l.bf16 %v33
  %v226 = vunpack.c.l.bf16 %v34
  %v227 = vunpack.c.l.bf16 %v35
  %v228 = vunpack.c.l.bf16 %v36
  %v229 = vunpack.c.l.bf16 %v37
  %v230 = vunpack.c.l.bf16 %v38
  %v231 = vunpack.c.l.bf16 %v39
  %v232 = vunpack.c.l.bf16 %v40
  %v233 = vunpack.c.l.bf16 %v41
  %v234 = vunpack.c.l.bf16 %v42
  %v235 = vunpack.c.l.bf16 %v43
  %v236 = vunpack.c.l.bf16 %v44
  %v237 = vunpack.c.l.bf16 %v45
  %v238 = vunpack.c.l.bf16 %v46
  %v239 = vunpack.c.l.bf16 %v47
  %v240 = vunpack.c.l.bf16 %v48
  %v241 = vunpack.c.l.bf16 %v49
  %v242 = vunpack.c.l.bf16 %v50
  %v243 = vunpack.c.l.bf16 %v51
  %v244 = vunpack.c.l.bf16 %v52
  %v245 = vunpack.c.l.bf16 %v53
  %v246 = vunpack.c.l.bf16 %v54
  %v247 = vunpack.c.l.bf16 %v55
  %v248 = vunpack.c.l.bf16 %v56
  %v249 = vunpack.c.l.bf16 %v57
  %v250 = vunpack.c.l.bf16 %v58
  %v251 = vunpack.c.l.bf16 %v59
  %v252 = vunpack.c.l.bf16 %v60
  %v253 = vunpack.c.l.bf16 %v61
  %v254 = vunpack.c.l.bf16 %v62
  %v255 = vunpack.c.l.bf16 %v63
  %v256 = vunpack.c.l.bf16 %v64
  %v257 = vunpack.c.l.bf16 %v65
  %v258 = vunpack.c.l.bf16 %v66
  %v259 = vunpack.c.l.bf16 %v67
  %v260 = vunpack.c.l.bf16 %v68
  %v261 = vunpack.c.l.bf16 %v69
  %v262 = vunpack.c.l.bf16 %v70
  %v263 = vunpack.c.l.bf16 %v71
  %v264 = vunpack.c.l.bf16 %v72
  %v265 = vunpack.c.l.bf16 %v73
  %v266 = vunpack.c.l.bf16 %v74
  %v267 = vunpack.c.l.bf16 %v75
  %v268 = vunpack.c.l.bf16 %v76
  %v269 = vunpack.c.l.bf16 %v77
  %v270 = vunpack.c.l.bf16 %v78
  %v271 = vunpack.c.l.bf16 %v79
  %v272 = vunpack.c.l.bf16 %v80
  %v273 = vunpack.c.l.bf16 %v81
  %v274 = vunpack.c.l.bf16 %v82
  %v275 = vunpack.c.l.bf16 %v83
  %v276 = vunpack.c.l.bf16 %v84
  %v277 = vunpack.c.l.bf16 %v85
  %v278 = vunpack.c.l.bf16 %v86
  %v279 = vunpack.c.l.bf16 %v87
  %v280 = vunpack.c.l.bf16 %v88
  %v281 = vunpack.c.l.bf16 %v89
  %v282 = vunpack.c.l.bf16 %v90
  %v283 = vunpack.c.l.bf16 %v91
  %v284 = vunpack.c.l.bf16 %v92
  %v285 = vunpack.c.l.bf16 %v93
  %v286 = vunpack.c.l.bf16 %v94
  %v287 = vunpack.c.l.bf16 %v95
  %v288 = vunpack.c.l.bf16 %v96
  %v289 = vunpack.c.l.bf16 %v97
  %v290 = vunpack.c.l.bf16 %v98
  %v291 = vunpack.c.l.bf16 %v99
  %v292 = vunpack.c.l.bf16 %v100
  %v293 = vunpack.c.l.bf16 %v101
  %v294 = vunpack.c.l.bf16 %v102
  %v295 = vunpack.c.l.bf16 %v103
  %v296 = vunpack.c.l.bf16 %v104
  %v297 = vunpack.c.l.bf16 %v105
  %v298 = vunpack.c.l.bf16 %v106
  %v299 = vunpack.c.l.bf16 %v107
  %v300 = vunpack.c.l.bf16 %v108
  %v301 = vunpack.c.l.bf16 %v109
  %v302 = vunpack.c.l.bf16 %v110
  %v303 = vunpack.c.l.bf16 %v111
  %v304 = vunpack.c.l.bf16 %v112
  %v305 = vunpack.c.l.bf16 %v113
  %v306 = vunpack.c.l.bf16 %v114
  %v307 = vunpack.c.l.bf16 %v115
  %v308 = vunpack.c.l.bf16 %v116
  %v309 = vunpack.c.l.bf16 %v117
  %v310 = vunpack.c.l.bf16 %v118
  %v311 = vunpack.c.l.bf16 %v119
  %v312 = vunpack.c.l.bf16 %v120
  %v313 = vunpack.c.l.bf16 %v121
  %v314 = vunpack.c.l.bf16 %v122
  %v315 = vunpack.c.l.bf16 %v123
  %v316 = vunpack.c.l.bf16 %v124
  %v317 = vunpack.c.l.bf16 %v125
  %v318 = vunpack.c.l.bf16 %v126
  %v319 = vunpack.c.l.bf16 %v127
  %v320 = vunpack.c.l.bf16 %v128
  %v321 = vunpack.c.l.bf16 %v129
  %v322 = vunpack.c.l.bf16 %v130
  %v323 = vunpack.c.l.bf16 %v131
  %v324 = vunpack.c.l.bf16 %v132
  %v325 = vunpack.c.l.bf16 %v133
  %v326 = vunpack.c.l.bf16 %v134
  %v327 = vunpack.c.l.bf16 %v135
  %v328 = vunpack.c.l.bf16 %v136
  %v329 = vunpack.c.l.bf16 %v137
  %v330 = vunpack.c.l.bf16 %v138
  %v331 = vunpack.c.l.bf16 %v139
  %v332 = vunpack.c.l.bf16 %v140
  %v333 = vunpack.c.l.bf16 %v141
  %v334 = vunpack.c.l.bf16 %v142
  %v335 = vunpack.c.l.bf16 %v143
  %v336 = vunpack.c.l.bf16 %v144
  %v337 = vunpack.c.l.bf16 %v145
  %v338 = vunpack.c.l.bf16 %v146
  %v339 = vunpack.c.l.bf16 %v147
  %v340 = vunpack.c.l.bf16 %v148
  %v341 = vunpack.c.l.bf16 %v149
  %v342 = vunpack.c.l.bf16 %v150
  %v343 = vunpack.c.l.bf16 %v151
  %v344 = vunpack.c.l.bf16 %v152
  %v345 = vunpack.c.l.bf16 %v153
  %v346 = vunpack.c.l.bf16 %v154
  %v347 = vunpack.c.l.bf16 %v155
  %v348 = vunpack.c.l.bf16 %v156
  %v349 = vunpack.c.l.bf16 %v157
  %v350 = vunpack.c.l.bf16 %v158
  %v351 = vunpack.c.l.bf16 %v159
  %v352 = vunpack.c.l.bf16 %v160
  %v353 = vunpack.c.l.bf16 %v161
  %v354 = vunpack.c.l.bf16 %v162
  %v355 = vunpack.c.l.bf16 %v163
  %v356 = vunpack.c.l.bf16 %v164
  %v357 = vunpack.c.l.bf16 %v165
  %v358 = vunpack.c.l.bf16 %v166
  %v359 = vunpack.c.l.bf16 %v167
  %v360 = vunpack.c.l.bf16 %v168
  %v361 = vunpack.c.l.bf16 %v169
  %v362 = vunpack.c.l.bf16 %v170
  %v363 = vunpack.c.l.bf16 %v171
  %v364 = vunpack.c.l.bf16 %v172
  %v365 = vunpack.c.l.bf16 %v173
  %v366 = vunpack.c.l.bf16 %v174
  %v367 = vunpack.c.l.bf16 %v175
  %v368 = vunpack.c.l.bf16 %v176
  %v369 = vunpack.c.l.bf16 %v177
  %v370 = vunpack.c.l.bf16 %v178
  %v371 = vunpack.c.l.bf16 %v179
  %v372 = vunpack.c.l.bf16 %v180
  %v373 = vunpack.c.l.bf16 %v181
  %v374 = vunpack.c.l.bf16 %v182
  %v375 = vunpack.c.l.bf16 %v183
  %v376 = vunpack.c.l.bf16 %v184
  %v377 = vunpack.c.l.bf16 %v185
  %v378 = vunpack.c.l.bf16 %v186
  %v379 = vunpack.c.l.bf16 %v187
  %v380 = vunpack.c.l.bf16 %v188
  %v381 = vunpack.c.l.bf16 %v189
  %v382 = vunpack.c.l.bf16 %v190
  %v383 = vunpack.c.l.bf16 %v191
  %v384 = vunpack.c.l.bf16 %v192
  %v385 = vunpack.c.l.bf16 %v193
  %v386 = vunpack.c.l.bf16 %v194
  %v387 = vunpack.c.l.bf16 %v195
  %v388 = vunpack.c.l.bf16 %v196
  %v389 = vunpack.c.l.bf16 %v197
  %v390 = vunpack.c.l.bf16 %v198
  %v391 = vunpack.c.l.bf16 %v199
  %vm392 = vcmask 130048
  %v393 = vsel %vm392, %v200, -inf
  %v394 = vsel %vm392, %v264, -inf
  %v395 = vmax.f32 %v393, %v394
  %v396 = vsel %vm392, %v328, -inf
  %v397 = vmax.f32 %v395, %v396
  %v398 = vsel %vm392, %v201, -inf
  %v399 = vsel %vm392, %v265, -inf
  %v400 = vmax.f32 %v398, %v399
  %v401 = vsel %vm392, %v329, -inf
  %v402 = vmax.f32 %v400, %v401
  %v403 = vsel %vm392, %v202, -inf
  %v404 = vsel %vm392, %v266, -inf
  %v405 = vmax.f32 %v403, %v404
  %v406 = vsel %vm392, %v330, -inf
  %v407 = vmax.f32 %v405, %v406
  %v408 = vsel %vm392, %v203, -inf
  %v409 = vsel %vm392, %v267, -inf
  %v410 = vmax.f32 %v408, %v409
  %v411 = vsel %vm392, %v331, -inf
  %v412 = vmax.f32 %v410, %v411
  %v413 = vsel %vm392, %v204, -inf
  %v414 = vsel %vm392, %v268, -inf
  %v415 = vmax.f32 %v413, %v414
  %v416 = vsel %vm392, %v332, -inf
  %v417 = vmax.f32 %v415, %v416
  %v418 = vsel %vm392, %v205, -inf
  %v419 = vsel %vm392, %v269, -inf
  %v420 = vmax.f32 %v418, %v419
  %v421 = vsel %vm392, %v333, -inf
  %v422 = vmax.f32 %v420, %v421
  %v423 = vsel %vm392, %v206, -inf
  %v424 = vsel %vm392, %v270, -inf
  %v425 = vmax.f32 %v423, %v424
  %v426 = vsel %vm392, %v334, -inf
  %v427 = vmax.f32 %v425, %v426
  %v428 = vsel %vm392, %v207, -inf
  %v429 = vsel %vm392, %v271, -inf
  %v430 = vmax.f32 %v428, %v429
  %v431 = vsel %vm392, %v335, -inf
  %v432 = vmax.f32 %v430, %v431
  %v433 = vsel %vm392, %v208, -inf
  %v434 = vsel %vm392, %v272, -inf
  %v435 = vmax.f32 %v433, %v434
  %v436 = vsel %vm392, %v336, -inf
  %v437 = vmax.f32 %v435, %v436
  %v438 = vsel %vm392, %v209, -inf
  %v439 = vsel %vm392, %v273, -inf
  %v440 = vmax.f32 %v438, %v439
  %v441 = vsel %vm392, %v337, -inf
  %v442 = vmax.f32 %v440, %v441
  %v443 = vsel %vm392, %v210, -inf
  %v444 = vsel %vm392, %v274, -inf
  %v445 = vmax.f32 %v443, %v444
  %v446 = vsel %vm392, %v338, -inf
  %v447 = vmax.f32 %v445, %v446
  %v448 = vsel %vm392, %v211, -inf
  %v449 = vsel %vm392, %v275, -inf
  %v450 = vmax.f32 %v448, %v449
  %v451 = vsel %vm392, %v339, -inf
  %v452 = vmax.f32 %v450, %v451
  %v453 = vsel %vm392, %v212, -inf
  %v454 = vsel %vm392, %v276, -inf
  %v455 = vmax.f32 %v453, %v454
  %v456 = vsel %vm392, %v340, -inf
  %v457 = vmax.f32 %v455, %v456
  %v458 = vsel %vm392, %v213, -inf
  %v459 = vsel %vm392, %v277, -inf
  %v460 = vmax.f32 %v458, %v459
  %v461 = vsel %vm392, %v341, -inf
  %v462 = vmax.f32 %v460, %v461
  %v463 = vsel %vm392, %v214, -inf
  %v464 = vsel %vm392, %v278, -inf
  %v465 = vmax.f32 %v463, %v464
  %v466 = vsel %vm392, %v342, -inf
  %v467 = vmax.f32 %v465, %v466
  %v468 = vsel %vm392, %v215, -inf
  %v469 = vsel %vm392, %v279, -inf
  %v470 = vmax.f32 %v468, %v469
  %v471 = vsel %vm392, %v343, -inf
  %v472 = vmax.f32 %v470, %v471
  %v473 = vsel %vm392, %v216, -inf
  %v474 = vsel %vm392, %v280, -inf
  %v475 = vmax.f32 %v473, %v474
  %v476 = vsel %vm392, %v344, -inf
  %v477 = vmax.f32 %v475, %v476
  %v478 = vsel %vm392, %v217, -inf
  %v479 = vsel %vm392, %v281, -inf
  %v480 = vmax.f32 %v478, %v479
  %v481 = vsel %vm392, %v345, -inf
  %v482 = vmax.f32 %v480, %v481
  %v483 = vsel %vm392, %v218, -inf
  %v484 = vsel %vm392, %v282, -inf
  %v485 = vmax.f32 %v483, %v484
  %v486 = vsel %vm392, %v346, -inf
  %v487 = vmax.f32 %v485, %v486
  %v488 = vsel %vm392, %v219, -inf
  %v489 = vsel %vm392, %v283, -inf
  %v490 = vmax.f32 %v488, %v489
  %v491 = vsel %vm392, %v347, -inf
  %v492 = vmax.f32 %v490, %v491
  %v493 = vsel %vm392, %v220, -inf
  %v494 = vsel %vm392, %v284, -inf
  %v495 = vmax.f32 %v493, %v494
  %v496 = vsel %vm392, %v348, -inf
  %v497 = vmax.f32 %v495, %v496
  %v498 = vsel %vm392, %v221, -inf
  %v499 = vsel %vm392, %v285, -inf
  %v500 = vmax.f32 %v498, %v499
  %v501 = vsel %vm392, %v349, -inf
  %v502 = vmax.f32 %v500, %v501
  %v503 = vsel %vm392, %v222, -inf
  %v504 = vsel %vm392, %v286, -inf
  %v505 = vmax.f32 %v503, %v504
  %v506 = vsel %vm392, %v350, -inf
  %v507 = vmax.f32 %v505, %v506
  %v508 = vsel %vm392, %v223, -inf
  %v509 = vsel %vm392, %v287, -inf
  %v510 = vmax.f32 %v508, %v509
  %v511 = vsel %vm392, %v351, -inf
  %v512 = vmax.f32 %v510, %v511
  %v513 = vsel %vm392, %v224, -inf
  %v514 = vsel %vm392, %v288, -inf
  %v515 = vmax.f32 %v513, %v514
  %v516 = vsel %vm392, %v352, -inf
  %v517 = vmax.f32 %v515, %v516
  %v518 = vsel %vm392, %v225, -inf
  %v519 = vsel %vm392, %v289, -inf
  %v520 = vmax.f32 %v518, %v519
  %v521 = vsel %vm392, %v353, -inf
  %v522 = vmax.f32 %v520, %v521
  %v523 = vsel %vm392, %v226, -inf
  %v524 = vsel %vm392, %v290, -inf
  %v525 = vmax.f32 %v523, %v524
  %v526 = vsel %vm392, %v354, -inf
  %v527 = vmax.f32 %v525, %v526
  %v528 = vsel %vm392, %v227, -inf
  %v529 = vsel %vm392, %v291, -inf
  %v530 = vmax.f32 %v528, %v529
  %v531 = vsel %vm392, %v355, -inf
  %v532 = vmax.f32 %v530, %v531
  %v533 = vsel %vm392, %v228, -inf
  %v534 = vsel %vm392, %v292, -inf
  %v535 = vmax.f32 %v533, %v534
  %v536 = vsel %vm392, %v356, -inf
  %v537 = vmax.f32 %v535, %v536
  %v538 = vsel %vm392, %v229, -inf
  %v539 = vsel %vm392, %v293, -inf
  %v540 = vmax.f32 %v538, %v539
  %v541 = vsel %vm392, %v357, -inf
  %v542 = vmax.f32 %v540, %v541
  %v543 = vsel %vm392, %v230, -inf
  %v544 = vsel %vm392, %v294, -inf
  %v545 = vmax.f32 %v543, %v544
  %v546 = vsel %vm392, %v358, -inf
  %v547 = vmax.f32 %v545, %v546
  %v548 = vsel %vm392, %v231, -inf
  %v549 = vsel %vm392, %v295, -inf
  %v550 = vmax.f32 %v548, %v549
  %v551 = vsel %vm392, %v359, -inf
  %v552 = vmax.f32 %v550, %v551
  %v553 = vsel %vm392, %v232, -inf
  %v554 = vsel %vm392, %v296, -inf
  %v555 = vmax.f32 %v553, %v554
  %v556 = vsel %vm392, %v360, -inf
  %v557 = vmax.f32 %v555, %v556
  %v558 = vsel %vm392, %v233, -inf
  %v559 = vsel %vm392, %v297, -inf
  %v560 = vmax.f32 %v558, %v559
  %v561 = vsel %vm392, %v361, -inf
  %v562 = vmax.f32 %v560, %v561
  %v563 = vsel %vm392, %v234, -inf
  %v564 = vsel %vm392, %v298, -inf
  %v565 = vmax.f32 %v563, %v564
  %v566 = vsel %vm392, %v362, -inf
  %v567 = vmax.f32 %v565, %v566
  %v568 = vsel %vm392, %v235, -inf
  %v569 = vsel %vm392, %v299, -inf
  %v570 = vmax.f32 %v568, %v569
  %v571 = vsel %vm392, %v363, -inf
  %v572 = vmax.f32 %v570, %v571
  %v573 = vsel %vm392, %v236, -inf
  %v574 = vsel %vm392, %v300, -inf
  %v575 = vmax.f32 %v573, %v574
  %v576 = vsel %vm392, %v364, -inf
  %v577 = vmax.f32 %v575, %v576
  %v578 = vsel %vm392, %v237, -inf
  %v579 = vsel %vm392, %v301, -inf
  %v580 = vmax.f32 %v578, %v579
  %v581 = vsel %vm392, %v365, -inf
  %v582 = vmax.f32 %v580, %v581
  %v583 = vsel %vm392, %v238, -inf
  %v584 = vsel %vm392, %v302, -inf
  %v585 = vmax.f32 %v583, %v584
  %v586 = vsel %vm392, %v366, -inf
  %v587 = vmax.f32 %v585, %v586
  %v588 = vsel %vm392, %v239, -inf
  %v589 = vsel %vm392, %v303, -inf
  %v590 = vmax.f32 %v588, %v589
  %v591 = vsel %vm392, %v367, -inf
  %v592 = vmax.f32 %v590, %v591
  %v593 = vsel %vm392, %v240, -inf
  %v594 = vsel %vm392, %v304, -inf
  %v595 = vmax.f32 %v593, %v594
  %v596 = vsel %vm392, %v368, -inf
  %v597 = vmax.f32 %v595, %v596
  %v598 = vsel %vm392, %v241, -inf
  %v599 = vsel %vm392, %v305, -inf
  %v600 = vmax.f32 %v598, %v599
  %v601 = vsel %vm392, %v369, -inf
  %v602 = vmax.f32 %v600, %v601
  %v603 = vsel %vm392, %v242, -inf
  %v604 = vsel %vm392, %v306, -inf
  %v605 = vmax.f32 %v603, %v604
  %v606 = vsel %vm392, %v370, -inf
  %v607 = vmax.f32 %v605, %v606
  %v608 = vsel %vm392, %v243, -inf
  %v609 = vsel %vm392, %v307, -inf
  %v610 = vmax.f32 %v608, %v609
  %v611 = vsel %vm392, %v371, -inf
  %v612 = vmax.f32 %v610, %v611
  %v613 = vsel %vm392, %v244, -inf
  %v614 = vsel %vm392, %v308, -inf
  %v615 = vmax.f32 %v613, %v614
  %v616 = vsel %vm392, %v372, -inf
  %v617 = vmax.f32 %v615, %v616
  %v618 = vsel %vm392, %v245, -inf
  %v619 = vsel %vm392, %v309, -inf
  %v620 = vmax.f32 %v618, %v619
  %v621 = vsel %vm392, %v373, -inf
  %v622 = vmax.f32 %v620, %v621
  %v623 = vsel %vm392, %v246, -inf
  %v624 = vsel %vm392, %v310, -inf
  %v625 = vmax.f32 %v623, %v624
  %v626 = vsel %vm392, %v374, -inf
  %v627 = vmax.f32 %v625, %v626
  %v628 = vsel %vm392, %v247, -inf
  %v629 = vsel %vm392, %v311, -inf
  %v630 = vmax.f32 %v628, %v629
  %v631 = vsel %vm392, %v375, -inf
  %v632 = vmax.f32 %v630, %v631
  %v633 = vsel %vm392, %v248, -inf
  %v634 = vsel %vm392, %v312, -inf
  %v635 = vmax.f32 %v633, %v634
  %v636 = vsel %vm392, %v376, -inf
  %v637 = vmax.f32 %v635, %v636
  %v638 = vsel %vm392, %v249, -inf
  %v639 = vsel %vm392, %v313, -inf
  %v640 = vmax.f32 %v638, %v639
  %v641 = vsel %vm392, %v377, -inf
  %v642 = vmax.f32 %v640, %v641
  %v643 = vsel %vm392, %v250, -inf
  %v644 = vsel %vm392, %v314, -inf
  %v645 = vmax.f32 %v643, %v644
  %v646 = vsel %vm392, %v378, -inf
  %v647 = vmax.f32 %v645, %v646
  %v648 = vsel %vm392, %v251, -inf
  %v649 = vsel %vm392, %v315, -inf
  %v650 = vmax.f32 %v648, %v649
  %v651 = vsel %vm392, %v379, -inf
  %v652 = vmax.f32 %v650, %v651
  %v653 = vsel %vm392, %v252, -inf
  %v654 = vsel %vm392, %v316, -inf
  %v655 = vmax.f32 %v653, %v654
  %v656 = vsel %vm392, %v380, -inf
  %v657 = vmax.f32 %v655, %v656
  %v658 = vsel %vm392, %v253, -inf
  %v659 = vsel %vm392, %v317, -inf
  %v660 = vmax.f32 %v658, %v659
  %v661 = vsel %vm392, %v381, -inf
  %v662 = vmax.f32 %v660, %v661
  %v663 = vsel %vm392, %v254, -inf
  %v664 = vsel %vm392, %v318, -inf
  %v665 = vmax.f32 %v663, %v664
  %v666 = vsel %vm392, %v382, -inf
  %v667 = vmax.f32 %v665, %v666
  %v668 = vsel %vm392, %v255, -inf
  %v669 = vsel %vm392, %v319, -inf
  %v670 = vmax.f32 %v668, %v669
  %v671 = vsel %vm392, %v383, -inf
  %v672 = vmax.f32 %v670, %v671
  %v673 = vsel %vm392, %v256, -inf
  %v674 = vsel %vm392, %v320, -inf
  %v675 = vmax.f32 %v673, %v674
  %v676 = vsel %vm392, %v384, -inf
  %v677 = vmax.f32 %v675, %v676
  %v678 = vsel %vm392, %v257, -inf
  %v679 = vsel %vm392, %v321, -inf
  %v680 = vmax.f32 %v678, %v679
  %v681 = vsel %vm392, %v385, -inf
  %v682 = vmax.f32 %v680, %v681
  %v683 = vsel %vm392, %v258, -inf
  %v684 = vsel %vm392, %v322, -inf
  %v685 = vmax.f32 %v683, %v684
  %v686 = vsel %vm392, %v386, -inf
  %v687 = vmax.f32 %v685, %v686
  %v688 = vsel %vm392, %v259, -inf
  %v689 = vsel %vm392, %v323, -inf
  %v690 = vmax.f32 %v688, %v689
  %v691 = vsel %vm392, %v387, -inf
  %v692 = vmax.f32 %v690, %v691
  %v693 = vsel %vm392, %v260, -inf
  %v694 = vsel %vm392, %v324, -inf
  %v695 = vmax.f32 %v693, %v694
  %v696 = vsel %vm392, %v388, -inf
  %v697 = vmax.f32 %v695, %v696
  %v698 = vsel %vm392, %v261, -inf
  %v699 = vsel %vm392, %v325, -inf
  %v700 = vmax.f32 %v698, %v699
  %v701 = vsel %vm392, %v389, -inf
  %v702 = vmax.f32 %v700, %v701
  %v703 = vsel %vm392, %v262, -inf
  %v704 = vsel %vm392, %v326, -inf
  %v705 = vmax.f32 %v703, %v704
  %v706 = vsel %vm392, %v390, -inf
  %v707 = vmax.f32 %v705, %v706
  %v708 = vsel %vm392, %v263, -inf
  %v709 = vsel %vm392, %v327, -inf
  %v710 = vmax.f32 %v708, %v709
  %v711 = vsel %vm392, %v391, -inf
  %v712 = vmax.f32 %v710, %v711
  %v713 = vpack.c.bf16 %v402, %v397
  %v714 = vpack.c.bf16 %v412, %v407
  %v715 = vpack.c.bf16 %v422, %v417
  %v716 = vpack.c.bf16 %v432, %v427
  %v717 = vpack.c.bf16 %v442, %v437
  %v718 = vpack.c.bf16 %v452, %v447
  %v719 = vpack.c.bf16 %v462, %v457
  %v720 = vpack.c.bf16 %v472, %v467
  %v721 = vpack.c.bf16 %v482, %v477
  %v722 = vpack.c.bf16 %v492, %v487
  %v723 = vpack.c.bf16 %v502, %v497
  %v724 = vpack.c.bf16 %v512, %v507
  %v725 = vpack.c.bf16 %v522, %v517
  %v726 = vpack.c.bf16 %v532, %v527
  %v727 = vpack.c.bf16 %v542, %v537
  %v728 = vpack.c.bf16 %v552, %v547
  %v729 = vpack.c.bf16 %v562, %v557
  %v730 = vpack.c.bf16 %v572, %v567
  %v731 = vpack.c.bf16 %v582, %v577
  %v732 = vpack.c.bf16 %v592, %v587
  %v733 = vpack.c.bf16 %v602, %v597
  %v734 = vpack.c.bf16 %v612, %v607
  %v735 = vpack.c.bf16 %v622, %v617
  %v736 = vpack.c.bf16 %v632, %v627
  %v737 = vpack.c.bf16 %v642, %v637
  %v738 = vpack.c.bf16 %v652, %v647
  %v739 = vpack.c.bf16 %v662, %v657
  %v740 = vpack.c.bf16 %v672, %v667
  %v741 = vpack.c.bf16 %v682, %v677
  %v742 = vpack.c.bf16 %v692, %v687
  %v743 = vpack.c.bf16 %v702, %v697
  %v744 = vpack.c.bf16 %v712, %v707
  %v777 = vunpack.c.l.b16 %v713
  %v778 = vunpack.c.h.b16 %v713
  %v779 = vunpack.c.l.b16 %v714
  %v780 = vunpack.c.h.b16 %v714
  %v781 = vunpack.c.l.b16 %v715
  %v782 = vunpack.c.h.b16 %v715
  %v783 = vunpack.c.l.b16 %v716
  %v784 = vunpack.c.h.b16 %v716
  %v785 = vunpack.c.l.b16 %v717
  %v786 = vunpack.c.h.b16 %v717
  %v787 = vunpack.c.l.b16 %v718
  %v788 = vunpack.c.h.b16 %v718
  %v789 = vunpack.c.l.b16 %v719
  %v790 = vunpack.c.h.b16 %v719
  %v791 = vunpack.c.l.b16 %v720
  %v792 = vunpack.c.h.b16 %v720
  %v793 = vunpack.c.l.b16 %v721
  %v794 = vunpack.c.h.b16 %v721
  %v795 = vunpack.c.l.b16 %v722
  %v796 = vunpack.c.h.b16 %v722
  %v797 = vunpack.c.l.b16 %v723
  %v798 = vunpack.c.h.b16 %v723
  %v799 = vunpack.c.l.b16 %v724
  %v800 = vunpack.c.h.b16 %v724
  %v801 = vunpack.c.l.b16 %v725
  %v802 = vunpack.c.h.b16 %v725
  %v803 = vunpack.c.l.b16 %v726
  %v804 = vunpack.c.h.b16 %v726
  %v805 = vunpack.c.l.b16 %v727
  %v806 = vunpack.c.h.b16 %v727
  %v807 = vunpack.c.l.b16 %v728
  %v808 = vunpack.c.h.b16 %v728
  %v809 = vunpack.c.l.b16 %v729
  %v810 = vunpack.c.h.b16 %v729
  %v811 = vunpack.c.l.b16 %v730
  %v812 = vunpack.c.h.b16 %v730
  %v813 = vunpack.c.l.b16 %v731
  %v814 = vunpack.c.h.b16 %v731
  %v815 = vunpack.c.l.b16 %v732
  %v816 = vunpack.c.h.b16 %v732
  %v817 = vunpack.c.l.b16 %v733
  %v818 = vunpack.c.h.b16 %v733
  %v819 = vunpack.c.l.b16 %v734
  %v820 = vunpack.c.h.b16 %v734
  %v821 = vunpack.c.l.b16 %v735
  %v822 = vunpack.c.h.b16 %v735
  %v823 = vunpack.c.l.b16 %v736
  %v824 = vunpack.c.h.b16 %v736
  %v825 = vunpack.c.l.b16 %v737
  %v826 = vunpack.c.h.b16 %v737
  %v827 = vunpack.c.l.b16 %v738
  %v828 = vunpack.c.h.b16 %v738
  %v829 = vunpack.c.l.b16 %v739
  %v830 = vunpack.c.h.b16 %v739
  %v831 = vunpack.c.l.b16 %v740
  %v832 = vunpack.c.h.b16 %v740
  %v833 = vunpack.c.l.b16 %v741
  %v834 = vunpack.c.h.b16 %v741
  %v835 = vunpack.c.l.b16 %v742
  %v836 = vunpack.c.h.b16 %v742
  %v837 = vunpack.c.l.b16 %v743
  %v838 = vunpack.c.h.b16 %v743
  %v839 = vunpack.c.l.b16 %v744
  %v840 = vunpack.c.h.b16 %v744
  %v841 = vpack.c.b16 %v777, %v777
  %v842 = vpack.c.b16 %v778, %v778
  %v843 = vpack.c.b16 %v779, %v779
  %v844 = vpack.c.b16 %v780, %v780
  %v845 = vpack.c.b16 %v781, %v781
  %v846 = vpack.c.b16 %v782, %v782
  %v847 = vpack.c.b16 %v783, %v783
  %v848 = vpack.c.b16 %v784, %v784
  %v849 = vpack.c.b16 %v785, %v785
  %v850 = vpack.c.b16 %v786, %v786
  %v851 = vpack.c.b16 %v787, %v787
  %v852 = vpack.c.b16 %v788, %v788
  %v853 = vpack.c.b16 %v789, %v789
  %v854 = vpack.c.b16 %v790, %v790
  %v855 = vpack.c.b16 %v791, %v791
  %v856 = vpack.c.b16 %v792, %v792
  %v857 = vpack.c.b16 %v793, %v793
  %v858 = vpack.c.b16 %v794, %v794
  %v859 = vpack.c.b16 %v795, %v795
  %v860 = vpack.c.b16 %v796, %v796
  %v861 = vpack.c.b16 %v797, %v797
  %v862 = vpack.c.b16 %v798, %v798
  %v863 = vpack.c.b16 %v799, %v799
  %v864 = vpack.c.b16 %v800, %v800
  %v865 = vpack.c.b16 %v801, %v801
  %v866 = vpack.c.b16 %v802, %v802
  %v867 = vpack.c.b16 %v803, %v803
  %v868 = vpack.c.b16 %v804, %v804
  %v869 = vpack.c.b16 %v805, %v805
  %v870 = vpack.c.b16 %v806, %v806
  %v871 = vpack.c.b16 %v807, %v807
  %v872 = vpack.c.b16 %v808, %v808
  %v873 = vpack.c.b16 %v809, %v809
  %v874 = vpack.c.b16 %v810, %v810
  %v875 = vpack.c.b16 %v811, %v811
  %v876 = vpack.c.b16 %v812, %v812
  %v877 = vpack.c.b16 %v813, %v813
  %v878 = vpack.c.b16 %v814, %v814
  %v879 = vpack.c.b16 %v815, %v815
  %v880 = vpack.c.b16 %v816, %v816
  %v881 = vpack.c.b16 %v817, %v817
  %v882 = vpack.c.b16 %v818, %v818
  %v883 = vpack.c.b16 %v819, %v819
  %v884 = vpack.c.b16 %v820, %v820
  %v885 = vpack.c.b16 %v821, %v821
  %v886 = vpack.c.b16 %v822, %v822
  %v887 = vpack.c.b16 %v823, %v823
  %v888 = vpack.c.b16 %v824, %v824
  %v889 = vpack.c.b16 %v825, %v825
  %v890 = vpack.c.b16 %v826, %v826
  %v891 = vpack.c.b16 %v827, %v827
  %v892 = vpack.c.b16 %v828, %v828
  %v893 = vpack.c.b16 %v829, %v829
  %v894 = vpack.c.b16 %v830, %v830
  %v895 = vpack.c.b16 %v831, %v831
  %v896 = vpack.c.b16 %v832, %v832
  %v897 = vpack.c.b16 %v833, %v833
  %v898 = vpack.c.b16 %v834, %v834
  %v899 = vpack.c.b16 %v835, %v835
  %v900 = vpack.c.b16 %v836, %v836
  %v901 = vpack.c.b16 %v837, %v837
  %v902 = vpack.c.b16 %v838, %v838
  %v903 = vpack.c.b16 %v839, %v839
  %v904 = vpack.c.b16 %v840, %v840
  %vm969 = vcmask 125952
  %970 = vst.msk [vmem:[%s1] sm:$0xf] %vm969, %v841
  %971 = vst.msk [vmem:[%s1 + $0x4] sm:$0xf] %vm969, %v842
  %972 = vst.msk [vmem:[%s1 + $0x8] sm:$0xf] %vm969, %v843
  %973 = vst.msk [vmem:[%s1 + $0xc] sm:$0xf] %vm969, %v844
  %974 = vst.msk [vmem:[%s1 + $0x10] sm:$0xf] %vm969, %v845
  %975 = vst.msk [vmem:[%s1 + $0x14] sm:$0xf] %vm969, %v846
  %976 = vst.msk [vmem:[%s1 + $0x18] sm:$0xf] %vm969, %v847
  %977 = vst.msk [vmem:[%s1 + $0x1c] sm:$0xf] %vm969, %v848
  %978 = vst.msk [vmem:[%s1 + $0x20] sm:$0xf] %vm969, %v849
  %979 = vst.msk [vmem:[%s1 + $0x24] sm:$0xf] %vm969, %v850
  %980 = vst.msk [vmem:[%s1 + $0x28] sm:$0xf] %vm969, %v851
  %981 = vst.msk [vmem:[%s1 + $0x2c] sm:$0xf] %vm969, %v852
  %982 = vst.msk [vmem:[%s1 + $0x30] sm:$0xf] %vm969, %v853
  %983 = vst.msk [vmem:[%s1 + $0x34] sm:$0xf] %vm969, %v854
  %984 = vst.msk [vmem:[%s1 + $0x38] sm:$0xf] %vm969, %v855
  %985 = vst.msk [vmem:[%s1 + $0x3c] sm:$0xf] %vm969, %v856
  %986 = vst.msk [vmem:[%s1 + $0x40] sm:$0xf] %vm969, %v857
  %987 = vst.msk [vmem:[%s1 + $0x44] sm:$0xf] %vm969, %v858
  %988 = vst.msk [vmem:[%s1 + $0x48] sm:$0xf] %vm969, %v859
  %989 = vst.msk [vmem:[%s1 + $0x4c] sm:$0xf] %vm969, %v860
  %990 = vst.msk [vmem:[%s1 + $0x50] sm:$0xf] %vm969, %v861
  %991 = vst.msk [vmem:[%s1 + $0x54] sm:$0xf] %vm969, %v862
  %992 = vst.msk [vmem:[%s1 + $0x58] sm:$0xf] %vm969, %v863
  %993 = vst.msk [vmem:[%s1 + $0x5c] sm:$0xf] %vm969, %v864
  %994 = vst.msk [vmem:[%s1 + $0x60] sm:$0xf] %vm969, %v865
  %995 = vst.msk [vmem:[%s1 + $0x64] sm:$0xf] %vm969, %v866
  %996 = vst.msk [vmem:[%s1 + $0x68] sm:$0xf] %vm969, %v867
  %997 = vst.msk [vmem:[%s1 + $0x6c] sm:$0xf] %vm969, %v868
  %998 = vst.msk [vmem:[%s1 + $0x70] sm:$0xf] %vm969, %v869
  %999 = vst.msk [vmem:[%s1 + $0x74] sm:$0xf] %vm969, %v870
  %1000 = vst.msk [vmem:[%s1 + $0x78] sm:$0xf] %vm969, %v871
  %1001 = vst.msk [vmem:[%s1 + $0x7c] sm:$0xf] %vm969, %v872
  %1002 = vst.msk [vmem:[%s1 + $0x80] sm:$0xf] %vm969, %v873
  %1003 = vst.msk [vmem:[%s1 + $0x84] sm:$0xf] %vm969, %v874
  %1004 = vst.msk [vmem:[%s1 + $0x88] sm:$0xf] %vm969, %v875
  %1005 = vst.msk [vmem:[%s1 + $0x8c] sm:$0xf] %vm969, %v876
  %1006 = vst.msk [vmem:[%s1 + $0x90] sm:$0xf] %vm969, %v877
  %1007 = vst.msk [vmem:[%s1 + $0x94] sm:$0xf] %vm969, %v878
  %1008 = vst.msk [vmem:[%s1 + $0x98] sm:$0xf] %vm969, %v879
  %1009 = vst.msk [vmem:[%s1 + $0x9c] sm:$0xf] %vm969, %v880
  %1010 = vst.msk [vmem:[%s1 + $0xa0] sm:$0xf] %vm969, %v881
  %1011 = vst.msk [vmem:[%s1 + $0xa4] sm:$0xf] %vm969, %v882
  %1012 = vst.msk [vmem:[%s1 + $0xa8] sm:$0xf] %vm969, %v883
  %1013 = vst.msk [vmem:[%s1 + $0xac] sm:$0xf] %vm969, %v884
  %1014 = vst.msk [vmem:[%s1 + $0xb0] sm:$0xf] %vm969, %v885
  %1015 = vst.msk [vmem:[%s1 + $0xb4] sm:$0xf] %vm969, %v886
  %1016 = vst.msk [vmem:[%s1 + $0xb8] sm:$0xf] %vm969, %v887
  %1017 = vst.msk [vmem:[%s1 + $0xbc] sm:$0xf] %vm969, %v888
  %1018 = vst.msk [vmem:[%s1 + $0xc0] sm:$0xf] %vm969, %v889
  %1019 = vst.msk [vmem:[%s1 + $0xc4] sm:$0xf] %vm969, %v890
  %1020 = vst.msk [vmem:[%s1 + $0xc8] sm:$0xf] %vm969, %v891
  %1021 = vst.msk [vmem:[%s1 + $0xcc] sm:$0xf] %vm969, %v892
  %1022 = vst.msk [vmem:[%s1 + $0xd0] sm:$0xf] %vm969, %v893
  %1023 = vst.msk [vmem:[%s1 + $0xd4] sm:$0xf] %vm969, %v894
  %1024 = vst.msk [vmem:[%s1 + $0xd8] sm:$0xf] %vm969, %v895
  %1025 = vst.msk [vmem:[%s1 + $0xdc] sm:$0xf] %vm969, %v896
  %1026 = vst.msk [vmem:[%s1 + $0xe0] sm:$0xf] %vm969, %v897
  %1027 = vst.msk [vmem:[%s1 + $0xe4] sm:$0xf] %vm969, %v898
  %1028 = vst.msk [vmem:[%s1 + $0xe8] sm:$0xf] %vm969, %v899
  %1029 = vst.msk [vmem:[%s1 + $0xec] sm:$0xf] %vm969, %v900
  %1030 = vst.msk [vmem:[%s1 + $0xf0] sm:$0xf] %vm969, %v901
  %1031 = vst.msk [vmem:[%s1 + $0xf4] sm:$0xf] %vm969, %v902
  %1032 = vst.msk [vmem:[%s1 + $0xf8] sm:$0xf] %vm969, %v903
  %1033 = vst.msk [vmem:[%s1 + $0xfc] sm:$0xf] %vm969, %v904
  // Predicated region
  $region6: #{densenet_mm_forward.37} parent=0 // pred_check
    _
  $region7: #{densenet_mm_forward.37} parent=0 // pred_check_branch
    %1035 = sbr.rel (0) target = $region9
  $region8: #{densenet_mm_forward.37} parent=0 // pred_region
    _
  $region9: #{densenet_mm_forward.37} parent=0 // pred_fallthru
    _
  // Predicated region
  $region10: #{densenet_mm_forward.37} parent=0 // pred_check
    _
  $region11: #{densenet_mm_forward.37} parent=0 // pred_check_branch
    %1037 = sbr.rel (0) target = $region13
  $region12: #{densenet_mm_forward.37} parent=0 // pred_region
    _
  $region13: #{densenet_mm_forward.37} parent=0 // pred_fallthru
    _

// kernel: densenet_mm_forward.38
$region0: #{densenet_mm_forward.38}
  #allocation0 [shape = 'u32[]', space=smem, size = 0x4, offset = 0x4, fixed_abs, tag = 'smem constant byte address 0x4 - core index']
  #allocation1 [shape = 'u32[144,128]{1,0:T(1,128)}', space=vmem, size = 0x12000, scoped, tag = 'internal scratch']
  %s0 = inlined_call_operand.vmem [shape: bf16[3,256,16], index: 0, kind: input, shape index: {}]
  %s1 = inlined_call_operand.vmem [shape: bf16[256,16], index: 1, kind: output, shape index: {}]
  %s2 = sld [smem:[#allocation0]]
  $region14: #{densenet_mm_forward.38} parent=0
    _
  %s4 = ssub.s32 1, %s2
  %s5 = scalar_select 0, %s4, %s2
  // Predicated region
  $region2: #{densenet_mm_forward.38} parent=0 // pred_check
    _
  $region3: #{densenet_mm_forward.38} parent=0 // pred_check_branch
    %7 = sbr.rel (0) target = $region5
  $region4: #{densenet_mm_forward.38} parent=0 // pred_region
    _
  $region5: #{densenet_mm_forward.38} parent=0 // pred_fallthru
    _
  %v8 = vld [vmem:[%s0] sm:$0xf]
  %v9 = vld [vmem:[%s0 + $0x4] sm:$0xf]
  %v10 = vld [vmem:[%s0 + $0x8] sm:$0xf]
  %v11 = vld [vmem:[%s0 + $0xc] sm:$0xf]
  %v12 = vld [vmem:[%s0 + $0x10] sm:$0xf]
  %v13 = vld [vmem:[%s0 + $0x14] sm:$0xf]
  %v14 = vld [vmem:[%s0 + $0x18] sm:$0xf]
  %v15 = vld [vmem:[%s0 + $0x1c] sm:$0xf]
  %v16 = vld [vmem:[%s0 + $0x20] sm:$0xf]
  %v17 = vld [vmem:[%s0 + $0x24] sm:$0xf]
  %v18 = vld [vmem:[%s0 + $0x28] sm:$0xf]
  %v19 = vld [vmem:[%s0 + $0x2c] sm:$0xf]
  %v20 = vld [vmem:[%s0 + $0x30] sm:$0xf]
  %v21 = vld [vmem:[%s0 + $0x34] sm:$0xf]
  %v22 = vld [vmem:[%s0 + $0x38] sm:$0xf]
  %v23 = vld [vmem:[%s0 + $0x3c] sm:$0xf]
  %v24 = vld [vmem:[%s0 + $0x40] sm:$0xf]
  %v25 = vld [vmem:[%s0 + $0x44] sm:$0xf]
  %v26 = vld [vmem:[%s0 + $0x48] sm:$0xf]
  %v27 = vld [vmem:[%s0 + $0x4c] sm:$0xf]
  %v28 = vld [vmem:[%s0 + $0x50] sm:$0xf]
  %v29 = vld [vmem:[%s0 + $0x54] sm:$0xf]
  %v30 = vld [vmem:[%s0 + $0x58] sm:$0xf]
  %v31 = vld [vmem:[%s0 + $0x5c] sm:$0xf]
  %v32 = vld [vmem:[%s0 + $0x60] sm:$0xf]
  %v33 = vld [vmem:[%s0 + $0x64] sm:$0xf]
  %v34 = vld [vmem:[%s0 + $0x68] sm:$0xf]
  %v35 = vld [vmem:[%s0 + $0x6c] sm:$0xf]
  %v36 = vld [vmem:[%s0 + $0x70] sm:$0xf]
  %v37 = vld [vmem:[%s0 + $0x74] sm:$0xf]
  %v38 = vld [vmem:[%s0 + $0x78] sm:$0xf]
  %v39 = vld [vmem:[%s0 + $0x7c] sm:$0xf]
  %v40 = vld [vmem:[%s0 + $0x80] sm:$0xf]
  %v41 = vld [vmem:[%s0 + $0x84] sm:$0xf]
  %v42 = vld [vmem:[%s0 + $0x88] sm:$0xf]
  %v43 = vld [vmem:[%s0 + $0x8c] sm:$0xf]
  %v44 = vld [vmem:[%s0 + $0x90] sm:$0xf]
  %v45 = vld [vmem:[%s0 + $0x94] sm:$0xf]
  %v46 = vld [vmem:[%s0 + $0x98] sm:$0xf]
  %v47 = vld [vmem:[%s0 + $0x9c] sm:$0xf]
  %v48 = vld [vmem:[%s0 + $0xa0] sm:$0xf]
  %v49 = vld [vmem:[%s0 + $0xa4] sm:$0xf]
  %v50 = vld [vmem:[%s0 + $0xa8] sm:$0xf]
  %v51 = vld [vmem:[%s0 + $0xac] sm:$0xf]
  %v52 = vld [vmem:[%s0 + $0xb0] sm:$0xf]
  %v53 = vld [vmem:[%s0 + $0xb4] sm:$0xf]
  %v54 = vld [vmem:[%s0 + $0xb8] sm:$0xf]
  %v55 = vld [vmem:[%s0 + $0xbc] sm:$0xf]
  %v56 = vld [vmem:[%s0 + $0xc0] sm:$0xf]
  %v57 = vld [vmem:[%s0 + $0xc4] sm:$0xf]
  %v58 = vld [vmem:[%s0 + $0xc8] sm:$0xf]
  %v59 = vld [vmem:[%s0 + $0xcc] sm:$0xf]
  %v60 = vld [vmem:[%s0 + $0xd0] sm:$0xf]
  %v61 = vld [vmem:[%s0 + $0xd4] sm:$0xf]
  %v62 = vld [vmem:[%s0 + $0xd8] sm:$0xf]
  %v63 = vld [vmem:[%s0 + $0xdc] sm:$0xf]
  %v64 = vld [vmem:[%s0 + $0xe0] sm:$0xf]
  %v65 = vld [vmem:[%s0 + $0xe4] sm:$0xf]
  %v66 = vld [vmem:[%s0 + $0xe8] sm:$0xf]
  %v67 = vld [vmem:[%s0 + $0xec] sm:$0xf]
  %v68 = vld [vmem:[%s0 + $0xf0] sm:$0xf]
  %v69 = vld [vmem:[%s0 + $0xf4] sm:$0xf]
  %v70 = vld [vmem:[%s0 + $0xf8] sm:$0xf]
  %v71 = vld [vmem:[%s0 + $0xfc] sm:$0xf]
  %v72 = vld [vmem:[%s0 + $0x100] sm:$0xf]
  %v73 = vld [vmem:[%s0 + $0x104] sm:$0xf]
  %v74 = vld [vmem:[%s0 + $0x108] sm:$0xf]
  %v75 = vld [vmem:[%s0 + $0x10c] sm:$0xf]
  %v76 = vld [vmem:[%s0 + $0x110] sm:$0xf]
  %v77 = vld [vmem:[%s0 + $0x114] sm:$0xf]
  %v78 = vld [vmem:[%s0 + $0x118] sm:$0xf]
  %v79 = vld [vmem:[%s0 + $0x11c] sm:$0xf]
  %v80 = vld [vmem:[%s0 + $0x120] sm:$0xf]
  %v81 = vld [vmem:[%s0 + $0x124] sm:$0xf]
  %v82 = vld [vmem:[%s0 + $0x128] sm:$0xf]
  %v83 = vld [vmem:[%s0 + $0x12c] sm:$0xf]
  %v84 = vld [vmem:[%s0 + $0x130] sm:$0xf]
  %v85 = vld [vmem:[%s0 + $0x134] sm:$0xf]
  %v86 = vld [vmem:[%s0 + $0x138] sm:$0xf]
  %v87 = vld [vmem:[%s0 + $0x13c] sm:$0xf]
  %v88 = vld [vmem:[%s0 + $0x140] sm:$0xf]
  %v89 = vld [vmem:[%s0 + $0x144] sm:$0xf]
  %v90 = vld [vmem:[%s0 + $0x148] sm:$0xf]
  %v91 = vld [vmem:[%s0 + $0x14c] sm:$0xf]
  %v92 = vld [vmem:[%s0 + $0x150] sm:$0xf]
  %v93 = vld [vmem:[%s0 + $0x154] sm:$0xf]
  %v94 = vld [vmem:[%s0 + $0x158] sm:$0xf]
  %v95 = vld [vmem:[%s0 + $0x15c] sm:$0xf]
  %v96 = vld [vmem:[%s0 + $0x160] sm:$0xf]
  %v97 = vld [vmem:[%s0 + $0x164] sm:$0xf]
  %v98 = vld [vmem:[%s0 + $0x168] sm:$0xf]
  %v99 = vld [vmem:[%s0 + $0x16c] sm:$0xf]
  %v100 = vld [vmem:[%s0 + $0x170] sm:$0xf]
  %v101 = vld [vmem:[%s0 + $0x174] sm:$0xf]
  %v102 = vld [vmem:[%s0 + $0x178] sm:$0xf]
  %v103 = vld [vmem:[%s0 + $0x17c] sm:$0xf]
  %v104 = vunpack.c.l.bf16 %v8
  %v105 = vunpack.c.l.bf16 %v9
  %v106 = vunpack.c.l.bf16 %v10
  %v107 = vunpack.c.l.bf16 %v11
  %v108 = vunpack.c.l.bf16 %v12
  %v109 = vunpack.c.l.bf16 %v13
  %v110 = vunpack.c.l.bf16 %v14
  %v111 = vunpack.c.l.bf16 %v15
  %v112 = vunpack.c.l.bf16 %v16
  %v113 = vunpack.c.l.bf16 %v17
  %v114 = vunpack.c.l.bf16 %v18
  %v115 = vunpack.c.l.bf16 %v19
  %v116 = vunpack.c.l.bf16 %v20
  %v117 = vunpack.c.l.bf16 %v21
  %v118 = vunpack.c.l.bf16 %v22
  %v119 = vunpack.c.l.bf16 %v23
  %v120 = vunpack.c.l.bf16 %v24
  %v121 = vunpack.c.l.bf16 %v25
  %v122 = vunpack.c.l.bf16 %v26
  %v123 = vunpack.c.l.bf16 %v27
  %v124 = vunpack.c.l.bf16 %v28
  %v125 = vunpack.c.l.bf16 %v29
  %v126 = vunpack.c.l.bf16 %v30
  %v127 = vunpack.c.l.bf16 %v31
  %v128 = vunpack.c.l.bf16 %v32
  %v129 = vunpack.c.l.bf16 %v33
  %v130 = vunpack.c.l.bf16 %v34
  %v131 = vunpack.c.l.bf16 %v35
  %v132 = vunpack.c.l.bf16 %v36
  %v133 = vunpack.c.l.bf16 %v37
  %v134 = vunpack.c.l.bf16 %v38
  %v135 = vunpack.c.l.bf16 %v39
  %v136 = vunpack.c.l.bf16 %v40
  %v137 = vunpack.c.l.bf16 %v41
  %v138 = vunpack.c.l.bf16 %v42
  %v139 = vunpack.c.l.bf16 %v43
  %v140 = vunpack.c.l.bf16 %v44
  %v141 = vunpack.c.l.bf16 %v45
  %v142 = vunpack.c.l.bf16 %v46
  %v143 = vunpack.c.l.bf16 %v47
  %v144 = vunpack.c.l.bf16 %v48
  %v145 = vunpack.c.l.bf16 %v49
  %v146 = vunpack.c.l.bf16 %v50
  %v147 = vunpack.c.l.bf16 %v51
  %v148 = vunpack.c.l.bf16 %v52
  %v149 = vunpack.c.l.bf16 %v53
  %v150 = vunpack.c.l.bf16 %v54
  %v151 = vunpack.c.l.bf16 %v55
  %v152 = vunpack.c.l.bf16 %v56
  %v153 = vunpack.c.l.bf16 %v57
  %v154 = vunpack.c.l.bf16 %v58
  %v155 = vunpack.c.l.bf16 %v59
  %v156 = vunpack.c.l.bf16 %v60
  %v157 = vunpack.c.l.bf16 %v61
  %v158 = vunpack.c.l.bf16 %v62
  %v159 = vunpack.c.l.bf16 %v63
  %v160 = vunpack.c.l.bf16 %v64
  %v161 = vunpack.c.l.bf16 %v65
  %v162 = vunpack.c.l.bf16 %v66
  %v163 = vunpack.c.l.bf16 %v67
  %v164 = vunpack.c.l.bf16 %v68
  %v165 = vunpack.c.l.bf16 %v69
  %v166 = vunpack.c.l.bf16 %v70
  %v167 = vunpack.c.l.bf16 %v71
  %v168 = vunpack.c.l.bf16 %v72
  %v169 = vunpack.c.l.bf16 %v73
  %v170 = vunpack.c.l.bf16 %v74
  %v171 = vunpack.c.l.bf16 %v75
  %v172 = vunpack.c.l.bf16 %v76
  %v173 = vunpack.c.l.bf16 %v77
  %v174 = vunpack.c.l.bf16 %v78
  %v175 = vunpack.c.l.bf16 %v79
  %v176 = vunpack.c.l.bf16 %v80
  %v177 = vunpack.c.l.bf16 %v81
  %v178 = vunpack.c.l.bf16 %v82
  %v179 = vunpack.c.l.bf16 %v83
  %v180 = vunpack.c.l.bf16 %v84
  %v181 = vunpack.c.l.bf16 %v85
  %v182 = vunpack.c.l.bf16 %v86
  %v183 = vunpack.c.l.bf16 %v87
  %v184 = vunpack.c.l.bf16 %v88
  %v185 = vunpack.c.l.bf16 %v89
  %v186 = vunpack.c.l.bf16 %v90
  %v187 = vunpack.c.l.bf16 %v91
  %v188 = vunpack.c.l.bf16 %v92
  %v189 = vunpack.c.l.bf16 %v93
  %v190 = vunpack.c.l.bf16 %v94
  %v191 = vunpack.c.l.bf16 %v95
  %v192 = vunpack.c.l.bf16 %v96
  %v193 = vunpack.c.l.bf16 %v97
  %v194 = vunpack.c.l.bf16 %v98
  %v195 = vunpack.c.l.bf16 %v99
  %v196 = vunpack.c.l.bf16 %v100
  %v197 = vunpack.c.l.bf16 %v101
  %v198 = vunpack.c.l.bf16 %v102
  %v199 = vunpack.c.l.bf16 %v103
  %vm200 = vcmask 130048
  %v201 = vsel %vm200, %v104, -inf
  %v202 = vsel %vm200, %v136, -inf
  %v203 = vmax.f32 %v201, %v202
  %v204 = vsel %vm200, %v168, -inf
  %v205 = vmax.f32 %v203, %v204
  %v206 = vsel %vm200, %v105, -inf
  %v207 = vsel %vm200, %v137, -inf
  %v208 = vmax.f32 %v206, %v207
  %v209 = vsel %vm200, %v169, -inf
  %v210 = vmax.f32 %v208, %v209
  %v211 = vsel %vm200, %v106, -inf
  %v212 = vsel %vm200, %v138, -inf
  %v213 = vmax.f32 %v211, %v212
  %v214 = vsel %vm200, %v170, -inf
  %v215 = vmax.f32 %v213, %v214
  %v216 = vsel %vm200, %v107, -inf
  %v217 = vsel %vm200, %v139, -inf
  %v218 = vmax.f32 %v216, %v217
  %v219 = vsel %vm200, %v171, -inf
  %v220 = vmax.f32 %v218, %v219
  %v221 = vsel %vm200, %v108, -inf
  %v222 = vsel %vm200, %v140, -inf
  %v223 = vmax.f32 %v221, %v222
  %v224 = vsel %vm200, %v172, -inf
  %v225 = vmax.f32 %v223, %v224
  %v226 = vsel %vm200, %v109, -inf
  %v227 = vsel %vm200, %v141, -inf
  %v228 = vmax.f32 %v226, %v227
  %v229 = vsel %vm200, %v173, -inf
  %v230 = vmax.f32 %v228, %v229
  %v231 = vsel %vm200, %v110, -inf
  %v232 = vsel %vm200, %v142, -inf
  %v233 = vmax.f32 %v231, %v232
  %v234 = vsel %vm200, %v174, -inf
  %v235 = vmax.f32 %v233, %v234
  %v236 = vsel %vm200, %v111, -inf
  %v237 = vsel %vm200, %v143, -inf
  %v238 = vmax.f32 %v236, %v237
  %v239 = vsel %vm200, %v175, -inf
  %v240 = vmax.f32 %v238, %v239
  %v241 = vsel %vm200, %v112, -inf
  %v242 = vsel %vm200, %v144, -inf
  %v243 = vmax.f32 %v241, %v242
  %v244 = vsel %vm200, %v176, -inf
  %v245 = vmax.f32 %v243, %v244
  %v246 = vsel %vm200, %v113, -inf
  %v247 = vsel %vm200, %v145, -inf
  %v248 = vmax.f32 %v246, %v247
  %v249 = vsel %vm200, %v177, -inf
  %v250 = vmax.f32 %v248, %v249
  %v251 = vsel %vm200, %v114, -inf
  %v252 = vsel %vm200, %v146, -inf
  %v253 = vmax.f32 %v251, %v252
  %v254 = vsel %vm200, %v178, -inf
  %v255 = vmax.f32 %v253, %v254
  %v256 = vsel %vm200, %v115, -inf
  %v257 = vsel %vm200, %v147, -inf
  %v258 = vmax.f32 %v256, %v257
  %v259 = vsel %vm200, %v179, -inf
  %v260 = vmax.f32 %v258, %v259
  %v261 = vsel %vm200, %v116, -inf
  %v262 = vsel %vm200, %v148, -inf
  %v263 = vmax.f32 %v261, %v262
  %v264 = vsel %vm200, %v180, -inf
  %v265 = vmax.f32 %v263, %v264
  %v266 = vsel %vm200, %v117, -inf
  %v267 = vsel %vm200, %v149, -inf
  %v268 = vmax.f32 %v266, %v267
  %v269 = vsel %vm200, %v181, -inf
  %v270 = vmax.f32 %v268, %v269
  %v271 = vsel %vm200, %v118, -inf
  %v272 = vsel %vm200, %v150, -inf
  %v273 = vmax.f32 %v271, %v272
  %v274 = vsel %vm200, %v182, -inf
  %v275 = vmax.f32 %v273, %v274
  %v276 = vsel %vm200, %v119, -inf
  %v277 = vsel %vm200, %v151, -inf
  %v278 = vmax.f32 %v276, %v277
  %v279 = vsel %vm200, %v183, -inf
  %v280 = vmax.f32 %v278, %v279
  %v281 = vsel %vm200, %v120, -inf
  %v282 = vsel %vm200, %v152, -inf
  %v283 = vmax.f32 %v281, %v282
  %v284 = vsel %vm200, %v184, -inf
  %v285 = vmax.f32 %v283, %v284
  %v286 = vsel %vm200, %v121, -inf
  %v287 = vsel %vm200, %v153, -inf
  %v288 = vmax.f32 %v286, %v287
  %v289 = vsel %vm200, %v185, -inf
  %v290 = vmax.f32 %v288, %v289
  %v291 = vsel %vm200, %v122, -inf
  %v292 = vsel %vm200, %v154, -inf
  %v293 = vmax.f32 %v291, %v292
  %v294 = vsel %vm200, %v186, -inf
  %v295 = vmax.f32 %v293, %v294
  %v296 = vsel %vm200, %v123, -inf
  %v297 = vsel %vm200, %v155, -inf
  %v298 = vmax.f32 %v296, %v297
  %v299 = vsel %vm200, %v187, -inf
  %v300 = vmax.f32 %v298, %v299
  %v301 = vsel %vm200, %v124, -inf
  %v302 = vsel %vm200, %v156, -inf
  %v303 = vmax.f32 %v301, %v302
  %v304 = vsel %vm200, %v188, -inf
  %v305 = vmax.f32 %v303, %v304
  %v306 = vsel %vm200, %v125, -inf
  %v307 = vsel %vm200, %v157, -inf
  %v308 = vmax.f32 %v306, %v307
  %v309 = vsel %vm200, %v189, -inf
  %v310 = vmax.f32 %v308, %v309
  %v311 = vsel %vm200, %v126, -inf
  %v312 = vsel %vm200, %v158, -inf
  %v313 = vmax.f32 %v311, %v312
  %v314 = vsel %vm200, %v190, -inf
  %v315 = vmax.f32 %v313, %v314
  %v316 = vsel %vm200, %v127, -inf
  %v317 = vsel %vm200, %v159, -inf
  %v318 = vmax.f32 %v316, %v317
  %v319 = vsel %vm200, %v191, -inf
  %v320 = vmax.f32 %v318, %v319
  %v321 = vsel %vm200, %v128, -inf
  %v322 = vsel %vm200, %v160, -inf
  %v323 = vmax.f32 %v321, %v322
  %v324 = vsel %vm200, %v192, -inf
  %v325 = vmax.f32 %v323, %v324
  %v326 = vsel %vm200, %v129, -inf
  %v327 = vsel %vm200, %v161, -inf
  %v328 = vmax.f32 %v326, %v327
  %v329 = vsel %vm200, %v193, -inf
  %v330 = vmax.f32 %v328, %v329
  %v331 = vsel %vm200, %v130, -inf
  %v332 = vsel %vm200, %v162, -inf
  %v333 = vmax.f32 %v331, %v332
  %v334 = vsel %vm200, %v194, -inf
  %v335 = vmax.f32 %v333, %v334
  %v336 = vsel %vm200, %v131, -inf
  %v337 = vsel %vm200, %v163, -inf
  %v338 = vmax.f32 %v336, %v337
  %v339 = vsel %vm200, %v195, -inf
  %v340 = vmax.f32 %v338, %v339
  %v341 = vsel %vm200, %v132, -inf
  %v342 = vsel %vm200, %v164, -inf
  %v343 = vmax.f32 %v341, %v342
  %v344 = vsel %vm200, %v196, -inf
  %v345 = vmax.f32 %v343, %v344
  %v346 = vsel %vm200, %v133, -inf
  %v347 = vsel %vm200, %v165, -inf
  %v348 = vmax.f32 %v346, %v347
  %v349 = vsel %vm200, %v197, -inf
  %v350 = vmax.f32 %v348, %v349
  %v351 = vsel %vm200, %v134, -inf
  %v352 = vsel %vm200, %v166, -inf
  %v353 = vmax.f32 %v351, %v352
  %v354 = vsel %vm200, %v198, -inf
  %v355 = vmax.f32 %v353, %v354
  %v356 = vsel %vm200, %v135, -inf
  %v357 = vsel %vm200, %v167, -inf
  %v358 = vmax.f32 %v356, %v357
  %v359 = vsel %vm200, %v199, -inf
  %v360 = vmax.f32 %v358, %v359
  %v361 = vpack.c.bf16 %v210, %v205
  %v362 = vpack.c.bf16 %v220, %v215
  %v363 = vpack.c.bf16 %v230, %v225
  %v364 = vpack.c.bf16 %v240, %v235
  %v365 = vpack.c.bf16 %v250, %v245
  %v366 = vpack.c.bf16 %v260, %v255
  %v367 = vpack.c.bf16 %v270, %v265
  %v368 = vpack.c.bf16 %v280, %v275
  %v369 = vpack.c.bf16 %v290, %v285
  %v370 = vpack.c.bf16 %v300, %v295
  %v371 = vpack.c.bf16 %v310, %v305
  %v372 = vpack.c.bf16 %v320, %v315
  %v373 = vpack.c.bf16 %v330, %v325
  %v374 = vpack.c.bf16 %v340, %v335
  %v375 = vpack.c.bf16 %v350, %v345
  %v376 = vpack.c.bf16 %v360, %v355
  %v393 = vunpack.c.l.b16 %v361
  %v394 = vunpack.c.h.b16 %v361
  %v395 = vunpack.c.l.b16 %v362
  %v396 = vunpack.c.h.b16 %v362
  %v397 = vunpack.c.l.b16 %v363
  %v398 = vunpack.c.h.b16 %v363
  %v399 = vunpack.c.l.b16 %v364
  %v400 = vunpack.c.h.b16 %v364
  %v401 = vunpack.c.l.b16 %v365
  %v402 = vunpack.c.h.b16 %v365
  %v403 = vunpack.c.l.b16 %v366
  %v404 = vunpack.c.h.b16 %v366
  %v405 = vunpack.c.l.b16 %v367
  %v406 = vunpack.c.h.b16 %v367
  %v407 = vunpack.c.l.b16 %v368
  %v408 = vunpack.c.h.b16 %v368
  %v409 = vunpack.c.l.b16 %v369
  %v410 = vunpack.c.h.b16 %v369
  %v411 = vunpack.c.l.b16 %v370
  %v412 = vunpack.c.h.b16 %v370
  %v413 = vunpack.c.l.b16 %v371
  %v414 = vunpack.c.h.b16 %v371
  %v415 = vunpack.c.l.b16 %v372
  %v416 = vunpack.c.h.b16 %v372
  %v417 = vunpack.c.l.b16 %v373
  %v418 = vunpack.c.h.b16 %v373
  %v419 = vunpack.c.l.b16 %v374
  %v420 = vunpack.c.h.b16 %v374
  %v421 = vunpack.c.l.b16 %v375
  %v422 = vunpack.c.h.b16 %v375
  %v423 = vunpack.c.l.b16 %v376
  %v424 = vunpack.c.h.b16 %v376
  %v425 = vpack.c.b16 %v393, %v393
  %v426 = vpack.c.b16 %v394, %v394
  %v427 = vpack.c.b16 %v395, %v395
  %v428 = vpack.c.b16 %v396, %v396
  %v429 = vpack.c.b16 %v397, %v397
  %v430 = vpack.c.b16 %v398, %v398
  %v431 = vpack.c.b16 %v399, %v399
  %v432 = vpack.c.b16 %v400, %v400
  %v433 = vpack.c.b16 %v401, %v401
  %v434 = vpack.c.b16 %v402, %v402
  %v435 = vpack.c.b16 %v403, %v403
  %v436 = vpack.c.b16 %v404, %v404
  %v437 = vpack.c.b16 %v405, %v405
  %v438 = vpack.c.b16 %v406, %v406
  %v439 = vpack.c.b16 %v407, %v407
  %v440 = vpack.c.b16 %v408, %v408
  %v441 = vpack.c.b16 %v409, %v409
  %v442 = vpack.c.b16 %v410, %v410
  %v443 = vpack.c.b16 %v411, %v411
  %v444 = vpack.c.b16 %v412, %v412
  %v445 = vpack.c.b16 %v413, %v413
  %v446 = vpack.c.b16 %v414, %v414
  %v447 = vpack.c.b16 %v415, %v415
  %v448 = vpack.c.b16 %v416, %v416
  %v449 = vpack.c.b16 %v417, %v417
  %v450 = vpack.c.b16 %v418, %v418
  %v451 = vpack.c.b16 %v419, %v419
  %v452 = vpack.c.b16 %v420, %v420
  %v453 = vpack.c.b16 %v421, %v421
  %v454 = vpack.c.b16 %v422, %v422
  %v455 = vpack.c.b16 %v423, %v423
  %v456 = vpack.c.b16 %v424, %v424
  %vm489 = vcmask 125952
  %490 = vst.msk [vmem:[%s1] sm:$0xf] %vm489, %v425
  %491 = vst.msk [vmem:[%s1 + $0x4] sm:$0xf] %vm489, %v426
  %492 = vst.msk [vmem:[%s1 + $0x8] sm:$0xf] %vm489, %v427
  %493 = vst.msk [vmem:[%s1 + $0xc] sm:$0xf] %vm489, %v428
  %494 = vst.msk [vmem:[%s1 + $0x10] sm:$0xf] %vm489, %v429
  %495 = vst.msk [vmem:[%s1 + $0x14] sm:$0xf] %vm489, %v430
  %496 = vst.msk [vmem:[%s1 + $0x18] sm:$0xf] %vm489, %v431
  %497 = vst.msk [vmem:[%s1 + $0x1c] sm:$0xf] %vm489, %v432
  %498 = vst.msk [vmem:[%s1 + $0x20] sm:$0xf] %vm489, %v433
  %499 = vst.msk [vmem:[%s1 + $0x24] sm:$0xf] %vm489, %v434
  %500 = vst.msk [vmem:[%s1 + $0x28] sm:$0xf] %vm489, %v435
  %501 = vst.msk [vmem:[%s1 + $0x2c] sm:$0xf] %vm489, %v436
  %502 = vst.msk [vmem:[%s1 + $0x30] sm:$0xf] %vm489, %v437
  %503 = vst.msk [vmem:[%s1 + $0x34] sm:$0xf] %vm489, %v438
  %504 = vst.msk [vmem:[%s1 + $0x38] sm:$0xf] %vm489, %v439
  %505 = vst.msk [vmem:[%s1 + $0x3c] sm:$0xf] %vm489, %v440
  %506 = vst.msk [vmem:[%s1 + $0x40] sm:$0xf] %vm489, %v441
  %507 = vst.msk [vmem:[%s1 + $0x44] sm:$0xf] %vm489, %v442
  %508 = vst.msk [vmem:[%s1 + $0x48] sm:$0xf] %vm489, %v443
  %509 = vst.msk [vmem:[%s1 + $0x4c] sm:$0xf] %vm489, %v444
  %510 = vst.msk [vmem:[%s1 + $0x50] sm:$0xf] %vm489, %v445
  %511 = vst.msk [vmem:[%s1 + $0x54] sm:$0xf] %vm489, %v446
  %512 = vst.msk [vmem:[%s1 + $0x58] sm:$0xf] %vm489, %v447
  %513 = vst.msk [vmem:[%s1 + $0x5c] sm:$0xf] %vm489, %v448
  %514 = vst.msk [vmem:[%s1 + $0x60] sm:$0xf] %vm489, %v449
  %515 = vst.msk [vmem:[%s1 + $0x64] sm:$0xf] %vm489, %v450
  %516 = vst.msk [vmem:[%s1 + $0x68] sm:$0xf] %vm489, %v451
  %517 = vst.msk [vmem:[%s1 + $0x6c] sm:$0xf] %vm489, %v452
  %518 = vst.msk [vmem:[%s1 + $0x70] sm:$0xf] %vm489, %v453
  %519 = vst.msk [vmem:[%s1 + $0x74] sm:$0xf] %vm489, %v454
  %520 = vst.msk [vmem:[%s1 + $0x78] sm:$0xf] %vm489, %v455
  %521 = vst.msk [vmem:[%s1 + $0x7c] sm:$0xf] %vm489, %v456
  // Predicated region
  $region6: #{densenet_mm_forward.38} parent=0 // pred_check
    _
  $region7: #{densenet_mm_forward.38} parent=0 // pred_check_branch
    %523 = sbr.rel (0) target = $region9
  $region8: #{densenet_mm_forward.38} parent=0 // pred_region
    _
  $region9: #{densenet_mm_forward.38} parent=0 // pred_fallthru
    _
  // Predicated region
  $region10: #{densenet_mm_forward.38} parent=0 // pred_check
    _
  $region11: #{densenet_mm_forward.38} parent=0 // pred_check_branch
    %525 = sbr.rel (0) target = $region13
  $region12: #{densenet_mm_forward.38} parent=0 // pred_region
    _
  $region13: #{densenet_mm_forward.38} parent=0 // pred_fallthru
    _

// kernel: densenet_mm_forward.39
$region0: #{densenet_mm_forward.39}
  #allocation0 [shape = 'u32[]', space=smem, size = 0x4, offset = 0x4, fixed_abs, tag = 'smem constant byte address 0x4 - core index']
  #allocation1 [shape = 'u32[144,128]{1,0:T(1,128)}', space=vmem, size = 0x12000, scoped, tag = 'internal scratch']
  %s0 = inlined_call_operand.vmem [shape: bf16[3,128,16], index: 0, kind: input, shape index: {}]
  %s1 = inlined_call_operand.vmem [shape: bf16[128,16], index: 1, kind: output, shape index: {}]
  %s2 = sld [smem:[#allocation0]]
  $region14: #{densenet_mm_forward.39} parent=0
    _
  %s4 = ssub.s32 1, %s2
  %s5 = scalar_select 0, %s4, %s2
  // Predicated region
  $region2: #{densenet_mm_forward.39} parent=0 // pred_check
    _
  $region3: #{densenet_mm_forward.39} parent=0 // pred_check_branch
    %7 = sbr.rel (0) target = $region5
  $region4: #{densenet_mm_forward.39} parent=0 // pred_region
    _
  $region5: #{densenet_mm_forward.39} parent=0 // pred_fallthru
    _
  %v8 = vld [vmem:[%s0] sm:$0xf]
  %v9 = vld [vmem:[%s0 + $0x4] sm:$0xf]
  %v10 = vld [vmem:[%s0 + $0x8] sm:$0xf]
  %v11 = vld [vmem:[%s0 + $0xc] sm:$0xf]
  %v12 = vld [vmem:[%s0 + $0x10] sm:$0xf]
  %v13 = vld [vmem:[%s0 + $0x14] sm:$0xf]
  %v14 = vld [vmem:[%s0 + $0x18] sm:$0xf]
  %v15 = vld [vmem:[%s0 + $0x1c] sm:$0xf]
  %v16 = vld [vmem:[%s0 + $0x20] sm:$0xf]
  %v17 = vld [vmem:[%s0 + $0x24] sm:$0xf]
  %v18 = vld [vmem:[%s0 + $0x28] sm:$0xf]
  %v19 = vld [vmem:[%s0 + $0x2c] sm:$0xf]
  %v20 = vld [vmem:[%s0 + $0x30] sm:$0xf]
  %v21 = vld [vmem:[%s0 + $0x34] sm:$0xf]
  %v22 = vld [vmem:[%s0 + $0x38] sm:$0xf]
  %v23 = vld [vmem:[%s0 + $0x3c] sm:$0xf]
  %v24 = vld [vmem:[%s0 + $0x40] sm:$0xf]
  %v25 = vld [vmem:[%s0 + $0x44] sm:$0xf]
  %v26 = vld [vmem:[%s0 + $0x48] sm:$0xf]
  %v27 = vld [vmem:[%s0 + $0x4c] sm:$0xf]
  %v28 = vld [vmem:[%s0 + $0x50] sm:$0xf]
  %v29 = vld [vmem:[%s0 + $0x54] sm:$0xf]
  %v30 = vld [vmem:[%s0 + $0x58] sm:$0xf]
  %v31 = vld [vmem:[%s0 + $0x5c] sm:$0xf]
  %v32 = vld [vmem:[%s0 + $0x60] sm:$0xf]
  %v33 = vld [vmem:[%s0 + $0x64] sm:$0xf]
  %v34 = vld [vmem:[%s0 + $0x68] sm:$0xf]
  %v35 = vld [vmem:[%s0 + $0x6c] sm:$0xf]
  %v36 = vld [vmem:[%s0 + $0x70] sm:$0xf]
  %v37 = vld [vmem:[%s0 + $0x74] sm:$0xf]
  %v38 = vld [vmem:[%s0 + $0x78] sm:$0xf]
  %v39 = vld [vmem:[%s0 + $0x7c] sm:$0xf]
  %v40 = vld [vmem:[%s0 + $0x80] sm:$0xf]
  %v41 = vld [vmem:[%s0 + $0x84] sm:$0xf]
  %v42 = vld [vmem:[%s0 + $0x88] sm:$0xf]
  %v43 = vld [vmem:[%s0 + $0x8c] sm:$0xf]
  %v44 = vld [vmem:[%s0 + $0x90] sm:$0xf]
  %v45 = vld [vmem:[%s0 + $0x94] sm:$0xf]
  %v46 = vld [vmem:[%s0 + $0x98] sm:$0xf]
  %v47 = vld [vmem:[%s0 + $0x9c] sm:$0xf]
  %v48 = vld [vmem:[%s0 + $0xa0] sm:$0xf]
  %v49 = vld [vmem:[%s0 + $0xa4] sm:$0xf]
  %v50 = vld [vmem:[%s0 + $0xa8] sm:$0xf]
  %v51 = vld [vmem:[%s0 + $0xac] sm:$0xf]
  %v52 = vld [vmem:[%s0 + $0xb0] sm:$0xf]
  %v53 = vld [vmem:[%s0 + $0xb4] sm:$0xf]
  %v54 = vld [vmem:[%s0 + $0xb8] sm:$0xf]
  %v55 = vld [vmem:[%s0 + $0xbc] sm:$0xf]
  %v56 = vunpack.c.l.bf16 %v8
  %v57 = vunpack.c.l.bf16 %v9
  %v58 = vunpack.c.l.bf16 %v10
  %v59 = vunpack.c.l.bf16 %v11
  %v60 = vunpack.c.l.bf16 %v12
  %v61 = vunpack.c.l.bf16 %v13
  %v62 = vunpack.c.l.bf16 %v14
  %v63 = vunpack.c.l.bf16 %v15
  %v64 = vunpack.c.l.bf16 %v16
  %v65 = vunpack.c.l.bf16 %v17
  %v66 = vunpack.c.l.bf16 %v18
  %v67 = vunpack.c.l.bf16 %v19
  %v68 = vunpack.c.l.bf16 %v20
  %v69 = vunpack.c.l.bf16 %v21
  %v70 = vunpack.c.l.bf16 %v22
  %v71 = vunpack.c.l.bf16 %v23
  %v72 = vunpack.c.l.bf16 %v24
  %v73 = vunpack.c.l.bf16 %v25
  %v74 = vunpack.c.l.bf16 %v26
  %v75 = vunpack.c.l.bf16 %v27
  %v76 = vunpack.c.l.bf16 %v28
  %v77 = vunpack.c.l.bf16 %v29
  %v78 = vunpack.c.l.bf16 %v30
  %v79 = vunpack.c.l.bf16 %v31
  %v80 = vunpack.c.l.bf16 %v32
  %v81 = vunpack.c.l.bf16 %v33
  %v82 = vunpack.c.l.bf16 %v34
  %v83 = vunpack.c.l.bf16 %v35
  %v84 = vunpack.c.l.bf16 %v36
  %v85 = vunpack.c.l.bf16 %v37
  %v86 = vunpack.c.l.bf16 %v38
  %v87 = vunpack.c.l.bf16 %v39
  %v88 = vunpack.c.l.bf16 %v40
  %v89 = vunpack.c.l.bf16 %v41
  %v90 = vunpack.c.l.bf16 %v42
  %v91 = vunpack.c.l.bf16 %v43
  %v92 = vunpack.c.l.bf16 %v44
  %v93 = vunpack.c.l.bf16 %v45
  %v94 = vunpack.c.l.bf16 %v46
  %v95 = vunpack.c.l.bf16 %v47
  %v96 = vunpack.c.l.bf16 %v48
  %v97 = vunpack.c.l.bf16 %v49
  %v98 = vunpack.c.l.bf16 %v50
  %v99 = vunpack.c.l.bf16 %v51
  %v100 = vunpack.c.l.bf16 %v52
  %v101 = vunpack.c.l.bf16 %v53
  %v102 = vunpack.c.l.bf16 %v54
  %v103 = vunpack.c.l.bf16 %v55
  %vm104 = vcmask 130048
  %v105 = vsel %vm104, %v56, -inf
  %v106 = vsel %vm104, %v72, -inf
  %v107 = vmax.f32 %v105, %v106
  %v108 = vsel %vm104, %v88, -inf
  %v109 = vmax.f32 %v107, %v108
  %v110 = vsel %vm104, %v57, -inf
  %v111 = vsel %vm104, %v73, -inf
  %v112 = vmax.f32 %v110, %v111
  %v113 = vsel %vm104, %v89, -inf
  %v114 = vmax.f32 %v112, %v113
  %v115 = vsel %vm104, %v58, -inf
  %v116 = vsel %vm104, %v74, -inf
  %v117 = vmax.f32 %v115, %v116
  %v118 = vsel %vm104, %v90, -inf
  %v119 = vmax.f32 %v117, %v118
  %v120 = vsel %vm104, %v59, -inf
  %v121 = vsel %vm104, %v75, -inf
  %v122 = vmax.f32 %v120, %v121
  %v123 = vsel %vm104, %v91, -inf
  %v124 = vmax.f32 %v122, %v123
  %v125 = vsel %vm104, %v60, -inf
  %v126 = vsel %vm104, %v76, -inf
  %v127 = vmax.f32 %v125, %v126
  %v128 = vsel %vm104, %v92, -inf
  %v129 = vmax.f32 %v127, %v128
  %v130 = vsel %vm104, %v61, -inf
  %v131 = vsel %vm104, %v77, -inf
  %v132 = vmax.f32 %v130, %v131
  %v133 = vsel %vm104, %v93, -inf
  %v134 = vmax.f32 %v132, %v133
  %v135 = vsel %vm104, %v62, -inf
  %v136 = vsel %vm104, %v78, -inf
  %v137 = vmax.f32 %v135, %v136
  %v138 = vsel %vm104, %v94, -inf
  %v139 = vmax.f32 %v137, %v138
  %v140 = vsel %vm104, %v63, -inf
  %v141 = vsel %vm104, %v79, -inf
  %v142 = vmax.f32 %v140, %v141
  %v143 = vsel %vm104, %v95, -inf
  %v144 = vmax.f32 %v142, %v143
  %v145 = vsel %vm104, %v64, -inf
  %v146 = vsel %vm104, %v80, -inf
  %v147 = vmax.f32 %v145, %v146
  %v148 = vsel %vm104, %v96, -inf
  %v149 = vmax.f32 %v147, %v148
  %v150 = vsel %vm104, %v65, -inf
  %v151 = vsel %vm104, %v81, -inf
  %v152 = vmax.f32 %v150, %v151
  %v153 = vsel %vm104, %v97, -inf
  %v154 = vmax.f32 %v152, %v153
  %v155 = vsel %vm104, %v66, -inf
  %v156 = vsel %vm104, %v82, -inf
  %v157 = vmax.f32 %v155, %v156
  %v158 = vsel %vm104, %v98, -inf
  %v159 = vmax.f32 %v157, %v158
  %v160 = vsel %vm104, %v67, -inf
  %v161 = vsel %vm104, %v83, -inf
  %v162 = vmax.f32 %v160, %v161
  %v163 = vsel %vm104, %v99, -inf
  %v164 = vmax.f32 %v162, %v163
  %v165 = vsel %vm104, %v68, -inf
  %v166 = vsel %vm104, %v84, -inf
  %v167 = vmax.f32 %v165, %v166
  %v168 = vsel %vm104, %v100, -inf
  %v169 = vmax.f32 %v167, %v168
  %v170 = vsel %vm104, %v69, -inf
  %v171 = vsel %vm104, %v85, -inf
  %v172 = vmax.f32 %v170, %v171
  %v173 = vsel %vm104, %v101, -inf
  %v174 = vmax.f32 %v172, %v173
  %v175 = vsel %vm104, %v70, -inf
  %v176 = vsel %vm104, %v86, -inf
  %v177 = vmax.f32 %v175, %v176
  %v178 = vsel %vm104, %v102, -inf
  %v179 = vmax.f32 %v177, %v178
  %v180 = vsel %vm104, %v71, -inf
  %v181 = vsel %vm104, %v87, -inf
  %v182 = vmax.f32 %v180, %v181
  %v183 = vsel %vm104, %v103, -inf
  %v184 = vmax.f32 %v182, %v183
  %v185 = vpack.c.bf16 %v114, %v109
  %v186 = vpack.c.bf16 %v124, %v119
  %v187 = vpack.c.bf16 %v134, %v129
  %v188 = vpack.c.bf16 %v144, %v139
  %v189 = vpack.c.bf16 %v154, %v149
  %v190 = vpack.c.bf16 %v164, %v159
  %v191 = vpack.c.bf16 %v174, %v169
  %v192 = vpack.c.bf16 %v184, %v179
  %v201 = vunpack.c.l.b16 %v185
  %v202 = vunpack.c.h.b16 %v185
  %v203 = vunpack.c.l.b16 %v186
  %v204 = vunpack.c.h.b16 %v186
  %v205 = vunpack.c.l.b16 %v187
  %v206 = vunpack.c.h.b16 %v187
  %v207 = vunpack.c.l.b16 %v188
  %v208 = vunpack.c.h.b16 %v188
  %v209 = vunpack.c.l.b16 %v189
  %v210 = vunpack.c.h.b16 %v189
  %v211 = vunpack.c.l.b16 %v190
  %v212 = vunpack.c.h.b16 %v190
  %v213 = vunpack.c.l.b16 %v191
  %v214 = vunpack.c.h.b16 %v191
  %v215 = vunpack.c.l.b16 %v192
  %v216 = vunpack.c.h.b16 %v192
  %v217 = vpack.c.b16 %v201, %v201
  %v218 = vpack.c.b16 %v202, %v202
  %v219 = vpack.c.b16 %v203, %v203
  %v220 = vpack.c.b16 %v204, %v204
  %v221 = vpack.c.b16 %v205, %v205
  %v222 = vpack.c.b16 %v206, %v206
  %v223 = vpack.c.b16 %v207, %v207
  %v224 = vpack.c.b16 %v208, %v208
  %v225 = vpack.c.b16 %v209, %v209
  %v226 = vpack.c.b16 %v210, %v210
  %v227 = vpack.c.b16 %v211, %v211
  %v228 = vpack.c.b16 %v212, %v212
  %v229 = vpack.c.b16 %v213, %v213
  %v230 = vpack.c.b16 %v214, %v214
  %v231 = vpack.c.b16 %v215, %v215
  %v232 = vpack.c.b16 %v216, %v216
  %vm249 = vcmask 125952
  %250 = vst.msk [vmem:[%s1] sm:$0xf] %vm249, %v217
  %251 = vst.msk [vmem:[%s1 + $0x4] sm:$0xf] %vm249, %v218
  %252 = vst.msk [vmem:[%s1 + $0x8] sm:$0xf] %vm249, %v219
  %253 = vst.msk [vmem:[%s1 + $0xc] sm:$0xf] %vm249, %v220
  %254 = vst.msk [vmem:[%s1 + $0x10] sm:$0xf] %vm249, %v221
  %255 = vst.msk [vmem:[%s1 + $0x14] sm:$0xf] %vm249, %v222
  %256 = vst.msk [vmem:[%s1 + $0x18] sm:$0xf] %vm249, %v223
  %257 = vst.msk [vmem:[%s1 + $0x1c] sm:$0xf] %vm249, %v224
  %258 = vst.msk [vmem:[%s1 + $0x20] sm:$0xf] %vm249, %v225
  %259 = vst.msk [vmem:[%s1 + $0x24] sm:$0xf] %vm249, %v226
  %260 = vst.msk [vmem:[%s1 + $0x28] sm:$0xf] %vm249, %v227
  %261 = vst.msk [vmem:[%s1 + $0x2c] sm:$0xf] %vm249, %v228
  %262 = vst.msk [vmem:[%s1 + $0x30] sm:$0xf] %vm249, %v229
  %263 = vst.msk [vmem:[%s1 + $0x34] sm:$0xf] %vm249, %v230
  %264 = vst.msk [vmem:[%s1 + $0x38] sm:$0xf] %vm249, %v231
  %265 = vst.msk [vmem:[%s1 + $0x3c] sm:$0xf] %vm249, %v232
  // Predicated region
  $region6: #{densenet_mm_forward.39} parent=0 // pred_check
    _
  $region7: #{densenet_mm_forward.39} parent=0 // pred_check_branch
    %267 = sbr.rel (0) target = $region9
  $region8: #{densenet_mm_forward.39} parent=0 // pred_region
    _
  $region9: #{densenet_mm_forward.39} parent=0 // pred_fallthru
    _
  // Predicated region
  $region10: #{densenet_mm_forward.39} parent=0 // pred_check
    _
  $region11: #{densenet_mm_forward.39} parent=0 // pred_check_branch
    %269 = sbr.rel (0) target = $region13
  $region12: #{densenet_mm_forward.39} parent=0 // pred_region
    _
  $region13: #{densenet_mm_forward.39} parent=0 // pred_fallthru
    _

// kernel: densenet_mm_forward.40
$region0: #{densenet_mm_forward.40}
  #allocation0 [shape = 'u32[]', space=smem, size = 0x4, offset = 0x4, fixed_abs, tag = 'smem constant byte address 0x4 - core index']
  #allocation1 [shape = 'u32[144,128]{1,0:T(1,128)}', space=vmem, size = 0x12000, scoped, tag = 'internal scratch']
  %s0 = inlined_call_operand.vmem [shape: bf16[128,16], index: 0, kind: input, shape index: {}]
  %s1 = inlined_call_operand.vmem [shape: f32[1,16], index: 1, kind: input, shape index: {}]
  %s2 = inlined_call_operand.vmem [shape: f32[1,16], index: 2, kind: input, shape index: {}]
  %s3 = inlined_call_operand.vmem [shape: bf16[16,16], index: 3, kind: input, shape index: {}]
  %s4 = inlined_call_operand.vmem [shape: f32[1,16], index: 4, kind: input, shape index: {}]
  %s5 = inlined_call_operand.vmem [shape: f32[1,16], index: 5, kind: input, shape index: {}]
  %s6 = inlined_call_operand.vmem [shape: bf16[128,16], index: 6, kind: output, shape index: {}]
  %s7 = sld [smem:[#allocation0]]
  $region34: #{densenet_mm_forward.40} parent=0
    _
  %s9 = ssub.s32 1, %s7
  %s10 = scalar_select 0, %s9, %s7
  // Predicated region
  $region2: #{densenet_mm_forward.40} parent=0 // pred_check
    _
  $region3: #{densenet_mm_forward.40} parent=0 // pred_check_branch
    %12 = sbr.rel (0) target = $region5
  $region4: #{densenet_mm_forward.40} parent=0 // pred_region
    _
  $region5: #{densenet_mm_forward.40} parent=0 // pred_fallthru
    _
  // Predicated region
  $region6: #{densenet_mm_forward.40} parent=0 // pred_check
    _
  $region7: #{densenet_mm_forward.40} parent=0 // pred_check_branch
    %14 = sbr.rel (0) target = $region9
  $region8: #{densenet_mm_forward.40} parent=0 // pred_region
    _
  $region9: #{densenet_mm_forward.40} parent=0 // pred_fallthru
    _
  // Predicated region
  $region10: #{densenet_mm_forward.40} parent=0 // pred_check
    _
  $region11: #{densenet_mm_forward.40} parent=0 // pred_check_branch
    %16 = sbr.rel (0) target = $region13
  $region12: #{densenet_mm_forward.40} parent=0 // pred_region
    _
  $region13: #{densenet_mm_forward.40} parent=0 // pred_fallthru
    _
  // Predicated region
  $region14: #{densenet_mm_forward.40} parent=0 // pred_check
    _
  $region15: #{densenet_mm_forward.40} parent=0 // pred_check_branch
    %18 = sbr.rel (0) target = $region17
  $region16: #{densenet_mm_forward.40} parent=0 // pred_region
    _
  $region17: #{densenet_mm_forward.40} parent=0 // pred_fallthru
    _
  // Predicated region
  $region18: #{densenet_mm_forward.40} parent=0 // pred_check
    _
  $region19: #{densenet_mm_forward.40} parent=0 // pred_check_branch
    %20 = sbr.rel (0) target = $region21
  $region20: #{densenet_mm_forward.40} parent=0 // pred_region
    _
  $region21: #{densenet_mm_forward.40} parent=0 // pred_fallthru
    _
  // Predicated region
  $region22: #{densenet_mm_forward.40} parent=0 // pred_check
    _
  $region23: #{densenet_mm_forward.40} parent=0 // pred_check_branch
    %22 = sbr.rel (0) target = $region25
  $region24: #{densenet_mm_forward.40} parent=0 // pred_region
    _
  $region25: #{densenet_mm_forward.40} parent=0 // pred_fallthru
    _
  %v24 = vld [vmem:[%s0] sm:$0xf]
  %v25 = vld [vmem:[%s0 + $0x4] sm:$0xf]
  %v26 = vld [vmem:[%s0 + $0x8] sm:$0xf]
  %v27 = vld [vmem:[%s0 + $0xc] sm:$0xf]
  %v28 = vld [vmem:[%s0 + $0x10] sm:$0xf]
  %v29 = vld [vmem:[%s0 + $0x14] sm:$0xf]
  %v30 = vld [vmem:[%s0 + $0x18] sm:$0xf]
  %v31 = vld [vmem:[%s0 + $0x1c] sm:$0xf]
  %v32 = vld [vmem:[%s0 + $0x20] sm:$0xf]
  %v33 = vld [vmem:[%s0 + $0x24] sm:$0xf]
  %v34 = vld [vmem:[%s0 + $0x28] sm:$0xf]
  %v35 = vld [vmem:[%s0 + $0x2c] sm:$0xf]
  %v36 = vld [vmem:[%s0 + $0x30] sm:$0xf]
  %v37 = vld [vmem:[%s0 + $0x34] sm:$0xf]
  %v38 = vld [vmem:[%s0 + $0x38] sm:$0xf]
  %v39 = vld [vmem:[%s0 + $0x3c] sm:$0xf]
  %v40 = vunpack.c.l.bf16 %v24
  %v41 = vunpack.c.l.bf16 %v25
  %v42 = vunpack.c.l.bf16 %v26
  %v43 = vunpack.c.l.bf16 %v27
  %v44 = vunpack.c.l.bf16 %v28
  %v45 = vunpack.c.l.bf16 %v29
  %v46 = vunpack.c.l.bf16 %v30
  %v47 = vunpack.c.l.bf16 %v31
  %v48 = vunpack.c.l.bf16 %v32
  %v49 = vunpack.c.l.bf16 %v33
  %v50 = vunpack.c.l.bf16 %v34
  %v51 = vunpack.c.l.bf16 %v35
  %v52 = vunpack.c.l.bf16 %v36
  %v53 = vunpack.c.l.bf16 %v37
  %v54 = vunpack.c.l.bf16 %v38
  %v55 = vunpack.c.l.bf16 %v39
  %v56 = vld [vmem:[%s1] sm:$0x1]
  %v58 = vlaneseq
  %v59 = vshrl.u32 %v58, 7
  %v60 = vsub.s32 0, %v59
  %v61 = vrot.slane %v56, %v60
  %v63 = vmul.f32 %v40, %v61
  %v64 = vmul.f32 %v41, %v61
  %v65 = vmul.f32 %v42, %v61
  %v66 = vmul.f32 %v43, %v61
  %v67 = vmul.f32 %v44, %v61
  %v68 = vmul.f32 %v45, %v61
  %v69 = vmul.f32 %v46, %v61
  %v70 = vmul.f32 %v47, %v61
  %v71 = vmul.f32 %v48, %v61
  %v72 = vmul.f32 %v49, %v61
  %v73 = vmul.f32 %v50, %v61
  %v74 = vmul.f32 %v51, %v61
  %v75 = vmul.f32 %v52, %v61
  %v76 = vmul.f32 %v53, %v61
  %v77 = vmul.f32 %v54, %v61
  %v78 = vmul.f32 %v55, %v61
  %v79 = vld [vmem:[%s2] sm:$0x1]
  %v81 = vlaneseq
  %v82 = vshrl.u32 %v81, 7
  %v83 = vsub.s32 0, %v82
  %v84 = vrot.slane %v79, %v83
  %v86 = vadd.f32 %v63, %v84
  %v87 = vadd.f32 %v64, %v84
  %v88 = vadd.f32 %v65, %v84
  %v89 = vadd.f32 %v66, %v84
  %v90 = vadd.f32 %v67, %v84
  %v91 = vadd.f32 %v68, %v84
  %v92 = vadd.f32 %v69, %v84
  %v93 = vadd.f32 %v70, %v84
  %v94 = vadd.f32 %v71, %v84
  %v95 = vadd.f32 %v72, %v84
  %v96 = vadd.f32 %v73, %v84
  %v97 = vadd.f32 %v74, %v84
  %v98 = vadd.f32 %v75, %v84
  %v99 = vadd.f32 %v76, %v84
  %v100 = vadd.f32 %v77, %v84
  %v101 = vadd.f32 %v78, %v84
  %v102 = vmax.f32 %v86, 0.0
  %v103 = vmax.f32 %v87, 0.0
  %v104 = vmax.f32 %v88, 0.0
  %v105 = vmax.f32 %v89, 0.0
  %v106 = vmax.f32 %v90, 0.0
  %v107 = vmax.f32 %v91, 0.0
  %v108 = vmax.f32 %v92, 0.0
  %v109 = vmax.f32 %v93, 0.0
  %v110 = vmax.f32 %v94, 0.0
  %v111 = vmax.f32 %v95, 0.0
  %v112 = vmax.f32 %v96, 0.0
  %v113 = vmax.f32 %v97, 0.0
  %v114 = vmax.f32 %v98, 0.0
  %v115 = vmax.f32 %v99, 0.0
  %v116 = vmax.f32 %v100, 0.0
  %v117 = vmax.f32 %v101, 0.0
  %v118 = vpack.c.bf16 %v103, %v102
  %v119 = vpack.c.bf16 %v105, %v104
  %v120 = vpack.c.bf16 %v107, %v106
  %v121 = vpack.c.bf16 %v109, %v108
  %v122 = vpack.c.bf16 %v111, %v110
  %v123 = vpack.c.bf16 %v113, %v112
  %v124 = vpack.c.bf16 %v115, %v114
  %v125 = vpack.c.bf16 %v117, %v116
  %v126 = vld [vmem:[%s3] sm:$0xf]
  %v127 = vld [vmem:[%s3 + $0x4] sm:$0xf]
  %v130 = vunpack.c.l.b16 %v126
  %v131 = vunpack.c.l.b16 %v127
  %v132 = vpack.c.b16 %v131, %v130
  %vm134 = vcmask 130048
  %v136 = vsel %vm134, %v118, 0
  %v139 = vsel %vm134, %v119, 0
  %v142 = vsel %vm134, %v120, 0
  %v145 = vsel %vm134, %v121, 0
  %v148 = vsel %vm134, %v122, 0
  %v151 = vsel %vm134, %v123, 0
  %v154 = vsel %vm134, %v124, 0
  %v157 = vsel %vm134, %v125, 0
  %159 = vmatprep.subr.bf16.mxu0 0
  %160 = vmatpush1.bf16.msra.mxu0 %v132
  %161 = vmatprep.subr.bf16.mxu0 0
  %162 = vmatpush1.bf16.msra.mxu0 0
  %163 = vmatprep.subr.bf16.mxu0 0
  %164 = vmatpush1.bf16.msra.mxu0 0
  %165 = vmatprep.subr.bf16.mxu0 0
  %166 = vmatpush1.bf16.msra.mxu0 0
  %167 = vmatprep.subr.bf16.mxu0 0
  %168 = vmatpush1.bf16.msra.mxu0 0
  %169 = vmatprep.subr.bf16.mxu0 0
  %170 = vmatpush1.bf16.msra.mxu0 0
  %171 = vmatprep.subr.bf16.mxu0 0
  %172 = vmatpush1.bf16.msra.mxu0 0
  %173 = vmatprep.subr.bf16.mxu0 0
  %174 = vmatpush1.bf16.msra.mxu0 0
  %175 = vmatprep.subr.bf16.mxu0 0
  %176 = vmatpush1.bf16.msra.mxu0 0
  %177 = vmatprep.subr.bf16.mxu0 0
  %178 = vmatpush1.bf16.msra.mxu0 0
  %179 = vmatprep.subr.bf16.mxu0 0
  %180 = vmatpush1.bf16.msra.mxu0 0
  %181 = vmatprep.subr.bf16.mxu0 0
  %182 = vmatpush1.bf16.msra.mxu0 0
  %183 = vmatprep.subr.bf16.mxu0 0
  %184 = vmatpush1.bf16.msra.mxu0 0
  %185 = vmatprep.subr.bf16.mxu0 0
  %186 = vmatpush1.bf16.msra.mxu0 0
  %187 = vmatprep.subr.bf16.mxu0 0
  %188 = vmatpush1.bf16.msra.mxu0 0
  %189 = vmatprep.subr.bf16.mxu0 0
  %190 = vmatpush1.bf16.msra.mxu0 0
  %191 = vmatprep.mubr.bf16.mxu0 0
  %192 = vmatmul.mubr.bf16.gmra.mrb[0].mxu0 %v136
  %v193 = vpop.f32.mrb[0].mxu0
  %v194 = vadd.f32 0.0, %v193
  %v195 = vpop.f32.mrb[0].mxu0
  %v196 = vpop.f32.mrb[0].mxu0
  %v197 = vadd.f32 0.0, %v196
  %v198 = vpop.f32.mrb[0].mxu0
  %199 = vmatprep.mubr.bf16.mxu0 0
  %200 = vmatmul.mubr.bf16.gmra.mrb[0].mxu0 %v139
  %v201 = vpop.f32.mrb[0].mxu0
  %v202 = vadd.f32 0.0, %v201
  %v203 = vpop.f32.mrb[0].mxu0
  %v204 = vpop.f32.mrb[0].mxu0
  %v205 = vadd.f32 0.0, %v204
  %v206 = vpop.f32.mrb[0].mxu0
  %207 = vmatprep.mubr.bf16.mxu0 0
  %208 = vmatmul.mubr.bf16.gmra.mrb[0].mxu0 %v142
  %v209 = vpop.f32.mrb[0].mxu0
  %v210 = vadd.f32 0.0, %v209
  %v211 = vpop.f32.mrb[0].mxu0
  %v212 = vpop.f32.mrb[0].mxu0
  %v213 = vadd.f32 0.0, %v212
  %v214 = vpop.f32.mrb[0].mxu0
  %215 = vmatprep.mubr.bf16.mxu0 0
  %216 = vmatmul.mubr.bf16.gmra.mrb[0].mxu0 %v145
  %v217 = vpop.f32.mrb[0].mxu0
  %v218 = vadd.f32 0.0, %v217
  %v219 = vpop.f32.mrb[0].mxu0
  %v220 = vpop.f32.mrb[0].mxu0
  %v221 = vadd.f32 0.0, %v220
  %v222 = vpop.f32.mrb[0].mxu0
  %223 = vmatprep.mubr.bf16.mxu0 0
  %224 = vmatmul.mubr.bf16.gmra.mrb[0].mxu0 %v148
  %v225 = vpop.f32.mrb[0].mxu0
  %v226 = vadd.f32 0.0, %v225
  %v227 = vpop.f32.mrb[0].mxu0
  %v228 = vpop.f32.mrb[0].mxu0
  %v229 = vadd.f32 0.0, %v228
  %v230 = vpop.f32.mrb[0].mxu0
  %231 = vmatprep.mubr.bf16.mxu0 0
  %232 = vmatmul.mubr.bf16.gmra.mrb[0].mxu0 %v151
  %v233 = vpop.f32.mrb[0].mxu0
  %v234 = vadd.f32 0.0, %v233
  %v235 = vpop.f32.mrb[0].mxu0
  %v236 = vpop.f32.mrb[0].mxu0
  %v237 = vadd.f32 0.0, %v236
  %v238 = vpop.f32.mrb[0].mxu0
  %239 = vmatprep.mubr.bf16.mxu0 0
  %240 = vmatmul.mubr.bf16.gmra.mrb[0].mxu0 %v154
  %v241 = vpop.f32.mrb[0].mxu0
  %v242 = vadd.f32 0.0, %v241
  %v243 = vpop.f32.mrb[0].mxu0
  %v244 = vpop.f32.mrb[0].mxu0
  %v245 = vadd.f32 0.0, %v244
  %v246 = vpop.f32.mrb[0].mxu0
  %247 = vmatprep.mubr.bf16.mxu0 0
  %248 = vmatmul.mubr.bf16.gmra.mrb[0].mxu0 %v157
  %v249 = vpop.f32.mrb[0].mxu0
  %v250 = vadd.f32 0.0, %v249
  %v251 = vpop.f32.mrb[0].mxu0
  %v252 = vpop.f32.mrb[0].mxu0
  %v253 = vadd.f32 0.0, %v252
  %v254 = vpop.f32.mrb[0].mxu0
  %255 = vdwg.mxu0
  %v256 = vld [vmem:[%s4] sm:$0x1]
  %v258 = vlaneseq
  %v259 = vshrl.u32 %v258, 7
  %v260 = vsub.s32 0, %v259
  %v261 = vrot.slane %v256, %v260
  %v263 = vmul.f32 %v194, %v261
  %v264 = vmul.f32 %v197, %v261
  %v265 = vmul.f32 %v202, %v261
  %v266 = vmul.f32 %v205, %v261
  %v267 = vmul.f32 %v210, %v261
  %v268 = vmul.f32 %v213, %v261
  %v269 = vmul.f32 %v218, %v261
  %v270 = vmul.f32 %v221, %v261
  %v271 = vmul.f32 %v226, %v261
  %v272 = vmul.f32 %v229, %v261
  %v273 = vmul.f32 %v234, %v261
  %v274 = vmul.f32 %v237, %v261
  %v275 = vmul.f32 %v242, %v261
  %v276 = vmul.f32 %v245, %v261
  %v277 = vmul.f32 %v250, %v261
  %v278 = vmul.f32 %v253, %v261
  %v279 = vld [vmem:[%s5] sm:$0x1]
  %v281 = vlaneseq
  %v282 = vshrl.u32 %v281, 7
  %v283 = vsub.s32 0, %v282
  %v284 = vrot.slane %v279, %v283
  %v286 = vadd.f32 %v263, %v284
  %v287 = vadd.f32 %v264, %v284
  %v288 = vadd.f32 %v265, %v284
  %v289 = vadd.f32 %v266, %v284
  %v290 = vadd.f32 %v267, %v284
  %v291 = vadd.f32 %v268, %v284
  %v292 = vadd.f32 %v269, %v284
  %v293 = vadd.f32 %v270, %v284
  %v294 = vadd.f32 %v271, %v284
  %v295 = vadd.f32 %v272, %v284
  %v296 = vadd.f32 %v273, %v284
  %v297 = vadd.f32 %v274, %v284
  %v298 = vadd.f32 %v275, %v284
  %v299 = vadd.f32 %v276, %v284
  %v300 = vadd.f32 %v277, %v284
  %v301 = vadd.f32 %v278, %v284
  %v302 = vmax.f32 %v286, 0.0
  %v303 = vmax.f32 %v287, 0.0
  %v304 = vmax.f32 %v288, 0.0
  %v305 = vmax.f32 %v289, 0.0
  %v306 = vmax.f32 %v290, 0.0
  %v307 = vmax.f32 %v291, 0.0
  %v308 = vmax.f32 %v292, 0.0
  %v309 = vmax.f32 %v293, 0.0
  %v310 = vmax.f32 %v294, 0.0
  %v311 = vmax.f32 %v295, 0.0
  %v312 = vmax.f32 %v296, 0.0
  %v313 = vmax.f32 %v297, 0.0
  %v314 = vmax.f32 %v298, 0.0
  %v315 = vmax.f32 %v299, 0.0
  %v316 = vmax.f32 %v300, 0.0
  %v317 = vmax.f32 %v301, 0.0
  %v318 = vpack.c.bf16 %v303, %v302
  %v319 = vpack.c.bf16 %v305, %v304
  %v320 = vpack.c.bf16 %v307, %v306
  %v321 = vpack.c.bf16 %v309, %v308
  %v322 = vpack.c.bf16 %v311, %v310
  %v323 = vpack.c.bf16 %v313, %v312
  %v324 = vpack.c.bf16 %v315, %v314
  %v325 = vpack.c.bf16 %v317, %v316
  %v334 = vunpack.c.l.b16 %v318
  %v335 = vunpack.c.h.b16 %v318
  %v336 = vunpack.c.l.b16 %v319
  %v337 = vunpack.c.h.b16 %v319
  %v338 = vunpack.c.l.b16 %v320
  %v339 = vunpack.c.h.b16 %v320
  %v340 = vunpack.c.l.b16 %v321
  %v341 = vunpack.c.h.b16 %v321
  %v342 = vunpack.c.l.b16 %v322
  %v343 = vunpack.c.h.b16 %v322
  %v344 = vunpack.c.l.b16 %v323
  %v345 = vunpack.c.h.b16 %v323
  %v346 = vunpack.c.l.b16 %v324
  %v347 = vunpack.c.h.b16 %v324
  %v348 = vunpack.c.l.b16 %v325
  %v349 = vunpack.c.h.b16 %v325
  %v350 = vpack.c.b16 %v334, %v334
  %v351 = vpack.c.b16 %v335, %v335
  %v352 = vpack.c.b16 %v336, %v336
  %v353 = vpack.c.b16 %v337, %v337
  %v354 = vpack.c.b16 %v338, %v338
  %v355 = vpack.c.b16 %v339, %v339
  %v356 = vpack.c.b16 %v340, %v340
  %v357 = vpack.c.b16 %v341, %v341
  %v358 = vpack.c.b16 %v342, %v342
  %v359 = vpack.c.b16 %v343, %v343
  %v360 = vpack.c.b16 %v344, %v344
  %v361 = vpack.c.b16 %v345, %v345
  %v362 = vpack.c.b16 %v346, %v346
  %v363 = vpack.c.b16 %v347, %v347
  %v364 = vpack.c.b16 %v348, %v348
  %v365 = vpack.c.b16 %v349, %v349
  %vm382 = vcmask 125952
  %383 = vst.msk [vmem:[%s6] sm:$0xf] %vm382, %v350
  %384 = vst.msk [vmem:[%s6 + $0x4] sm:$0xf] %vm382, %v351
  %385 = vst.msk [vmem:[%s6 + $0x8] sm:$0xf] %vm382, %v352
  %386 = vst.msk [vmem:[%s6 + $0xc] sm:$0xf] %vm382, %v353
  %387 = vst.msk [vmem:[%s6 + $0x10] sm:$0xf] %vm382, %v354
  %388 = vst.msk [vmem:[%s6 + $0x14] sm:$0xf] %vm382, %v355
  %389 = vst.msk [vmem:[%s6 + $0x18] sm:$0xf] %vm382, %v356
  %390 = vst.msk [vmem:[%s6 + $0x1c] sm:$0xf] %vm382, %v357
  %391 = vst.msk [vmem:[%s6 + $0x20] sm:$0xf] %vm382, %v358
  %392 = vst.msk [vmem:[%s6 + $0x24] sm:$0xf] %vm382, %v359
  %393 = vst.msk [vmem:[%s6 + $0x28] sm:$0xf] %vm382, %v360
  %394 = vst.msk [vmem:[%s6 + $0x2c] sm:$0xf] %vm382, %v361
  %395 = vst.msk [vmem:[%s6 + $0x30] sm:$0xf] %vm382, %v362
  %396 = vst.msk [vmem:[%s6 + $0x34] sm:$0xf] %vm382, %v363
  %397 = vst.msk [vmem:[%s6 + $0x38] sm:$0xf] %vm382, %v364
  %398 = vst.msk [vmem:[%s6 + $0x3c] sm:$0xf] %vm382, %v365
  // Predicated region
  $region26: #{densenet_mm_forward.40} parent=0 // pred_check
    _
  $region27: #{densenet_mm_forward.40} parent=0 // pred_check_branch
    %400 = sbr.rel (0) target = $region29
  $region28: #{densenet_mm_forward.40} parent=0 // pred_region
    _
  $region29: #{densenet_mm_forward.40} parent=0 // pred_fallthru
    _
  // Predicated region
  $region30: #{densenet_mm_forward.40} parent=0 // pred_check
    _
  $region31: #{densenet_mm_forward.40} parent=0 // pred_check_branch
    %402 = sbr.rel (0) target = $region33
  $region32: #{densenet_mm_forward.40} parent=0 // pred_region
    _
  $region33: #{densenet_mm_forward.40} parent=0 // pred_fallthru
    _

// kernel: densenet_mm_forward.41
$region0: #{densenet_mm_forward.41}
  #allocation0 [shape = 'u32[]', space=smem, size = 0x4, offset = 0x4, fixed_abs, tag = 'smem constant byte address 0x4 - core index']
  #allocation1 [shape = 'u32[144,128]{1,0:T(1,128)}', space=vmem, size = 0x12000, scoped, tag = 'internal scratch']
  #allocation2 [shape = 'f32[24,8]{1,0:T(8,128)}', space=vmem, size = 0x3000, scoped, tag = 'scratch operand']
  %s0 = inlined_call_operand.vmem [shape: bf16[2,6,42,16], index: 0, kind: input, shape index: {}]
  %s1 = inlined_call_operand.vmem [shape: bf16[3,9,16,8], index: 1, kind: input, shape index: {}]
  %s2 = inlined_call_operand.vmem [shape: bf16[2,4,24,8], index: 2, kind: output, shape index: {}]
  %s3 = sld [smem:[#allocation0]]
  $region49: #{densenet_mm_forward.41} parent=0
    _
  %s5 = ssub.s32 1, %s3
  %s6 = scalar_select 0, %s5, %s3
  loop: start=0, step=1, limit=26
  $region2: #{densenet_mm_forward.41} parent=0 // loop_pre_header
    _
  $region3: #{densenet_mm_forward.41} parent=0 // loop_header
    %s8 = sphi 0, %s12
    %p9 = scmp.ge.s32.totalorder %s8, 26
    %s15 = sphi 0, %s34
    %s16 = sphi 0, %s30
    %s17 = sphi 0, %s26
    %s18 = sphi 0, %s15
    %s19 = sphi 0, %s16
    %s20 = sphi 0, %s17
    %s21 = sphi 0, %s18
    %s22 = sphi 0, %s19
    %s23 = sphi 0, %s20
    %s41 = sphi 0, %s43
    %s44 = sphi 0, %s41
    %s45 = sphi 0, %s44
    %s61 = sphi 0, %s45
    %s67 = sphi 0, %s69
    %s70 = sphi 0, %s67
    %s71 = sphi 0, %s70
    %s87 = sphi 0, %s71
    %s95 = sphi 0, %s97
    %s98 = sphi 0, %s95
    %s99 = sphi 0, %s98
    %s115 = sphi 0, %s99
  $region4: #{densenet_mm_forward.41} parent=0 // loop_header_branch
    %11 = sbr.rel (%p9) target = $region8
  $region5: #{densenet_mm_forward.41} parent=0 // loop_body
    %s13 = ssub.s32 %s8, 1
    %s14 = ssub.s32 %s8, 2
    %s24 = sadd.s32 1, %s17
    %p25 = scmp.ge.s32.totalorder %s24, 3
    %s26 = scalar_select %p25, 0, %s24
    %s27 = sadd.s32 1, %s16
    %s28 = scalar_select %p25, %s27, %s16
    %p29 = scmp.ge.s32.totalorder %s28, 4
    %s30 = scalar_select %p29, 0, %s28
    %s31 = sadd.s32 1, %s15
    %s32 = scalar_select %p29, %s31, %s15
    %p33 = scmp.ge.s32.totalorder %s32, 2
    %s34 = scalar_select %p33, 0, %s32
    %s35 = sadd.s32 %s16, %s17
    %s36 = sadd.s32 %s30, %s26
    %s37 = ssub.s32 %s15, %s34
    %s38 = ssub.s32 %s35, %s36
    %s39 = sor.u32 %s37, %s38
    %p40 = scmp.eq.s32.totalorder %s39, 0
    %s42 = sadd.s32 %s41, 1
    %s43 = scalar_select %p40, %s41, %s42
    %p46 = pneg %p40
    %p47 = scmp.eq.s32.totalorder %s8, 23
    %p48 = por %p46, %p47
    %p49 = scmp.ne.s32.totalorder %s41, %s44
    %p50 = scmp.eq.s32.totalorder %s8, 0
    %p51 = por %p49, %p50
    %p52 = scmp.ne.s32.totalorder %s41, %s44
    %p53 = scmp.eq.s32.totalorder %s13, 23
    %p54 = por %p52, %p53
    %p55 = scmp.ne.s32.totalorder %s44, %s45
    %p56 = scmp.eq.s32.totalorder %s13, 0
    %p57 = por %p55, %p56
    %p58 = scmp.ne.s32.totalorder %s44, %s45
    %p59 = scmp.eq.s32.totalorder %s14, 23
    %p60 = por %p58, %p59
    %p62 = scmp.ne.s32.totalorder %s45, %s61
    %p63 = scmp.eq.s32.totalorder %s14, 0
    %p64 = por %p62, %p63
    %s65 = ssub.s32 %s17, %s26
    %p66 = scmp.eq.s32.totalorder %s65, 0
    %s68 = sadd.s32 %s67, 1
    %s69 = scalar_select %p66, %s67, %s68
    %p72 = pneg %p66
    %p73 = scmp.eq.s32.totalorder %s8, 23
    %p74 = por %p72, %p73
    %p75 = scmp.ne.s32.totalorder %s67, %s70
    %p76 = scmp.eq.s32.totalorder %s8, 0
    %p77 = por %p75, %p76
    %p78 = scmp.ne.s32.totalorder %s67, %s70
    %p79 = scmp.eq.s32.totalorder %s13, 23
    %p80 = por %p78, %p79
    %p81 = scmp.ne.s32.totalorder %s70, %s71
    %p82 = scmp.eq.s32.totalorder %s13, 0
    %p83 = por %p81, %p82
    %p84 = scmp.ne.s32.totalorder %s70, %s71
    %p85 = scmp.eq.s32.totalorder %s14, 23
    %p86 = por %p84, %p85
    %p88 = scmp.ne.s32.totalorder %s71, %s87
    %p89 = scmp.eq.s32.totalorder %s14, 0
    %p90 = por %p88, %p89
    %s91 = ssub.s32 %s15, %s34
    %s92 = ssub.s32 %s16, %s30
    %s93 = sor.u32 %s91, %s92
    %p94 = scmp.eq.s32.totalorder %s93, 0
    %s96 = sadd.s32 %s95, 1
    %s97 = scalar_select %p94, %s95, %s96
    %p100 = pneg %p94
    %p101 = scmp.eq.s32.totalorder %s8, 23
    %p102 = por %p100, %p101
    %p103 = scmp.ne.s32.totalorder %s95, %s98
    %p104 = scmp.eq.s32.totalorder %s8, 0
    %p105 = por %p103, %p104
    %p106 = scmp.ne.s32.totalorder %s95, %s98
    %p107 = scmp.eq.s32.totalorder %s13, 23
    %p108 = por %p106, %p107
    %p109 = scmp.ne.s32.totalorder %s98, %s99
    %p110 = scmp.eq.s32.totalorder %s13, 0
    %p111 = por %p109, %p110
    %p112 = scmp.ne.s32.totalorder %s98, %s99
    %p113 = scmp.eq.s32.totalorder %s14, 23
    %p114 = por %p112, %p113
    %p116 = scmp.ne.s32.totalorder %s99, %s115
    %p117 = scmp.eq.s32.totalorder %s14, 0
    %p118 = por %p116, %p117
    %p119 = scmp.le.s32.totalorder 1, %s8
    %p120 = scmp.lt.s32.totalorder %s8, 25
    %p121 = pnand %p119, %p120
    %p122 = pneg %p121
    // Predicated region
    $region9: #{densenet_mm_forward.41} parent=5 // pred_check
      _
    $region10: #{densenet_mm_forward.41} parent=5 // pred_check_branch
      %124 = sbr.rel (%p121) target = $region12
    $region11: #{densenet_mm_forward.41} parent=5 // pred_region
      %s125 = ssub.s32 %s8, 1
    $region12: #{densenet_mm_forward.41} parent=5 // pred_fallthru
      _
    %p126 = scmp.lt.s32.totalorder %s8, 24
    // Predicated region
    $region13: #{densenet_mm_forward.41} parent=5 // pred_check
      %p127 = pneg %p126
    $region14: #{densenet_mm_forward.41} parent=5 // pred_check_branch
      %129 = sbr.rel (%p127) target = $region16
    $region15: #{densenet_mm_forward.41} parent=5 // pred_region
      // Predicated region
      $region17: #{densenet_mm_forward.41} parent=15 // pred_check
        %p130 = pneg %p51
      $region18: #{densenet_mm_forward.41} parent=15 // pred_check_branch
        %132 = sbr.rel (%p130) target = $region20
      $region19: #{densenet_mm_forward.41} parent=15 // pred_region
        %s133 = sadd.s32 %s16, %s17
        %p134 = scmp.lt.s32.totalorder %s15, 1
        %s135 = scalar_select %p134, %s15, 1
        %p136 = scmp.lt.s32.totalorder %s133, 5
        %s137 = scalar_select %p136, %s133, 5
        %s138 = smul.addr %s137, 6
        %s139 = smul.addr %s135, 36
        %s140 = sadd.s32 %s138, %s139
        %s141 = smul.addr %s140, 4
        %s142 = scalar_lea.vmem %s0, %s141
        %s143 = sadd.s32 %s16, %s17
      $region20: #{densenet_mm_forward.41} parent=15 // pred_fallthru
        _
      // Predicated region
      $region21: #{densenet_mm_forward.41} parent=15 // pred_check
        %p144 = pneg %p77
      $region22: #{densenet_mm_forward.41} parent=15 // pred_check_branch
        %146 = sbr.rel (%p144) target = $region24
      $region23: #{densenet_mm_forward.41} parent=15 // pred_region
        %p147 = scmp.lt.s32.totalorder %s17, 2
        %s148 = scalar_select %p147, %s17, 2
        %s149 = smul.addr %s148, 18
        %s150 = smul.addr %s149, 4
        %s151 = scalar_lea.vmem %s1, %s150
      $region24: #{densenet_mm_forward.41} parent=15 // pred_fallthru
        _
    $region16: #{densenet_mm_forward.41} parent=5 // pred_fallthru
      _
    %p152 = scmp.le.s32.totalorder 1, %s8
    %p153 = scmp.lt.s32.totalorder %s8, 25
    %p154 = pnand %p152, %p153
    %p155 = pneg %p154
    // Predicated region
    $region25: #{densenet_mm_forward.41} parent=5 // pred_check
      _
    $region26: #{densenet_mm_forward.41} parent=5 // pred_check_branch
      %157 = sbr.rel (%p154) target = $region28
    $region27: #{densenet_mm_forward.41} parent=5 // pred_region
      %s158 = ssub.s32 %s8, 1
      %s159 = sadd.s32 %s19, %s20
      %p160 = scmp.lt.s32.totalorder %s18, 1
      %s161 = scalar_select %p160, %s18, 1
      %p162 = scmp.lt.s32.totalorder %s159, 5
      %s163 = scalar_select %p162, %s159, 5
      %s164 = smul.addr %s163, 6
      %s165 = smul.addr %s161, 36
      %s166 = sadd.s32 %s164, %s165
      %s167 = smul.addr %s166, 4
      %s168 = scalar_lea.vmem %s0, %s167
      %p169 = pneg %p57
      %p170 = pneg %p54
      %p171 = scmp.lt.s32.totalorder %s20, 2
      %s172 = scalar_select %p171, %s20, 2
      %s173 = smul.addr %s172, 18
      %s174 = smul.addr %s173, 4
      %s175 = scalar_lea.vmem %s1, %s174
      %p176 = pneg %p83
      %p177 = pneg %p80
      %p178 = pneg %p111
      %p179 = pneg %p108
      %p180 = scmp.lt.s32.totalorder %s18, 1
      %s181 = scalar_select %p180, %s18, 1
      %p182 = scmp.lt.s32.totalorder %s19, 3
      %s183 = scalar_select %p182, %s19, 3
      %s184 = smul.addr %s183, 3
      %s185 = smul.addr %s181, 12
      %s186 = sadd.s32 %s184, %s185
      %s187 = smul.addr %s186, 4
      %s188 = scalar_lea.vmem %s2, %s187
      %s189 = sadd.s32 %s19, %s20
      %p190 = scmp.lt.s32.totalorder %s18, 1
      %s191 = scalar_select %p190, %s18, 1
      %p192 = scmp.lt.s32.totalorder %s189, 5
      %s193 = scalar_select %p192, %s189, 5
      %s194 = smul.addr %s193, 6
      %s195 = smul.addr %s191, 36
      %s196 = sadd.s32 %s194, %s195
      %s197 = smul.addr %s196, 4
      %s198 = scalar_lea.vmem %s0, %s197
      %s199 = sadd.s32 %s19, %s20
      %p200 = scmp.lt.s32.totalorder %s20, 2
      %s201 = scalar_select %p200, %s20, 2
      %s202 = smul.addr %s201, 18
      %s203 = smul.addr %s202, 4
      %s204 = scalar_lea.vmem %s1, %s203
      %p205 = scmp.lt.s32.totalorder %s18, 1
      %s206 = scalar_select %p205, %s18, 1
      %p207 = scmp.lt.s32.totalorder %s19, 3
      %s208 = scalar_select %p207, %s19, 3
      %s209 = smul.addr %s208, 3
      %s210 = smul.addr %s206, 12
      %s211 = sadd.s32 %s209, %s210
      %s212 = smul.addr %s211, 4
      %s213 = scalar_lea.vmem %s2, %s212
      %p215 = scmp.eq.s32.totalorder %s20, 0
      // Predicated region
      $region29: #{densenet_mm_forward.41} parent=27 // pred_check
        %p216 = pneg %p215
      $region30: #{densenet_mm_forward.41} parent=27 // pred_check_branch
        %218 = sbr.rel (%p216) target = $region32
      $region31: #{densenet_mm_forward.41} parent=27 // pred_region
        %vm219 = vcmask 64512
        %220 = vst.msk [vmem:[#allocation2] sm:$0xff] %vm219, 0.0
        %221 = vst.msk [vmem:[#allocation2 + $0x8] sm:$0xff] %vm219, 0.0
        %222 = vst.msk [vmem:[#allocation2 + $0x10] sm:$0xff] %vm219, 0.0
      $region32: #{densenet_mm_forward.41} parent=27 // pred_fallthru
        _
      %v223 = vld [vmem:[#allocation2] sm:$0xff]
      %v224 = vld [vmem:[#allocation2 + $0x8] sm:$0xff]
      %v225 = vld [vmem:[#allocation2 + $0x10] sm:$0xff]
      %v226 = vld [vmem:[%s198] sm:$0xf]
      %v227 = vld [vmem:[%s198 + $0x4] sm:$0xf]
      %v228 = vld [vmem:[%s198 + $0x8] sm:$0xf]
      %v229 = vld [vmem:[%s204] sm:$0xf]
      %v230 = vld [vmem:[%s204 + $0x4] sm:$0xf]
      %v234 = vunpack.c.l.b16 %v226
      %v235 = vunpack.c.l.b16 %v227
      %v236 = vunpack.c.l.b16 %v228
      %v237 = vpack.c.b16 %v235, %v234
      %v238 = vpack.c.b16 %v236, %v236
      %v241 = vunpack.c.l.b16 %v229
      %v242 = vunpack.c.l.b16 %v230
      %v243 = vpack.c.b16 %v242, %v241
      %vm245 = vcmask 130048
      %v247 = vsel %vm245, %v237, 0
      %v250 = vsel %vm245, %v238, 0
      %252 = vmatprep.subr.bf16.mxu0 0
      %253 = vmatpush1.bf16.msra.mxu0 %v243
      %254 = vmatprep.subr.bf16.mxu0 0
      %255 = vmatpush1.bf16.msra.mxu0 0
      %256 = vmatprep.subr.bf16.mxu0 0
      %257 = vmatpush1.bf16.msra.mxu0 0
      %258 = vmatprep.subr.bf16.mxu0 0
      %259 = vmatpush1.bf16.msra.mxu0 0
      %260 = vmatprep.subr.bf16.mxu0 0
      %261 = vmatpush1.bf16.msra.mxu0 0
      %262 = vmatprep.subr.bf16.mxu0 0
      %263 = vmatpush1.bf16.msra.mxu0 0
      %264 = vmatprep.subr.bf16.mxu0 0
      %265 = vmatpush1.bf16.msra.mxu0 0
      %266 = vmatprep.subr.bf16.mxu0 0
      %267 = vmatpush1.bf16.msra.mxu0 0
      %268 = vmatprep.subr.bf16.mxu0 0
      %269 = vmatpush1.bf16.msra.mxu0 0
      %270 = vmatprep.subr.bf16.mxu0 0
      %271 = vmatpush1.bf16.msra.mxu0 0
      %272 = vmatprep.subr.bf16.mxu0 0
      %273 = vmatpush1.bf16.msra.mxu0 0
      %274 = vmatprep.subr.bf16.mxu0 0
      %275 = vmatpush1.bf16.msra.mxu0 0
      %276 = vmatprep.subr.bf16.mxu0 0
      %277 = vmatpush1.bf16.msra.mxu0 0
      %278 = vmatprep.subr.bf16.mxu0 0
      %279 = vmatpush1.bf16.msra.mxu0 0
      %280 = vmatprep.subr.bf16.mxu0 0
      %281 = vmatpush1.bf16.msra.mxu0 0
      %282 = vmatprep.subr.bf16.mxu0 0
      %283 = vmatpush1.bf16.msra.mxu0 0
      %284 = vmatprep.mubr.bf16.mxu0 0
      %285 = vmatmul.mubr.bf16.gmra.mrb[0].mxu0 %v247
      %v286 = vpop.f32.mrb[0].mxu0
      %v287 = vadd.f32 0.0, %v286
      %v288 = vpop.f32.mrb[0].mxu0
      %v289 = vpop.f32.mrb[0].mxu0
      %v290 = vadd.f32 0.0, %v289
      %v291 = vpop.f32.mrb[0].mxu0
      %292 = vmatprep.mubr.bf16.mxu0 0
      %293 = vmatmul.mubr.bf16.gmra.mrb[0].mxu0 %v250
      %v294 = vpop.f32.mrb[0].mxu0
      %v295 = vadd.f32 0.0, %v294
      %v296 = vpop.f32.mrb[0].mxu0
      %v297 = vpop.f32.mrb[0].mxu0
      %v298 = vpop.f32.mrb[0].mxu0
      %299 = vdwg.mxu0
      %v300 = vadd.f32 %v223, %v287
      %v301 = vadd.f32 %v224, %v290
      %v302 = vadd.f32 %v225, %v295
      %v303 = vld [vmem:[%s198] sm:$0xf]
      %v304 = vld [vmem:[%s198 + $0x4] sm:$0xf]
      %v305 = vld [vmem:[%s198 + $0x8] sm:$0xf]
      %v306 = vld [vmem:[%s198 + $0xc] sm:$0x1]
      %s307 = scalar_lea.vmem %s204, 8
      %v308 = vld [vmem:[%s307] sm:$0xf]
      %v309 = vld [vmem:[%s307 + $0x4] sm:$0xf]
      %v314 = vunpack.c.l.b16 %v303
      %v315 = vunpack.c.l.b16 %v304
      %v316 = vunpack.c.l.b16 %v305
      %v317 = vunpack.c.l.b16 %v306
      %v318 = vpack.c.b16 %v315, %v314
      %v319 = vpack.c.b16 %v317, %v316
      %vm320 = vsmask.f32 7424
      %v322 = vshrl.u32 %v318, 16
      %v324 = vshll.u32 %v318, 16
      %v326 = vrot.slane %v324, 1
      %v327 = vor.u32 %v322, %v326
      %v329 = vshll.u32 %v319, 16
      %v331 = vrot.slane %v329, 1
      %v332 = vsel %vm320, %v327, %v331
      %v333 = vshrl.u32 %v319, 16
      %v335 = vor.u32 %v333, %v331
      %v338 = vunpack.c.l.b16 %v308
      %v339 = vunpack.c.l.b16 %v309
      %v340 = vpack.c.b16 %v339, %v338
      %v343 = vsel %vm245, %v332, 0
      %v346 = vsel %vm245, %v335, 0
      %348 = vmatprep.subr.bf16.mxu0 0
      %349 = vmatpush1.bf16.msra.mxu0 %v340
      %350 = vmatprep.subr.bf16.mxu0 0
      %351 = vmatpush1.bf16.msra.mxu0 0
      %352 = vmatprep.subr.bf16.mxu0 0
      %353 = vmatpush1.bf16.msra.mxu0 0
      %354 = vmatprep.subr.bf16.mxu0 0
      %355 = vmatpush1.bf16.msra.mxu0 0
      %356 = vmatprep.subr.bf16.mxu0 0
      %357 = vmatpush1.bf16.msra.mxu0 0
      %358 = vmatprep.subr.bf16.mxu0 0
      %359 = vmatpush1.bf16.msra.mxu0 0
      %360 = vmatprep.subr.bf16.mxu0 0
      %361 = vmatpush1.bf16.msra.mxu0 0
      %362 = vmatprep.subr.bf16.mxu0 0
      %363 = vmatpush1.bf16.msra.mxu0 0
      %364 = vmatprep.subr.bf16.mxu0 0
      %365 = vmatpush1.bf16.msra.mxu0 0
      %366 = vmatprep.subr.bf16.mxu0 0
      %367 = vmatpush1.bf16.msra.mxu0 0
      %368 = vmatprep.subr.bf16.mxu0 0
      %369 = vmatpush1.bf16.msra.mxu0 0
      %370 = vmatprep.subr.bf16.mxu0 0
      %371 = vmatpush1.bf16.msra.mxu0 0
      %372 = vmatprep.subr.bf16.mxu0 0
      %373 = vmatpush1.bf16.msra.mxu0 0
      %374 = vmatprep.subr.bf16.mxu0 0
      %375 = vmatpush1.bf16.msra.mxu0 0
      %376 = vmatprep.subr.bf16.mxu0 0
      %377 = vmatpush1.bf16.msra.mxu0 0
      %378 = vmatprep.subr.bf16.mxu0 0
      %379 = vmatpush1.bf16.msra.mxu0 0
      %380 = vmatprep.mubr.bf16.mxu0 0
      %381 = vmatmul.mubr.bf16.gmra.mrb[0].mxu0 %v343
      %v382 = vpop.f32.mrb[0].mxu0
      %v383 = vadd.f32 0.0, %v382
      %v384 = vpop.f32.mrb[0].mxu0
      %v385 = vpop.f32.mrb[0].mxu0
      %v386 = vadd.f32 0.0, %v385
      %v387 = vpop.f32.mrb[0].mxu0
      %388 = vmatprep.mubr.bf16.mxu0 0
      %389 = vmatmul.mubr.bf16.gmra.mrb[0].mxu0 %v346
      %v390 = vpop.f32.mrb[0].mxu0
      %v391 = vadd.f32 0.0, %v390
      %v392 = vpop.f32.mrb[0].mxu0
      %v393 = vpop.f32.mrb[0].mxu0
      %v394 = vpop.f32.mrb[0].mxu0
      %395 = vdwg.mxu0
      %v396 = vadd.f32 %v300, %v383
      %v397 = vadd.f32 %v301, %v386
      %v398 = vadd.f32 %v302, %v391
      %v399 = vld [vmem:[%s198] sm:$0xe]
      %s400 = scalar_lea.vmem %s204, 16
      %v401 = vld [vmem:[%s400] sm:$0xf]
      %v402 = vld [vmem:[%s400 + $0x4] sm:$0xf]
      %v404 = vunpack.c.l.b16 %v399
      %v405 = vpack.c.b16 %v315, %v404
      %vm406 = vcmask 1046528
      %v407 = vrot.slane %v405, 1
      %v408 = vrot.slane %v319, 1
      %v409 = vsel %vm406, %v407, %v408
      %v412 = vunpack.c.l.b16 %v401
      %v413 = vunpack.c.l.b16 %v402
      %v414 = vpack.c.b16 %v413, %v412
      %v417 = vsel %vm245, %v409, 0
      %v420 = vsel %vm245, %v408, 0
      %422 = vmatprep.subr.bf16.mxu0 0
      %423 = vmatpush1.bf16.msra.mxu0 %v414
      %424 = vmatprep.subr.bf16.mxu0 0
      %425 = vmatpush1.bf16.msra.mxu0 0
      %426 = vmatprep.subr.bf16.mxu0 0
      %427 = vmatpush1.bf16.msra.mxu0 0
      %428 = vmatprep.subr.bf16.mxu0 0
      %429 = vmatpush1.bf16.msra.mxu0 0
      %430 = vmatprep.subr.bf16.mxu0 0
      %431 = vmatpush1.bf16.msra.mxu0 0
      %432 = vmatprep.subr.bf16.mxu0 0
      %433 = vmatpush1.bf16.msra.mxu0 0
      %434 = vmatprep.subr.bf16.mxu0 0
      %435 = vmatpush1.bf16.msra.mxu0 0
      %436 = vmatprep.subr.bf16.mxu0 0
      %437 = vmatpush1.bf16.msra.mxu0 0
      %438 = vmatprep.subr.bf16.mxu0 0
      %439 = vmatpush1.bf16.msra.mxu0 0
      %440 = vmatprep.subr.bf16.mxu0 0
      %441 = vmatpush1.bf16.msra.mxu0 0
      %442 = vmatprep.subr.bf16.mxu0 0
      %443 = vmatpush1.bf16.msra.mxu0 0
      %444 = vmatprep.subr.bf16.mxu0 0
      %445 = vmatpush1.bf16.msra.mxu0 0
      %446 = vmatprep.subr.bf16.mxu0 0
      %447 = vmatpush1.bf16.msra.mxu0 0
      %448 = vmatprep.subr.bf16.mxu0 0
      %449 = vmatpush1.bf16.msra.mxu0 0
      %450 = vmatprep.subr.bf16.mxu0 0
      %451 = vmatpush1.bf16.msra.mxu0 0
      %452 = vmatprep.subr.bf16.mxu0 0
      %453 = vmatpush1.bf16.msra.mxu0 0
      %454 = vmatprep.mubr.bf16.mxu0 0
      %455 = vmatmul.mubr.bf16.gmra.mrb[0].mxu0 %v417
      %v456 = vpop.f32.mrb[0].mxu0
      %v457 = vadd.f32 0.0, %v456
      %v458 = vpop.f32.mrb[0].mxu0
      %v459 = vpop.f32.mrb[0].mxu0
      %v460 = vadd.f32 0.0, %v459
      %v461 = vpop.f32.mrb[0].mxu0
      %462 = vmatprep.mubr.bf16.mxu0 0
      %463 = vmatmul.mubr.bf16.gmra.mrb[0].mxu0 %v420
      %v464 = vpop.f32.mrb[0].mxu0
      %v465 = vadd.f32 0.0, %v464
      %v466 = vpop.f32.mrb[0].mxu0
      %v467 = vpop.f32.mrb[0].mxu0
      %v468 = vpop.f32.mrb[0].mxu0
      %469 = vdwg.mxu0
      %v470 = vadd.f32 %v396, %v457
      %v471 = vadd.f32 %v397, %v460
      %v472 = vadd.f32 %v398, %v465
      %v473 = vld [vmem:[%s198] sm:$0x8]
      %v474 = vld [vmem:[%s198 + $0xc] sm:$0x7]
      %s475 = scalar_lea.vmem %s204, 24
      %v476 = vld [vmem:[%s475] sm:$0xf]
      %v477 = vld [vmem:[%s475 + $0x4] sm:$0xf]
      %v480 = vunpack.c.l.b16 %v473
      %v481 = vunpack.c.l.b16 %v474
      %v482 = vpack.c.b16 %v315, %v480
      %v483 = vpack.c.b16 %v481, %v316
      %vm484 = vcmask 1044480
      %v485 = vrot.slane %v482, 3
      %v486 = vrot.slane %v483, 3
      %v487 = vsel %vm484, %v485, %v486
      %v490 = vunpack.c.l.b16 %v476
      %v491 = vunpack.c.l.b16 %v477
      %v492 = vpack.c.b16 %v491, %v490
      %v495 = vsel %vm245, %v487, 0
      %v498 = vsel %vm245, %v486, 0
      %500 = vmatprep.subr.bf16.mxu0 0
      %501 = vmatpush1.bf16.msra.mxu0 %v492
      %502 = vmatprep.subr.bf16.mxu0 0
      %503 = vmatpush1.bf16.msra.mxu0 0
      %504 = vmatprep.subr.bf16.mxu0 0
      %505 = vmatpush1.bf16.msra.mxu0 0
      %506 = vmatprep.subr.bf16.mxu0 0
      %507 = vmatpush1.bf16.msra.mxu0 0
      %508 = vmatprep.subr.bf16.mxu0 0
      %509 = vmatpush1.bf16.msra.mxu0 0
      %510 = vmatprep.subr.bf16.mxu0 0
      %511 = vmatpush1.bf16.msra.mxu0 0
      %512 = vmatprep.subr.bf16.mxu0 0
      %513 = vmatpush1.bf16.msra.mxu0 0
      %514 = vmatprep.subr.bf16.mxu0 0
      %515 = vmatpush1.bf16.msra.mxu0 0
      %516 = vmatprep.subr.bf16.mxu0 0
      %517 = vmatpush1.bf16.msra.mxu0 0
      %518 = vmatprep.subr.bf16.mxu0 0
      %519 = vmatpush1.bf16.msra.mxu0 0
      %520 = vmatprep.subr.bf16.mxu0 0
      %521 = vmatpush1.bf16.msra.mxu0 0
      %522 = vmatprep.subr.bf16.mxu0 0
      %523 = vmatpush1.bf16.msra.mxu0 0
      %524 = vmatprep.subr.bf16.mxu0 0
      %525 = vmatpush1.bf16.msra.mxu0 0
      %526 = vmatprep.subr.bf16.mxu0 0
      %527 = vmatpush1.bf16.msra.mxu0 0
      %528 = vmatprep.subr.bf16.mxu0 0
      %529 = vmatpush1.bf16.msra.mxu0 0
      %530 = vmatprep.subr.bf16.mxu0 0
      %531 = vmatpush1.bf16.msra.mxu0 0
      %532 = vmatprep.mubr.bf16.mxu0 0
      %533 = vmatmul.mubr.bf16.gmra.mrb[0].mxu0 %v495
      %v534 = vpop.f32.mrb[0].mxu0
      %v535 = vadd.f32 0.0, %v534
      %v536 = vpop.f32.mrb[0].mxu0
      %v537 = vpop.f32.mrb[0].mxu0
      %v538 = vadd.f32 0.0, %v537
      %v539 = vpop.f32.mrb[0].mxu0
      %540 = vmatprep.mubr.bf16.mxu0 0
      %541 = vmatmul.mubr.bf16.gmra.mrb[0].mxu0 %v498
      %v542 = vpop.f32.mrb[0].mxu0
      %v543 = vadd.f32 0.0, %v542
      %v544 = vpop.f32.mrb[0].mxu0
      %v545 = vpop.f32.mrb[0].mxu0
      %v546 = vpop.f32.mrb[0].mxu0
      %547 = vdwg.mxu0
      %v548 = vadd.f32 %v470, %v535
      %v549 = vadd.f32 %v471, %v538
      %v550 = vadd.f32 %v472, %v543
      %v551 = vld [vmem:[%s198 + $0xc] sm:$0xf]
      %s552 = scalar_lea.vmem %s204, 32
      %v553 = vld [vmem:[%s552] sm:$0xf]
      %v554 = vld [vmem:[%s552 + $0x4] sm:$0xf]
      %v556 = vunpack.c.l.b16 %v551
      %v557 = vpack.c.b16 %v556, %v316
      %vm558 = vsmask.f32 4352
      %v560 = vshrl.u32 %v482, 16
      %v562 = vrot.slane %v560, 3
      %v563 = vshll.u32 %v482, 16
      %v565 = vrot.slane %v563, 4
      %v566 = vor.u32 %v562, %v565
      %v568 = vshrl.u32 %v557, 16
      %v570 = vrot.slane %v568, 3
      %v571 = vshll.u32 %v557, 16
      %v573 = vrot.slane %v571, 4
      %v574 = vor.u32 %v570, %v573
      %v575 = vsel %vm558, %v566, %v574
      %v578 = vunpack.c.l.b16 %v553
      %v579 = vunpack.c.l.b16 %v554
      %v580 = vpack.c.b16 %v579, %v578
      %v583 = vsel %vm245, %v575, 0
      %v586 = vsel %vm245, %v574, 0
      %588 = vmatprep.subr.bf16.mxu0 0
      %589 = vmatpush1.bf16.msra.mxu0 %v580
      %590 = vmatprep.subr.bf16.mxu0 0
      %591 = vmatpush1.bf16.msra.mxu0 0
      %592 = vmatprep.subr.bf16.mxu0 0
      %593 = vmatpush1.bf16.msra.mxu0 0
      %594 = vmatprep.subr.bf16.mxu0 0
      %595 = vmatpush1.bf16.msra.mxu0 0
      %596 = vmatprep.subr.bf16.mxu0 0
      %597 = vmatpush1.bf16.msra.mxu0 0
      %598 = vmatprep.subr.bf16.mxu0 0
      %599 = vmatpush1.bf16.msra.mxu0 0
      %600 = vmatprep.subr.bf16.mxu0 0
      %601 = vmatpush1.bf16.msra.mxu0 0
      %602 = vmatprep.subr.bf16.mxu0 0
      %603 = vmatpush1.bf16.msra.mxu0 0
      %604 = vmatprep.subr.bf16.mxu0 0
      %605 = vmatpush1.bf16.msra.mxu0 0
      %606 = vmatprep.subr.bf16.mxu0 0
      %607 = vmatpush1.bf16.msra.mxu0 0
      %608 = vmatprep.subr.bf16.mxu0 0
      %609 = vmatpush1.bf16.msra.mxu0 0
      %610 = vmatprep.subr.bf16.mxu0 0
      %611 = vmatpush1.bf16.msra.mxu0 0
      %612 = vmatprep.subr.bf16.mxu0 0
      %613 = vmatpush1.bf16.msra.mxu0 0
      %614 = vmatprep.subr.bf16.mxu0 0
      %615 = vmatpush1.bf16.msra.mxu0 0
      %616 = vmatprep.subr.bf16.mxu0 0
      %617 = vmatpush1.bf16.msra.mxu0 0
      %618 = vmatprep.subr.bf16.mxu0 0
      %619 = vmatpush1.bf16.msra.mxu0 0
      %620 = vmatprep.mubr.bf16.mxu0 0
      %621 = vmatmul.mubr.bf16.gmra.mrb[0].mxu0 %v583
      %v622 = vpop.f32.mrb[0].mxu0
      %v623 = vadd.f32 0.0, %v622
      %v624 = vpop.f32.mrb[0].mxu0
      %v625 = vpop.f32.mrb[0].mxu0
      %v626 = vadd.f32 0.0, %v625
      %v627 = vpop.f32.mrb[0].mxu0
      %628 = vmatprep.mubr.bf16.mxu0 0
      %629 = vmatmul.mubr.bf16.gmra.mrb[0].mxu0 %v586
      %v630 = vpop.f32.mrb[0].mxu0
      %v631 = vadd.f32 0.0, %v630
      %v632 = vpop.f32.mrb[0].mxu0
      %v633 = vpop.f32.mrb[0].mxu0
      %v634 = vpop.f32.mrb[0].mxu0
      %635 = vdwg.mxu0
      %v636 = vadd.f32 %v548, %v623
      %v637 = vadd.f32 %v549, %v626
      %v638 = vadd.f32 %v550, %v631
      %s639 = scalar_lea.vmem %s204, 40
      %v640 = vld [vmem:[%s639] sm:$0xf]
      %v641 = vld [vmem:[%s639 + $0x4] sm:$0xf]
      %v642 = vpack.c.b16 %v316, %v315
      %v643 = vpack.c.b16 %v556, %v556
      %v646 = vunpack.c.l.b16 %v640
      %v647 = vunpack.c.l.b16 %v641
      %v648 = vpack.c.b16 %v647, %v646
      %v651 = vsel %vm245, %v642, 0
      %v654 = vsel %vm245, %v643, 0
      %656 = vmatprep.subr.bf16.mxu0 0
      %657 = vmatpush1.bf16.msra.mxu0 %v648
      %658 = vmatprep.subr.bf16.mxu0 0
      %659 = vmatpush1.bf16.msra.mxu0 0
      %660 = vmatprep.subr.bf16.mxu0 0
      %661 = vmatpush1.bf16.msra.mxu0 0
      %662 = vmatprep.subr.bf16.mxu0 0
      %663 = vmatpush1.bf16.msra.mxu0 0
      %664 = vmatprep.subr.bf16.mxu0 0
      %665 = vmatpush1.bf16.msra.mxu0 0
      %666 = vmatprep.subr.bf16.mxu0 0
      %667 = vmatpush1.bf16.msra.mxu0 0
      %668 = vmatprep.subr.bf16.mxu0 0
      %669 = vmatpush1.bf16.msra.mxu0 0
      %670 = vmatprep.subr.bf16.mxu0 0
      %671 = vmatpush1.bf16.msra.mxu0 0
      %672 = vmatprep.subr.bf16.mxu0 0
      %673 = vmatpush1.bf16.msra.mxu0 0
      %674 = vmatprep.subr.bf16.mxu0 0
      %675 = vmatpush1.bf16.msra.mxu0 0
      %676 = vmatprep.subr.bf16.mxu0 0
      %677 = vmatpush1.bf16.msra.mxu0 0
      %678 = vmatprep.subr.bf16.mxu0 0
      %679 = vmatpush1.bf16.msra.mxu0 0
      %680 = vmatprep.subr.bf16.mxu0 0
      %681 = vmatpush1.bf16.msra.mxu0 0
      %682 = vmatprep.subr.bf16.mxu0 0
      %683 = vmatpush1.bf16.msra.mxu0 0
      %684 = vmatprep.subr.bf16.mxu0 0
      %685 = vmatpush1.bf16.msra.mxu0 0
      %686 = vmatprep.subr.bf16.mxu0 0
      %687 = vmatpush1.bf16.msra.mxu0 0
      %688 = vmatprep.mubr.bf16.mxu0 0
      %689 = vmatmul.mubr.bf16.gmra.mrb[0].mxu0 %v651
      %v690 = vpop.f32.mrb[0].mxu0
      %v691 = vadd.f32 0.0, %v690
      %v692 = vpop.f32.mrb[0].mxu0
      %v693 = vpop.f32.mrb[0].mxu0
      %v694 = vadd.f32 0.0, %v693
      %v695 = vpop.f32.mrb[0].mxu0
      %696 = vmatprep.mubr.bf16.mxu0 0
      %697 = vmatmul.mubr.bf16.gmra.mrb[0].mxu0 %v654
      %v698 = vpop.f32.mrb[0].mxu0
      %v699 = vadd.f32 0.0, %v698
      %v700 = vpop.f32.mrb[0].mxu0
      %v701 = vpop.f32.mrb[0].mxu0
      %v702 = vpop.f32.mrb[0].mxu0
      %703 = vdwg.mxu0
      %v704 = vadd.f32 %v636, %v691
      %v705 = vadd.f32 %v637, %v694
      %v706 = vadd.f32 %v638, %v699
      %v707 = vld [vmem:[%s198 + $0x4] sm:$0xc]
      %v708 = vld [vmem:[%s198 + $0x8] sm:$0xf]
      %v709 = vld [vmem:[%s198 + $0xc] sm:$0xf]
      %v710 = vld [vmem:[%s198 + $0x10] sm:$0x3]
      %s711 = scalar_lea.vmem %s204, 48
      %v712 = vld [vmem:[%s711] sm:$0xf]
      %v713 = vld [vmem:[%s711 + $0x4] sm:$0xf]
      %v718 = vunpack.c.l.b16 %v707
      %v719 = vunpack.c.l.b16 %v708
      %v720 = vunpack.c.l.b16 %v709
      %v721 = vunpack.c.l.b16 %v710
      %v722 = vpack.c.b16 %v719, %v718
      %v723 = vpack.c.b16 %v721, %v720
      %vm724 = vcmask 1045504
      %v725 = vrot.slane %v722, 2
      %v726 = vrot.slane %v723, 2
      %v727 = vsel %vm724, %v725, %v726
      %v730 = vunpack.c.l.b16 %v712
      %v731 = vunpack.c.l.b16 %v713
      %v732 = vpack.c.b16 %v731, %v730
      %v735 = vsel %vm245, %v727, 0
      %v738 = vsel %vm245, %v726, 0
      %740 = vmatprep.subr.bf16.mxu0 0
      %741 = vmatpush1.bf16.msra.mxu0 %v732
      %742 = vmatprep.subr.bf16.mxu0 0
      %743 = vmatpush1.bf16.msra.mxu0 0
      %744 = vmatprep.subr.bf16.mxu0 0
      %745 = vmatpush1.bf16.msra.mxu0 0
      %746 = vmatprep.subr.bf16.mxu0 0
      %747 = vmatpush1.bf16.msra.mxu0 0
      %748 = vmatprep.subr.bf16.mxu0 0
      %749 = vmatpush1.bf16.msra.mxu0 0
      %750 = vmatprep.subr.bf16.mxu0 0
      %751 = vmatpush1.bf16.msra.mxu0 0
      %752 = vmatprep.subr.bf16.mxu0 0
      %753 = vmatpush1.bf16.msra.mxu0 0
      %754 = vmatprep.subr.bf16.mxu0 0
      %755 = vmatpush1.bf16.msra.mxu0 0
      %756 = vmatprep.subr.bf16.mxu0 0
      %757 = vmatpush1.bf16.msra.mxu0 0
      %758 = vmatprep.subr.bf16.mxu0 0
      %759 = vmatpush1.bf16.msra.mxu0 0
      %760 = vmatprep.subr.bf16.mxu0 0
      %761 = vmatpush1.bf16.msra.mxu0 0
      %762 = vmatprep.subr.bf16.mxu0 0
      %763 = vmatpush1.bf16.msra.mxu0 0
      %764 = vmatprep.subr.bf16.mxu0 0
      %765 = vmatpush1.bf16.msra.mxu0 0
      %766 = vmatprep.subr.bf16.mxu0 0
      %767 = vmatpush1.bf16.msra.mxu0 0
      %768 = vmatprep.subr.bf16.mxu0 0
      %769 = vmatpush1.bf16.msra.mxu0 0
      %770 = vmatprep.subr.bf16.mxu0 0
      %771 = vmatpush1.bf16.msra.mxu0 0
      %772 = vmatprep.mubr.bf16.mxu0 0
      %773 = vmatmul.mubr.bf16.gmra.mrb[0].mxu0 %v735
      %v774 = vpop.f32.mrb[0].mxu0
      %v775 = vadd.f32 0.0, %v774
      %v776 = vpop.f32.mrb[0].mxu0
      %v777 = vpop.f32.mrb[0].mxu0
      %v778 = vadd.f32 0.0, %v777
      %v779 = vpop.f32.mrb[0].mxu0
      %780 = vmatprep.mubr.bf16.mxu0 0
      %781 = vmatmul.mubr.bf16.gmra.mrb[0].mxu0 %v738
      %v782 = vpop.f32.mrb[0].mxu0
      %v783 = vadd.f32 0.0, %v782
      %v784 = vpop.f32.mrb[0].mxu0
      %v785 = vpop.f32.mrb[0].mxu0
      %v786 = vpop.f32.mrb[0].mxu0
      %787 = vdwg.mxu0
      %v788 = vadd.f32 %v704, %v775
      %v789 = vadd.f32 %v705, %v778
      %v790 = vadd.f32 %v706, %v783
      %v791 = vld [vmem:[%s198 + $0x10] sm:$0x7]
      %s792 = scalar_lea.vmem %s204, 56
      %v793 = vld [vmem:[%s792] sm:$0xf]
      %v794 = vld [vmem:[%s792 + $0x4] sm:$0xf]
      %v796 = vunpack.c.l.b16 %v791
      %v797 = vpack.c.b16 %v796, %v720
      %vm798 = vsmask.f32 5376
      %v800 = vshrl.u32 %v722, 16
      %v802 = vrot.slane %v800, 2
      %v803 = vshll.u32 %v722, 16
      %v805 = vrot.slane %v803, 3
      %v806 = vor.u32 %v802, %v805
      %v808 = vshrl.u32 %v797, 16
      %v810 = vrot.slane %v808, 2
      %v811 = vshll.u32 %v797, 16
      %v813 = vrot.slane %v811, 3
      %v814 = vor.u32 %v810, %v813
      %v815 = vsel %vm798, %v806, %v814
      %v818 = vunpack.c.l.b16 %v793
      %v819 = vunpack.c.l.b16 %v794
      %v820 = vpack.c.b16 %v819, %v818
      %v823 = vsel %vm245, %v815, 0
      %v826 = vsel %vm245, %v814, 0
      %828 = vmatprep.subr.bf16.mxu0 0
      %829 = vmatpush1.bf16.msra.mxu0 %v820
      %830 = vmatprep.subr.bf16.mxu0 0
      %831 = vmatpush1.bf16.msra.mxu0 0
      %832 = vmatprep.subr.bf16.mxu0 0
      %833 = vmatpush1.bf16.msra.mxu0 0
      %834 = vmatprep.subr.bf16.mxu0 0
      %835 = vmatpush1.bf16.msra.mxu0 0
      %836 = vmatprep.subr.bf16.mxu0 0
      %837 = vmatpush1.bf16.msra.mxu0 0
      %838 = vmatprep.subr.bf16.mxu0 0
      %839 = vmatpush1.bf16.msra.mxu0 0
      %840 = vmatprep.subr.bf16.mxu0 0
      %841 = vmatpush1.bf16.msra.mxu0 0
      %842 = vmatprep.subr.bf16.mxu0 0
      %843 = vmatpush1.bf16.msra.mxu0 0
      %844 = vmatprep.subr.bf16.mxu0 0
      %845 = vmatpush1.bf16.msra.mxu0 0
      %846 = vmatprep.subr.bf16.mxu0 0
      %847 = vmatpush1.bf16.msra.mxu0 0
      %848 = vmatprep.subr.bf16.mxu0 0
      %849 = vmatpush1.bf16.msra.mxu0 0
      %850 = vmatprep.subr.bf16.mxu0 0
      %851 = vmatpush1.bf16.msra.mxu0 0
      %852 = vmatprep.subr.bf16.mxu0 0
      %853 = vmatpush1.bf16.msra.mxu0 0
      %854 = vmatprep.subr.bf16.mxu0 0
      %855 = vmatpush1.bf16.msra.mxu0 0
      %856 = vmatprep.subr.bf16.mxu0 0
      %857 = vmatpush1.bf16.msra.mxu0 0
      %858 = vmatprep.subr.bf16.mxu0 0
      %859 = vmatpush1.bf16.msra.mxu0 0
      %860 = vmatprep.mubr.bf16.mxu0 0
      %861 = vmatmul.mubr.bf16.gmra.mrb[0].mxu0 %v823
      %v862 = vpop.f32.mrb[0].mxu0
      %v863 = vadd.f32 0.0, %v862
      %v864 = vpop.f32.mrb[0].mxu0
      %v865 = vpop.f32.mrb[0].mxu0
      %v866 = vadd.f32 0.0, %v865
      %v867 = vpop.f32.mrb[0].mxu0
      %868 = vmatprep.mubr.bf16.mxu0 0
      %869 = vmatmul.mubr.bf16.gmra.mrb[0].mxu0 %v826
      %v870 = vpop.f32.mrb[0].mxu0
      %v871 = vadd.f32 0.0, %v870
      %v872 = vpop.f32.mrb[0].mxu0
      %v873 = vpop.f32.mrb[0].mxu0
      %v874 = vpop.f32.mrb[0].mxu0
      %875 = vdwg.mxu0
      %v876 = vadd.f32 %v788, %v863
      %v877 = vadd.f32 %v789, %v866
      %v878 = vadd.f32 %v790, %v871
      %v879 = vld [vmem:[%s198 + $0x4] sm:$0x8]
      %s880 = scalar_lea.vmem %s204, 64
      %v881 = vld [vmem:[%s880] sm:$0xf]
      %v882 = vld [vmem:[%s880 + $0x4] sm:$0xf]
      %v884 = vunpack.c.l.b16 %v879
      %v885 = vpack.c.b16 %v719, %v884
      %v886 = vrot.slane %v885, 3
      %v887 = vrot.slane %v797, 3
      %v888 = vsel %vm484, %v886, %v887
      %v891 = vunpack.c.l.b16 %v881
      %v892 = vunpack.c.l.b16 %v882
      %v893 = vpack.c.b16 %v892, %v891
      %v896 = vsel %vm245, %v888, 0
      %v899 = vsel %vm245, %v887, 0
      %901 = vmatprep.subr.bf16.mxu0 0
      %902 = vmatpush1.bf16.msra.mxu0 %v893
      %903 = vmatprep.subr.bf16.mxu0 0
      %904 = vmatpush1.bf16.msra.mxu0 0
      %905 = vmatprep.subr.bf16.mxu0 0
      %906 = vmatpush1.bf16.msra.mxu0 0
      %907 = vmatprep.subr.bf16.mxu0 0
      %908 = vmatpush1.bf16.msra.mxu0 0
      %909 = vmatprep.subr.bf16.mxu0 0
      %910 = vmatpush1.bf16.msra.mxu0 0
      %911 = vmatprep.subr.bf16.mxu0 0
      %912 = vmatpush1.bf16.msra.mxu0 0
      %913 = vmatprep.subr.bf16.mxu0 0
      %914 = vmatpush1.bf16.msra.mxu0 0
      %915 = vmatprep.subr.bf16.mxu0 0
      %916 = vmatpush1.bf16.msra.mxu0 0
      %917 = vmatprep.subr.bf16.mxu0 0
      %918 = vmatpush1.bf16.msra.mxu0 0
      %919 = vmatprep.subr.bf16.mxu0 0
      %920 = vmatpush1.bf16.msra.mxu0 0
      %921 = vmatprep.subr.bf16.mxu0 0
      %922 = vmatpush1.bf16.msra.mxu0 0
      %923 = vmatprep.subr.bf16.mxu0 0
      %924 = vmatpush1.bf16.msra.mxu0 0
      %925 = vmatprep.subr.bf16.mxu0 0
      %926 = vmatpush1.bf16.msra.mxu0 0
      %927 = vmatprep.subr.bf16.mxu0 0
      %928 = vmatpush1.bf16.msra.mxu0 0
      %929 = vmatprep.subr.bf16.mxu0 0
      %930 = vmatpush1.bf16.msra.mxu0 0
      %931 = vmatprep.subr.bf16.mxu0 0
      %932 = vmatpush1.bf16.msra.mxu0 0
      %933 = vmatprep.mubr.bf16.mxu0 0
      %934 = vmatmul.mubr.bf16.gmra.mrb[0].mxu0 %v896
      %v935 = vpop.f32.mrb[0].mxu0
      %v936 = vadd.f32 0.0, %v935
      %v937 = vpop.f32.mrb[0].mxu0
      %v938 = vpop.f32.mrb[0].mxu0
      %v939 = vadd.f32 0.0, %v938
      %v940 = vpop.f32.mrb[0].mxu0
      %941 = vmatprep.mubr.bf16.mxu0 0
      %942 = vmatmul.mubr.bf16.gmra.mrb[0].mxu0 %v899
      %v943 = vpop.f32.mrb[0].mxu0
      %v944 = vadd.f32 0.0, %v943
      %v945 = vpop.f32.mrb[0].mxu0
      %v946 = vpop.f32.mrb[0].mxu0
      %v947 = vpop.f32.mrb[0].mxu0
      %948 = vdwg.mxu0
      %v949 = vadd.f32 %v876, %v936
      %v950 = vadd.f32 %v877, %v939
      %v951 = vadd.f32 %v878, %v944
      %vm952 = vcmask 64512
      %953 = vst.msk [vmem:[#allocation2] sm:$0xff] %vm952, %v949
      %954 = vst.msk [vmem:[#allocation2 + $0x8] sm:$0xff] %vm952, %v950
      %955 = vst.msk [vmem:[#allocation2 + $0x10] sm:$0xff] %vm952, %v951
      %p956 = scmp.eq.s32.totalorder %s20, 2
      // Predicated region
      $region33: #{densenet_mm_forward.41} parent=27 // pred_check
        %p957 = pneg %p956
      $region34: #{densenet_mm_forward.41} parent=27 // pred_check_branch
        %959 = sbr.rel (%p957) target = $region36
      $region35: #{densenet_mm_forward.41} parent=27 // pred_region
        %v960 = vpack.c.bf16 %v950, %v949
        %v961 = vpack.c.bf16 %v951, %v951
        %v964 = vunpack.c.l.b16 %v960
        %v965 = vunpack.c.h.b16 %v960
        %v966 = vunpack.c.l.b16 %v961
        %v967 = vpack.c.b16 %v964, %v964
        %v968 = vpack.c.b16 %v965, %v965
        %v969 = vpack.c.b16 %v966, %v966
        %vm973 = vcmask 60416
        %974 = vst.msk [vmem:[%s213] sm:$0xf] %vm973, %v967
        %975 = vst.msk [vmem:[%s213 + $0x4] sm:$0xf] %vm973, %v968
        %976 = vst.msk [vmem:[%s213 + $0x8] sm:$0xf] %vm973, %v969
      $region36: #{densenet_mm_forward.41} parent=27 // pred_fallthru
        _
      %p977 = scmp.lt.s32.totalorder %s18, 1
      %s978 = scalar_select %p977, %s18, 1
      %p979 = scmp.lt.s32.totalorder %s19, 3
      %s980 = scalar_select %p979, %s19, 3
      %s981 = smul.addr %s980, 3
      %s982 = smul.addr %s978, 12
      %s983 = sadd.s32 %s981, %s982
      %s984 = smul.addr %s983, 4
      %s985 = scalar_lea.vmem %s2, %s984
      // Predicated region
      $region37: #{densenet_mm_forward.41} parent=27 // pred_check
        %p986 = pneg %p108
      $region38: #{densenet_mm_forward.41} parent=27 // pred_check_branch
        %988 = sbr.rel (%p986) target = $region40
      $region39: #{densenet_mm_forward.41} parent=27 // pred_region
        _
      $region40: #{densenet_mm_forward.41} parent=27 // pred_fallthru
        _
    $region28: #{densenet_mm_forward.41} parent=5 // pred_fallthru
      _
    %p989 = scmp.le.s32.totalorder 2, %s8
    // Predicated region
    $region41: #{densenet_mm_forward.41} parent=5 // pred_check
      %p990 = pneg %p989
    $region42: #{densenet_mm_forward.41} parent=5 // pred_check_branch
      %992 = sbr.rel (%p990) target = $region44
    $region43: #{densenet_mm_forward.41} parent=5 // pred_region
      %s993 = ssub.s32 %s8, 2
      // Predicated region
      $region45: #{densenet_mm_forward.41} parent=43 // pred_check
        %p994 = pneg %p114
      $region46: #{densenet_mm_forward.41} parent=43 // pred_check_branch
        %996 = sbr.rel (%p994) target = $region48
      $region47: #{densenet_mm_forward.41} parent=43 // pred_region
        %p997 = scmp.lt.s32.totalorder %s21, 1
        %s998 = scalar_select %p997, %s21, 1
        %p999 = scmp.lt.s32.totalorder %s22, 3
        %s1000 = scalar_select %p999, %s22, 3
        %s1001 = smul.addr %s1000, 3
        %s1002 = smul.addr %s998, 12
        %s1003 = sadd.s32 %s1001, %s1002
        %s1004 = smul.addr %s1003, 4
        %s1005 = scalar_lea.vmem %s2, %s1004
      $region48: #{densenet_mm_forward.41} parent=43 // pred_fallthru
        _
    $region44: #{densenet_mm_forward.41} parent=5 // pred_fallthru
      _
  $region6: #{densenet_mm_forward.41} parent=0 // loop_footer
    %s12 = sadd.s32 1, %s8
  $region7: #{densenet_mm_forward.41} parent=0 // loop_footer_branch
    %7 = sbr.rel target = $region3
  $region8: #{densenet_mm_forward.41} parent=0 // loop_exit
    _

// kernel: densenet_mm_forward.42
$region0: #{densenet_mm_forward.42}
  #allocation0 [shape = 'u32[]', space=smem, size = 0x4, offset = 0x4, fixed_abs, tag = 'smem constant byte address 0x4 - core index']
  #allocation1 [shape = 'u32[144,128]{1,0:T(1,128)}', space=vmem, size = 0x12000, scoped, tag = 'internal scratch']
  %s0 = inlined_call_operand.vmem [shape: bf16[128,24], index: 0, kind: input, shape index: {}]
  %s1 = inlined_call_operand.vmem [shape: f32[1,24], index: 1, kind: input, shape index: {}]
  %s2 = inlined_call_operand.vmem [shape: f32[1,24], index: 2, kind: input, shape index: {}]
  %s3 = inlined_call_operand.vmem [shape: bf16[24,16], index: 3, kind: input, shape index: {}]
  %s4 = inlined_call_operand.vmem [shape: f32[1,16], index: 4, kind: input, shape index: {}]
  %s5 = inlined_call_operand.vmem [shape: f32[1,16], index: 5, kind: input, shape index: {}]
  %s6 = inlined_call_operand.vmem [shape: bf16[128,16], index: 6, kind: output, shape index: {}]
  %s7 = sld [smem:[#allocation0]]
  $region34: #{densenet_mm_forward.42} parent=0
    _
  %s9 = ssub.s32 1, %s7
  %s10 = scalar_select 0, %s9, %s7
  // Predicated region
  $region2: #{densenet_mm_forward.42} parent=0 // pred_check
    _
  $region3: #{densenet_mm_forward.42} parent=0 // pred_check_branch
    %12 = sbr.rel (0) target = $region5
  $region4: #{densenet_mm_forward.42} parent=0 // pred_region
    _
  $region5: #{densenet_mm_forward.42} parent=0 // pred_fallthru
    _
  // Predicated region
  $region6: #{densenet_mm_forward.42} parent=0 // pred_check
    _
  $region7: #{densenet_mm_forward.42} parent=0 // pred_check_branch
    %14 = sbr.rel (0) target = $region9
  $region8: #{densenet_mm_forward.42} parent=0 // pred_region
    _
  $region9: #{densenet_mm_forward.42} parent=0 // pred_fallthru
    _
  // Predicated region
  $region10: #{densenet_mm_forward.42} parent=0 // pred_check
    _
  $region11: #{densenet_mm_forward.42} parent=0 // pred_check_branch
    %16 = sbr.rel (0) target = $region13
  $region12: #{densenet_mm_forward.42} parent=0 // pred_region
    _
  $region13: #{densenet_mm_forward.42} parent=0 // pred_fallthru
    _
  // Predicated region
  $region14: #{densenet_mm_forward.42} parent=0 // pred_check
    _
  $region15: #{densenet_mm_forward.42} parent=0 // pred_check_branch
    %18 = sbr.rel (0) target = $region17
  $region16: #{densenet_mm_forward.42} parent=0 // pred_region
    _
  $region17: #{densenet_mm_forward.42} parent=0 // pred_fallthru
    _
  // Predicated region
  $region18: #{densenet_mm_forward.42} parent=0 // pred_check
    _
  $region19: #{densenet_mm_forward.42} parent=0 // pred_check_branch
    %20 = sbr.rel (0) target = $region21
  $region20: #{densenet_mm_forward.42} parent=0 // pred_region
    _
  $region21: #{densenet_mm_forward.42} parent=0 // pred_fallthru
    _
  // Predicated region
  $region22: #{densenet_mm_forward.42} parent=0 // pred_check
    _
  $region23: #{densenet_mm_forward.42} parent=0 // pred_check_branch
    %22 = sbr.rel (0) target = $region25
  $region24: #{densenet_mm_forward.42} parent=0 // pred_region
    _
  $region25: #{densenet_mm_forward.42} parent=0 // pred_fallthru
    _
  %v24 = vld [vmem:[%s0] sm:$0xf]
  %v25 = vld [vmem:[%s0 + $0x4] sm:$0xf]
  %v26 = vld [vmem:[%s0 + $0x8] sm:$0xf]
  %v27 = vld [vmem:[%s0 + $0xc] sm:$0xf]
  %v28 = vld [vmem:[%s0 + $0x10] sm:$0xf]
  %v29 = vld [vmem:[%s0 + $0x14] sm:$0xf]
  %v30 = vld [vmem:[%s0 + $0x18] sm:$0xf]
  %v31 = vld [vmem:[%s0 + $0x1c] sm:$0xf]
  %v32 = vld [vmem:[%s0 + $0x20] sm:$0xf]
  %v33 = vld [vmem:[%s0 + $0x24] sm:$0xf]
  %v34 = vld [vmem:[%s0 + $0x28] sm:$0xf]
  %v35 = vld [vmem:[%s0 + $0x2c] sm:$0xf]
  %v36 = vld [vmem:[%s0 + $0x30] sm:$0xf]
  %v37 = vld [vmem:[%s0 + $0x34] sm:$0xf]
  %v38 = vld [vmem:[%s0 + $0x38] sm:$0xf]
  %v39 = vld [vmem:[%s0 + $0x3c] sm:$0xf]
  %v40 = vunpack.c.l.bf16 %v24
  %v41 = vunpack.c.l.bf16 %v25
  %v42 = vunpack.c.l.bf16 %v26
  %v43 = vunpack.c.l.bf16 %v27
  %v44 = vunpack.c.l.bf16 %v28
  %v45 = vunpack.c.l.bf16 %v29
  %v46 = vunpack.c.l.bf16 %v30
  %v47 = vunpack.c.l.bf16 %v31
  %v48 = vunpack.c.l.bf16 %v32
  %v49 = vunpack.c.l.bf16 %v33
  %v50 = vunpack.c.l.bf16 %v34
  %v51 = vunpack.c.l.bf16 %v35
  %v52 = vunpack.c.l.bf16 %v36
  %v53 = vunpack.c.l.bf16 %v37
  %v54 = vunpack.c.l.bf16 %v38
  %v55 = vunpack.c.l.bf16 %v39
  %v56 = vld [vmem:[%s1] sm:$0x1]
  %v58 = vlaneseq
  %v59 = vshrl.u32 %v58, 7
  %v60 = vsub.s32 0, %v59
  %v61 = vrot.slane %v56, %v60
  %v63 = vmul.f32 %v40, %v61
  %v64 = vmul.f32 %v41, %v61
  %v65 = vmul.f32 %v42, %v61
  %v66 = vmul.f32 %v43, %v61
  %v67 = vmul.f32 %v44, %v61
  %v68 = vmul.f32 %v45, %v61
  %v69 = vmul.f32 %v46, %v61
  %v70 = vmul.f32 %v47, %v61
  %v71 = vmul.f32 %v48, %v61
  %v72 = vmul.f32 %v49, %v61
  %v73 = vmul.f32 %v50, %v61
  %v74 = vmul.f32 %v51, %v61
  %v75 = vmul.f32 %v52, %v61
  %v76 = vmul.f32 %v53, %v61
  %v77 = vmul.f32 %v54, %v61
  %v78 = vmul.f32 %v55, %v61
  %v79 = vld [vmem:[%s2] sm:$0x1]
  %v81 = vlaneseq
  %v82 = vshrl.u32 %v81, 7
  %v83 = vsub.s32 0, %v82
  %v84 = vrot.slane %v79, %v83
  %v86 = vadd.f32 %v63, %v84
  %v87 = vadd.f32 %v64, %v84
  %v88 = vadd.f32 %v65, %v84
  %v89 = vadd.f32 %v66, %v84
  %v90 = vadd.f32 %v67, %v84
  %v91 = vadd.f32 %v68, %v84
  %v92 = vadd.f32 %v69, %v84
  %v93 = vadd.f32 %v70, %v84
  %v94 = vadd.f32 %v71, %v84
  %v95 = vadd.f32 %v72, %v84
  %v96 = vadd.f32 %v73, %v84
  %v97 = vadd.f32 %v74, %v84
  %v98 = vadd.f32 %v75, %v84
  %v99 = vadd.f32 %v76, %v84
  %v100 = vadd.f32 %v77, %v84
  %v101 = vadd.f32 %v78, %v84
  %v102 = vmax.f32 %v86, 0.0
  %v103 = vmax.f32 %v87, 0.0
  %v104 = vmax.f32 %v88, 0.0
  %v105 = vmax.f32 %v89, 0.0
  %v106 = vmax.f32 %v90, 0.0
  %v107 = vmax.f32 %v91, 0.0
  %v108 = vmax.f32 %v92, 0.0
  %v109 = vmax.f32 %v93, 0.0
  %v110 = vmax.f32 %v94, 0.0
  %v111 = vmax.f32 %v95, 0.0
  %v112 = vmax.f32 %v96, 0.0
  %v113 = vmax.f32 %v97, 0.0
  %v114 = vmax.f32 %v98, 0.0
  %v115 = vmax.f32 %v99, 0.0
  %v116 = vmax.f32 %v100, 0.0
  %v117 = vmax.f32 %v101, 0.0
  %v118 = vpack.c.bf16 %v103, %v102
  %v119 = vpack.c.bf16 %v105, %v104
  %v120 = vpack.c.bf16 %v107, %v106
  %v121 = vpack.c.bf16 %v109, %v108
  %v122 = vpack.c.bf16 %v111, %v110
  %v123 = vpack.c.bf16 %v113, %v112
  %v124 = vpack.c.bf16 %v115, %v114
  %v125 = vpack.c.bf16 %v117, %v116
  %v126 = vld [vmem:[%s3] sm:$0xf]
  %v127 = vld [vmem:[%s3 + $0x4] sm:$0xf]
  %v128 = vld [vmem:[%s3 + $0x8] sm:$0xf]
  %v132 = vunpack.c.l.b16 %v126
  %v133 = vunpack.c.l.b16 %v127
  %v134 = vunpack.c.l.b16 %v128
  %v135 = vpack.c.b16 %v133, %v132
  %v136 = vpack.c.b16 %v134, %v134
  %vm138 = vcmask 195584
  %v140 = vsel %vm138, %v118, 0
  %v143 = vsel %vm138, %v119, 0
  %v146 = vsel %vm138, %v120, 0
  %v149 = vsel %vm138, %v121, 0
  %v152 = vsel %vm138, %v122, 0
  %v155 = vsel %vm138, %v123, 0
  %v158 = vsel %vm138, %v124, 0
  %v161 = vsel %vm138, %v125, 0
  %vm163 = vcmask 1043456
  %v165 = vsel %vm163, %v136, 0
  %167 = vmatprep.subr.bf16.mxu0 0
  %168 = vmatpush1.bf16.msra.mxu0 %v135
  %169 = vmatprep.subr.bf16.mxu0 0
  %170 = vmatpush1.bf16.msra.mxu0 %v165
  %171 = vmatprep.subr.bf16.mxu0 0
  %172 = vmatpush1.bf16.msra.mxu0 0
  %173 = vmatprep.subr.bf16.mxu0 0
  %174 = vmatpush1.bf16.msra.mxu0 0
  %175 = vmatprep.subr.bf16.mxu0 0
  %176 = vmatpush1.bf16.msra.mxu0 0
  %177 = vmatprep.subr.bf16.mxu0 0
  %178 = vmatpush1.bf16.msra.mxu0 0
  %179 = vmatprep.subr.bf16.mxu0 0
  %180 = vmatpush1.bf16.msra.mxu0 0
  %181 = vmatprep.subr.bf16.mxu0 0
  %182 = vmatpush1.bf16.msra.mxu0 0
  %183 = vmatprep.subr.bf16.mxu0 0
  %184 = vmatpush1.bf16.msra.mxu0 0
  %185 = vmatprep.subr.bf16.mxu0 0
  %186 = vmatpush1.bf16.msra.mxu0 0
  %187 = vmatprep.subr.bf16.mxu0 0
  %188 = vmatpush1.bf16.msra.mxu0 0
  %189 = vmatprep.subr.bf16.mxu0 0
  %190 = vmatpush1.bf16.msra.mxu0 0
  %191 = vmatprep.subr.bf16.mxu0 0
  %192 = vmatpush1.bf16.msra.mxu0 0
  %193 = vmatprep.subr.bf16.mxu0 0
  %194 = vmatpush1.bf16.msra.mxu0 0
  %195 = vmatprep.subr.bf16.mxu0 0
  %196 = vmatpush1.bf16.msra.mxu0 0
  %197 = vmatprep.subr.bf16.mxu0 0
  %198 = vmatpush1.bf16.msra.mxu0 0
  %199 = vmatprep.mubr.bf16.mxu0 0
  %200 = vmatmul.mubr.bf16.gmra.mrb[0].mxu0 %v140
  %v201 = vpop.f32.mrb[0].mxu0
  %v202 = vadd.f32 0.0, %v201
  %v203 = vpop.f32.mrb[0].mxu0
  %v204 = vpop.f32.mrb[0].mxu0
  %v205 = vadd.f32 0.0, %v204
  %v206 = vpop.f32.mrb[0].mxu0
  %207 = vmatprep.mubr.bf16.mxu0 0
  %208 = vmatmul.mubr.bf16.gmra.mrb[0].mxu0 %v143
  %v209 = vpop.f32.mrb[0].mxu0
  %v210 = vadd.f32 0.0, %v209
  %v211 = vpop.f32.mrb[0].mxu0
  %v212 = vpop.f32.mrb[0].mxu0
  %v213 = vadd.f32 0.0, %v212
  %v214 = vpop.f32.mrb[0].mxu0
  %215 = vmatprep.mubr.bf16.mxu0 0
  %216 = vmatmul.mubr.bf16.gmra.mrb[0].mxu0 %v146
  %v217 = vpop.f32.mrb[0].mxu0
  %v218 = vadd.f32 0.0, %v217
  %v219 = vpop.f32.mrb[0].mxu0
  %v220 = vpop.f32.mrb[0].mxu0
  %v221 = vadd.f32 0.0, %v220
  %v222 = vpop.f32.mrb[0].mxu0
  %223 = vmatprep.mubr.bf16.mxu0 0
  %224 = vmatmul.mubr.bf16.gmra.mrb[0].mxu0 %v149
  %v225 = vpop.f32.mrb[0].mxu0
  %v226 = vadd.f32 0.0, %v225
  %v227 = vpop.f32.mrb[0].mxu0
  %v228 = vpop.f32.mrb[0].mxu0
  %v229 = vadd.f32 0.0, %v228
  %v230 = vpop.f32.mrb[0].mxu0
  %231 = vmatprep.mubr.bf16.mxu0 0
  %232 = vmatmul.mubr.bf16.gmra.mrb[0].mxu0 %v152
  %v233 = vpop.f32.mrb[0].mxu0
  %v234 = vadd.f32 0.0, %v233
  %v235 = vpop.f32.mrb[0].mxu0
  %v236 = vpop.f32.mrb[0].mxu0
  %v237 = vadd.f32 0.0, %v236
  %v238 = vpop.f32.mrb[0].mxu0
  %239 = vmatprep.mubr.bf16.mxu0 0
  %240 = vmatmul.mubr.bf16.gmra.mrb[0].mxu0 %v155
  %v241 = vpop.f32.mrb[0].mxu0
  %v242 = vadd.f32 0.0, %v241
  %v243 = vpop.f32.mrb[0].mxu0
  %v244 = vpop.f32.mrb[0].mxu0
  %v245 = vadd.f32 0.0, %v244
  %v246 = vpop.f32.mrb[0].mxu0
  %247 = vmatprep.mubr.bf16.mxu0 0
  %248 = vmatmul.mubr.bf16.gmra.mrb[0].mxu0 %v158
  %v249 = vpop.f32.mrb[0].mxu0
  %v250 = vadd.f32 0.0, %v249
  %v251 = vpop.f32.mrb[0].mxu0
  %v252 = vpop.f32.mrb[0].mxu0
  %v253 = vadd.f32 0.0, %v252
  %v254 = vpop.f32.mrb[0].mxu0
  %255 = vmatprep.mubr.bf16.mxu0 0
  %256 = vmatmul.mubr.bf16.gmra.mrb[0].mxu0 %v161
  %v257 = vpop.f32.mrb[0].mxu0
  %v258 = vadd.f32 0.0, %v257
  %v259 = vpop.f32.mrb[0].mxu0
  %v260 = vpop.f32.mrb[0].mxu0
  %v261 = vadd.f32 0.0, %v260
  %v262 = vpop.f32.mrb[0].mxu0
  %263 = vdwg.mxu0
  %v264 = vld [vmem:[%s4] sm:$0x1]
  %v266 = vlaneseq
  %v267 = vshrl.u32 %v266, 7
  %v268 = vsub.s32 0, %v267
  %v269 = vrot.slane %v264, %v268
  %v271 = vmul.f32 %v202, %v269
  %v272 = vmul.f32 %v205, %v269
  %v273 = vmul.f32 %v210, %v269
  %v274 = vmul.f32 %v213, %v269
  %v275 = vmul.f32 %v218, %v269
  %v276 = vmul.f32 %v221, %v269
  %v277 = vmul.f32 %v226, %v269
  %v278 = vmul.f32 %v229, %v269
  %v279 = vmul.f32 %v234, %v269
  %v280 = vmul.f32 %v237, %v269
  %v281 = vmul.f32 %v242, %v269
  %v282 = vmul.f32 %v245, %v269
  %v283 = vmul.f32 %v250, %v269
  %v284 = vmul.f32 %v253, %v269
  %v285 = vmul.f32 %v258, %v269
  %v286 = vmul.f32 %v261, %v269
  %v287 = vld [vmem:[%s5] sm:$0x1]
  %v289 = vlaneseq
  %v290 = vshrl.u32 %v289, 7
  %v291 = vsub.s32 0, %v290
  %v292 = vrot.slane %v287, %v291
  %v294 = vadd.f32 %v271, %v292
  %v295 = vadd.f32 %v272, %v292
  %v296 = vadd.f32 %v273, %v292
  %v297 = vadd.f32 %v274, %v292
  %v298 = vadd.f32 %v275, %v292
  %v299 = vadd.f32 %v276, %v292
  %v300 = vadd.f32 %v277, %v292
  %v301 = vadd.f32 %v278, %v292
  %v302 = vadd.f32 %v279, %v292
  %v303 = vadd.f32 %v280, %v292
  %v304 = vadd.f32 %v281, %v292
  %v305 = vadd.f32 %v282, %v292
  %v306 = vadd.f32 %v283, %v292
  %v307 = vadd.f32 %v284, %v292
  %v308 = vadd.f32 %v285, %v292
  %v309 = vadd.f32 %v286, %v292
  %v310 = vmax.f32 %v294, 0.0
  %v311 = vmax.f32 %v295, 0.0
  %v312 = vmax.f32 %v296, 0.0
  %v313 = vmax.f32 %v297, 0.0
  %v314 = vmax.f32 %v298, 0.0
  %v315 = vmax.f32 %v299, 0.0
  %v316 = vmax.f32 %v300, 0.0
  %v317 = vmax.f32 %v301, 0.0
  %v318 = vmax.f32 %v302, 0.0
  %v319 = vmax.f32 %v303, 0.0
  %v320 = vmax.f32 %v304, 0.0
  %v321 = vmax.f32 %v305, 0.0
  %v322 = vmax.f32 %v306, 0.0
  %v323 = vmax.f32 %v307, 0.0
  %v324 = vmax.f32 %v308, 0.0
  %v325 = vmax.f32 %v309, 0.0
  %v326 = vpack.c.bf16 %v311, %v310
  %v327 = vpack.c.bf16 %v313, %v312
  %v328 = vpack.c.bf16 %v315, %v314
  %v329 = vpack.c.bf16 %v317, %v316
  %v330 = vpack.c.bf16 %v319, %v318
  %v331 = vpack.c.bf16 %v321, %v320
  %v332 = vpack.c.bf16 %v323, %v322
  %v333 = vpack.c.bf16 %v325, %v324
  %v342 = vunpack.c.l.b16 %v326
  %v343 = vunpack.c.h.b16 %v326
  %v344 = vunpack.c.l.b16 %v327
  %v345 = vunpack.c.h.b16 %v327
  %v346 = vunpack.c.l.b16 %v328
  %v347 = vunpack.c.h.b16 %v328
  %v348 = vunpack.c.l.b16 %v329
  %v349 = vunpack.c.h.b16 %v329
  %v350 = vunpack.c.l.b16 %v330
  %v351 = vunpack.c.h.b16 %v330
  %v352 = vunpack.c.l.b16 %v331
  %v353 = vunpack.c.h.b16 %v331
  %v354 = vunpack.c.l.b16 %v332
  %v355 = vunpack.c.h.b16 %v332
  %v356 = vunpack.c.l.b16 %v333
  %v357 = vunpack.c.h.b16 %v333
  %v358 = vpack.c.b16 %v342, %v342
  %v359 = vpack.c.b16 %v343, %v343
  %v360 = vpack.c.b16 %v344, %v344
  %v361 = vpack.c.b16 %v345, %v345
  %v362 = vpack.c.b16 %v346, %v346
  %v363 = vpack.c.b16 %v347, %v347
  %v364 = vpack.c.b16 %v348, %v348
  %v365 = vpack.c.b16 %v349, %v349
  %v366 = vpack.c.b16 %v350, %v350
  %v367 = vpack.c.b16 %v351, %v351
  %v368 = vpack.c.b16 %v352, %v352
  %v369 = vpack.c.b16 %v353, %v353
  %v370 = vpack.c.b16 %v354, %v354
  %v371 = vpack.c.b16 %v355, %v355
  %v372 = vpack.c.b16 %v356, %v356
  %v373 = vpack.c.b16 %v357, %v357
  %vm390 = vcmask 125952
  %391 = vst.msk [vmem:[%s6] sm:$0xf] %vm390, %v358
  %392 = vst.msk [vmem:[%s6 + $0x4] sm:$0xf] %vm390, %v359
  %393 = vst.msk [vmem:[%s6 + $0x8] sm:$0xf] %vm390, %v360
  %394 = vst.msk [vmem:[%s6 + $0xc] sm:$0xf] %vm390, %v361
  %395 = vst.msk [vmem:[%s6 + $0x10] sm:$0xf] %vm390, %v362
  %396 = vst.msk [vmem:[%s6 + $0x14] sm:$0xf] %vm390, %v363
  %397 = vst.msk [vmem:[%s6 + $0x18] sm:$0xf] %vm390, %v364
  %398 = vst.msk [vmem:[%s6 + $0x1c] sm:$0xf] %vm390, %v365
  %399 = vst.msk [vmem:[%s6 + $0x20] sm:$0xf] %vm390, %v366
  %400 = vst.msk [vmem:[%s6 + $0x24] sm:$0xf] %vm390, %v367
  %401 = vst.msk [vmem:[%s6 + $0x28] sm:$0xf] %vm390, %v368
  %402 = vst.msk [vmem:[%s6 + $0x2c] sm:$0xf] %vm390, %v369
  %403 = vst.msk [vmem:[%s6 + $0x30] sm:$0xf] %vm390, %v370
  %404 = vst.msk [vmem:[%s6 + $0x34] sm:$0xf] %vm390, %v371
  %405 = vst.msk [vmem:[%s6 + $0x38] sm:$0xf] %vm390, %v372
  %406 = vst.msk [vmem:[%s6 + $0x3c] sm:$0xf] %vm390, %v373
  // Predicated region
  $region26: #{densenet_mm_forward.42} parent=0 // pred_check
    _
  $region27: #{densenet_mm_forward.42} parent=0 // pred_check_branch
    %408 = sbr.rel (0) target = $region29
  $region28: #{densenet_mm_forward.42} parent=0 // pred_region
    _
  $region29: #{densenet_mm_forward.42} parent=0 // pred_fallthru
    _
  // Predicated region
  $region30: #{densenet_mm_forward.42} parent=0 // pred_check
    _
  $region31: #{densenet_mm_forward.42} parent=0 // pred_check_branch
    %410 = sbr.rel (0) target = $region33
  $region32: #{densenet_mm_forward.42} parent=0 // pred_region
    _
  $region33: #{densenet_mm_forward.42} parent=0 // pred_fallthru
    _

// kernel: densenet_mm_forward.44
$region0: #{densenet_mm_forward.44}
  #allocation0 [shape = 'u32[]', space=smem, size = 0x4, offset = 0x4, fixed_abs, tag = 'smem constant byte address 0x4 - core index']
  #allocation1 [shape = 'u32[144,128]{1,0:T(1,128)}', space=vmem, size = 0x12000, scoped, tag = 'internal scratch']
  %s0 = inlined_call_operand.vmem [shape: bf16[128,32], index: 0, kind: input, shape index: {}]
  %s1 = inlined_call_operand.vmem [shape: f32[1,32], index: 1, kind: input, shape index: {}]
  %s2 = inlined_call_operand.vmem [shape: f32[1,32], index: 2, kind: input, shape index: {}]
  %s3 = inlined_call_operand.vmem [shape: bf16[32,16], index: 3, kind: input, shape index: {}]
  %s4 = inlined_call_operand.vmem [shape: f32[1,16], index: 4, kind: input, shape index: {}]
  %s5 = inlined_call_operand.vmem [shape: f32[1,16], index: 5, kind: input, shape index: {}]
  %s6 = inlined_call_operand.vmem [shape: bf16[128,16], index: 6, kind: output, shape index: {}]
  %s7 = sld [smem:[#allocation0]]
  $region34: #{densenet_mm_forward.44} parent=0
    _
  %s9 = ssub.s32 1, %s7
  %s10 = scalar_select 0, %s9, %s7
  // Predicated region
  $region2: #{densenet_mm_forward.44} parent=0 // pred_check
    _
  $region3: #{densenet_mm_forward.44} parent=0 // pred_check_branch
    %12 = sbr.rel (0) target = $region5
  $region4: #{densenet_mm_forward.44} parent=0 // pred_region
    _
  $region5: #{densenet_mm_forward.44} parent=0 // pred_fallthru
    _
  // Predicated region
  $region6: #{densenet_mm_forward.44} parent=0 // pred_check
    _
  $region7: #{densenet_mm_forward.44} parent=0 // pred_check_branch
    %14 = sbr.rel (0) target = $region9
  $region8: #{densenet_mm_forward.44} parent=0 // pred_region
    _
  $region9: #{densenet_mm_forward.44} parent=0 // pred_fallthru
    _
  // Predicated region
  $region10: #{densenet_mm_forward.44} parent=0 // pred_check
    _
  $region11: #{densenet_mm_forward.44} parent=0 // pred_check_branch
    %16 = sbr.rel (0) target = $region13
  $region12: #{densenet_mm_forward.44} parent=0 // pred_region
    _
  $region13: #{densenet_mm_forward.44} parent=0 // pred_fallthru
    _
  // Predicated region
  $region14: #{densenet_mm_forward.44} parent=0 // pred_check
    _
  $region15: #{densenet_mm_forward.44} parent=0 // pred_check_branch
    %18 = sbr.rel (0) target = $region17
  $region16: #{densenet_mm_forward.44} parent=0 // pred_region
    _
  $region17: #{densenet_mm_forward.44} parent=0 // pred_fallthru
    _
  // Predicated region
  $region18: #{densenet_mm_forward.44} parent=0 // pred_check
    _
  $region19: #{densenet_mm_forward.44} parent=0 // pred_check_branch
    %20 = sbr.rel (0) target = $region21
  $region20: #{densenet_mm_forward.44} parent=0 // pred_region
    _
  $region21: #{densenet_mm_forward.44} parent=0 // pred_fallthru
    _
  // Predicated region
  $region22: #{densenet_mm_forward.44} parent=0 // pred_check
    _
  $region23: #{densenet_mm_forward.44} parent=0 // pred_check_branch
    %22 = sbr.rel (0) target = $region25
  $region24: #{densenet_mm_forward.44} parent=0 // pred_region
    _
  $region25: #{densenet_mm_forward.44} parent=0 // pred_fallthru
    _
  %v24 = vld [vmem:[%s0] sm:$0xf]
  %v25 = vld [vmem:[%s0 + $0x4] sm:$0xf]
  %v26 = vld [vmem:[%s0 + $0x8] sm:$0xf]
  %v27 = vld [vmem:[%s0 + $0xc] sm:$0xf]
  %v28 = vld [vmem:[%s0 + $0x10] sm:$0xf]
  %v29 = vld [vmem:[%s0 + $0x14] sm:$0xf]
  %v30 = vld [vmem:[%s0 + $0x18] sm:$0xf]
  %v31 = vld [vmem:[%s0 + $0x1c] sm:$0xf]
  %v32 = vld [vmem:[%s0 + $0x20] sm:$0xf]
  %v33 = vld [vmem:[%s0 + $0x24] sm:$0xf]
  %v34 = vld [vmem:[%s0 + $0x28] sm:$0xf]
  %v35 = vld [vmem:[%s0 + $0x2c] sm:$0xf]
  %v36 = vld [vmem:[%s0 + $0x30] sm:$0xf]
  %v37 = vld [vmem:[%s0 + $0x34] sm:$0xf]
  %v38 = vld [vmem:[%s0 + $0x38] sm:$0xf]
  %v39 = vld [vmem:[%s0 + $0x3c] sm:$0xf]
  %v40 = vunpack.c.l.bf16 %v24
  %v41 = vunpack.c.l.bf16 %v25
  %v42 = vunpack.c.l.bf16 %v26
  %v43 = vunpack.c.l.bf16 %v27
  %v44 = vunpack.c.l.bf16 %v28
  %v45 = vunpack.c.l.bf16 %v29
  %v46 = vunpack.c.l.bf16 %v30
  %v47 = vunpack.c.l.bf16 %v31
  %v48 = vunpack.c.l.bf16 %v32
  %v49 = vunpack.c.l.bf16 %v33
  %v50 = vunpack.c.l.bf16 %v34
  %v51 = vunpack.c.l.bf16 %v35
  %v52 = vunpack.c.l.bf16 %v36
  %v53 = vunpack.c.l.bf16 %v37
  %v54 = vunpack.c.l.bf16 %v38
  %v55 = vunpack.c.l.bf16 %v39
  %v56 = vld [vmem:[%s1] sm:$0x1]
  %v58 = vlaneseq
  %v59 = vshrl.u32 %v58, 7
  %v60 = vsub.s32 0, %v59
  %v61 = vrot.slane %v56, %v60
  %v63 = vmul.f32 %v40, %v61
  %v64 = vmul.f32 %v41, %v61
  %v65 = vmul.f32 %v42, %v61
  %v66 = vmul.f32 %v43, %v61
  %v67 = vmul.f32 %v44, %v61
  %v68 = vmul.f32 %v45, %v61
  %v69 = vmul.f32 %v46, %v61
  %v70 = vmul.f32 %v47, %v61
  %v71 = vmul.f32 %v48, %v61
  %v72 = vmul.f32 %v49, %v61
  %v73 = vmul.f32 %v50, %v61
  %v74 = vmul.f32 %v51, %v61
  %v75 = vmul.f32 %v52, %v61
  %v76 = vmul.f32 %v53, %v61
  %v77 = vmul.f32 %v54, %v61
  %v78 = vmul.f32 %v55, %v61
  %v79 = vld [vmem:[%s2] sm:$0x1]
  %v81 = vlaneseq
  %v82 = vshrl.u32 %v81, 7
  %v83 = vsub.s32 0, %v82
  %v84 = vrot.slane %v79, %v83
  %v86 = vadd.f32 %v63, %v84
  %v87 = vadd.f32 %v64, %v84
  %v88 = vadd.f32 %v65, %v84
  %v89 = vadd.f32 %v66, %v84
  %v90 = vadd.f32 %v67, %v84
  %v91 = vadd.f32 %v68, %v84
  %v92 = vadd.f32 %v69, %v84
  %v93 = vadd.f32 %v70, %v84
  %v94 = vadd.f32 %v71, %v84
  %v95 = vadd.f32 %v72, %v84
  %v96 = vadd.f32 %v73, %v84
  %v97 = vadd.f32 %v74, %v84
  %v98 = vadd.f32 %v75, %v84
  %v99 = vadd.f32 %v76, %v84
  %v100 = vadd.f32 %v77, %v84
  %v101 = vadd.f32 %v78, %v84
  %v102 = vmax.f32 %v86, 0.0
  %v103 = vmax.f32 %v87, 0.0
  %v104 = vmax.f32 %v88, 0.0
  %v105 = vmax.f32 %v89, 0.0
  %v106 = vmax.f32 %v90, 0.0
  %v107 = vmax.f32 %v91, 0.0
  %v108 = vmax.f32 %v92, 0.0
  %v109 = vmax.f32 %v93, 0.0
  %v110 = vmax.f32 %v94, 0.0
  %v111 = vmax.f32 %v95, 0.0
  %v112 = vmax.f32 %v96, 0.0
  %v113 = vmax.f32 %v97, 0.0
  %v114 = vmax.f32 %v98, 0.0
  %v115 = vmax.f32 %v99, 0.0
  %v116 = vmax.f32 %v100, 0.0
  %v117 = vmax.f32 %v101, 0.0
  %v118 = vpack.c.bf16 %v103, %v102
  %v119 = vpack.c.bf16 %v105, %v104
  %v120 = vpack.c.bf16 %v107, %v106
  %v121 = vpack.c.bf16 %v109, %v108
  %v122 = vpack.c.bf16 %v111, %v110
  %v123 = vpack.c.bf16 %v113, %v112
  %v124 = vpack.c.bf16 %v115, %v114
  %v125 = vpack.c.bf16 %v117, %v116
  %v126 = vld [vmem:[%s3] sm:$0xf]
  %v127 = vld [vmem:[%s3 + $0x4] sm:$0xf]
  %v128 = vld [vmem:[%s3 + $0x8] sm:$0xf]
  %v129 = vld [vmem:[%s3 + $0xc] sm:$0xf]
  %v134 = vunpack.c.l.b16 %v126
  %v135 = vunpack.c.l.b16 %v127
  %v136 = vunpack.c.l.b16 %v128
  %v137 = vunpack.c.l.b16 %v129
  %v138 = vpack.c.b16 %v135, %v134
  %v139 = vpack.c.b16 %v137, %v136
  %vm142 = vcmask 261120
  %v144 = vsel %vm142, %v118, 0
  %v147 = vsel %vm142, %v119, 0
  %v150 = vsel %vm142, %v120, 0
  %v153 = vsel %vm142, %v121, 0
  %v156 = vsel %vm142, %v122, 0
  %v159 = vsel %vm142, %v123, 0
  %v162 = vsel %vm142, %v124, 0
  %v165 = vsel %vm142, %v125, 0
  %167 = vmatprep.subr.bf16.mxu0 0
  %168 = vmatpush1.bf16.msra.mxu0 %v138
  %169 = vmatprep.subr.bf16.mxu0 0
  %170 = vmatpush1.bf16.msra.mxu0 %v139
  %171 = vmatprep.subr.bf16.mxu0 0
  %172 = vmatpush1.bf16.msra.mxu0 0
  %173 = vmatprep.subr.bf16.mxu0 0
  %174 = vmatpush1.bf16.msra.mxu0 0
  %175 = vmatprep.subr.bf16.mxu0 0
  %176 = vmatpush1.bf16.msra.mxu0 0
  %177 = vmatprep.subr.bf16.mxu0 0
  %178 = vmatpush1.bf16.msra.mxu0 0
  %179 = vmatprep.subr.bf16.mxu0 0
  %180 = vmatpush1.bf16.msra.mxu0 0
  %181 = vmatprep.subr.bf16.mxu0 0
  %182 = vmatpush1.bf16.msra.mxu0 0
  %183 = vmatprep.subr.bf16.mxu0 0
  %184 = vmatpush1.bf16.msra.mxu0 0
  %185 = vmatprep.subr.bf16.mxu0 0
  %186 = vmatpush1.bf16.msra.mxu0 0
  %187 = vmatprep.subr.bf16.mxu0 0
  %188 = vmatpush1.bf16.msra.mxu0 0
  %189 = vmatprep.subr.bf16.mxu0 0
  %190 = vmatpush1.bf16.msra.mxu0 0
  %191 = vmatprep.subr.bf16.mxu0 0
  %192 = vmatpush1.bf16.msra.mxu0 0
  %193 = vmatprep.subr.bf16.mxu0 0
  %194 = vmatpush1.bf16.msra.mxu0 0
  %195 = vmatprep.subr.bf16.mxu0 0
  %196 = vmatpush1.bf16.msra.mxu0 0
  %197 = vmatprep.subr.bf16.mxu0 0
  %198 = vmatpush1.bf16.msra.mxu0 0
  %199 = vmatprep.mubr.bf16.mxu0 0
  %200 = vmatmul.mubr.bf16.gmra.mrb[0].mxu0 %v144
  %v201 = vpop.f32.mrb[0].mxu0
  %v202 = vadd.f32 0.0, %v201
  %v203 = vpop.f32.mrb[0].mxu0
  %v204 = vpop.f32.mrb[0].mxu0
  %v205 = vadd.f32 0.0, %v204
  %v206 = vpop.f32.mrb[0].mxu0
  %207 = vmatprep.mubr.bf16.mxu0 0
  %208 = vmatmul.mubr.bf16.gmra.mrb[0].mxu0 %v147
  %v209 = vpop.f32.mrb[0].mxu0
  %v210 = vadd.f32 0.0, %v209
  %v211 = vpop.f32.mrb[0].mxu0
  %v212 = vpop.f32.mrb[0].mxu0
  %v213 = vadd.f32 0.0, %v212
  %v214 = vpop.f32.mrb[0].mxu0
  %215 = vmatprep.mubr.bf16.mxu0 0
  %216 = vmatmul.mubr.bf16.gmra.mrb[0].mxu0 %v150
  %v217 = vpop.f32.mrb[0].mxu0
  %v218 = vadd.f32 0.0, %v217
  %v219 = vpop.f32.mrb[0].mxu0
  %v220 = vpop.f32.mrb[0].mxu0
  %v221 = vadd.f32 0.0, %v220
  %v222 = vpop.f32.mrb[0].mxu0
  %223 = vmatprep.mubr.bf16.mxu0 0
  %224 = vmatmul.mubr.bf16.gmra.mrb[0].mxu0 %v153
  %v225 = vpop.f32.mrb[0].mxu0
  %v226 = vadd.f32 0.0, %v225
  %v227 = vpop.f32.mrb[0].mxu0
  %v228 = vpop.f32.mrb[0].mxu0
  %v229 = vadd.f32 0.0, %v228
  %v230 = vpop.f32.mrb[0].mxu0
  %231 = vmatprep.mubr.bf16.mxu0 0
  %232 = vmatmul.mubr.bf16.gmra.mrb[0].mxu0 %v156
  %v233 = vpop.f32.mrb[0].mxu0
  %v234 = vadd.f32 0.0, %v233
  %v235 = vpop.f32.mrb[0].mxu0
  %v236 = vpop.f32.mrb[0].mxu0
  %v237 = vadd.f32 0.0, %v236
  %v238 = vpop.f32.mrb[0].mxu0
  %239 = vmatprep.mubr.bf16.mxu0 0
  %240 = vmatmul.mubr.bf16.gmra.mrb[0].mxu0 %v159
  %v241 = vpop.f32.mrb[0].mxu0
  %v242 = vadd.f32 0.0, %v241
  %v243 = vpop.f32.mrb[0].mxu0
  %v244 = vpop.f32.mrb[0].mxu0
  %v245 = vadd.f32 0.0, %v244
  %v246 = vpop.f32.mrb[0].mxu0
  %247 = vmatprep.mubr.bf16.mxu0 0
  %248 = vmatmul.mubr.bf16.gmra.mrb[0].mxu0 %v162
  %v249 = vpop.f32.mrb[0].mxu0
  %v250 = vadd.f32 0.0, %v249
  %v251 = vpop.f32.mrb[0].mxu0
  %v252 = vpop.f32.mrb[0].mxu0
  %v253 = vadd.f32 0.0, %v252
  %v254 = vpop.f32.mrb[0].mxu0
  %255 = vmatprep.mubr.bf16.mxu0 0
  %256 = vmatmul.mubr.bf16.gmra.mrb[0].mxu0 %v165
  %v257 = vpop.f32.mrb[0].mxu0
  %v258 = vadd.f32 0.0, %v257
  %v259 = vpop.f32.mrb[0].mxu0
  %v260 = vpop.f32.mrb[0].mxu0
  %v261 = vadd.f32 0.0, %v260
  %v262 = vpop.f32.mrb[0].mxu0
  %263 = vdwg.mxu0
  %v264 = vpack.c.bf16 %v205, %v202
  %v265 = vpack.c.bf16 %v213, %v210
  %v266 = vpack.c.bf16 %v221, %v218
  %v267 = vpack.c.bf16 %v229, %v226
  %v268 = vpack.c.bf16 %v237, %v234
  %v269 = vpack.c.bf16 %v245, %v242
  %v270 = vpack.c.bf16 %v253, %v250
  %v271 = vpack.c.bf16 %v261, %v258
  %v280 = vunpack.c.l.b16 %v264
  %v281 = vunpack.c.h.b16 %v264
  %v282 = vunpack.c.l.b16 %v265
  %v283 = vunpack.c.h.b16 %v265
  %v284 = vunpack.c.l.b16 %v266
  %v285 = vunpack.c.h.b16 %v266
  %v286 = vunpack.c.l.b16 %v267
  %v287 = vunpack.c.h.b16 %v267
  %v288 = vunpack.c.l.b16 %v268
  %v289 = vunpack.c.h.b16 %v268
  %v290 = vunpack.c.l.b16 %v269
  %v291 = vunpack.c.h.b16 %v269
  %v292 = vunpack.c.l.b16 %v270
  %v293 = vunpack.c.h.b16 %v270
  %v294 = vunpack.c.l.b16 %v271
  %v295 = vunpack.c.h.b16 %v271
  %v296 = vpack.c.b16 %v280, %v280
  %v297 = vpack.c.b16 %v281, %v281
  %v298 = vpack.c.b16 %v282, %v282
  %v299 = vpack.c.b16 %v283, %v283
  %v300 = vpack.c.b16 %v284, %v284
  %v301 = vpack.c.b16 %v285, %v285
  %v302 = vpack.c.b16 %v286, %v286
  %v303 = vpack.c.b16 %v287, %v287
  %v304 = vpack.c.b16 %v288, %v288
  %v305 = vpack.c.b16 %v289, %v289
  %v306 = vpack.c.b16 %v290, %v290
  %v307 = vpack.c.b16 %v291, %v291
  %v308 = vpack.c.b16 %v292, %v292
  %v309 = vpack.c.b16 %v293, %v293
  %v310 = vpack.c.b16 %v294, %v294
  %v311 = vpack.c.b16 %v295, %v295
  %vm328 = vcmask 125952
  %329 = vst.msk [vmem:[%s6] sm:$0xf] %vm328, %v296
  %330 = vst.msk [vmem:[%s6 + $0x4] sm:$0xf] %vm328, %v297
  %331 = vst.msk [vmem:[%s6 + $0x8] sm:$0xf] %vm328, %v298
  %332 = vst.msk [vmem:[%s6 + $0xc] sm:$0xf] %vm328, %v299
  %333 = vst.msk [vmem:[%s6 + $0x10] sm:$0xf] %vm328, %v300
  %334 = vst.msk [vmem:[%s6 + $0x14] sm:$0xf] %vm328, %v301
  %335 = vst.msk [vmem:[%s6 + $0x18] sm:$0xf] %vm328, %v302
  %336 = vst.msk [vmem:[%s6 + $0x1c] sm:$0xf] %vm328, %v303
  %337 = vst.msk [vmem:[%s6 + $0x20] sm:$0xf] %vm328, %v304
  %338 = vst.msk [vmem:[%s6 + $0x24] sm:$0xf] %vm328, %v305
  %339 = vst.msk [vmem:[%s6 + $0x28] sm:$0xf] %vm328, %v306
  %340 = vst.msk [vmem:[%s6 + $0x2c] sm:$0xf] %vm328, %v307
  %341 = vst.msk [vmem:[%s6 + $0x30] sm:$0xf] %vm328, %v308
  %342 = vst.msk [vmem:[%s6 + $0x34] sm:$0xf] %vm328, %v309
  %343 = vst.msk [vmem:[%s6 + $0x38] sm:$0xf] %vm328, %v310
  %344 = vst.msk [vmem:[%s6 + $0x3c] sm:$0xf] %vm328, %v311
  // Predicated region
  $region26: #{densenet_mm_forward.44} parent=0 // pred_check
    _
  $region27: #{densenet_mm_forward.44} parent=0 // pred_check_branch
    %346 = sbr.rel (0) target = $region29
  $region28: #{densenet_mm_forward.44} parent=0 // pred_region
    _
  $region29: #{densenet_mm_forward.44} parent=0 // pred_fallthru
    _
  // Predicated region
  $region30: #{densenet_mm_forward.44} parent=0 // pred_check
    _
  $region31: #{densenet_mm_forward.44} parent=0 // pred_check_branch
    %348 = sbr.rel (0) target = $region33
  $region32: #{densenet_mm_forward.44} parent=0 // pred_region
    _
  $region33: #{densenet_mm_forward.44} parent=0 // pred_fallthru
    _

// kernel: densenet_mm_forward.46
$region0: #{densenet_mm_forward.46}
  #allocation0 [shape = 'u32[]', space=smem, size = 0x4, offset = 0x4, fixed_abs, tag = 'smem constant byte address 0x4 - core index']
  #allocation1 [shape = 'u32[144,128]{1,0:T(1,128)}', space=vmem, size = 0x12000, scoped, tag = 'internal scratch']
  %s0 = inlined_call_operand.vmem [shape: bf16[2,32,16], index: 0, kind: input, shape index: {}]
  %s1 = inlined_call_operand.vmem [shape: bf16[32,16], index: 1, kind: output, shape index: {}]
  %s2 = sld [smem:[#allocation0]]
  $region14: #{densenet_mm_forward.46} parent=0
    _
  %s4 = ssub.s32 1, %s2
  %s5 = scalar_select 0, %s4, %s2
  // Predicated region
  $region2: #{densenet_mm_forward.46} parent=0 // pred_check
    _
  $region3: #{densenet_mm_forward.46} parent=0 // pred_check_branch
    %7 = sbr.rel (0) target = $region5
  $region4: #{densenet_mm_forward.46} parent=0 // pred_region
    _
  $region5: #{densenet_mm_forward.46} parent=0 // pred_fallthru
    _
  %v8 = vld [vmem:[%s0] sm:$0xf]
  %v9 = vld [vmem:[%s0 + $0x4] sm:$0xf]
  %v10 = vld [vmem:[%s0 + $0x8] sm:$0xf]
  %v11 = vld [vmem:[%s0 + $0xc] sm:$0xf]
  %v12 = vld [vmem:[%s0 + $0x10] sm:$0xf]
  %v13 = vld [vmem:[%s0 + $0x14] sm:$0xf]
  %v14 = vld [vmem:[%s0 + $0x18] sm:$0xf]
  %v15 = vld [vmem:[%s0 + $0x1c] sm:$0xf]
  %v16 = vunpack.c.l.bf16 %v8
  %v17 = vunpack.c.l.bf16 %v9
  %v18 = vunpack.c.l.bf16 %v10
  %v19 = vunpack.c.l.bf16 %v11
  %v20 = vunpack.c.l.bf16 %v12
  %v21 = vunpack.c.l.bf16 %v13
  %v22 = vunpack.c.l.bf16 %v14
  %v23 = vunpack.c.l.bf16 %v15
  %vm24 = vcmask 130048
  %v25 = vsel %vm24, %v16, 0.0
  %v26 = vsel %vm24, %v20, 0.0
  %v27 = vadd.f32 %v25, %v26
  %v28 = vsel %vm24, %v17, 0.0
  %v29 = vsel %vm24, %v21, 0.0
  %v30 = vadd.f32 %v28, %v29
  %v31 = vsel %vm24, %v18, 0.0
  %v32 = vsel %vm24, %v22, 0.0
  %v33 = vadd.f32 %v31, %v32
  %v34 = vsel %vm24, %v19, 0.0
  %v35 = vsel %vm24, %v23, 0.0
  %v36 = vadd.f32 %v34, %v35
  %v37 = vrcp.pop 2.0
  %v38 = vmul.f32 %v27, %v37
  %v39 = vmul.f32 %v30, %v37
  %v40 = vmul.f32 %v33, %v37
  %v41 = vmul.f32 %v36, %v37
  %v42 = vpack.c.bf16 %v39, %v38
  %v43 = vpack.c.bf16 %v41, %v40
  %v46 = vunpack.c.l.b16 %v42
  %v47 = vunpack.c.h.b16 %v42
  %v48 = vunpack.c.l.b16 %v43
  %v49 = vunpack.c.h.b16 %v43
  %v50 = vpack.c.b16 %v46, %v46
  %v51 = vpack.c.b16 %v47, %v47
  %v52 = vpack.c.b16 %v48, %v48
  %v53 = vpack.c.b16 %v49, %v49
  %vm58 = vcmask 125952
  %59 = vst.msk [vmem:[%s1] sm:$0xf] %vm58, %v50
  %60 = vst.msk [vmem:[%s1 + $0x4] sm:$0xf] %vm58, %v51
  %61 = vst.msk [vmem:[%s1 + $0x8] sm:$0xf] %vm58, %v52
  %62 = vst.msk [vmem:[%s1 + $0xc] sm:$0xf] %vm58, %v53
  // Predicated region
  $region6: #{densenet_mm_forward.46} parent=0 // pred_check
    _
  $region7: #{densenet_mm_forward.46} parent=0 // pred_check_branch
    %64 = sbr.rel (0) target = $region9
  $region8: #{densenet_mm_forward.46} parent=0 // pred_region
    _
  $region9: #{densenet_mm_forward.46} parent=0 // pred_fallthru
    _
  // Predicated region
  $region10: #{densenet_mm_forward.46} parent=0 // pred_check
    _
  $region11: #{densenet_mm_forward.46} parent=0 // pred_check_branch
    %66 = sbr.rel (0) target = $region13
  $region12: #{densenet_mm_forward.46} parent=0 // pred_region
    _
  $region13: #{densenet_mm_forward.46} parent=0 // pred_fallthru
    _

// kernel: densenet_mm_forward.45
$region0: #{densenet_mm_forward.45}
  #allocation0 [shape = 'u32[]', space=smem, size = 0x4, offset = 0x4, fixed_abs, tag = 'smem constant byte address 0x4 - core index']
  #allocation1 [shape = 'u32[144,128]{1,0:T(1,128)}', space=vmem, size = 0x12000, scoped, tag = 'internal scratch']
  %s0 = inlined_call_operand.vmem [shape: bf16[2,64,16], index: 0, kind: input, shape index: {}]
  %s1 = inlined_call_operand.vmem [shape: bf16[64,16], index: 1, kind: output, shape index: {}]
  %s2 = sld [smem:[#allocation0]]
  $region14: #{densenet_mm_forward.45} parent=0
    _
  %s4 = ssub.s32 1, %s2
  %s5 = scalar_select 0, %s4, %s2
  // Predicated region
  $region2: #{densenet_mm_forward.45} parent=0 // pred_check
    _
  $region3: #{densenet_mm_forward.45} parent=0 // pred_check_branch
    %7 = sbr.rel (0) target = $region5
  $region4: #{densenet_mm_forward.45} parent=0 // pred_region
    _
  $region5: #{densenet_mm_forward.45} parent=0 // pred_fallthru
    _
  %v8 = vld [vmem:[%s0] sm:$0xf]
  %v9 = vld [vmem:[%s0 + $0x4] sm:$0xf]
  %v10 = vld [vmem:[%s0 + $0x8] sm:$0xf]
  %v11 = vld [vmem:[%s0 + $0xc] sm:$0xf]
  %v12 = vld [vmem:[%s0 + $0x10] sm:$0xf]
  %v13 = vld [vmem:[%s0 + $0x14] sm:$0xf]
  %v14 = vld [vmem:[%s0 + $0x18] sm:$0xf]
  %v15 = vld [vmem:[%s0 + $0x1c] sm:$0xf]
  %v16 = vld [vmem:[%s0 + $0x20] sm:$0xf]
  %v17 = vld [vmem:[%s0 + $0x24] sm:$0xf]
  %v18 = vld [vmem:[%s0 + $0x28] sm:$0xf]
  %v19 = vld [vmem:[%s0 + $0x2c] sm:$0xf]
  %v20 = vld [vmem:[%s0 + $0x30] sm:$0xf]
  %v21 = vld [vmem:[%s0 + $0x34] sm:$0xf]
  %v22 = vld [vmem:[%s0 + $0x38] sm:$0xf]
  %v23 = vld [vmem:[%s0 + $0x3c] sm:$0xf]
  %v24 = vunpack.c.l.bf16 %v8
  %v25 = vunpack.c.l.bf16 %v9
  %v26 = vunpack.c.l.bf16 %v10
  %v27 = vunpack.c.l.bf16 %v11
  %v28 = vunpack.c.l.bf16 %v12
  %v29 = vunpack.c.l.bf16 %v13
  %v30 = vunpack.c.l.bf16 %v14
  %v31 = vunpack.c.l.bf16 %v15
  %v32 = vunpack.c.l.bf16 %v16
  %v33 = vunpack.c.l.bf16 %v17
  %v34 = vunpack.c.l.bf16 %v18
  %v35 = vunpack.c.l.bf16 %v19
  %v36 = vunpack.c.l.bf16 %v20
  %v37 = vunpack.c.l.bf16 %v21
  %v38 = vunpack.c.l.bf16 %v22
  %v39 = vunpack.c.l.bf16 %v23
  %vm40 = vcmask 130048
  %v41 = vsel %vm40, %v24, 0.0
  %v42 = vsel %vm40, %v32, 0.0
  %v43 = vadd.f32 %v41, %v42
  %v44 = vsel %vm40, %v25, 0.0
  %v45 = vsel %vm40, %v33, 0.0
  %v46 = vadd.f32 %v44, %v45
  %v47 = vsel %vm40, %v26, 0.0
  %v48 = vsel %vm40, %v34, 0.0
  %v49 = vadd.f32 %v47, %v48
  %v50 = vsel %vm40, %v27, 0.0
  %v51 = vsel %vm40, %v35, 0.0
  %v52 = vadd.f32 %v50, %v51
  %v53 = vsel %vm40, %v28, 0.0
  %v54 = vsel %vm40, %v36, 0.0
  %v55 = vadd.f32 %v53, %v54
  %v56 = vsel %vm40, %v29, 0.0
  %v57 = vsel %vm40, %v37, 0.0
  %v58 = vadd.f32 %v56, %v57
  %v59 = vsel %vm40, %v30, 0.0
  %v60 = vsel %vm40, %v38, 0.0
  %v61 = vadd.f32 %v59, %v60
  %v62 = vsel %vm40, %v31, 0.0
  %v63 = vsel %vm40, %v39, 0.0
  %v64 = vadd.f32 %v62, %v63
  %v65 = vrcp.pop 2.0
  %v66 = vmul.f32 %v43, %v65
  %v67 = vmul.f32 %v46, %v65
  %v68 = vmul.f32 %v49, %v65
  %v69 = vmul.f32 %v52, %v65
  %v70 = vmul.f32 %v55, %v65
  %v71 = vmul.f32 %v58, %v65
  %v72 = vmul.f32 %v61, %v65
  %v73 = vmul.f32 %v64, %v65
  %v74 = vpack.c.bf16 %v67, %v66
  %v75 = vpack.c.bf16 %v69, %v68
  %v76 = vpack.c.bf16 %v71, %v70
  %v77 = vpack.c.bf16 %v73, %v72
  %v82 = vunpack.c.l.b16 %v74
  %v83 = vunpack.c.h.b16 %v74
  %v84 = vunpack.c.l.b16 %v75
  %v85 = vunpack.c.h.b16 %v75
  %v86 = vunpack.c.l.b16 %v76
  %v87 = vunpack.c.h.b16 %v76
  %v88 = vunpack.c.l.b16 %v77
  %v89 = vunpack.c.h.b16 %v77
  %v90 = vpack.c.b16 %v82, %v82
  %v91 = vpack.c.b16 %v83, %v83
  %v92 = vpack.c.b16 %v84, %v84
  %v93 = vpack.c.b16 %v85, %v85
  %v94 = vpack.c.b16 %v86, %v86
  %v95 = vpack.c.b16 %v87, %v87
  %v96 = vpack.c.b16 %v88, %v88
  %v97 = vpack.c.b16 %v89, %v89
  %vm106 = vcmask 125952
  %107 = vst.msk [vmem:[%s1] sm:$0xf] %vm106, %v90
  %108 = vst.msk [vmem:[%s1 + $0x4] sm:$0xf] %vm106, %v91
  %109 = vst.msk [vmem:[%s1 + $0x8] sm:$0xf] %vm106, %v92
  %110 = vst.msk [vmem:[%s1 + $0xc] sm:$0xf] %vm106, %v93
  %111 = vst.msk [vmem:[%s1 + $0x10] sm:$0xf] %vm106, %v94
  %112 = vst.msk [vmem:[%s1 + $0x14] sm:$0xf] %vm106, %v95
  %113 = vst.msk [vmem:[%s1 + $0x18] sm:$0xf] %vm106, %v96
  %114 = vst.msk [vmem:[%s1 + $0x1c] sm:$0xf] %vm106, %v97
  // Predicated region
  $region6: #{densenet_mm_forward.45} parent=0 // pred_check
    _
  $region7: #{densenet_mm_forward.45} parent=0 // pred_check_branch
    %116 = sbr.rel (0) target = $region9
  $region8: #{densenet_mm_forward.45} parent=0 // pred_region
    _
  $region9: #{densenet_mm_forward.45} parent=0 // pred_fallthru
    _
  // Predicated region
  $region10: #{densenet_mm_forward.45} parent=0 // pred_check
    _
  $region11: #{densenet_mm_forward.45} parent=0 // pred_check_branch
    %118 = sbr.rel (0) target = $region13
  $region12: #{densenet_mm_forward.45} parent=0 // pred_region
    _
  $region13: #{densenet_mm_forward.45} parent=0 // pred_fallthru
    _

// kernel: densenet_mm_forward.48
$region0: #{densenet_mm_forward.48}
  #allocation0 [shape = 'u32[]', space=smem, size = 0x4, offset = 0x4, fixed_abs, tag = 'smem constant byte address 0x4 - core index']
  #allocation1 [shape = 'u32[144,128]{1,0:T(1,128)}', space=vmem, size = 0x12000, scoped, tag = 'internal scratch']
  %s0 = inlined_call_operand.vmem [shape: bf16[16,16], index: 0, kind: input, shape index: {}]
  %s1 = inlined_call_operand.vmem [shape: f32[1,16], index: 1, kind: input, shape index: {}]
  %s2 = inlined_call_operand.vmem [shape: f32[1,16], index: 2, kind: input, shape index: {}]
  %s3 = inlined_call_operand.vmem [shape: bf16[16,16], index: 3, kind: input, shape index: {}]
  %s4 = inlined_call_operand.vmem [shape: f32[1,16], index: 4, kind: input, shape index: {}]
  %s5 = inlined_call_operand.vmem [shape: f32[1,16], index: 5, kind: input, shape index: {}]
  %s6 = inlined_call_operand.vmem [shape: bf16[16,16], index: 6, kind: output, shape index: {}]
  %s7 = sld [smem:[#allocation0]]
  $region34: #{densenet_mm_forward.48} parent=0
    _
  %s9 = ssub.s32 1, %s7
  %s10 = scalar_select 0, %s9, %s7
  // Predicated region
  $region2: #{densenet_mm_forward.48} parent=0 // pred_check
    _
  $region3: #{densenet_mm_forward.48} parent=0 // pred_check_branch
    %12 = sbr.rel (0) target = $region5
  $region4: #{densenet_mm_forward.48} parent=0 // pred_region
    _
  $region5: #{densenet_mm_forward.48} parent=0 // pred_fallthru
    _
  // Predicated region
  $region6: #{densenet_mm_forward.48} parent=0 // pred_check
    _
  $region7: #{densenet_mm_forward.48} parent=0 // pred_check_branch
    %14 = sbr.rel (0) target = $region9
  $region8: #{densenet_mm_forward.48} parent=0 // pred_region
    _
  $region9: #{densenet_mm_forward.48} parent=0 // pred_fallthru
    _
  // Predicated region
  $region10: #{densenet_mm_forward.48} parent=0 // pred_check
    _
  $region11: #{densenet_mm_forward.48} parent=0 // pred_check_branch
    %16 = sbr.rel (0) target = $region13
  $region12: #{densenet_mm_forward.48} parent=0 // pred_region
    _
  $region13: #{densenet_mm_forward.48} parent=0 // pred_fallthru
    _
  // Predicated region
  $region14: #{densenet_mm_forward.48} parent=0 // pred_check
    _
  $region15: #{densenet_mm_forward.48} parent=0 // pred_check_branch
    %18 = sbr.rel (0) target = $region17
  $region16: #{densenet_mm_forward.48} parent=0 // pred_region
    _
  $region17: #{densenet_mm_forward.48} parent=0 // pred_fallthru
    _
  // Predicated region
  $region18: #{densenet_mm_forward.48} parent=0 // pred_check
    _
  $region19: #{densenet_mm_forward.48} parent=0 // pred_check_branch
    %20 = sbr.rel (0) target = $region21
  $region20: #{densenet_mm_forward.48} parent=0 // pred_region
    _
  $region21: #{densenet_mm_forward.48} parent=0 // pred_fallthru
    _
  // Predicated region
  $region22: #{densenet_mm_forward.48} parent=0 // pred_check
    _
  $region23: #{densenet_mm_forward.48} parent=0 // pred_check_branch
    %22 = sbr.rel (0) target = $region25
  $region24: #{densenet_mm_forward.48} parent=0 // pred_region
    _
  $region25: #{densenet_mm_forward.48} parent=0 // pred_fallthru
    _
  %v24 = vld [vmem:[%s0] sm:$0xf]
  %v25 = vld [vmem:[%s0 + $0x4] sm:$0xf]
  %v26 = vunpack.c.l.bf16 %v24
  %v27 = vunpack.c.l.bf16 %v25
  %v28 = vld [vmem:[%s1] sm:$0x1]
  %v30 = vlaneseq
  %v31 = vshrl.u32 %v30, 7
  %v32 = vsub.s32 0, %v31
  %v33 = vrot.slane %v28, %v32
  %v35 = vmul.f32 %v26, %v33
  %v36 = vmul.f32 %v27, %v33
  %v37 = vld [vmem:[%s2] sm:$0x1]
  %v39 = vlaneseq
  %v40 = vshrl.u32 %v39, 7
  %v41 = vsub.s32 0, %v40
  %v42 = vrot.slane %v37, %v41
  %v44 = vadd.f32 %v35, %v42
  %v45 = vadd.f32 %v36, %v42
  %v46 = vmax.f32 %v44, 0.0
  %v47 = vmax.f32 %v45, 0.0
  %v48 = vpack.c.bf16 %v47, %v46
  %v49 = vld [vmem:[%s3] sm:$0xf]
  %v50 = vld [vmem:[%s3 + $0x4] sm:$0xf]
  %v53 = vunpack.c.l.b16 %v49
  %v54 = vunpack.c.l.b16 %v50
  %v55 = vpack.c.b16 %v54, %v53
  %vm57 = vcmask 130048
  %v59 = vsel %vm57, %v48, 0
  %61 = vmatprep.subr.bf16.mxu0 0
  %62 = vmatpush1.bf16.msra.mxu0 %v55
  %63 = vmatprep.subr.bf16.mxu0 0
  %64 = vmatpush1.bf16.msra.mxu0 0
  %65 = vmatprep.subr.bf16.mxu0 0
  %66 = vmatpush1.bf16.msra.mxu0 0
  %67 = vmatprep.subr.bf16.mxu0 0
  %68 = vmatpush1.bf16.msra.mxu0 0
  %69 = vmatprep.subr.bf16.mxu0 0
  %70 = vmatpush1.bf16.msra.mxu0 0
  %71 = vmatprep.subr.bf16.mxu0 0
  %72 = vmatpush1.bf16.msra.mxu0 0
  %73 = vmatprep.subr.bf16.mxu0 0
  %74 = vmatpush1.bf16.msra.mxu0 0
  %75 = vmatprep.subr.bf16.mxu0 0
  %76 = vmatpush1.bf16.msra.mxu0 0
  %77 = vmatprep.subr.bf16.mxu0 0
  %78 = vmatpush1.bf16.msra.mxu0 0
  %79 = vmatprep.subr.bf16.mxu0 0
  %80 = vmatpush1.bf16.msra.mxu0 0
  %81 = vmatprep.subr.bf16.mxu0 0
  %82 = vmatpush1.bf16.msra.mxu0 0
  %83 = vmatprep.subr.bf16.mxu0 0
  %84 = vmatpush1.bf16.msra.mxu0 0
  %85 = vmatprep.subr.bf16.mxu0 0
  %86 = vmatpush1.bf16.msra.mxu0 0
  %87 = vmatprep.subr.bf16.mxu0 0
  %88 = vmatpush1.bf16.msra.mxu0 0
  %89 = vmatprep.subr.bf16.mxu0 0
  %90 = vmatpush1.bf16.msra.mxu0 0
  %91 = vmatprep.subr.bf16.mxu0 0
  %92 = vmatpush1.bf16.msra.mxu0 0
  %93 = vmatprep.mubr.bf16.mxu0 0
  %94 = vmatmul.mubr.bf16.gmra.mrb[0].mxu0 %v59
  %v95 = vpop.f32.mrb[0].mxu0
  %v96 = vadd.f32 0.0, %v95
  %v97 = vpop.f32.mrb[0].mxu0
  %v98 = vpop.f32.mrb[0].mxu0
  %v99 = vadd.f32 0.0, %v98
  %v100 = vpop.f32.mrb[0].mxu0
  %101 = vdwg.mxu0
  %v102 = vld [vmem:[%s4] sm:$0x1]
  %v104 = vlaneseq
  %v105 = vshrl.u32 %v104, 7
  %v106 = vsub.s32 0, %v105
  %v107 = vrot.slane %v102, %v106
  %v109 = vmul.f32 %v96, %v107
  %v110 = vmul.f32 %v99, %v107
  %v111 = vld [vmem:[%s5] sm:$0x1]
  %v113 = vlaneseq
  %v114 = vshrl.u32 %v113, 7
  %v115 = vsub.s32 0, %v114
  %v116 = vrot.slane %v111, %v115
  %v118 = vadd.f32 %v109, %v116
  %v119 = vadd.f32 %v110, %v116
  %v120 = vmax.f32 %v118, 0.0
  %v121 = vmax.f32 %v119, 0.0
  %v122 = vpack.c.bf16 %v121, %v120
  %v124 = vunpack.c.l.b16 %v122
  %v125 = vunpack.c.h.b16 %v122
  %v126 = vpack.c.b16 %v124, %v124
  %v127 = vpack.c.b16 %v125, %v125
  %vm130 = vcmask 125952
  %131 = vst.msk [vmem:[%s6] sm:$0xf] %vm130, %v126
  %132 = vst.msk [vmem:[%s6 + $0x4] sm:$0xf] %vm130, %v127
  // Predicated region
  $region26: #{densenet_mm_forward.48} parent=0 // pred_check
    _
  $region27: #{densenet_mm_forward.48} parent=0 // pred_check_branch
    %134 = sbr.rel (0) target = $region29
  $region28: #{densenet_mm_forward.48} parent=0 // pred_region
    _
  $region29: #{densenet_mm_forward.48} parent=0 // pred_fallthru
    _
  // Predicated region
  $region30: #{densenet_mm_forward.48} parent=0 // pred_check
    _
  $region31: #{densenet_mm_forward.48} parent=0 // pred_check_branch
    %136 = sbr.rel (0) target = $region33
  $region32: #{densenet_mm_forward.48} parent=0 // pred_region
    _
  $region33: #{densenet_mm_forward.48} parent=0 // pred_fallthru
    _

// kernel: densenet_mm_forward.47
$region0: #{densenet_mm_forward.47}
  #allocation0 [shape = 'u32[]', space=smem, size = 0x4, offset = 0x4, fixed_abs, tag = 'smem constant byte address 0x4 - core index']
  #allocation1 [shape = 'u32[144,128]{1,0:T(1,128)}', space=vmem, size = 0x12000, scoped, tag = 'internal scratch']
  %s0 = inlined_call_operand.vmem [shape: bf16[2,16,16], index: 0, kind: input, shape index: {}]
  %s1 = inlined_call_operand.vmem [shape: bf16[16,16], index: 1, kind: output, shape index: {}]
  %s2 = sld [smem:[#allocation0]]
  $region14: #{densenet_mm_forward.47} parent=0
    _
  %s4 = ssub.s32 1, %s2
  %s5 = scalar_select 0, %s4, %s2
  // Predicated region
  $region2: #{densenet_mm_forward.47} parent=0 // pred_check
    _
  $region3: #{densenet_mm_forward.47} parent=0 // pred_check_branch
    %7 = sbr.rel (0) target = $region5
  $region4: #{densenet_mm_forward.47} parent=0 // pred_region
    _
  $region5: #{densenet_mm_forward.47} parent=0 // pred_fallthru
    _
  %v8 = vld [vmem:[%s0] sm:$0xf]
  %v9 = vld [vmem:[%s0 + $0x4] sm:$0xf]
  %v10 = vld [vmem:[%s0 + $0x8] sm:$0xf]
  %v11 = vld [vmem:[%s0 + $0xc] sm:$0xf]
  %v12 = vunpack.c.l.bf16 %v8
  %v13 = vunpack.c.l.bf16 %v9
  %v14 = vunpack.c.l.bf16 %v10
  %v15 = vunpack.c.l.bf16 %v11
  %vm16 = vcmask 130048
  %v17 = vsel %vm16, %v12, 0.0
  %v18 = vsel %vm16, %v14, 0.0
  %v19 = vadd.f32 %v17, %v18
  %v20 = vsel %vm16, %v13, 0.0
  %v21 = vsel %vm16, %v15, 0.0
  %v22 = vadd.f32 %v20, %v21
  %v23 = vrcp.pop 2.0
  %v24 = vmul.f32 %v19, %v23
  %v25 = vmul.f32 %v22, %v23
  %v26 = vpack.c.bf16 %v25, %v24
  %v28 = vunpack.c.l.b16 %v26
  %v29 = vunpack.c.h.b16 %v26
  %v30 = vpack.c.b16 %v28, %v28
  %v31 = vpack.c.b16 %v29, %v29
  %vm34 = vcmask 125952
  %35 = vst.msk [vmem:[%s1] sm:$0xf] %vm34, %v30
  %36 = vst.msk [vmem:[%s1 + $0x4] sm:$0xf] %vm34, %v31
  // Predicated region
  $region6: #{densenet_mm_forward.47} parent=0 // pred_check
    _
  $region7: #{densenet_mm_forward.47} parent=0 // pred_check_branch
    %38 = sbr.rel (0) target = $region9
  $region8: #{densenet_mm_forward.47} parent=0 // pred_region
    _
  $region9: #{densenet_mm_forward.47} parent=0 // pred_fallthru
    _
  // Predicated region
  $region10: #{densenet_mm_forward.47} parent=0 // pred_check
    _
  $region11: #{densenet_mm_forward.47} parent=0 // pred_check_branch
    %40 = sbr.rel (0) target = $region13
  $region12: #{densenet_mm_forward.47} parent=0 // pred_region
    _
  $region13: #{densenet_mm_forward.47} parent=0 // pred_fallthru
    _

// kernel: densenet_mm_forward.50
$region0: #{densenet_mm_forward.50}
  #allocation0 [shape = 'u32[]', space=smem, size = 0x4, offset = 0x4, fixed_abs, tag = 'smem constant byte address 0x4 - core index']
  #allocation1 [shape = 'u32[144,128]{1,0:T(1,128)}', space=vmem, size = 0x12000, scoped, tag = 'internal scratch']
  %s0 = inlined_call_operand.vmem [shape: bf16[16,24], index: 0, kind: input, shape index: {}]
  %s1 = inlined_call_operand.vmem [shape: f32[1,24], index: 1, kind: input, shape index: {}]
  %s2 = inlined_call_operand.vmem [shape: f32[1,24], index: 2, kind: input, shape index: {}]
  %s3 = inlined_call_operand.vmem [shape: bf16[24,16], index: 3, kind: input, shape index: {}]
  %s4 = inlined_call_operand.vmem [shape: f32[1,16], index: 4, kind: input, shape index: {}]
  %s5 = inlined_call_operand.vmem [shape: f32[1,16], index: 5, kind: input, shape index: {}]
  %s6 = inlined_call_operand.vmem [shape: bf16[16,16], index: 6, kind: output, shape index: {}]
  %s7 = sld [smem:[#allocation0]]
  $region34: #{densenet_mm_forward.50} parent=0
    _
  %s9 = ssub.s32 1, %s7
  %s10 = scalar_select 0, %s9, %s7
  // Predicated region
  $region2: #{densenet_mm_forward.50} parent=0 // pred_check
    _
  $region3: #{densenet_mm_forward.50} parent=0 // pred_check_branch
    %12 = sbr.rel (0) target = $region5
  $region4: #{densenet_mm_forward.50} parent=0 // pred_region
    _
  $region5: #{densenet_mm_forward.50} parent=0 // pred_fallthru
    _
  // Predicated region
  $region6: #{densenet_mm_forward.50} parent=0 // pred_check
    _
  $region7: #{densenet_mm_forward.50} parent=0 // pred_check_branch
    %14 = sbr.rel (0) target = $region9
  $region8: #{densenet_mm_forward.50} parent=0 // pred_region
    _
  $region9: #{densenet_mm_forward.50} parent=0 // pred_fallthru
    _
  // Predicated region
  $region10: #{densenet_mm_forward.50} parent=0 // pred_check
    _
  $region11: #{densenet_mm_forward.50} parent=0 // pred_check_branch
    %16 = sbr.rel (0) target = $region13
  $region12: #{densenet_mm_forward.50} parent=0 // pred_region
    _
  $region13: #{densenet_mm_forward.50} parent=0 // pred_fallthru
    _
  // Predicated region
  $region14: #{densenet_mm_forward.50} parent=0 // pred_check
    _
  $region15: #{densenet_mm_forward.50} parent=0 // pred_check_branch
    %18 = sbr.rel (0) target = $region17
  $region16: #{densenet_mm_forward.50} parent=0 // pred_region
    _
  $region17: #{densenet_mm_forward.50} parent=0 // pred_fallthru
    _
  // Predicated region
  $region18: #{densenet_mm_forward.50} parent=0 // pred_check
    _
  $region19: #{densenet_mm_forward.50} parent=0 // pred_check_branch
    %20 = sbr.rel (0) target = $region21
  $region20: #{densenet_mm_forward.50} parent=0 // pred_region
    _
  $region21: #{densenet_mm_forward.50} parent=0 // pred_fallthru
    _
  // Predicated region
  $region22: #{densenet_mm_forward.50} parent=0 // pred_check
    _
  $region23: #{densenet_mm_forward.50} parent=0 // pred_check_branch
    %22 = sbr.rel (0) target = $region25
  $region24: #{densenet_mm_forward.50} parent=0 // pred_region
    _
  $region25: #{densenet_mm_forward.50} parent=0 // pred_fallthru
    _
  %v24 = vld [vmem:[%s0] sm:$0xf]
  %v25 = vld [vmem:[%s0 + $0x4] sm:$0xf]
  %v26 = vunpack.c.l.bf16 %v24
  %v27 = vunpack.c.l.bf16 %v25
  %v28 = vld [vmem:[%s1] sm:$0x1]
  %v30 = vlaneseq
  %v31 = vshrl.u32 %v30, 7
  %v32 = vsub.s32 0, %v31
  %v33 = vrot.slane %v28, %v32
  %v35 = vmul.f32 %v26, %v33
  %v36 = vmul.f32 %v27, %v33
  %v37 = vld [vmem:[%s2] sm:$0x1]
  %v39 = vlaneseq
  %v40 = vshrl.u32 %v39, 7
  %v41 = vsub.s32 0, %v40
  %v42 = vrot.slane %v37, %v41
  %v44 = vadd.f32 %v35, %v42
  %v45 = vadd.f32 %v36, %v42
  %v46 = vmax.f32 %v44, 0.0
  %v47 = vmax.f32 %v45, 0.0
  %v48 = vpack.c.bf16 %v47, %v46
  %v49 = vld [vmem:[%s3] sm:$0xf]
  %v50 = vld [vmem:[%s3 + $0x4] sm:$0xf]
  %v51 = vld [vmem:[%s3 + $0x8] sm:$0xf]
  %v55 = vunpack.c.l.b16 %v49
  %v56 = vunpack.c.l.b16 %v50
  %v57 = vunpack.c.l.b16 %v51
  %v58 = vpack.c.b16 %v56, %v55
  %v59 = vpack.c.b16 %v57, %v57
  %vm61 = vcmask 195584
  %v63 = vsel %vm61, %v48, 0
  %vm65 = vcmask 1043456
  %v67 = vsel %vm65, %v59, 0
  %69 = vmatprep.subr.bf16.mxu0 0
  %70 = vmatpush1.bf16.msra.mxu0 %v58
  %71 = vmatprep.subr.bf16.mxu0 0
  %72 = vmatpush1.bf16.msra.mxu0 %v67
  %73 = vmatprep.subr.bf16.mxu0 0
  %74 = vmatpush1.bf16.msra.mxu0 0
  %75 = vmatprep.subr.bf16.mxu0 0
  %76 = vmatpush1.bf16.msra.mxu0 0
  %77 = vmatprep.subr.bf16.mxu0 0
  %78 = vmatpush1.bf16.msra.mxu0 0
  %79 = vmatprep.subr.bf16.mxu0 0
  %80 = vmatpush1.bf16.msra.mxu0 0
  %81 = vmatprep.subr.bf16.mxu0 0
  %82 = vmatpush1.bf16.msra.mxu0 0
  %83 = vmatprep.subr.bf16.mxu0 0
  %84 = vmatpush1.bf16.msra.mxu0 0
  %85 = vmatprep.subr.bf16.mxu0 0
  %86 = vmatpush1.bf16.msra.mxu0 0
  %87 = vmatprep.subr.bf16.mxu0 0
  %88 = vmatpush1.bf16.msra.mxu0 0
  %89 = vmatprep.subr.bf16.mxu0 0
  %90 = vmatpush1.bf16.msra.mxu0 0
  %91 = vmatprep.subr.bf16.mxu0 0
  %92 = vmatpush1.bf16.msra.mxu0 0
  %93 = vmatprep.subr.bf16.mxu0 0
  %94 = vmatpush1.bf16.msra.mxu0 0
  %95 = vmatprep.subr.bf16.mxu0 0
  %96 = vmatpush1.bf16.msra.mxu0 0
  %97 = vmatprep.subr.bf16.mxu0 0
  %98 = vmatpush1.bf16.msra.mxu0 0
  %99 = vmatprep.subr.bf16.mxu0 0
  %100 = vmatpush1.bf16.msra.mxu0 0
  %101 = vmatprep.mubr.bf16.mxu0 0
  %102 = vmatmul.mubr.bf16.gmra.mrb[0].mxu0 %v63
  %v103 = vpop.f32.mrb[0].mxu0
  %v104 = vadd.f32 0.0, %v103
  %v105 = vpop.f32.mrb[0].mxu0
  %v106 = vpop.f32.mrb[0].mxu0
  %v107 = vadd.f32 0.0, %v106
  %v108 = vpop.f32.mrb[0].mxu0
  %109 = vdwg.mxu0
  %v110 = vld [vmem:[%s4] sm:$0x1]
  %v112 = vlaneseq
  %v113 = vshrl.u32 %v112, 7
  %v114 = vsub.s32 0, %v113
  %v115 = vrot.slane %v110, %v114
  %v117 = vmul.f32 %v104, %v115
  %v118 = vmul.f32 %v107, %v115
  %v119 = vld [vmem:[%s5] sm:$0x1]
  %v121 = vlaneseq
  %v122 = vshrl.u32 %v121, 7
  %v123 = vsub.s32 0, %v122
  %v124 = vrot.slane %v119, %v123
  %v126 = vadd.f32 %v117, %v124
  %v127 = vadd.f32 %v118, %v124
  %v128 = vmax.f32 %v126, 0.0
  %v129 = vmax.f32 %v127, 0.0
  %v130 = vpack.c.bf16 %v129, %v128
  %v132 = vunpack.c.l.b16 %v130
  %v133 = vunpack.c.h.b16 %v130
  %v134 = vpack.c.b16 %v132, %v132
  %v135 = vpack.c.b16 %v133, %v133
  %vm138 = vcmask 125952
  %139 = vst.msk [vmem:[%s6] sm:$0xf] %vm138, %v134
  %140 = vst.msk [vmem:[%s6 + $0x4] sm:$0xf] %vm138, %v135
  // Predicated region
  $region26: #{densenet_mm_forward.50} parent=0 // pred_check
    _
  $region27: #{densenet_mm_forward.50} parent=0 // pred_check_branch
    %142 = sbr.rel (0) target = $region29
  $region28: #{densenet_mm_forward.50} parent=0 // pred_region
    _
  $region29: #{densenet_mm_forward.50} parent=0 // pred_fallthru
    _
  // Predicated region
  $region30: #{densenet_mm_forward.50} parent=0 // pred_check
    _
  $region31: #{densenet_mm_forward.50} parent=0 // pred_check_branch
    %144 = sbr.rel (0) target = $region33
  $region32: #{densenet_mm_forward.50} parent=0 // pred_region
    _
  $region33: #{densenet_mm_forward.50} parent=0 // pred_fallthru
    _

// kernel: densenet_mm_forward.49
$region0: #{densenet_mm_forward.49}
  #allocation0 [shape = 'u32[]', space=smem, size = 0x4, offset = 0x4, fixed_abs, tag = 'smem constant byte address 0x4 - core index']
  #allocation1 [shape = 'u32[144,128]{1,0:T(1,128)}', space=vmem, size = 0x12000, scoped, tag = 'internal scratch']
  #allocation2 [shape = 'f32[8,8]{1,0:T(8,128)}', space=vmem, size = 0x1000, scoped, tag = 'scratch operand']
  %s0 = inlined_call_operand.vmem [shape: bf16[2,4,20,16], index: 0, kind: input, shape index: {}]
  %s1 = inlined_call_operand.vmem [shape: bf16[3,9,16,8], index: 1, kind: input, shape index: {}]
  %s2 = inlined_call_operand.vmem [shape: bf16[2,2,8,8], index: 2, kind: output, shape index: {}]
  %s3 = sld [smem:[#allocation0]]
  $region49: #{densenet_mm_forward.49} parent=0
    _
  %s5 = ssub.s32 1, %s3
  %s6 = scalar_select 0, %s5, %s3
  loop: start=0, step=1, limit=14
  $region2: #{densenet_mm_forward.49} parent=0 // loop_pre_header
    _
  $region3: #{densenet_mm_forward.49} parent=0 // loop_header
    %s8 = sphi 0, %s12
    %p9 = scmp.ge.s32.totalorder %s8, 14
    %s15 = sphi 0, %s34
    %s16 = sphi 0, %s30
    %s17 = sphi 0, %s26
    %s18 = sphi 0, %s15
    %s19 = sphi 0, %s16
    %s20 = sphi 0, %s17
    %s21 = sphi 0, %s18
    %s22 = sphi 0, %s19
    %s23 = sphi 0, %s20
    %s41 = sphi 0, %s43
    %s44 = sphi 0, %s41
    %s45 = sphi 0, %s44
    %s61 = sphi 0, %s45
    %s67 = sphi 0, %s69
    %s70 = sphi 0, %s67
    %s71 = sphi 0, %s70
    %s87 = sphi 0, %s71
    %s95 = sphi 0, %s97
    %s98 = sphi 0, %s95
    %s99 = sphi 0, %s98
    %s115 = sphi 0, %s99
  $region4: #{densenet_mm_forward.49} parent=0 // loop_header_branch
    %11 = sbr.rel (%p9) target = $region8
  $region5: #{densenet_mm_forward.49} parent=0 // loop_body
    %s13 = ssub.s32 %s8, 1
    %s14 = ssub.s32 %s8, 2
    %s24 = sadd.s32 1, %s17
    %p25 = scmp.ge.s32.totalorder %s24, 3
    %s26 = scalar_select %p25, 0, %s24
    %s27 = sadd.s32 1, %s16
    %s28 = scalar_select %p25, %s27, %s16
    %p29 = scmp.ge.s32.totalorder %s28, 2
    %s30 = scalar_select %p29, 0, %s28
    %s31 = sadd.s32 1, %s15
    %s32 = scalar_select %p29, %s31, %s15
    %p33 = scmp.ge.s32.totalorder %s32, 2
    %s34 = scalar_select %p33, 0, %s32
    %s35 = sadd.s32 %s16, %s17
    %s36 = sadd.s32 %s30, %s26
    %s37 = ssub.s32 %s15, %s34
    %s38 = ssub.s32 %s35, %s36
    %s39 = sor.u32 %s37, %s38
    %p40 = scmp.eq.s32.totalorder %s39, 0
    %s42 = sadd.s32 %s41, 1
    %s43 = scalar_select %p40, %s41, %s42
    %p46 = pneg %p40
    %p47 = scmp.eq.s32.totalorder %s8, 11
    %p48 = por %p46, %p47
    %p49 = scmp.ne.s32.totalorder %s41, %s44
    %p50 = scmp.eq.s32.totalorder %s8, 0
    %p51 = por %p49, %p50
    %p52 = scmp.ne.s32.totalorder %s41, %s44
    %p53 = scmp.eq.s32.totalorder %s13, 11
    %p54 = por %p52, %p53
    %p55 = scmp.ne.s32.totalorder %s44, %s45
    %p56 = scmp.eq.s32.totalorder %s13, 0
    %p57 = por %p55, %p56
    %p58 = scmp.ne.s32.totalorder %s44, %s45
    %p59 = scmp.eq.s32.totalorder %s14, 11
    %p60 = por %p58, %p59
    %p62 = scmp.ne.s32.totalorder %s45, %s61
    %p63 = scmp.eq.s32.totalorder %s14, 0
    %p64 = por %p62, %p63
    %s65 = ssub.s32 %s17, %s26
    %p66 = scmp.eq.s32.totalorder %s65, 0
    %s68 = sadd.s32 %s67, 1
    %s69 = scalar_select %p66, %s67, %s68
    %p72 = pneg %p66
    %p73 = scmp.eq.s32.totalorder %s8, 11
    %p74 = por %p72, %p73
    %p75 = scmp.ne.s32.totalorder %s67, %s70
    %p76 = scmp.eq.s32.totalorder %s8, 0
    %p77 = por %p75, %p76
    %p78 = scmp.ne.s32.totalorder %s67, %s70
    %p79 = scmp.eq.s32.totalorder %s13, 11
    %p80 = por %p78, %p79
    %p81 = scmp.ne.s32.totalorder %s70, %s71
    %p82 = scmp.eq.s32.totalorder %s13, 0
    %p83 = por %p81, %p82
    %p84 = scmp.ne.s32.totalorder %s70, %s71
    %p85 = scmp.eq.s32.totalorder %s14, 11
    %p86 = por %p84, %p85
    %p88 = scmp.ne.s32.totalorder %s71, %s87
    %p89 = scmp.eq.s32.totalorder %s14, 0
    %p90 = por %p88, %p89
    %s91 = ssub.s32 %s15, %s34
    %s92 = ssub.s32 %s16, %s30
    %s93 = sor.u32 %s91, %s92
    %p94 = scmp.eq.s32.totalorder %s93, 0
    %s96 = sadd.s32 %s95, 1
    %s97 = scalar_select %p94, %s95, %s96
    %p100 = pneg %p94
    %p101 = scmp.eq.s32.totalorder %s8, 11
    %p102 = por %p100, %p101
    %p103 = scmp.ne.s32.totalorder %s95, %s98
    %p104 = scmp.eq.s32.totalorder %s8, 0
    %p105 = por %p103, %p104
    %p106 = scmp.ne.s32.totalorder %s95, %s98
    %p107 = scmp.eq.s32.totalorder %s13, 11
    %p108 = por %p106, %p107
    %p109 = scmp.ne.s32.totalorder %s98, %s99
    %p110 = scmp.eq.s32.totalorder %s13, 0
    %p111 = por %p109, %p110
    %p112 = scmp.ne.s32.totalorder %s98, %s99
    %p113 = scmp.eq.s32.totalorder %s14, 11
    %p114 = por %p112, %p113
    %p116 = scmp.ne.s32.totalorder %s99, %s115
    %p117 = scmp.eq.s32.totalorder %s14, 0
    %p118 = por %p116, %p117
    %p119 = scmp.le.s32.totalorder 1, %s8
    %p120 = scmp.lt.s32.totalorder %s8, 13
    %p121 = pnand %p119, %p120
    %p122 = pneg %p121
    // Predicated region
    $region9: #{densenet_mm_forward.49} parent=5 // pred_check
      _
    $region10: #{densenet_mm_forward.49} parent=5 // pred_check_branch
      %124 = sbr.rel (%p121) target = $region12
    $region11: #{densenet_mm_forward.49} parent=5 // pred_region
      %s125 = ssub.s32 %s8, 1
    $region12: #{densenet_mm_forward.49} parent=5 // pred_fallthru
      _
    %p126 = scmp.lt.s32.totalorder %s8, 12
    // Predicated region
    $region13: #{densenet_mm_forward.49} parent=5 // pred_check
      %p127 = pneg %p126
    $region14: #{densenet_mm_forward.49} parent=5 // pred_check_branch
      %129 = sbr.rel (%p127) target = $region16
    $region15: #{densenet_mm_forward.49} parent=5 // pred_region
      // Predicated region
      $region17: #{densenet_mm_forward.49} parent=15 // pred_check
        %p130 = pneg %p51
      $region18: #{densenet_mm_forward.49} parent=15 // pred_check_branch
        %132 = sbr.rel (%p130) target = $region20
      $region19: #{densenet_mm_forward.49} parent=15 // pred_region
        %s133 = sadd.s32 %s16, %s17
        %p134 = scmp.lt.s32.totalorder %s15, 1
        %s135 = scalar_select %p134, %s15, 1
        %p136 = scmp.lt.s32.totalorder %s133, 3
        %s137 = scalar_select %p136, %s133, 3
        %s138 = smul.addr %s137, 3
        %s139 = smul.addr %s135, 12
        %s140 = sadd.s32 %s138, %s139
        %s141 = smul.addr %s140, 4
        %s142 = scalar_lea.vmem %s0, %s141
        %s143 = sadd.s32 %s16, %s17
      $region20: #{densenet_mm_forward.49} parent=15 // pred_fallthru
        _
      // Predicated region
      $region21: #{densenet_mm_forward.49} parent=15 // pred_check
        %p144 = pneg %p77
      $region22: #{densenet_mm_forward.49} parent=15 // pred_check_branch
        %146 = sbr.rel (%p144) target = $region24
      $region23: #{densenet_mm_forward.49} parent=15 // pred_region
        %p147 = scmp.lt.s32.totalorder %s17, 2
        %s148 = scalar_select %p147, %s17, 2
        %s149 = smul.addr %s148, 18
        %s150 = smul.addr %s149, 4
        %s151 = scalar_lea.vmem %s1, %s150
      $region24: #{densenet_mm_forward.49} parent=15 // pred_fallthru
        _
    $region16: #{densenet_mm_forward.49} parent=5 // pred_fallthru
      _
    %p152 = scmp.le.s32.totalorder 1, %s8
    %p153 = scmp.lt.s32.totalorder %s8, 13
    %p154 = pnand %p152, %p153
    %p155 = pneg %p154
    // Predicated region
    $region25: #{densenet_mm_forward.49} parent=5 // pred_check
      _
    $region26: #{densenet_mm_forward.49} parent=5 // pred_check_branch
      %157 = sbr.rel (%p154) target = $region28
    $region27: #{densenet_mm_forward.49} parent=5 // pred_region
      %s158 = ssub.s32 %s8, 1
      %s159 = sadd.s32 %s19, %s20
      %p160 = scmp.lt.s32.totalorder %s18, 1
      %s161 = scalar_select %p160, %s18, 1
      %p162 = scmp.lt.s32.totalorder %s159, 3
      %s163 = scalar_select %p162, %s159, 3
      %s164 = smul.addr %s163, 3
      %s165 = smul.addr %s161, 12
      %s166 = sadd.s32 %s164, %s165
      %s167 = smul.addr %s166, 4
      %s168 = scalar_lea.vmem %s0, %s167
      %p169 = pneg %p57
      %p170 = pneg %p54
      %p171 = scmp.lt.s32.totalorder %s20, 2
      %s172 = scalar_select %p171, %s20, 2
      %s173 = smul.addr %s172, 18
      %s174 = smul.addr %s173, 4
      %s175 = scalar_lea.vmem %s1, %s174
      %p176 = pneg %p83
      %p177 = pneg %p80
      %p178 = pneg %p111
      %p179 = pneg %p108
      %p180 = scmp.lt.s32.totalorder %s18, 1
      %s181 = scalar_select %p180, %s18, 1
      %p182 = scmp.lt.s32.totalorder %s19, 1
      %s183 = scalar_select %p182, %s19, 1
      %s184 = smul.addr %s181, 2
      %s185 = sadd.s32 %s183, %s184
      %s186 = smul.addr %s185, 4
      %s187 = scalar_lea.vmem %s2, %s186
      %s188 = sadd.s32 %s19, %s20
      %p189 = scmp.lt.s32.totalorder %s18, 1
      %s190 = scalar_select %p189, %s18, 1
      %p191 = scmp.lt.s32.totalorder %s188, 3
      %s192 = scalar_select %p191, %s188, 3
      %s193 = smul.addr %s192, 3
      %s194 = smul.addr %s190, 12
      %s195 = sadd.s32 %s193, %s194
      %s196 = smul.addr %s195, 4
      %s197 = scalar_lea.vmem %s0, %s196
      %s198 = sadd.s32 %s19, %s20
      %p199 = scmp.lt.s32.totalorder %s20, 2
      %s200 = scalar_select %p199, %s20, 2
      %s201 = smul.addr %s200, 18
      %s202 = smul.addr %s201, 4
      %s203 = scalar_lea.vmem %s1, %s202
      %p204 = scmp.lt.s32.totalorder %s18, 1
      %s205 = scalar_select %p204, %s18, 1
      %p206 = scmp.lt.s32.totalorder %s19, 1
      %s207 = scalar_select %p206, %s19, 1
      %s208 = smul.addr %s205, 2
      %s209 = sadd.s32 %s207, %s208
      %s210 = smul.addr %s209, 4
      %s211 = scalar_lea.vmem %s2, %s210
      %p213 = scmp.eq.s32.totalorder %s20, 0
      // Predicated region
      $region29: #{densenet_mm_forward.49} parent=27 // pred_check
        %p214 = pneg %p213
      $region30: #{densenet_mm_forward.49} parent=27 // pred_check_branch
        %216 = sbr.rel (%p214) target = $region32
      $region31: #{densenet_mm_forward.49} parent=27 // pred_region
        %vm217 = vcmask 64512
        %218 = vst.msk [vmem:[#allocation2] sm:$0xff] %vm217, 0.0
      $region32: #{densenet_mm_forward.49} parent=27 // pred_fallthru
        _
      %v219 = vld [vmem:[#allocation2] sm:$0xff]
      %v220 = vld [vmem:[%s197] sm:$0xf]
      %v221 = vld [vmem:[%s203] sm:$0xf]
      %v222 = vld [vmem:[%s203 + $0x4] sm:$0xf]
      %v225 = vunpack.c.l.b16 %v221
      %v226 = vunpack.c.l.b16 %v222
      %v227 = vpack.c.b16 %v226, %v225
      %vm229 = vcmask 130048
      %v231 = vsel %vm229, %v220, 0
      %233 = vmatprep.subr.bf16.mxu0 0
      %234 = vmatpush1.bf16.msra.mxu0 %v227
      %235 = vmatprep.subr.bf16.mxu0 0
      %236 = vmatpush1.bf16.msra.mxu0 0
      %237 = vmatprep.subr.bf16.mxu0 0
      %238 = vmatpush1.bf16.msra.mxu0 0
      %239 = vmatprep.subr.bf16.mxu0 0
      %240 = vmatpush1.bf16.msra.mxu0 0
      %241 = vmatprep.subr.bf16.mxu0 0
      %242 = vmatpush1.bf16.msra.mxu0 0
      %243 = vmatprep.subr.bf16.mxu0 0
      %244 = vmatpush1.bf16.msra.mxu0 0
      %245 = vmatprep.subr.bf16.mxu0 0
      %246 = vmatpush1.bf16.msra.mxu0 0
      %247 = vmatprep.subr.bf16.mxu0 0
      %248 = vmatpush1.bf16.msra.mxu0 0
      %249 = vmatprep.subr.bf16.mxu0 0
      %250 = vmatpush1.bf16.msra.mxu0 0
      %251 = vmatprep.subr.bf16.mxu0 0
      %252 = vmatpush1.bf16.msra.mxu0 0
      %253 = vmatprep.subr.bf16.mxu0 0
      %254 = vmatpush1.bf16.msra.mxu0 0
      %255 = vmatprep.subr.bf16.mxu0 0
      %256 = vmatpush1.bf16.msra.mxu0 0
      %257 = vmatprep.subr.bf16.mxu0 0
      %258 = vmatpush1.bf16.msra.mxu0 0
      %259 = vmatprep.subr.bf16.mxu0 0
      %260 = vmatpush1.bf16.msra.mxu0 0
      %261 = vmatprep.subr.bf16.mxu0 0
      %262 = vmatpush1.bf16.msra.mxu0 0
      %263 = vmatprep.subr.bf16.mxu0 0
      %264 = vmatpush1.bf16.msra.mxu0 0
      %265 = vmatprep.mubr.bf16.mxu0 0
      %266 = vmatmul.mubr.bf16.gmra.mrb[0].mxu0 %v231
      %v267 = vpop.f32.mrb[0].mxu0
      %v268 = vadd.f32 0.0, %v267
      %v269 = vpop.f32.mrb[0].mxu0
      %v270 = vpop.f32.mrb[0].mxu0
      %v271 = vpop.f32.mrb[0].mxu0
      %272 = vdwg.mxu0
      %v273 = vadd.f32 %v219, %v268
      %v274 = vld [vmem:[%s197] sm:$0xf]
      %v275 = vld [vmem:[%s197 + $0x4] sm:$0x1]
      %s276 = scalar_lea.vmem %s203, 8
      %v277 = vld [vmem:[%s276] sm:$0xf]
      %v278 = vld [vmem:[%s276 + $0x4] sm:$0xf]
      %v281 = vunpack.c.l.b16 %v274
      %v282 = vunpack.c.l.b16 %v275
      %v283 = vpack.c.b16 %v282, %v281
      %v285 = vshrl.u32 %v283, 16
      %v287 = vshll.u32 %v283, 16
      %v289 = vrot.slane %v287, 1
      %v290 = vor.u32 %v285, %v289
      %v293 = vunpack.c.l.b16 %v277
      %v294 = vunpack.c.l.b16 %v278
      %v295 = vpack.c.b16 %v294, %v293
      %v298 = vsel %vm229, %v290, 0
      %300 = vmatprep.subr.bf16.mxu0 0
      %301 = vmatpush1.bf16.msra.mxu0 %v295
      %302 = vmatprep.subr.bf16.mxu0 0
      %303 = vmatpush1.bf16.msra.mxu0 0
      %304 = vmatprep.subr.bf16.mxu0 0
      %305 = vmatpush1.bf16.msra.mxu0 0
      %306 = vmatprep.subr.bf16.mxu0 0
      %307 = vmatpush1.bf16.msra.mxu0 0
      %308 = vmatprep.subr.bf16.mxu0 0
      %309 = vmatpush1.bf16.msra.mxu0 0
      %310 = vmatprep.subr.bf16.mxu0 0
      %311 = vmatpush1.bf16.msra.mxu0 0
      %312 = vmatprep.subr.bf16.mxu0 0
      %313 = vmatpush1.bf16.msra.mxu0 0
      %314 = vmatprep.subr.bf16.mxu0 0
      %315 = vmatpush1.bf16.msra.mxu0 0
      %316 = vmatprep.subr.bf16.mxu0 0
      %317 = vmatpush1.bf16.msra.mxu0 0
      %318 = vmatprep.subr.bf16.mxu0 0
      %319 = vmatpush1.bf16.msra.mxu0 0
      %320 = vmatprep.subr.bf16.mxu0 0
      %321 = vmatpush1.bf16.msra.mxu0 0
      %322 = vmatprep.subr.bf16.mxu0 0
      %323 = vmatpush1.bf16.msra.mxu0 0
      %324 = vmatprep.subr.bf16.mxu0 0
      %325 = vmatpush1.bf16.msra.mxu0 0
      %326 = vmatprep.subr.bf16.mxu0 0
      %327 = vmatpush1.bf16.msra.mxu0 0
      %328 = vmatprep.subr.bf16.mxu0 0
      %329 = vmatpush1.bf16.msra.mxu0 0
      %330 = vmatprep.subr.bf16.mxu0 0
      %331 = vmatpush1.bf16.msra.mxu0 0
      %332 = vmatprep.mubr.bf16.mxu0 0
      %333 = vmatmul.mubr.bf16.gmra.mrb[0].mxu0 %v298
      %v334 = vpop.f32.mrb[0].mxu0
      %v335 = vadd.f32 0.0, %v334
      %v336 = vpop.f32.mrb[0].mxu0
      %v337 = vpop.f32.mrb[0].mxu0
      %v338 = vpop.f32.mrb[0].mxu0
      %339 = vdwg.mxu0
      %v340 = vadd.f32 %v273, %v335
      %v341 = vld [vmem:[%s197] sm:$0xe]
      %s342 = scalar_lea.vmem %s203, 16
      %v343 = vld [vmem:[%s342] sm:$0xf]
      %v344 = vld [vmem:[%s342 + $0x4] sm:$0xf]
      %v346 = vunpack.c.l.b16 %v341
      %v347 = vpack.c.b16 %v282, %v346
      %v348 = vrot.slane %v347, 1
      %v351 = vunpack.c.l.b16 %v343
      %v352 = vunpack.c.l.b16 %v344
      %v353 = vpack.c.b16 %v352, %v351
      %v356 = vsel %vm229, %v348, 0
      %358 = vmatprep.subr.bf16.mxu0 0
      %359 = vmatpush1.bf16.msra.mxu0 %v353
      %360 = vmatprep.subr.bf16.mxu0 0
      %361 = vmatpush1.bf16.msra.mxu0 0
      %362 = vmatprep.subr.bf16.mxu0 0
      %363 = vmatpush1.bf16.msra.mxu0 0
      %364 = vmatprep.subr.bf16.mxu0 0
      %365 = vmatpush1.bf16.msra.mxu0 0
      %366 = vmatprep.subr.bf16.mxu0 0
      %367 = vmatpush1.bf16.msra.mxu0 0
      %368 = vmatprep.subr.bf16.mxu0 0
      %369 = vmatpush1.bf16.msra.mxu0 0
      %370 = vmatprep.subr.bf16.mxu0 0
      %371 = vmatpush1.bf16.msra.mxu0 0
      %372 = vmatprep.subr.bf16.mxu0 0
      %373 = vmatpush1.bf16.msra.mxu0 0
      %374 = vmatprep.subr.bf16.mxu0 0
      %375 = vmatpush1.bf16.msra.mxu0 0
      %376 = vmatprep.subr.bf16.mxu0 0
      %377 = vmatpush1.bf16.msra.mxu0 0
      %378 = vmatprep.subr.bf16.mxu0 0
      %379 = vmatpush1.bf16.msra.mxu0 0
      %380 = vmatprep.subr.bf16.mxu0 0
      %381 = vmatpush1.bf16.msra.mxu0 0
      %382 = vmatprep.subr.bf16.mxu0 0
      %383 = vmatpush1.bf16.msra.mxu0 0
      %384 = vmatprep.subr.bf16.mxu0 0
      %385 = vmatpush1.bf16.msra.mxu0 0
      %386 = vmatprep.subr.bf16.mxu0 0
      %387 = vmatpush1.bf16.msra.mxu0 0
      %388 = vmatprep.subr.bf16.mxu0 0
      %389 = vmatpush1.bf16.msra.mxu0 0
      %390 = vmatprep.mubr.bf16.mxu0 0
      %391 = vmatmul.mubr.bf16.gmra.mrb[0].mxu0 %v356
      %v392 = vpop.f32.mrb[0].mxu0
      %v393 = vadd.f32 0.0, %v392
      %v394 = vpop.f32.mrb[0].mxu0
      %v395 = vpop.f32.mrb[0].mxu0
      %v396 = vpop.f32.mrb[0].mxu0
      %397 = vdwg.mxu0
      %v398 = vadd.f32 %v340, %v393
      %v399 = vld [vmem:[%s197] sm:$0xc]
      %v400 = vld [vmem:[%s197 + $0x4] sm:$0x3]
      %s401 = scalar_lea.vmem %s203, 24
      %v402 = vld [vmem:[%s401] sm:$0xf]
      %v403 = vld [vmem:[%s401 + $0x4] sm:$0xf]
      %v406 = vunpack.c.l.b16 %v399
      %v407 = vunpack.c.l.b16 %v400
      %v408 = vpack.c.b16 %v407, %v406
      %v409 = vrot.slane %v408, 2
      %v412 = vunpack.c.l.b16 %v402
      %v413 = vunpack.c.l.b16 %v403
      %v414 = vpack.c.b16 %v413, %v412
      %v417 = vsel %vm229, %v409, 0
      %419 = vmatprep.subr.bf16.mxu0 0
      %420 = vmatpush1.bf16.msra.mxu0 %v414
      %421 = vmatprep.subr.bf16.mxu0 0
      %422 = vmatpush1.bf16.msra.mxu0 0
      %423 = vmatprep.subr.bf16.mxu0 0
      %424 = vmatpush1.bf16.msra.mxu0 0
      %425 = vmatprep.subr.bf16.mxu0 0
      %426 = vmatpush1.bf16.msra.mxu0 0
      %427 = vmatprep.subr.bf16.mxu0 0
      %428 = vmatpush1.bf16.msra.mxu0 0
      %429 = vmatprep.subr.bf16.mxu0 0
      %430 = vmatpush1.bf16.msra.mxu0 0
      %431 = vmatprep.subr.bf16.mxu0 0
      %432 = vmatpush1.bf16.msra.mxu0 0
      %433 = vmatprep.subr.bf16.mxu0 0
      %434 = vmatpush1.bf16.msra.mxu0 0
      %435 = vmatprep.subr.bf16.mxu0 0
      %436 = vmatpush1.bf16.msra.mxu0 0
      %437 = vmatprep.subr.bf16.mxu0 0
      %438 = vmatpush1.bf16.msra.mxu0 0
      %439 = vmatprep.subr.bf16.mxu0 0
      %440 = vmatpush1.bf16.msra.mxu0 0
      %441 = vmatprep.subr.bf16.mxu0 0
      %442 = vmatpush1.bf16.msra.mxu0 0
      %443 = vmatprep.subr.bf16.mxu0 0
      %444 = vmatpush1.bf16.msra.mxu0 0
      %445 = vmatprep.subr.bf16.mxu0 0
      %446 = vmatpush1.bf16.msra.mxu0 0
      %447 = vmatprep.subr.bf16.mxu0 0
      %448 = vmatpush1.bf16.msra.mxu0 0
      %449 = vmatprep.subr.bf16.mxu0 0
      %450 = vmatpush1.bf16.msra.mxu0 0
      %451 = vmatprep.mubr.bf16.mxu0 0
      %452 = vmatmul.mubr.bf16.gmra.mrb[0].mxu0 %v417
      %v453 = vpop.f32.mrb[0].mxu0
      %v454 = vadd.f32 0.0, %v453
      %v455 = vpop.f32.mrb[0].mxu0
      %v456 = vpop.f32.mrb[0].mxu0
      %v457 = vpop.f32.mrb[0].mxu0
      %458 = vdwg.mxu0
      %v459 = vadd.f32 %v398, %v454
      %v460 = vld [vmem:[%s197 + $0x4] sm:$0x7]
      %s461 = scalar_lea.vmem %s203, 32
      %v462 = vld [vmem:[%s461] sm:$0xf]
      %v463 = vld [vmem:[%s461 + $0x4] sm:$0xf]
      %v465 = vunpack.c.l.b16 %v460
      %v466 = vpack.c.b16 %v465, %v406
      %v468 = vshrl.u32 %v466, 16
      %v470 = vrot.slane %v468, 2
      %v471 = vshll.u32 %v466, 16
      %v473 = vrot.slane %v471, 3
      %v474 = vor.u32 %v470, %v473
      %v477 = vunpack.c.l.b16 %v462
      %v478 = vunpack.c.l.b16 %v463
      %v479 = vpack.c.b16 %v478, %v477
      %v482 = vsel %vm229, %v474, 0
      %484 = vmatprep.subr.bf16.mxu0 0
      %485 = vmatpush1.bf16.msra.mxu0 %v479
      %486 = vmatprep.subr.bf16.mxu0 0
      %487 = vmatpush1.bf16.msra.mxu0 0
      %488 = vmatprep.subr.bf16.mxu0 0
      %489 = vmatpush1.bf16.msra.mxu0 0
      %490 = vmatprep.subr.bf16.mxu0 0
      %491 = vmatpush1.bf16.msra.mxu0 0
      %492 = vmatprep.subr.bf16.mxu0 0
      %493 = vmatpush1.bf16.msra.mxu0 0
      %494 = vmatprep.subr.bf16.mxu0 0
      %495 = vmatpush1.bf16.msra.mxu0 0
      %496 = vmatprep.subr.bf16.mxu0 0
      %497 = vmatpush1.bf16.msra.mxu0 0
      %498 = vmatprep.subr.bf16.mxu0 0
      %499 = vmatpush1.bf16.msra.mxu0 0
      %500 = vmatprep.subr.bf16.mxu0 0
      %501 = vmatpush1.bf16.msra.mxu0 0
      %502 = vmatprep.subr.bf16.mxu0 0
      %503 = vmatpush1.bf16.msra.mxu0 0
      %504 = vmatprep.subr.bf16.mxu0 0
      %505 = vmatpush1.bf16.msra.mxu0 0
      %506 = vmatprep.subr.bf16.mxu0 0
      %507 = vmatpush1.bf16.msra.mxu0 0
      %508 = vmatprep.subr.bf16.mxu0 0
      %509 = vmatpush1.bf16.msra.mxu0 0
      %510 = vmatprep.subr.bf16.mxu0 0
      %511 = vmatpush1.bf16.msra.mxu0 0
      %512 = vmatprep.subr.bf16.mxu0 0
      %513 = vmatpush1.bf16.msra.mxu0 0
      %514 = vmatprep.subr.bf16.mxu0 0
      %515 = vmatpush1.bf16.msra.mxu0 0
      %516 = vmatprep.mubr.bf16.mxu0 0
      %517 = vmatmul.mubr.bf16.gmra.mrb[0].mxu0 %v482
      %v518 = vpop.f32.mrb[0].mxu0
      %v519 = vadd.f32 0.0, %v518
      %v520 = vpop.f32.mrb[0].mxu0
      %v521 = vpop.f32.mrb[0].mxu0
      %v522 = vpop.f32.mrb[0].mxu0
      %523 = vdwg.mxu0
      %v524 = vadd.f32 %v459, %v519
      %v525 = vld [vmem:[%s197] sm:$0x8]
      %s526 = scalar_lea.vmem %s203, 40
      %v527 = vld [vmem:[%s526] sm:$0xf]
      %v528 = vld [vmem:[%s526 + $0x4] sm:$0xf]
      %v530 = vunpack.c.l.b16 %v525
      %v531 = vpack.c.b16 %v465, %v530
      %v532 = vrot.slane %v531, 3
      %v535 = vunpack.c.l.b16 %v527
      %v536 = vunpack.c.l.b16 %v528
      %v537 = vpack.c.b16 %v536, %v535
      %v540 = vsel %vm229, %v532, 0
      %542 = vmatprep.subr.bf16.mxu0 0
      %543 = vmatpush1.bf16.msra.mxu0 %v537
      %544 = vmatprep.subr.bf16.mxu0 0
      %545 = vmatpush1.bf16.msra.mxu0 0
      %546 = vmatprep.subr.bf16.mxu0 0
      %547 = vmatpush1.bf16.msra.mxu0 0
      %548 = vmatprep.subr.bf16.mxu0 0
      %549 = vmatpush1.bf16.msra.mxu0 0
      %550 = vmatprep.subr.bf16.mxu0 0
      %551 = vmatpush1.bf16.msra.mxu0 0
      %552 = vmatprep.subr.bf16.mxu0 0
      %553 = vmatpush1.bf16.msra.mxu0 0
      %554 = vmatprep.subr.bf16.mxu0 0
      %555 = vmatpush1.bf16.msra.mxu0 0
      %556 = vmatprep.subr.bf16.mxu0 0
      %557 = vmatpush1.bf16.msra.mxu0 0
      %558 = vmatprep.subr.bf16.mxu0 0
      %559 = vmatpush1.bf16.msra.mxu0 0
      %560 = vmatprep.subr.bf16.mxu0 0
      %561 = vmatpush1.bf16.msra.mxu0 0
      %562 = vmatprep.subr.bf16.mxu0 0
      %563 = vmatpush1.bf16.msra.mxu0 0
      %564 = vmatprep.subr.bf16.mxu0 0
      %565 = vmatpush1.bf16.msra.mxu0 0
      %566 = vmatprep.subr.bf16.mxu0 0
      %567 = vmatpush1.bf16.msra.mxu0 0
      %568 = vmatprep.subr.bf16.mxu0 0
      %569 = vmatpush1.bf16.msra.mxu0 0
      %570 = vmatprep.subr.bf16.mxu0 0
      %571 = vmatpush1.bf16.msra.mxu0 0
      %572 = vmatprep.subr.bf16.mxu0 0
      %573 = vmatpush1.bf16.msra.mxu0 0
      %574 = vmatprep.mubr.bf16.mxu0 0
      %575 = vmatmul.mubr.bf16.gmra.mrb[0].mxu0 %v540
      %v576 = vpop.f32.mrb[0].mxu0
      %v577 = vadd.f32 0.0, %v576
      %v578 = vpop.f32.mrb[0].mxu0
      %v579 = vpop.f32.mrb[0].mxu0
      %v580 = vpop.f32.mrb[0].mxu0
      %581 = vdwg.mxu0
      %v582 = vadd.f32 %v524, %v577
      %v583 = vld [vmem:[%s197 + $0x4] sm:$0xf]
      %s584 = scalar_lea.vmem %s203, 48
      %v585 = vld [vmem:[%s584] sm:$0xf]
      %v586 = vld [vmem:[%s584 + $0x4] sm:$0xf]
      %v589 = vunpack.c.l.b16 %v585
      %v590 = vunpack.c.l.b16 %v586
      %v591 = vpack.c.b16 %v590, %v589
      %v594 = vsel %vm229, %v583, 0
      %596 = vmatprep.subr.bf16.mxu0 0
      %597 = vmatpush1.bf16.msra.mxu0 %v591
      %598 = vmatprep.subr.bf16.mxu0 0
      %599 = vmatpush1.bf16.msra.mxu0 0
      %600 = vmatprep.subr.bf16.mxu0 0
      %601 = vmatpush1.bf16.msra.mxu0 0
      %602 = vmatprep.subr.bf16.mxu0 0
      %603 = vmatpush1.bf16.msra.mxu0 0
      %604 = vmatprep.subr.bf16.mxu0 0
      %605 = vmatpush1.bf16.msra.mxu0 0
      %606 = vmatprep.subr.bf16.mxu0 0
      %607 = vmatpush1.bf16.msra.mxu0 0
      %608 = vmatprep.subr.bf16.mxu0 0
      %609 = vmatpush1.bf16.msra.mxu0 0
      %610 = vmatprep.subr.bf16.mxu0 0
      %611 = vmatpush1.bf16.msra.mxu0 0
      %612 = vmatprep.subr.bf16.mxu0 0
      %613 = vmatpush1.bf16.msra.mxu0 0
      %614 = vmatprep.subr.bf16.mxu0 0
      %615 = vmatpush1.bf16.msra.mxu0 0
      %616 = vmatprep.subr.bf16.mxu0 0
      %617 = vmatpush1.bf16.msra.mxu0 0
      %618 = vmatprep.subr.bf16.mxu0 0
      %619 = vmatpush1.bf16.msra.mxu0 0
      %620 = vmatprep.subr.bf16.mxu0 0
      %621 = vmatpush1.bf16.msra.mxu0 0
      %622 = vmatprep.subr.bf16.mxu0 0
      %623 = vmatpush1.bf16.msra.mxu0 0
      %624 = vmatprep.subr.bf16.mxu0 0
      %625 = vmatpush1.bf16.msra.mxu0 0
      %626 = vmatprep.subr.bf16.mxu0 0
      %627 = vmatpush1.bf16.msra.mxu0 0
      %628 = vmatprep.mubr.bf16.mxu0 0
      %629 = vmatmul.mubr.bf16.gmra.mrb[0].mxu0 %v594
      %v630 = vpop.f32.mrb[0].mxu0
      %v631 = vadd.f32 0.0, %v630
      %v632 = vpop.f32.mrb[0].mxu0
      %v633 = vpop.f32.mrb[0].mxu0
      %v634 = vpop.f32.mrb[0].mxu0
      %635 = vdwg.mxu0
      %v636 = vadd.f32 %v582, %v631
      %v637 = vld [vmem:[%s197 + $0x4] sm:$0xf]
      %v638 = vld [vmem:[%s197 + $0x8] sm:$0x1]
      %s639 = scalar_lea.vmem %s203, 56
      %v640 = vld [vmem:[%s639] sm:$0xf]
      %v641 = vld [vmem:[%s639 + $0x4] sm:$0xf]
      %v644 = vunpack.c.l.b16 %v637
      %v645 = vunpack.c.l.b16 %v638
      %v646 = vpack.c.b16 %v645, %v644
      %v648 = vshrl.u32 %v646, 16
      %v650 = vshll.u32 %v646, 16
      %v652 = vrot.slane %v650, 1
      %v653 = vor.u32 %v648, %v652
      %v656 = vunpack.c.l.b16 %v640
      %v657 = vunpack.c.l.b16 %v641
      %v658 = vpack.c.b16 %v657, %v656
      %v661 = vsel %vm229, %v653, 0
      %663 = vmatprep.subr.bf16.mxu0 0
      %664 = vmatpush1.bf16.msra.mxu0 %v658
      %665 = vmatprep.subr.bf16.mxu0 0
      %666 = vmatpush1.bf16.msra.mxu0 0
      %667 = vmatprep.subr.bf16.mxu0 0
      %668 = vmatpush1.bf16.msra.mxu0 0
      %669 = vmatprep.subr.bf16.mxu0 0
      %670 = vmatpush1.bf16.msra.mxu0 0
      %671 = vmatprep.subr.bf16.mxu0 0
      %672 = vmatpush1.bf16.msra.mxu0 0
      %673 = vmatprep.subr.bf16.mxu0 0
      %674 = vmatpush1.bf16.msra.mxu0 0
      %675 = vmatprep.subr.bf16.mxu0 0
      %676 = vmatpush1.bf16.msra.mxu0 0
      %677 = vmatprep.subr.bf16.mxu0 0
      %678 = vmatpush1.bf16.msra.mxu0 0
      %679 = vmatprep.subr.bf16.mxu0 0
      %680 = vmatpush1.bf16.msra.mxu0 0
      %681 = vmatprep.subr.bf16.mxu0 0
      %682 = vmatpush1.bf16.msra.mxu0 0
      %683 = vmatprep.subr.bf16.mxu0 0
      %684 = vmatpush1.bf16.msra.mxu0 0
      %685 = vmatprep.subr.bf16.mxu0 0
      %686 = vmatpush1.bf16.msra.mxu0 0
      %687 = vmatprep.subr.bf16.mxu0 0
      %688 = vmatpush1.bf16.msra.mxu0 0
      %689 = vmatprep.subr.bf16.mxu0 0
      %690 = vmatpush1.bf16.msra.mxu0 0
      %691 = vmatprep.subr.bf16.mxu0 0
      %692 = vmatpush1.bf16.msra.mxu0 0
      %693 = vmatprep.subr.bf16.mxu0 0
      %694 = vmatpush1.bf16.msra.mxu0 0
      %695 = vmatprep.mubr.bf16.mxu0 0
      %696 = vmatmul.mubr.bf16.gmra.mrb[0].mxu0 %v661
      %v697 = vpop.f32.mrb[0].mxu0
      %v698 = vadd.f32 0.0, %v697
      %v699 = vpop.f32.mrb[0].mxu0
      %v700 = vpop.f32.mrb[0].mxu0
      %v701 = vpop.f32.mrb[0].mxu0
      %702 = vdwg.mxu0
      %v703 = vadd.f32 %v636, %v698
      %v704 = vld [vmem:[%s197 + $0x4] sm:$0xe]
      %s705 = scalar_lea.vmem %s203, 64
      %v706 = vld [vmem:[%s705] sm:$0xf]
      %v707 = vld [vmem:[%s705 + $0x4] sm:$0xf]
      %v709 = vunpack.c.l.b16 %v704
      %v710 = vpack.c.b16 %v645, %v709
      %v711 = vrot.slane %v710, 1
      %v714 = vunpack.c.l.b16 %v706
      %v715 = vunpack.c.l.b16 %v707
      %v716 = vpack.c.b16 %v715, %v714
      %v719 = vsel %vm229, %v711, 0
      %721 = vmatprep.subr.bf16.mxu0 0
      %722 = vmatpush1.bf16.msra.mxu0 %v716
      %723 = vmatprep.subr.bf16.mxu0 0
      %724 = vmatpush1.bf16.msra.mxu0 0
      %725 = vmatprep.subr.bf16.mxu0 0
      %726 = vmatpush1.bf16.msra.mxu0 0
      %727 = vmatprep.subr.bf16.mxu0 0
      %728 = vmatpush1.bf16.msra.mxu0 0
      %729 = vmatprep.subr.bf16.mxu0 0
      %730 = vmatpush1.bf16.msra.mxu0 0
      %731 = vmatprep.subr.bf16.mxu0 0
      %732 = vmatpush1.bf16.msra.mxu0 0
      %733 = vmatprep.subr.bf16.mxu0 0
      %734 = vmatpush1.bf16.msra.mxu0 0
      %735 = vmatprep.subr.bf16.mxu0 0
      %736 = vmatpush1.bf16.msra.mxu0 0
      %737 = vmatprep.subr.bf16.mxu0 0
      %738 = vmatpush1.bf16.msra.mxu0 0
      %739 = vmatprep.subr.bf16.mxu0 0
      %740 = vmatpush1.bf16.msra.mxu0 0
      %741 = vmatprep.subr.bf16.mxu0 0
      %742 = vmatpush1.bf16.msra.mxu0 0
      %743 = vmatprep.subr.bf16.mxu0 0
      %744 = vmatpush1.bf16.msra.mxu0 0
      %745 = vmatprep.subr.bf16.mxu0 0
      %746 = vmatpush1.bf16.msra.mxu0 0
      %747 = vmatprep.subr.bf16.mxu0 0
      %748 = vmatpush1.bf16.msra.mxu0 0
      %749 = vmatprep.subr.bf16.mxu0 0
      %750 = vmatpush1.bf16.msra.mxu0 0
      %751 = vmatprep.subr.bf16.mxu0 0
      %752 = vmatpush1.bf16.msra.mxu0 0
      %753 = vmatprep.mubr.bf16.mxu0 0
      %754 = vmatmul.mubr.bf16.gmra.mrb[0].mxu0 %v719
      %v755 = vpop.f32.mrb[0].mxu0
      %v756 = vadd.f32 0.0, %v755
      %v757 = vpop.f32.mrb[0].mxu0
      %v758 = vpop.f32.mrb[0].mxu0
      %v759 = vpop.f32.mrb[0].mxu0
      %760 = vdwg.mxu0
      %v761 = vadd.f32 %v703, %v756
      %vm762 = vcmask 64512
      %763 = vst.msk [vmem:[#allocation2] sm:$0xff] %vm762, %v761
      %p764 = scmp.eq.s32.totalorder %s20, 2
      // Predicated region
      $region33: #{densenet_mm_forward.49} parent=27 // pred_check
        %p765 = pneg %p764
      $region34: #{densenet_mm_forward.49} parent=27 // pred_check_branch
        %767 = sbr.rel (%p765) target = $region36
      $region35: #{densenet_mm_forward.49} parent=27 // pred_region
        %v768 = vpack.c.bf16 %v761, %v761
        %vm769 = vcmask 60416
        %770 = vst.msk [vmem:[%s211] sm:$0xf] %vm769, %v768
      $region36: #{densenet_mm_forward.49} parent=27 // pred_fallthru
        _
      %p771 = scmp.lt.s32.totalorder %s18, 1
      %s772 = scalar_select %p771, %s18, 1
      %p773 = scmp.lt.s32.totalorder %s19, 1
      %s774 = scalar_select %p773, %s19, 1
      %s775 = smul.addr %s772, 2
      %s776 = sadd.s32 %s774, %s775
      %s777 = smul.addr %s776, 4
      %s778 = scalar_lea.vmem %s2, %s777
      // Predicated region
      $region37: #{densenet_mm_forward.49} parent=27 // pred_check
        %p779 = pneg %p108
      $region38: #{densenet_mm_forward.49} parent=27 // pred_check_branch
        %781 = sbr.rel (%p779) target = $region40
      $region39: #{densenet_mm_forward.49} parent=27 // pred_region
        _
      $region40: #{densenet_mm_forward.49} parent=27 // pred_fallthru
        _
    $region28: #{densenet_mm_forward.49} parent=5 // pred_fallthru
      _
    %p782 = scmp.le.s32.totalorder 2, %s8
    // Predicated region
    $region41: #{densenet_mm_forward.49} parent=5 // pred_check
      %p783 = pneg %p782
    $region42: #{densenet_mm_forward.49} parent=5 // pred_check_branch
      %785 = sbr.rel (%p783) target = $region44
    $region43: #{densenet_mm_forward.49} parent=5 // pred_region
      %s786 = ssub.s32 %s8, 2
      // Predicated region
      $region45: #{densenet_mm_forward.49} parent=43 // pred_check
        %p787 = pneg %p114
      $region46: #{densenet_mm_forward.49} parent=43 // pred_check_branch
        %789 = sbr.rel (%p787) target = $region48
      $region47: #{densenet_mm_forward.49} parent=43 // pred_region
        %p790 = scmp.lt.s32.totalorder %s21, 1
        %s791 = scalar_select %p790, %s21, 1
        %p792 = scmp.lt.s32.totalorder %s22, 1
        %s793 = scalar_select %p792, %s22, 1
        %s794 = smul.addr %s791, 2
        %s795 = sadd.s32 %s793, %s794
        %s796 = smul.addr %s795, 4
        %s797 = scalar_lea.vmem %s2, %s796
      $region48: #{densenet_mm_forward.49} parent=43 // pred_fallthru
        _
    $region44: #{densenet_mm_forward.49} parent=5 // pred_fallthru
      _
  $region6: #{densenet_mm_forward.49} parent=0 // loop_footer
    %s12 = sadd.s32 1, %s8
  $region7: #{densenet_mm_forward.49} parent=0 // loop_footer_branch
    %7 = sbr.rel target = $region3
  $region8: #{densenet_mm_forward.49} parent=0 // loop_exit
    _

// kernel: densenet_mm_forward.53
$region0: #{densenet_mm_forward.53}
  #allocation0 [shape = 'u32[]', space=smem, size = 0x4, offset = 0x4, fixed_abs, tag = 'smem constant byte address 0x4 - core index']
  #allocation1 [shape = 'u32[144,128]{1,0:T(1,128)}', space=vmem, size = 0x12000, scoped, tag = 'internal scratch']
  %s0 = inlined_call_operand.vmem [shape: f32[2,32], index: 0, kind: input, shape index: {}]
  %s1 = inlined_call_operand.vmem [shape: f32[32,3], index: 1, kind: input, shape index: {}]
  %s2 = inlined_call_operand.vmem [shape: f32[1,3], index: 2, kind: input, shape index: {}]
  %s3 = inlined_call_operand.hbm [shape: f32[2,3], index: 3, kind: output, shape index: {}]
  %s4 = sld [smem:[#allocation0]]
  $region22: #{densenet_mm_forward.53} parent=0
    _
  %s6 = ssub.s32 1, %s4
  %s7 = scalar_select 0, %s6, %s4
  $region1: #{densenet_mm_forward.53} parent=0
    #allocation2 [shape = 'u8[1024]{0}', space=vmem, size = 0x400, scoped, tag = 'output window, operand 0, single buffered']
    #allocation3 [shape = 's32[1]{0}', space=sflag, size = 0x4, scoped, tag = 'scoped memory for densenet_mm_forward.53']
    %8 = vsyncpa [#allocation3], 0
    // Predicated region
    $region2: #{densenet_mm_forward.53} parent=1 // pred_check
      _
    $region3: #{densenet_mm_forward.53} parent=1 // pred_check_branch
      %10 = sbr.rel (0) target = $region5
    $region4: #{densenet_mm_forward.53} parent=1 // pred_region
      _
    $region5: #{densenet_mm_forward.53} parent=1 // pred_fallthru
      _
    // Predicated region
    $region6: #{densenet_mm_forward.53} parent=1 // pred_check
      _
    $region7: #{densenet_mm_forward.53} parent=1 // pred_check_branch
      %12 = sbr.rel (0) target = $region9
    $region8: #{densenet_mm_forward.53} parent=1 // pred_region
      _
    $region9: #{densenet_mm_forward.53} parent=1 // pred_fallthru
      _
    // Predicated region
    $region10: #{densenet_mm_forward.53} parent=1 // pred_check
      _
    $region11: #{densenet_mm_forward.53} parent=1 // pred_check_branch
      %14 = sbr.rel (0) target = $region13
    $region12: #{densenet_mm_forward.53} parent=1 // pred_region
      _
    $region13: #{densenet_mm_forward.53} parent=1 // pred_fallthru
      _
    %v15 = vld [vmem:[%s0] sm:$0x3]
    %v16 = vmax.f32 %v15, 0.0
    %v17 = vmul.f32 %v16, %v16
    %vm18 = vcmask 254976
    %v19 = vsel %vm18, %v17, 0.0
    %20 = vadd.xlane.f32.xlu0 %v19
    %v21 = vpop.xlane.xlu0 %20
    %v22 = vmax.f32 %v21, 1e-24
    %v23 = vrsqrt.pop %v22
    %v24 = vmul.f32 %v16, %v23
    %v25 = vld [vmem:[%s1] sm:$0xff]
    %v26 = vld [vmem:[%s1 + $0x8] sm:$0xff]
    %v27 = vld [vmem:[%s1 + $0x10] sm:$0xff]
    %v28 = vld [vmem:[%s1 + $0x18] sm:$0xff]
    %v29 = vld [vmem:[%s2] sm:$0x1]
    %v31 = vlaneseq
    %v32 = vshrl.u32 %v31, 7
    %v33 = vsub.s32 0, %v32
    %v34 = vrot.slane %v29, %v33
    %vm36 = vcmask 261120
    %v38 = vsel %vm36, %v24, 0
    %40 = vmatprep.subr.mxu0 0.0
    %41 = vmatpush1.msra.mxu0 %v25
    %42 = vmatprep.subr.mxu0 0.0
    %43 = vmatpush1.msra.mxu0 %v26
    %44 = vmatprep.subr.mxu0 0.0
    %45 = vmatpush1.msra.mxu0 %v27
    %46 = vmatprep.subr.mxu0 0.0
    %47 = vmatpush1.msra.mxu0 %v28
    %48 = vmatprep.subr.mxu0 0.0
    %49 = vmatpush1.msra.mxu0 0.0
    %50 = vmatprep.subr.mxu0 0.0
    %51 = vmatpush1.msra.mxu0 0.0
    %52 = vmatprep.subr.mxu0 0.0
    %53 = vmatpush1.msra.mxu0 0.0
    %54 = vmatprep.subr.mxu0 0.0
    %55 = vmatpush1.msra.mxu0 0.0
    %56 = vmatprep.subr.mxu0 0.0
    %57 = vmatpush1.msra.mxu0 0.0
    %58 = vmatprep.subr.mxu0 0.0
    %59 = vmatpush1.msra.mxu0 0.0
    %60 = vmatprep.subr.mxu0 0.0
    %61 = vmatpush1.msra.mxu0 0.0
    %62 = vmatprep.subr.mxu0 0.0
    %63 = vmatpush1.msra.mxu0 0.0
    %64 = vmatprep.subr.mxu0 0.0
    %65 = vmatpush1.msra.mxu0 0.0
    %66 = vmatprep.subr.mxu0 0.0
    %67 = vmatpush1.msra.mxu0 0.0
    %68 = vmatprep.subr.mxu0 0.0
    %69 = vmatpush1.msra.mxu0 0.0
    %70 = vmatprep.subr.mxu0 0.0
    %71 = vmatpush1.msra.mxu0 0.0
    %72 = vmatprep.subr.mxu0 0.0
    %73 = vmatpush1.msra.mxu0 0.0
    %74 = vmatprep.subr.mxu0 0.0
    %75 = vmatpush1.msra.mxu0 0.0
    %76 = vmatprep.subr.mxu0 0.0
    %77 = vmatpush1.msra.mxu0 0.0
    %78 = vmatprep.subr.mxu0 0.0
    %79 = vmatpush1.msra.mxu0 0.0
    %80 = vmatprep.subr.mxu0 0.0
    %81 = vmatpush1.msra.mxu0 0.0
    %82 = vmatprep.subr.mxu0 0.0
    %83 = vmatpush1.msra.mxu0 0.0
    %84 = vmatprep.subr.mxu0 0.0
    %85 = vmatpush1.msra.mxu0 0.0
    %86 = vmatprep.subr.mxu0 0.0
    %87 = vmatpush1.msra.mxu0 0.0
    %88 = vmatprep.subr.mxu0 0.0
    %89 = vmatpush1.msra.mxu0 0.0
    %90 = vmatprep.subr.mxu0 0.0
    %91 = vmatpush1.msra.mxu0 0.0
    %92 = vmatprep.subr.mxu0 0.0
    %93 = vmatpush1.msra.mxu0 0.0
    %94 = vmatprep.subr.mxu0 0.0
    %95 = vmatpush1.msra.mxu0 0.0
    %96 = vmatprep.subr.mxu0 0.0
    %97 = vmatpush1.msra.mxu0 0.0
    %98 = vmatprep.subr.mxu0 0.0
    %99 = vmatpush1.msra.mxu0 0.0
    %100 = vmatprep.subr.mxu0 0.0
    %101 = vmatpush1.msra.mxu0 0.0
    %102 = vmatprep.subr.mxu0 0.0
    %103 = vmatpush1.msra.mxu0 0.0
    %104 = vmatprep.mubr.f32.mxu0 0.0
    %105 = vmatmul.mubr.f32.gmra.mrb[0].mxu0 %v38
    %v106 = vpop.f32.mrb[0].mxu0
    %v107 = vadd.f32 %v34, %v106
    %v108 = vpop.f32.mrb[0].mxu0
    %109 = vdwg.mxu0
    %v110 = vmul.f32 %v107, %v107
    %vm111 = vcmask 17408
    %v112 = vsel %vm111, %v110, 0.0
    %113 = vadd.xlane.f32.xlu0 %v112
    %v114 = vpop.xlane.xlu0 %113
    %v115 = vmax.f32 %v114, 1e-24
    %v116 = vrsqrt.pop %v115
    %v117 = vmul.f32 %v107, %v116
    %118 = vst.msk [vmem:[#allocation2] sm:$0x3] %vm111, %v117
    // Predicated region
    $region14: #{densenet_mm_forward.53} parent=1 // pred_check
      _
    $region15: #{densenet_mm_forward.53} parent=1 // pred_check_branch
      %120 = sbr.rel (0) target = $region17
    $region16: #{densenet_mm_forward.53} parent=1 // pred_region
      %s122 = ssub.s32 32, 32
      %123 = vsyncadd [#allocation3], %s122
      %s125 = sshll.u32 [#allocation2], 4
      %s126 = int_to_ptr.vmem [resolvable:$true] %s125
      %128 = dma.vmem_to_hbm [thread:$0]  %s126, 32, %s3, [#allocation3]
    $region17: #{densenet_mm_forward.53} parent=1 // pred_fallthru
      _
    // Predicated region
    $region18: #{densenet_mm_forward.53} parent=1 // pred_check
      _
    $region19: #{densenet_mm_forward.53} parent=1 // pred_check_branch
      %130 = sbr.rel (0) target = $region21
    $region20: #{densenet_mm_forward.53} parent=1 // pred_region
      %131 = dma.done [#allocation3], 32
    $region21: #{densenet_mm_forward.53} parent=1 // pred_fallthru
      _
    %132 = vsyncpa [#allocation3], 1

// kernel: densenet_mm_forward.52
$region0: #{densenet_mm_forward.52}
  #allocation0 [shape = 'u32[]', space=smem, size = 0x4, offset = 0x4, fixed_abs, tag = 'smem constant byte address 0x4 - core index']
  #allocation1 [shape = 'u32[144,128]{1,0:T(1,128)}', space=vmem, size = 0x12000, scoped, tag = 'internal scratch']
  %s0 = inlined_call_operand.vmem [shape: bf16[2,8,32], index: 0, kind: input, shape index: {}]
  %s1 = inlined_call_operand.vmem [shape: f32[1,32], index: 1, kind: input, shape index: {}]
  %s2 = inlined_call_operand.vmem [shape: f32[1,32], index: 2, kind: input, shape index: {}]
  %s3 = inlined_call_operand.vmem [shape: f32[2,32], index: 3, kind: output, shape index: {}]
  %s4 = sld [smem:[#allocation0]]
  $region22: #{densenet_mm_forward.52} parent=0
    _
  %s6 = ssub.s32 1, %s4
  %s7 = scalar_select 0, %s6, %s4
  // Predicated region
  $region2: #{densenet_mm_forward.52} parent=0 // pred_check
    _
  $region3: #{densenet_mm_forward.52} parent=0 // pred_check_branch
    %9 = sbr.rel (0) target = $region5
  $region4: #{densenet_mm_forward.52} parent=0 // pred_region
    _
  $region5: #{densenet_mm_forward.52} parent=0 // pred_fallthru
    _
  // Predicated region
  $region6: #{densenet_mm_forward.52} parent=0 // pred_check
    _
  $region7: #{densenet_mm_forward.52} parent=0 // pred_check_branch
    %11 = sbr.rel (0) target = $region9
  $region8: #{densenet_mm_forward.52} parent=0 // pred_region
    _
  $region9: #{densenet_mm_forward.52} parent=0 // pred_fallthru
    _
  // Predicated region
  $region10: #{densenet_mm_forward.52} parent=0 // pred_check
    _
  $region11: #{densenet_mm_forward.52} parent=0 // pred_check_branch
    %13 = sbr.rel (0) target = $region13
  $region12: #{densenet_mm_forward.52} parent=0 // pred_region
    _
  $region13: #{densenet_mm_forward.52} parent=0 // pred_fallthru
    _
  %v14 = vld [vmem:[%s0] sm:$0xf]
  %v15 = vld [vmem:[%s0 + $0x4] sm:$0xf]
  %v16 = vunpack.c.l.bf16 %v14
  %v17 = vunpack.c.l.bf16 %v15
  %vm18 = vcmask 261120
  %v19 = vsel %vm18, %v16, 0.0
  %v20 = vrot.slane %v19, 4
  %v21 = vadd.f32 %v19, %v20
  %v22 = vrot.slane %v21, 2
  %v23 = vadd.f32 %v21, %v22
  %v24 = vrot.slane %v23, 1
  %v25 = vadd.f32 %v23, %v24
  %v26 = vsel %vm18, %v17, 0.0
  %v27 = vrot.slane %v26, 4
  %v28 = vadd.f32 %v26, %v27
  %v29 = vrot.slane %v28, 2
  %v30 = vadd.f32 %v28, %v29
  %v31 = vrot.slane %v30, 1
  %v32 = vadd.f32 %v30, %v31
  %v33 = vrcp.pop 8.0
  %v34 = vmul.f32 %v25, %v33
  %v35 = vmul.f32 %v32, %v33
  %v36 = vld [vmem:[%s1] sm:$0x1]
  %v38 = vlaneseq
  %v39 = vshrl.u32 %v38, 7
  %v40 = vsub.s32 0, %v39
  %v41 = vrot.slane %v36, %v40
  %v43 = vmul.f32 %v34, %v41
  %v44 = vmul.f32 %v35, %v41
  %v45 = vld [vmem:[%s2] sm:$0x1]
  %v47 = vlaneseq
  %v48 = vshrl.u32 %v47, 7
  %v49 = vsub.s32 0, %v48
  %v50 = vrot.slane %v45, %v49
  %v52 = vadd.f32 %v43, %v50
  %v53 = vadd.f32 %v44, %v50
  %v56 = vrot.slane %v53, 7
  %vm57 = vcmask 1041409
  %v58 = vsel %vm57, %v56, %v52
  %vm60 = vcmask 254976
  %61 = vst.msk [vmem:[%s3] sm:$0x3] %vm60, %v58
  // Predicated region
  $region14: #{densenet_mm_forward.52} parent=0 // pred_check
    _
  $region15: #{densenet_mm_forward.52} parent=0 // pred_check_branch
    %63 = sbr.rel (0) target = $region17
  $region16: #{densenet_mm_forward.52} parent=0 // pred_region
    _
  $region17: #{densenet_mm_forward.52} parent=0 // pred_fallthru
    _
  // Predicated region
  $region18: #{densenet_mm_forward.52} parent=0 // pred_check
    _
  $region19: #{densenet_mm_forward.52} parent=0 // pred_check_branch
    %65 = sbr.rel (0) target = $region21
  $region20: #{densenet_mm_forward.52} parent=0 // pred_region
    _
  $region21: #{densenet_mm_forward.52} parent=0 // pred_fallthru
    _

</llo_original>
